<compile_context>
chip_gen: v7x
topology: tpu7x:2x2x1
jax: 0.10.0
libtpu: 0.0.40
codegen_flags: <defaults>
</compile_context>

<pallas_src>
import functools
import math

import jax
import jax.numpy as jnp
from jax.experimental import pallas as pl
from jax.experimental.pallas import tpu as pltpu


# ----------------------------------------------------------------------------
# Fixed DTCWT filter banks (deterministic, defined in-script).
# ----------------------------------------------------------------------------
H0O = (-0.05, 0.25, 0.6, 0.25, -0.05)
_G0O = (-3.0 / 280, -3.0 / 56, 73.0 / 280, 17.0 / 28, 73.0 / 280, -3.0 / 56, -3.0 / 280)
H1O = tuple(((-1.0) ** k) * g for k, g in enumerate(_G0O))          # level-1 highpass

_S3 = math.sqrt(3.0)
_D = 4.0 * math.sqrt(2.0)
H0A = ((1 + _S3) / _D, (3 + _S3) / _D, (3 - _S3) / _D, (1 - _S3) / _D)  # tree a lowpass
H0B = tuple(reversed(H0A))                                               # tree b lowpass
H1A = tuple(((-1.0) ** k) * h for k, h in enumerate(reversed(H0A)))      # tree a highpass
H1B = tuple(reversed(H1A))                                               # tree b highpass

_INV_SQRT2 = 1.0 / math.sqrt(2.0)   # murenn DTCWT(normalize=True) per-level scaling

_VMEM_LIMIT = 48 * 1024 * 1024      # fits v5e/v6e/v7x (v7x physical VMEM = 64 MiB)
_ROW_BUDGET = 8 * 1024 * 1024       # per-stage VMEM budget used to size row blocks


def _pad_mode(padding_mode):
    return "symmetric" if padding_mode == "symmetric" else "constant"


def _row_block(rows, lane_elems):
    """Largest row block that divides `rows`, is a multiple of 8 and keeps the
    double-buffered f32 tile set under _ROW_BUDGET; full extent otherwise."""
    if rows % 8 != 0:
        return rows
    per_row = 8 * max(lane_elems, 1)            # 4 bytes * double buffer
    cap = max(8, min(rows, (_ROW_BUDGET // per_row) // 8 * 8))
    rb = cap
    while rows % rb != 0:
        rb -= 8
    return rb


def _split_phases(x2d, pad_l, pad_r, mode):
    """Pad along the last axis, then return the (even, odd) polyphase arrays."""
    xp = jnp.pad(x2d, ((0, 0), (pad_l, pad_r)), mode=mode)
    return xp[:, 0::2], xp[:, 1::2]


def _interleave(a, b):
    return jnp.stack([a, b], axis=-1).reshape(*a.shape[:-1], a.shape[-1] * 2)


# ----------------------------------------------------------------------------
# Pallas kernel 1: fused polyphase FIR bank.
# One call computes every decimated output of a DTCWT level (lowpass even/odd
# phases and/or bandpass real/imag for both trees) from the even/odd phases of
# the padded input(s).  All per-tap reads are shifted window loads from Refs.
# ----------------------------------------------------------------------------
def _make_polyfir_kernel(n_pairs, out_defs, n_out):
    """out_defs: tuple of (pair_idx, taps, phase, offset, scale); output o is
         out[m] = scale * sum_t taps[t] * xpad[2*m + phase + offset + t]
    where xpad is the padded full-rate signal whose even/odd phase arrays are
    kernel inputs 2*pair_idx and 2*pair_idx + 1."""
    def kernel(*refs):
        in_refs = refs[:2 * n_pairs]
        out_refs = refs[2 * n_pairs:]
        for o_ref, (pidx, taps, phase, offset, scale) in zip(out_refs, out_defs):
            xe_ref = in_refs[2 * pidx]
            xo_ref = in_refs[2 * pidx + 1]
            acc = jnp.zeros(o_ref.shape, jnp.float32)
            for t, w in enumerate(taps):                 # static unroll over taps
                pos = phase + offset + t
                src = xe_ref if pos % 2 == 0 else xo_ref
                acc = acc + (float(w) * scale) * src[:, pl.ds(pos // 2, n_out)]
            o_ref[...] = acc
    return kernel


def _polyfir(pairs, out_defs, n_out):
    """Run the fused polyphase FIR bank. pairs: list of (xe, xo), each (R, Lp)."""
    rows = pairs[0][0].shape[0]
    flat_in = [a for pair in pairs for a in pair]
    lane_elems = sum(a.shape[1] for a in flat_in) + n_out * len(out_defs)
    rb = _row_block(rows, lane_elems)
    kernel = _make_polyfir_kernel(len(pairs), tuple(out_defs), n_out)
    in_specs = [pl.BlockSpec((rb, a.shape[1]), lambda i: (i, 0)) for a in flat_in]
    out_specs = tuple(pl.BlockSpec((rb, n_out), lambda i: (i, 0)) for _ in out_defs)
    out_shape = tuple(jax.ShapeDtypeStruct((rows, n_out), jnp.float32)
                      for _ in out_defs)
    outs = pl.pallas_call(
        kernel,
        out_shape=out_shape,
        grid=(rows // rb,),
        in_specs=in_specs,
        out_specs=out_specs,
        compiler_params=pltpu.CompilerParams(
            dimension_semantics=("parallel",),
            vmem_limit_bytes=_VMEM_LIMIT),
    )(*flat_in)
    return list(outs)


# ----------------------------------------------------------------------------
# Pallas kernel 2: grouped Conv1d (groups=C, Q filters/channel, 'same' zero pad,
# no bias) on real & imag + stable modulus + level-1 "down" lowpass, fused.
# The conv is evaluated in polyphase form (even/odd output positions) from the
# phase-split padded inputs, so the 5-tap H0O lowpass only needs a 1-sample
# halo, realized through a small VMEM scratch.  No Q-fold input replication:
# the (C, n) window is broadcast across the leading Q dim inside the kernel.
# ----------------------------------------------------------------------------
def _conv_mod_down_kernel(xre_ref, xro_ref, xie_ref, xio_ref, w_ref,
                          oa_ref, ob_ref, ue_s, uo_s, *,
                          n_half, ktaps, symmetric):
    w = w_ref[...]                                       # (Q, C, K)
    q, c, _ = w.shape
    cr_e = jnp.zeros((q, c, n_half), jnp.float32)
    ci_e = jnp.zeros((q, c, n_half), jnp.float32)
    cr_o = jnp.zeros((q, c, n_half), jnp.float32)
    ci_o = jnp.zeros((q, c, n_half), jnp.float32)
    for t in range(ktaps):                               # static unroll over taps
        wt = w[:, :, t:t + 1]                            # (Q, C, 1)
        # even output positions: padded index 2m + t
        sre = xre_ref if t % 2 == 0 else xro_ref
        sie = xie_ref if t % 2 == 0 else xio_ref
        off_e = t // 2
        cr_e = cr_e + wt * sre[0, :, pl.ds(off_e, n_half)][None, :, :]
        ci_e = ci_e + wt * sie[0, :, pl.ds(off_e, n_half)][None, :, :]
        # odd output positions: padded index 2m + 1 + t
        sro = xro_ref if t % 2 == 0 else xre_ref
        sio = xio_ref if t % 2 == 0 else xie_ref
        off_o = (t + 1) // 2
        cr_o = cr_o + wt * sro[0, :, pl.ds(off_o, n_half)][None, :, :]
        ci_o = ci_o + wt * sio[0, :, pl.ds(off_o, n_half)][None, :, :]
    # ModulusStable.forward: sqrt(r^2 + i^2), at even / odd conv positions
    u_e = jnp.sqrt(cr_e * cr_e + ci_e * ci_e)            # (Q, C, n_half)
    u_o = jnp.sqrt(cr_o * cr_o + ci_o * ci_o)
    # level-1 down lowpass (5-tap H0O, 'same' pad) via a 1-sample halo scratch:
    # ue_s[i] == u_e[i-1] == u[2*(i-1)], uo_s[i] == u_o[i-1] == u[2*(i-1)+1]
    ue_s[:, :, pl.ds(1, n_half)] = u_e
    uo_s[:, :, pl.ds(1, n_half)] = u_o
    if symmetric:
        ue_s[:, :, 0:1] = u_o[:, :, 0:1]                               # u[-2] = u[1]
        uo_s[:, :, 0:1] = u_e[:, :, 0:1]                               # u[-1] = u[0]
        ue_s[:, :, n_half + 1:n_half + 2] = u_o[:, :, n_half - 1:n_half]  # u[n] = u[n-1]
        uo_s[:, :, n_half + 1:n_half + 2] = u_e[:, :, n_half - 1:n_half]  # u[n+1] = u[n-2]
    else:
        zcol = jnp.zeros((q, c, 1), jnp.float32)
        ue_s[:, :, 0:1] = zcol
        uo_s[:, :, 0:1] = zcol
        ue_s[:, :, n_half + 1:n_half + 2] = zcol
        uo_s[:, :, n_half + 1:n_half + 2] = zcol
    ue_m1 = ue_s[:, :, pl.ds(0, n_half)]                 # u_e[m-1]
    uo_m1 = uo_s[:, :, pl.ds(0, n_half)]                 # u_o[m-1]
    ue_p1 = ue_s[:, :, pl.ds(2, n_half)]                 # u_e[m+1]
    uo_p1 = uo_s[:, :, pl.ds(2, n_half)]                 # u_o[m+1]
    h0, h1, h2, h3, h4 = (float(h) for h in H0O)
    # lo_d[2m]   and lo_d[2m+1] of the 'same'-padded H0O filter applied to u
    oa_ref[0] = h0 * ue_m1 + h1 * uo_m1 + h2 * u_e + h3 * u_o + h4 * ue_p1
    ob_ref[0] = h0 * uo_m1 + h1 * u_e + h2 * u_o + h3 * ue_p1 + h4 * uo_p1


def grouped_conv_modulus_down(xr, xi, wqck, mode):
    """xr, xi: (B, C, N); wqck: (Q, C, K) with wqck[q, c] = torch out-channel c*Q+q.
    Returns (lo_a, lo_b), each (B, Q, C, N//2): even / odd polyphase components of
    the level-1 down lowpass of ModulusStable(conv(xr), conv(xi))."""
    b, c, n = xr.shape
    q, _, k = wqck.shape
    assert n % 2 == 0
    n_half = n // 2
    pad_l = (k - 1) // 2
    pad_r = (k - 1) - pad_l
    pad_r += (n + k - 1) % 2          # make the padded length even (extra zero unused)
    xr_p = jnp.pad(xr, ((0, 0), (0, 0), (pad_l, pad_r)))   # zero padding ('same' conv)
    xi_p = jnp.pad(xi, ((0, 0), (0, 0), (pad_l, pad_r)))
    xre, xro = xr_p[..., 0::2], xr_p[..., 1::2]
    xie, xio = xi_p[..., 0::2], xi_p[..., 1::2]
    lh = xre.shape[-1]
    kernel = functools.partial(_conv_mod_down_kernel, n_half=n_half, ktaps=k,
                               symmetric=(mode == "symmetric"))
    return pl.pallas_call(
        kernel,
        out_shape=(jax.ShapeDtypeStruct((b, q, c, n_half), jnp.float32),
                   jax.ShapeDtypeStruct((b, q, c, n_half), jnp.float32)),
        grid=(b,),
        in_specs=[
            pl.BlockSpec((1, c, lh), lambda i: (i, 0, 0)),
            pl.BlockSpec((1, c, lh), lambda i: (i, 0, 0)),
            pl.BlockSpec((1, c, lh), lambda i: (i, 0, 0)),
            pl.BlockSpec((1, c, lh), lambda i: (i, 0, 0)),
            pl.BlockSpec((q, c, k), lambda i: (0, 0, 0)),
        ],
        out_specs=(pl.BlockSpec((1, q, c, n_half), lambda i: (i, 0, 0, 0)),
                   pl.BlockSpec((1, q, c, n_half), lambda i: (i, 0, 0, 0))),
        scratch_shapes=[pltpu.VMEM((q, c, n_half + 2), jnp.float32),
                        pltpu.VMEM((q, c, n_half + 2), jnp.float32)],
        compiler_params=pltpu.CompilerParams(
            dimension_semantics=("parallel",),
            vmem_limit_bytes=_VMEM_LIMIT),
    )(xre, xro, xie, xio, wqck)


# ----------------------------------------------------------------------------
# DTCWT analysis (bandpass only) and the remaining levels of the lowpass-only
# "down" cascade, built on the fused polyphase kernel.  One pallas_call per
# level, one pad per level.
# ----------------------------------------------------------------------------
def dtcwt_forward_bandpass(x, levels, mode):
    """Returns [(real_j, imag_j)] for j in range(levels); the analysis lowpass
    is skipped at the final level because MuReNNDirect discards it."""
    b, c, t = x.shape
    x2 = x.reshape(b * c, t).astype(jnp.float32)
    n1 = t // 2
    xe, xo = _split_phases(x2, 3, 3, mode)       # shared pad for the (5,7)-tap pair
    defs = [(0, H1O, 0, 0, 1.0),                 # bandpass real = hi[0::2]
            (0, H1O, 1, 0, 1.0)]                 # bandpass imag = hi[1::2]
    if levels > 1:
        defs += [(0, H0O, 0, 1, 1.0),            # lowpass even phase (offset 3-2=1)
                 (0, H0O, 1, 1, 1.0)]            # lowpass odd phase
    outs = _polyfir([(xe, xo)], defs, n1)
    bps = [(outs[0].reshape(b, c, n1), outs[1].reshape(b, c, n1))]
    lo_a, lo_b = (outs[2], outs[3]) if levels > 1 else (None, None)
    for lev in range(1, levels):
        nl = lo_a.shape[-1] // 2
        ae, ao = _split_phases(lo_a, 1, 3, mode)
        be, bo = _split_phases(lo_b, 1, 3, mode)
        last = lev == levels - 1
        defs = [(0, H1A, 0, 0, _INV_SQRT2),
                (1, H1B, 0, 0, _INV_SQRT2)]
        if not last:                             # lowpass unused after last level
            defs += [(0, H0A, 0, 0, _INV_SQRT2),
                     (1, H0B, 0, 0, _INV_SQRT2)]
        outs = _polyfir([(ae, ao), (be, bo)], defs, nl)
        bps.append((outs[0].reshape(b, c, nl), outs[1].reshape(b, c, nl)))
        if not last:
            lo_a, lo_b = outs[2], outs[3]
    return bps


def _lowpass_cascade_from_phases(lo_a, lo_b, extra_levels, mode):
    """Remaining levels (2..) of the skip_hps=True transform, starting from the
    even/odd phases of the level-1 lowpass.  Returns the full-rate lowpass of
    the deepest level (interleaved trees)."""
    for _ in range(extra_levels):
        nl = lo_a.shape[-1] // 2
        ae, ao = _split_phases(lo_a, 1, 3, mode)
        be, bo = _split_phases(lo_b, 1, 3, mode)
        lo_a, lo_b = _polyfir([(ae, ao), (be, bo)],
                              [(0, H0A, 0, 0, _INV_SQRT2),
                               (1, H0B, 0, 0, _INV_SQRT2)], nl)
    return _interleave(lo_a, lo_b)


# ----------------------------------------------------------------------------
# MuReNNDirect.forward
# ----------------------------------------------------------------------------
def murenn_direct_forward(x, conv_weights, *, J, Q, padding_mode="symmetric"):
    """x: (B, C, T) -> (B, C, Q, J, T // 2**J)."""
    b, c, t = x.shape
    # the polyphase surrogate needs an even length at every level of every octave
    assert t % (2 ** (J + 1)) == 0, "signal length must be divisible by 2**(J+1)"
    mode = _pad_mode(padding_mode)
    bps = dtcwt_forward_bandpass(x, J, mode)
    outputs = []
    for j in range(J):
        xr, xi = bps[j]                                         # (B, C, T / 2**(j+1))
        # torch grouped-conv weight (Q*C, K): row o = c*Q + q  ->  (Q, C, K)[q, c]
        wqck = jnp.transpose(conv_weights[j].reshape(c, Q, -1), (1, 0, 2))
        lo_a, lo_b = grouped_conv_modulus_down(xr, xi, wqck, mode)  # (B, Q, C, N_j/2)
        rows = b * Q * c
        d2 = _lowpass_cascade_from_phases(lo_a.reshape(rows, -1),
                                          lo_b.reshape(rows, -1),
                                          J - j - 1, mode)
        out_j = jnp.transpose(d2.reshape(b, Q, c, -1), (0, 2, 1, 3))
        outputs.append(out_j)                                   # == UWx.view(B, C, Q, N)
    return jnp.stack(outputs, axis=3)                           # (B, C, Q, J, T/2**J)


# ----------------------------------------------------------------------------
# Pure-JAX reference (mirrors the module with the same surrogate filters).
# ----------------------------------------------------------------------------
def _fir_same_ref(x, taps, mode):
    k = len(taps)
    pad = [(0, 0)] * (x.ndim - 1) + [((k - 1) // 2, k // 2)]
    xp = jnp.pad(x, pad, mode=mode)
    n = x.shape[-1]
    return sum(float(w) * xp[..., t:t + n] for t, w in enumerate(taps))


def _reference_forward(x, conv_weights, *, J, Q, padding_mode="symmetric"):
    mode = _pad_mode(padding_mode)
    b, c, t = x.shape
    lo = _fir_same_ref(x, H0O, mode)
    hi = _fir_same_ref(x, H1O, mode)
    bps = [(hi[..., 0::2], hi[..., 1::2])]
    for _ in range(1, J):
        lo_a, lo_b = lo[..., 0::2], lo[..., 1::2]
        la = _fir_same_ref(lo_a, H0A, mode)[..., 0::2]
        lb = _fir_same_ref(lo_b, H0B, mode)[..., 0::2]
        ha = _fir_same_ref(lo_a, H1A, mode)[..., 0::2]
        hb = _fir_same_ref(lo_b, H1B, mode)[..., 0::2]
        lo = _interleave(la, lb) * _INV_SQRT2
        bps.append((ha * _INV_SQRT2, hb * _INV_SQRT2))
    outs = []
    for j in range(J):
        xr, xi = bps[j]
        w = conv_weights[j]                                     # (Q*C, K)
        k = w.shape[-1]
        pad_l = (k - 1) // 2
        pad_r = (k - 1) - pad_l
        xr_p = jnp.pad(jnp.repeat(xr, Q, axis=1), ((0, 0), (0, 0), (pad_l, pad_r)))
        xi_p = jnp.pad(jnp.repeat(xi, Q, axis=1), ((0, 0), (0, 0), (pad_l, pad_r)))
        n = xr.shape[-1]
        cr = sum(w[None, :, t:t + 1] * xr_p[..., t:t + n] for t in range(k))
        ci = sum(w[None, :, t:t + 1] * xi_p[..., t:t + n] for t in range(k))
        uwx = jnp.sqrt(cr * cr + ci * ci)
        lo_d = _fir_same_ref(uwx, H0O, mode)
        for _ in range(1, J - j):
            da, db = lo_d[..., 0::2], lo_d[..., 1::2]
            la = _fir_same_ref(da, H0A, mode)[..., 0::2]
            lb = _fir_same_ref(db, H0B, mode)[..., 0::2]
            lo_d = _interleave(la, lb) * _INV_SQRT2
        outs.append(lo_d.reshape(b, c, Q, -1))
    return jnp.stack(outs, axis=3)


if __name__ == "__main__":
    B, C, T = 2, 4, 64          # batch, in_channels, signal length
    J, Q, T_k = 3, 3, 7         # octaves, filters per octave, conv kernel size

    key = jax.random.PRNGKey(0)
    k_x, *k_w = jax.random.split(key, 1 + J)
    x = jax.random.normal(k_x, (B, C, T), dtype=jnp.float32)

    # torch.nn.Conv1d(C, Q*C, T_k, groups=C, bias=False) weight: (Q*C, 1, T_k),
    # initialized with nn.init.normal_; stored here squeezed to (Q*C, T_k).
    conv_weights = [
        jax.random.normal(k_w[j], (Q * C, T_k), dtype=jnp.float32) for j in range(J)
    ]

    fwd = jax.jit(functools.partial(murenn_direct_forward, J=J, Q=Q))
    y = jax.block_until_ready(fwd(x, conv_weights))

    expected = (B, C, Q, J, T // (2 ** J))
    assert y.shape == expected, (y.shape, expected)
    assert y.dtype == jnp.float32
    assert bool(jnp.all(jnp.isfinite(y)))

    y_ref = _reference_forward(x, conv_weights, J=J, Q=Q)
    max_err = float(jnp.max(jnp.abs(y - y_ref)))
    assert bool(jnp.allclose(y, y_ref, rtol=1e-3, atol=1e-3)), max_err

    print("KERNEL_OK")
</pallas_src>

<mosaic_0001>
module attributes {stable_mosaic.version = 11 : i64} {
  func.func @kernel(%arg0: i32, %arg1: memref<8x35xf32, #tpu.memory_space<vmem>>, %arg2: memref<8x35xf32, #tpu.memory_space<vmem>>, %arg3: memref<8x32xf32, #tpu.memory_space<vmem>>, %arg4: memref<8x32xf32, #tpu.memory_space<vmem>>, %arg5: memref<8x32xf32, #tpu.memory_space<vmem>>, %arg6: memref<8x32xf32, #tpu.memory_space<vmem>>) attributes {dimension_semantics = [#tpu.dimension_semantics<parallel>], iteration_bounds = array<i64: 1>, scalar_prefetch = 0 : i64, scratch_operands = 0 : i64, tpu.core_type = #tpu.core_type<tc>, window_params = [{transform_indices = @transform_0, window_bounds = array<i64: 8, 35>}, {transform_indices = @transform_1, window_bounds = array<i64: 8, 35>}, {transform_indices = @transform_2, window_bounds = array<i64: 8, 32>}, {transform_indices = @transform_3, window_bounds = array<i64: 8, 32>}, {transform_indices = @transform_4, window_bounds = array<i64: 8, 32>}, {transform_indices = @transform_5, window_bounds = array<i64: 8, 32>}]} {
    %cst = arith.constant 0.000000e+00 : f32
    %0 = vector.broadcast %cst : f32 to vector<8x32xf32>
    %c0 = arith.constant 0 : index
    %c0_0 = arith.constant 0 : index
    %1 = vector.load %arg1[%c0, %c0_0] : memref<8x35xf32, #tpu.memory_space<vmem>>, vector<8x32xf32>
    %cst_1 = arith.constant -0.010714286 : f32
    %2 = vector.broadcast %cst_1 : f32 to vector<8x32xf32>
    %3 = arith.mulf %2, %1 : vector<8x32xf32>
    %4 = arith.addf %0, %3 : vector<8x32xf32>
    %c0_2 = arith.constant 0 : index
    %c0_3 = arith.constant 0 : index
    %5 = vector.load %arg2[%c0_2, %c0_3] : memref<8x35xf32, #tpu.memory_space<vmem>>, vector<8x32xf32>
    %cst_4 = arith.constant 0.0535714291 : f32
    %6 = vector.broadcast %cst_4 : f32 to vector<8x32xf32>
    %7 = arith.mulf %6, %5 : vector<8x32xf32>
    %8 = arith.addf %4, %7 : vector<8x32xf32>
    %c0_5 = arith.constant 0 : index
    %c1 = arith.constant 1 : index
    %9 = vector.load %arg1[%c0_5, %c1] : memref<8x35xf32, #tpu.memory_space<vmem>>, vector<8x32xf32>
    %cst_6 = arith.constant 0.260714293 : f32
    %10 = vector.broadcast %cst_6 : f32 to vector<8x32xf32>
    %11 = arith.mulf %10, %9 : vector<8x32xf32>
    %12 = arith.addf %8, %11 : vector<8x32xf32>
    %c0_7 = arith.constant 0 : index
    %c1_8 = arith.constant 1 : index
    %13 = vector.load %arg2[%c0_7, %c1_8] : memref<8x35xf32, #tpu.memory_space<vmem>>, vector<8x32xf32>
    %cst_9 = arith.constant -0.607142865 : f32
    %14 = vector.broadcast %cst_9 : f32 to vector<8x32xf32>
    %15 = arith.mulf %14, %13 : vector<8x32xf32>
    %16 = arith.addf %12, %15 : vector<8x32xf32>
    %c0_10 = arith.constant 0 : index
    %c2 = arith.constant 2 : index
    %17 = vector.load %arg1[%c0_10, %c2] : memref<8x35xf32, #tpu.memory_space<vmem>>, vector<8x32xf32>
    %cst_11 = arith.constant 0.260714293 : f32
    %18 = vector.broadcast %cst_11 : f32 to vector<8x32xf32>
    %19 = arith.mulf %18, %17 : vector<8x32xf32>
    %20 = arith.addf %16, %19 : vector<8x32xf32>
    %c0_12 = arith.constant 0 : index
    %c2_13 = arith.constant 2 : index
    %21 = vector.load %arg2[%c0_12, %c2_13] : memref<8x35xf32, #tpu.memory_space<vmem>>, vector<8x32xf32>
    %cst_14 = arith.constant 0.0535714291 : f32
    %22 = vector.broadcast %cst_14 : f32 to vector<8x32xf32>
    %23 = arith.mulf %22, %21 : vector<8x32xf32>
    %24 = arith.addf %20, %23 : vector<8x32xf32>
    %c0_15 = arith.constant 0 : index
    %c3 = arith.constant 3 : index
    %25 = vector.load %arg1[%c0_15, %c3] : memref<8x35xf32, #tpu.memory_space<vmem>>, vector<8x32xf32>
    %cst_16 = arith.constant -0.010714286 : f32
    %26 = vector.broadcast %cst_16 : f32 to vector<8x32xf32>
    %27 = arith.mulf %26, %25 : vector<8x32xf32>
    %28 = arith.addf %24, %27 : vector<8x32xf32>
    %c0_17 = arith.constant 0 : index
    %c0_18 = arith.constant 0 : index
    %29 = vector.load %arg3[%c0_17, %c0_18] : memref<8x32xf32, #tpu.memory_space<vmem>>, vector<8x32xf32>
    tpu.vector_store %arg3[%c0_17, %c0_18], %28 {strides = array<i32>} : memref<8x32xf32, #tpu.memory_space<vmem>>, vector<8x32xf32>,
    %cst_19 = arith.constant 0.000000e+00 : f32
    %30 = vector.broadcast %cst_19 : f32 to vector<8x32xf32>
    %c0_20 = arith.constant 0 : index
    %c0_21 = arith.constant 0 : index
    %31 = vector.load %arg2[%c0_20, %c0_21] : memref<8x35xf32, #tpu.memory_space<vmem>>, vector<8x32xf32>
    %cst_22 = arith.constant -0.010714286 : f32
    %32 = vector.broadcast %cst_22 : f32 to vector<8x32xf32>
    %33 = arith.mulf %32, %31 : vector<8x32xf32>
    %34 = arith.addf %30, %33 : vector<8x32xf32>
    %c0_23 = arith.constant 0 : index
    %c1_24 = arith.constant 1 : index
    %35 = vector.load %arg1[%c0_23, %c1_24] : memref<8x35xf32, #tpu.memory_space<vmem>>, vector<8x32xf32>
    %cst_25 = arith.constant 0.0535714291 : f32
    %36 = vector.broadcast %cst_25 : f32 to vector<8x32xf32>
    %37 = arith.mulf %36, %35 : vector<8x32xf32>
    %38 = arith.addf %34, %37 : vector<8x32xf32>
    %c0_26 = arith.constant 0 : index
    %c1_27 = arith.constant 1 : index
    %39 = vector.load %arg2[%c0_26, %c1_27] : memref<8x35xf32, #tpu.memory_space<vmem>>, vector<8x32xf32>
    %cst_28 = arith.constant 0.260714293 : f32
    %40 = vector.broadcast %cst_28 : f32 to vector<8x32xf32>
    %41 = arith.mulf %40, %39 : vector<8x32xf32>
    %42 = arith.addf %38, %41 : vector<8x32xf32>
    %c0_29 = arith.constant 0 : index
    %c2_30 = arith.constant 2 : index
    %43 = vector.load %arg1[%c0_29, %c2_30] : memref<8x35xf32, #tpu.memory_space<vmem>>, vector<8x32xf32>
    %cst_31 = arith.constant -0.607142865 : f32
    %44 = vector.broadcast %cst_31 : f32 to vector<8x32xf32>
    %45 = arith.mulf %44, %43 : vector<8x32xf32>
    %46 = arith.addf %42, %45 : vector<8x32xf32>
    %c0_32 = arith.constant 0 : index
    %c2_33 = arith.constant 2 : index
    %47 = vector.load %arg2[%c0_32, %c2_33] : memref<8x35xf32, #tpu.memory_space<vmem>>, vector<8x32xf32>
    %cst_34 = arith.constant 0.260714293 : f32
    %48 = vector.broadcast %cst_34 : f32 to vector<8x32xf32>
    %49 = arith.mulf %48, %47 : vector<8x32xf32>
    %50 = arith.addf %46, %49 : vector<8x32xf32>
    %c0_35 = arith.constant 0 : index
    %c3_36 = arith.constant 3 : index
    %51 = vector.load %arg1[%c0_35, %c3_36] : memref<8x35xf32, #tpu.memory_space<vmem>>, vector<8x32xf32>
    %cst_37 = arith.constant 0.0535714291 : f32
    %52 = vector.broadcast %cst_37 : f32 to vector<8x32xf32>
    %53 = arith.mulf %52, %51 : vector<8x32xf32>
    %54 = arith.addf %50, %53 : vector<8x32xf32>
    %c0_38 = arith.constant 0 : index
    %c3_39 = arith.constant 3 : index
    %55 = vector.load %arg2[%c0_38, %c3_39] : memref<8x35xf32, #tpu.memory_space<vmem>>, vector<8x32xf32>
    %cst_40 = arith.constant -0.010714286 : f32
    %56 = vector.broadcast %cst_40 : f32 to vector<8x32xf32>
    %57 = arith.mulf %56, %55 : vector<8x32xf32>
    %58 = arith.addf %54, %57 : vector<8x32xf32>
    %c0_41 = arith.constant 0 : index
    %c0_42 = arith.constant 0 : index
    %59 = vector.load %arg4[%c0_41, %c0_42] : memref<8x32xf32, #tpu.memory_space<vmem>>, vector<8x32xf32>
    tpu.vector_store %arg4[%c0_41, %c0_42], %58 {strides = array<i32>} : memref<8x32xf32, #tpu.memory_space<vmem>>, vector<8x32xf32>,
    %cst_43 = arith.constant 0.000000e+00 : f32
    %60 = vector.broadcast %cst_43 : f32 to vector<8x32xf32>
    %c0_44 = arith.constant 0 : index
    %c0_45 = arith.constant 0 : index
    %61 = vector.load %arg2[%c0_44, %c0_45] : memref<8x35xf32, #tpu.memory_space<vmem>>, vector<8x32xf32>
    %cst_46 = arith.constant -5.000000e-02 : f32
    %62 = vector.broadcast %cst_46 : f32 to vector<8x32xf32>
    %63 = arith.mulf %62, %61 : vector<8x32xf32>
    %64 = arith.addf %60, %63 : vector<8x32xf32>
    %c0_47 = arith.constant 0 : index
    %c1_48 = arith.constant 1 : index
    %65 = vector.load %arg1[%c0_47, %c1_48] : memref<8x35xf32, #tpu.memory_space<vmem>>, vector<8x32xf32>
    %cst_49 = arith.constant 2.500000e-01 : f32
    %66 = vector.broadcast %cst_49 : f32 to vector<8x32xf32>
    %67 = arith.mulf %66, %65 : vector<8x32xf32>
    %68 = arith.addf %64, %67 : vector<8x32xf32>
    %c0_50 = arith.constant 0 : index
    %c1_51 = arith.constant 1 : index
    %69 = vector.load %arg2[%c0_50, %c1_51] : memref<8x35xf32, #tpu.memory_space<vmem>>, vector<8x32xf32>
    %cst_52 = arith.constant 6.000000e-01 : f32
    %70 = vector.broadcast %cst_52 : f32 to vector<8x32xf32>
    %71 = arith.mulf %70, %69 : vector<8x32xf32>
    %72 = arith.addf %68, %71 : vector<8x32xf32>
    %c0_53 = arith.constant 0 : index
    %c2_54 = arith.constant 2 : index
    %73 = vector.load %arg1[%c0_53, %c2_54] : memref<8x35xf32, #tpu.memory_space<vmem>>, vector<8x32xf32>
    %cst_55 = arith.constant 2.500000e-01 : f32
    %74 = vector.broadcast %cst_55 : f32 to vector<8x32xf32>
    %75 = arith.mulf %74, %73 : vector<8x32xf32>
    %76 = arith.addf %72, %75 : vector<8x32xf32>
    %c0_56 = arith.constant 0 : index
    %c2_57 = arith.constant 2 : index
    %77 = vector.load %arg2[%c0_56, %c2_57] : memref<8x35xf32, #tpu.memory_space<vmem>>, vector<8x32xf32>
    %cst_58 = arith.constant -5.000000e-02 : f32
    %78 = vector.broadcast %cst_58 : f32 to vector<8x32xf32>
    %79 = arith.mulf %78, %77 : vector<8x32xf32>
    %80 = arith.addf %76, %79 : vector<8x32xf32>
    %c0_59 = arith.constant 0 : index
    %c0_60 = arith.constant 0 : index
    %81 = vector.load %arg5[%c0_59, %c0_60] : memref<8x32xf32, #tpu.memory_space<vmem>>, vector<8x32xf32>
    tpu.vector_store %arg5[%c0_59, %c0_60], %80 {strides = array<i32>} : memref<8x32xf32, #tpu.memory_space<vmem>>, vector<8x32xf32>,
    %cst_61 = arith.constant 0.000000e+00 : f32
    %82 = vector.broadcast %cst_61 : f32 to vector<8x32xf32>
    %c0_62 = arith.constant 0 : index
    %c1_63 = arith.constant 1 : index
    %83 = vector.load %arg1[%c0_62, %c1_63] : memref<8x35xf32, #tpu.memory_space<vmem>>, vector<8x32xf32>
    %cst_64 = arith.constant -5.000000e-02 : f32
    %84 = vector.broadcast %cst_64 : f32 to vector<8x32xf32>
    %85 = arith.mulf %84, %83 : vector<8x32xf32>
    %86 = arith.addf %82, %85 : vector<8x32xf32>
    %c0_65 = arith.constant 0 : index
    %c1_66 = arith.constant 1 : index
    %87 = vector.load %arg2[%c0_65, %c1_66] : memref<8x35xf32, #tpu.memory_space<vmem>>, vector<8x32xf32>
    %cst_67 = arith.constant 2.500000e-01 : f32
    %88 = vector.broadcast %cst_67 : f32 to vector<8x32xf32>
    %89 = arith.mulf %88, %87 : vector<8x32xf32>
    %90 = arith.addf %86, %89 : vector<8x32xf32>
    %c0_68 = arith.constant 0 : index
    %c2_69 = arith.constant 2 : index
    %91 = vector.load %arg1[%c0_68, %c2_69] : memref<8x35xf32, #tpu.memory_space<vmem>>, vector<8x32xf32>
    %cst_70 = arith.constant 6.000000e-01 : f32
    %92 = vector.broadcast %cst_70 : f32 to vector<8x32xf32>
    %93 = arith.mulf %92, %91 : vector<8x32xf32>
    %94 = arith.addf %90, %93 : vector<8x32xf32>
    %c0_71 = arith.constant 0 : index
    %c2_72 = arith.constant 2 : index
    %95 = vector.load %arg2[%c0_71, %c2_72] : memref<8x35xf32, #tpu.memory_space<vmem>>, vector<8x32xf32>
    %cst_73 = arith.constant 2.500000e-01 : f32
    %96 = vector.broadcast %cst_73 : f32 to vector<8x32xf32>
    %97 = arith.mulf %96, %95 : vector<8x32xf32>
    %98 = arith.addf %94, %97 : vector<8x32xf32>
    %c0_74 = arith.constant 0 : index
    %c3_75 = arith.constant 3 : index
    %99 = vector.load %arg1[%c0_74, %c3_75] : memref<8x35xf32, #tpu.memory_space<vmem>>, vector<8x32xf32>
    %cst_76 = arith.constant -5.000000e-02 : f32
    %100 = vector.broadcast %cst_76 : f32 to vector<8x32xf32>
    %101 = arith.mulf %100, %99 : vector<8x32xf32>
    %102 = arith.addf %98, %101 : vector<8x32xf32>
    %c0_77 = arith.constant 0 : index
    %c0_78 = arith.constant 0 : index
    %103 = vector.load %arg6[%c0_77, %c0_78] : memref<8x32xf32, #tpu.memory_space<vmem>>, vector<8x32xf32>
    tpu.vector_store %arg6[%c0_77, %c0_78], %102 {strides = array<i32>} : memref<8x32xf32, #tpu.memory_space<vmem>>, vector<8x32xf32>,
    return
  }
  func.func @transform_0(%arg0: i32) -> (i32, i32) {
    %c0_i32 = arith.constant 0 : i32
    %c0_i32_0 = arith.constant 0 : i32
    return %arg0, %c0_i32 : i32, i32
  }
  func.func @transform_1(%arg0: i32) -> (i32, i32) {
    %c0_i32 = arith.constant 0 : i32
    %c0_i32_0 = arith.constant 0 : i32
    return %arg0, %c0_i32 : i32, i32
  }
  func.func @transform_2(%arg0: i32) -> (i32, i32) {
    %c0_i32 = arith.constant 0 : i32
    %c0_i32_0 = arith.constant 0 : i32
    return %arg0, %c0_i32 : i32, i32
  }
  func.func @transform_3(%arg0: i32) -> (i32, i32) {
    %c0_i32 = arith.constant 0 : i32
    %c0_i32_0 = arith.constant 0 : i32
    return %arg0, %c0_i32 : i32, i32
  }
  func.func @transform_4(%arg0: i32) -> (i32, i32) {
    %c0_i32 = arith.constant 0 : i32
    %c0_i32_0 = arith.constant 0 : i32
    return %arg0, %c0_i32 : i32, i32
  }
  func.func @transform_5(%arg0: i32) -> (i32, i32) {
    %c0_i32 = arith.constant 0 : i32
    %c0_i32_0 = arith.constant 0 : i32
    return %arg0, %c0_i32 : i32, i32
  }
}

module attributes {stable_mosaic.version = 11 : i64} {
  func.func @_conv_mod_down_kernel(%arg0: i32, %arg1: memref<1x4x19xf32, #tpu.memory_space<vmem>>, %arg2: memref<1x4x19xf32, #tpu.memory_space<vmem>>, %arg3: memref<1x4x19xf32, #tpu.memory_space<vmem>>, %arg4: memref<1x4x19xf32, #tpu.memory_space<vmem>>, %arg5: memref<3x4x7xf32, #tpu.memory_space<vmem>>, %arg6: memref<1x3x4x16xf32, #tpu.memory_space<vmem>>, %arg7: memref<1x3x4x16xf32, #tpu.memory_space<vmem>>, %arg8: memref<3x4x18xf32, #tpu.memory_space<vmem>>, %arg9: memref<3x4x18xf32, #tpu.memory_space<vmem>>) attributes {dimension_semantics = [#tpu.dimension_semantics<parallel>], iteration_bounds = array<i64: 2>, scalar_prefetch = 0 : i64, scratch_operands = 2 : i64, tpu.core_type = #tpu.core_type<tc>, window_params = [{transform_indices = @transform_0, window_bounds = array<i64: 1, 4, 19>}, {transform_indices = @transform_1, window_bounds = array<i64: 1, 4, 19>}, {transform_indices = @transform_2, window_bounds = array<i64: 1, 4, 19>}, {transform_indices = @transform_3, window_bounds = array<i64: 1, 4, 19>}, {pipeline_mode = #tpu.pipeline_mode<synchronous>, transform_indices = @transform_4, window_bounds = array<i64: 3, 4, 7>}, {transform_indices = @transform_5, window_bounds = array<i64: 1, 3, 4, 16>}, {transform_indices = @transform_6, window_bounds = array<i64: 1, 3, 4, 16>}]} {
    %c0 = arith.constant 0 : index
    %c0_0 = arith.constant 0 : index
    %c0_1 = arith.constant 0 : index
    %0 = vector.load %arg5[%c0, %c0_0, %c0_1] : memref<3x4x7xf32, #tpu.memory_space<vmem>>, vector<3x4x7xf32>
    %cst = arith.constant 0.000000e+00 : f32
    %1 = vector.broadcast %cst : f32 to vector<3x4x16xf32>
    %cst_2 = arith.constant 0.000000e+00 : f32
    %2 = vector.broadcast %cst_2 : f32 to vector<3x4x16xf32>
    %cst_3 = arith.constant 0.000000e+00 : f32
    %3 = vector.broadcast %cst_3 : f32 to vector<3x4x16xf32>
    %cst_4 = arith.constant 0.000000e+00 : f32
    %4 = vector.broadcast %cst_4 : f32 to vector<3x4x16xf32>
    %5 = vector.extract_strided_slice %0 {offsets = [0, 0, 0], sizes = [3, 4, 1], strides = [1, 1, 1]} : vector<3x4x7xf32> to vector<3x4x1xf32>
    %c0_5 = arith.constant 0 : index
    %c0_6 = arith.constant 0 : index
    %c0_7 = arith.constant 0 : index
    %6 = vector.load %arg1[%c0_5, %c0_6, %c0_7] : memref<1x4x19xf32, #tpu.memory_space<vmem>>, vector<1x4x16xf32>
    %7 = vector.shape_cast %6 : vector<1x4x16xf32> to vector<4x16xf32>
    %8 = vector.shape_cast %7 : vector<4x16xf32> to vector<1x4x16xf32>
    %9 = vector.broadcast %5 : vector<3x4x1xf32> to vector<3x4x16xf32>
    %10 = vector.broadcast %8 : vector<1x4x16xf32> to vector<3x4x16xf32>
    %11 = arith.mulf %9, %10 : vector<3x4x16xf32>
    %12 = arith.addf %1, %11 : vector<3x4x16xf32>
    %c0_8 = arith.constant 0 : index
    %c0_9 = arith.constant 0 : index
    %c0_10 = arith.constant 0 : index
    %13 = vector.load %arg3[%c0_8, %c0_9, %c0_10] : memref<1x4x19xf32, #tpu.memory_space<vmem>>, vector<1x4x16xf32>
    %14 = vector.shape_cast %13 : vector<1x4x16xf32> to vector<4x16xf32>
    %15 = vector.shape_cast %14 : vector<4x16xf32> to vector<1x4x16xf32>
    %16 = vector.broadcast %5 : vector<3x4x1xf32> to vector<3x4x16xf32>
    %17 = vector.broadcast %15 : vector<1x4x16xf32> to vector<3x4x16xf32>
    %18 = arith.mulf %16, %17 : vector<3x4x16xf32>
    %19 = arith.addf %2, %18 : vector<3x4x16xf32>
    %c0_11 = arith.constant 0 : index
    %c0_12 = arith.constant 0 : index
    %c0_13 = arith.constant 0 : index
    %20 = vector.load %arg2[%c0_11, %c0_12, %c0_13] : memref<1x4x19xf32, #tpu.memory_space<vmem>>, vector<1x4x16xf32>
    %21 = vector.shape_cast %20 : vector<1x4x16xf32> to vector<4x16xf32>
    %22 = vector.shape_cast %21 : vector<4x16xf32> to vector<1x4x16xf32>
    %23 = vector.broadcast %5 : vector<3x4x1xf32> to vector<3x4x16xf32>
    %24 = vector.broadcast %22 : vector<1x4x16xf32> to vector<3x4x16xf32>
    %25 = arith.mulf %23, %24 : vector<3x4x16xf32>
    %26 = arith.addf %3, %25 : vector<3x4x16xf32>
    %c0_14 = arith.constant 0 : index
    %c0_15 = arith.constant 0 : index
    %c0_16 = arith.constant 0 : index
    %27 = vector.load %arg4[%c0_14, %c0_15, %c0_16] : memref<1x4x19xf32, #tpu.memory_space<vmem>>, vector<1x4x16xf32>
    %28 = vector.shape_cast %27 : vector<1x4x16xf32> to vector<4x16xf32>
    %29 = vector.shape_cast %28 : vector<4x16xf32> to vector<1x4x16xf32>
    %30 = vector.broadcast %5 : vector<3x4x1xf32> to vector<3x4x16xf32>
    %31 = vector.broadcast %29 : vector<1x4x16xf32> to vector<3x4x16xf32>
    %32 = arith.mulf %30, %31 : vector<3x4x16xf32>
    %33 = arith.addf %4, %32 : vector<3x4x16xf32>
    %34 = vector.extract_strided_slice %0 {offsets = [0, 0, 1], sizes = [3, 4, 1], strides = [1, 1, 1]} : vector<3x4x7xf32> to vector<3x4x1xf32>
    %c0_17 = arith.constant 0 : index
    %c0_18 = arith.constant 0 : index
    %c0_19 = arith.constant 0 : index
    %35 = vector.load %arg2[%c0_17, %c0_18, %c0_19] : memref<1x4x19xf32, #tpu.memory_space<vmem>>, vector<1x4x16xf32>
    %36 = vector.shape_cast %35 : vector<1x4x16xf32> to vector<4x16xf32>
    %37 = vector.shape_cast %36 : vector<4x16xf32> to vector<1x4x16xf32>
    %38 = vector.broadcast %34 : vector<3x4x1xf32> to vector<3x4x16xf32>
    %39 = vector.broadcast %37 : vector<1x4x16xf32> to vector<3x4x16xf32>
    %40 = arith.mulf %38, %39 : vector<3x4x16xf32>
    %41 = arith.addf %12, %40 : vector<3x4x16xf32>
    %c0_20 = arith.constant 0 : index
    %c0_21 = arith.constant 0 : index
    %c0_22 = arith.constant 0 : index
    %42 = vector.load %arg4[%c0_20, %c0_21, %c0_22] : memref<1x4x19xf32, #tpu.memory_space<vmem>>, vector<1x4x16xf32>
    %43 = vector.shape_cast %42 : vector<1x4x16xf32> to vector<4x16xf32>
    %44 = vector.shape_cast %43 : vector<4x16xf32> to vector<1x4x16xf32>
    %45 = vector.broadcast %34 : vector<3x4x1xf32> to vector<3x4x16xf32>
    %46 = vector.broadcast %44 : vector<1x4x16xf32> to vector<3x4x16xf32>
    %47 = arith.mulf %45, %46 : vector<3x4x16xf32>
    %48 = arith.addf %19, %47 : vector<3x4x16xf32>
    %c0_23 = arith.constant 0 : index
    %c0_24 = arith.constant 0 : index
    %c1 = arith.constant 1 : index
    %49 = vector.load %arg1[%c0_23, %c0_24, %c1] : memref<1x4x19xf32, #tpu.memory_space<vmem>>, vector<1x4x16xf32>
    %50 = vector.shape_cast %49 : vector<1x4x16xf32> to vector<4x16xf32>
    %51 = vector.shape_cast %50 : vector<4x16xf32> to vector<1x4x16xf32>
    %52 = vector.broadcast %34 : vector<3x4x1xf32> to vector<3x4x16xf32>
    %53 = vector.broadcast %51 : vector<1x4x16xf32> to vector<3x4x16xf32>
    %54 = arith.mulf %52, %53 : vector<3x4x16xf32>
    %55 = arith.addf %26, %54 : vector<3x4x16xf32>
    %c0_25 = arith.constant 0 : index
    %c0_26 = arith.constant 0 : index
    %c1_27 = arith.constant 1 : index
    %56 = vector.load %arg3[%c0_25, %c0_26, %c1_27] : memref<1x4x19xf32, #tpu.memory_space<vmem>>, vector<1x4x16xf32>
    %57 = vector.shape_cast %56 : vector<1x4x16xf32> to vector<4x16xf32>
    %58 = vector.shape_cast %57 : vector<4x16xf32> to vector<1x4x16xf32>
    %59 = vector.broadcast %34 : vector<3x4x1xf32> to vector<3x4x16xf32>
    %60 = vector.broadcast %58 : vector<1x4x16xf32> to vector<3x4x16xf32>
    %61 = arith.mulf %59, %60 : vector<3x4x16xf32>
    %62 = arith.addf %33, %61 : vector<3x4x16xf32>
    %63 = vector.extract_strided_slice %0 {offsets = [0, 0, 2], sizes = [3, 4, 1], strides = [1, 1, 1]} : vector<3x4x7xf32> to vector<3x4x1xf32>
    %c0_28 = arith.constant 0 : index
    %c0_29 = arith.constant 0 : index
    %c1_30 = arith.constant 1 : index
    %64 = vector.load %arg1[%c0_28, %c0_29, %c1_30] : memref<1x4x19xf32, #tpu.memory_space<vmem>>, vector<1x4x16xf32>
    %65 = vector.shape_cast %64 : vector<1x4x16xf32> to vector<4x16xf32>
    %66 = vector.shape_cast %65 : vector<4x16xf32> to vector<1x4x16xf32>
    %67 = vector.broadcast %63 : vector<3x4x1xf32> to vector<3x4x16xf32>
    %68 = vector.broadcast %66 : vector<1x4x16xf32> to vector<3x4x16xf32>
    %69 = arith.mulf %67, %68 : vector<3x4x16xf32>
    %70 = arith.addf %41, %69 : vector<3x4x16xf32>
    %c0_31 = arith.constant 0 : index
    %c0_32 = arith.constant 0 : index
    %c1_33 = arith.constant 1 : index
    %71 = vector.load %arg3[%c0_31, %c0_32, %c1_33] : memref<1x4x19xf32, #tpu.memory_space<vmem>>, vector<1x4x16xf32>
    %72 = vector.shape_cast %71 : vector<1x4x16xf32> to vector<4x16xf32>
    %73 = vector.shape_cast %72 : vector<4x16xf32> to vector<1x4x16xf32>
    %74 = vector.broadcast %63 : vector<3x4x1xf32> to vector<3x4x16xf32>
    %75 = vector.broadcast %73 : vector<1x4x16xf32> to vector<3x4x16xf32>
    %76 = arith.mulf %74, %75 : vector<3x4x16xf32>
    %77 = arith.addf %48, %76 : vector<3x4x16xf32>
    %c0_34 = arith.constant 0 : index
    %c0_35 = arith.constant 0 : index
    %c1_36 = arith.constant 1 : index
    %78 = vector.load %arg2[%c0_34, %c0_35, %c1_36] : memref<1x4x19xf32, #tpu.memory_space<vmem>>, vector<1x4x16xf32>
    %79 = vector.shape_cast %78 : vector<1x4x16xf32> to vector<4x16xf32>
    %80 = vector.shape_cast %79 : vector<4x16xf32> to vector<1x4x16xf32>
    %81 = vector.broadcast %63 : vector<3x4x1xf32> to vector<3x4x16xf32>
    %82 = vector.broadcast %80 : vector<1x4x16xf32> to vector<3x4x16xf32>
    %83 = arith.mulf %81, %82 : vector<3x4x16xf32>
    %84 = arith.addf %55, %83 : vector<3x4x16xf32>
    %c0_37 = arith.constant 0 : index
    %c0_38 = arith.constant 0 : index
    %c1_39 = arith.constant 1 : index
    %85 = vector.load %arg4[%c0_37, %c0_38, %c1_39] : memref<1x4x19xf32, #tpu.memory_space<vmem>>, vector<1x4x16xf32>
    %86 = vector.shape_cast %85 : vector<1x4x16xf32> to vector<4x16xf32>
    %87 = vector.shape_cast %86 : vector<4x16xf32> to vector<1x4x16xf32>
    %88 = vector.broadcast %63 : vector<3x4x1xf32> to vector<3x4x16xf32>
    %89 = vector.broadcast %87 : vector<1x4x16xf32> to vector<3x4x16xf32>
    %90 = arith.mulf %88, %89 : vector<3x4x16xf32>
    %91 = arith.addf %62, %90 : vector<3x4x16xf32>
    %92 = vector.extract_strided_slice %0 {offsets = [0, 0, 3], sizes = [3, 4, 1], strides = [1, 1, 1]} : vector<3x4x7xf32> to vector<3x4x1xf32>
    %c0_40 = arith.constant 0 : index
    %c0_41 = arith.constant 0 : index
    %c1_42 = arith.constant 1 : index
    %93 = vector.load %arg2[%c0_40, %c0_41, %c1_42] : memref<1x4x19xf32, #tpu.memory_space<vmem>>, vector<1x4x16xf32>
    %94 = vector.shape_cast %93 : vector<1x4x16xf32> to vector<4x16xf32>
    %95 = vector.shape_cast %94 : vector<4x16xf32> to vector<1x4x16xf32>
    %96 = vector.broadcast %92 : vector<3x4x1xf32> to vector<3x4x16xf32>
    %97 = vector.broadcast %95 : vector<1x4x16xf32> to vector<3x4x16xf32>
    %98 = arith.mulf %96, %97 : vector<3x4x16xf32>
    %99 = arith.addf %70, %98 : vector<3x4x16xf32>
    %c0_43 = arith.constant 0 : index
    %c0_44 = arith.constant 0 : index
    %c1_45 = arith.constant 1 : index
    %100 = vector.load %arg4[%c0_43, %c0_44, %c1_45] : memref<1x4x19xf32, #tpu.memory_space<vmem>>, vector<1x4x16xf32>
    %101 = vector.shape_cast %100 : vector<1x4x16xf32> to vector<4x16xf32>
    %102 = vector.shape_cast %101 : vector<4x16xf32> to vector<1x4x16xf32>
    %103 = vector.broadcast %92 : vector<3x4x1xf32> to vector<3x4x16xf32>
    %104 = vector.broadcast %102 : vector<1x4x16xf32> to vector<3x4x16xf32>
    %105 = arith.mulf %103, %104 : vector<3x4x16xf32>
    %106 = arith.addf %77, %105 : vector<3x4x16xf32>
    %c0_46 = arith.constant 0 : index
    %c0_47 = arith.constant 0 : index
    %c2 = arith.constant 2 : index
    %107 = vector.load %arg1[%c0_46, %c0_47, %c2] : memref<1x4x19xf32, #tpu.memory_space<vmem>>, vector<1x4x16xf32>
    %108 = vector.shape_cast %107 : vector<1x4x16xf32> to vector<4x16xf32>
    %109 = vector.shape_cast %108 : vector<4x16xf32> to vector<1x4x16xf32>
    %110 = vector.broadcast %92 : vector<3x4x1xf32> to vector<3x4x16xf32>
    %111 = vector.broadcast %109 : vector<1x4x16xf32> to vector<3x4x16xf32>
    %112 = arith.mulf %110, %111 : vector<3x4x16xf32>
    %113 = arith.addf %84, %112 : vector<3x4x16xf32>
    %c0_48 = arith.constant 0 : index
    %c0_49 = arith.constant 0 : index
    %c2_50 = arith.constant 2 : index
    %114 = vector.load %arg3[%c0_48, %c0_49, %c2_50] : memref<1x4x19xf32, #tpu.memory_space<vmem>>, vector<1x4x16xf32>
    %115 = vector.shape_cast %114 : vector<1x4x16xf32> to vector<4x16xf32>
    %116 = vector.shape_cast %115 : vector<4x16xf32> to vector<1x4x16xf32>
    %117 = vector.broadcast %92 : vector<3x4x1xf32> to vector<3x4x16xf32>
    %118 = vector.broadcast %116 : vector<1x4x16xf32> to vector<3x4x16xf32>
    %119 = arith.mulf %117, %118 : vector<3x4x16xf32>
    %120 = arith.addf %91, %119 : vector<3x4x16xf32>
    %121 = vector.extract_strided_slice %0 {offsets = [0, 0, 4], sizes = [3, 4, 1], strides = [1, 1, 1]} : vector<3x4x7xf32> to vector<3x4x1xf32>
    %c0_51 = arith.constant 0 : index
    %c0_52 = arith.constant 0 : index
    %c2_53 = arith.constant 2 : index
    %122 = vector.load %arg1[%c0_51, %c0_52, %c2_53] : memref<1x4x19xf32, #tpu.memory_space<vmem>>, vector<1x4x16xf32>
    %123 = vector.shape_cast %122 : vector<1x4x16xf32> to vector<4x16xf32>
    %124 = vector.shape_cast %123 : vector<4x16xf32> to vector<1x4x16xf32>
    %125 = vector.broadcast %121 : vector<3x4x1xf32> to vector<3x4x16xf32>
    %126 = vector.broadcast %124 : vector<1x4x16xf32> to vector<3x4x16xf32>
    %127 = arith.mulf %125, %126 : vector<3x4x16xf32>
    %128 = arith.addf %99, %127 : vector<3x4x16xf32>
    %c0_54 = arith.constant 0 : index
    %c0_55 = arith.constant 0 : index
    %c2_56 = arith.constant 2 : index
    %129 = vector.load %arg3[%c0_54, %c0_55, %c2_56] : memref<1x4x19xf32, #tpu.memory_space<vmem>>, vector<1x4x16xf32>
    %130 = vector.shape_cast %129 : vector<1x4x16xf32> to vector<4x16xf32>
    %131 = vector.shape_cast %130 : vector<4x16xf32> to vector<1x4x16xf32>
    %132 = vector.broadcast %121 : vector<3x4x1xf32> to vector<3x4x16xf32>
    %133 = vector.broadcast %131 : vector<1x4x16xf32> to vector<3x4x16xf32>
    %134 = arith.mulf %132, %133 : vector<3x4x16xf32>
    %135 = arith.addf %106, %134 : vector<3x4x16xf32>
    %c0_57 = arith.constant 0 : index
    %c0_58 = arith.constant 0 : index
    %c2_59 = arith.constant 2 : index
    %136 = vector.load %arg2[%c0_57, %c0_58, %c2_59] : memref<1x4x19xf32, #tpu.memory_space<vmem>>, vector<1x4x16xf32>
    %137 = vector.shape_cast %136 : vector<1x4x16xf32> to vector<4x16xf32>
    %138 = vector.shape_cast %137 : vector<4x16xf32> to vector<1x4x16xf32>
    %139 = vector.broadcast %121 : vector<3x4x1xf32> to vector<3x4x16xf32>
    %140 = vector.broadcast %138 : vector<1x4x16xf32> to vector<3x4x16xf32>
    %141 = arith.mulf %139, %140 : vector<3x4x16xf32>
    %142 = arith.addf %113, %141 : vector<3x4x16xf32>
    %c0_60 = arith.constant 0 : index
    %c0_61 = arith.constant 0 : index
    %c2_62 = arith.constant 2 : index
    %143 = vector.load %arg4[%c0_60, %c0_61, %c2_62] : memref<1x4x19xf32, #tpu.memory_space<vmem>>, vector<1x4x16xf32>
    %144 = vector.shape_cast %143 : vector<1x4x16xf32> to vector<4x16xf32>
    %145 = vector.shape_cast %144 : vector<4x16xf32> to vector<1x4x16xf32>
    %146 = vector.broadcast %121 : vector<3x4x1xf32> to vector<3x4x16xf32>
    %147 = vector.broadcast %145 : vector<1x4x16xf32> to vector<3x4x16xf32>
    %148 = arith.mulf %146, %147 : vector<3x4x16xf32>
    %149 = arith.addf %120, %148 : vector<3x4x16xf32>
    %150 = vector.extract_strided_slice %0 {offsets = [0, 0, 5], sizes = [3, 4, 1], strides = [1, 1, 1]} : vector<3x4x7xf32> to vector<3x4x1xf32>
    %c0_63 = arith.constant 0 : index
    %c0_64 = arith.constant 0 : index
    %c2_65 = arith.constant 2 : index
    %151 = vector.load %arg2[%c0_63, %c0_64, %c2_65] : memref<1x4x19xf32, #tpu.memory_space<vmem>>, vector<1x4x16xf32>
    %152 = vector.shape_cast %151 : vector<1x4x16xf32> to vector<4x16xf32>
    %153 = vector.shape_cast %152 : vector<4x16xf32> to vector<1x4x16xf32>
    %154 = vector.broadcast %150 : vector<3x4x1xf32> to vector<3x4x16xf32>
    %155 = vector.broadcast %153 : vector<1x4x16xf32> to vector<3x4x16xf32>
    %156 = arith.mulf %154, %155 : vector<3x4x16xf32>
    %157 = arith.addf %128, %156 : vector<3x4x16xf32>
    %c0_66 = arith.constant 0 : index
    %c0_67 = arith.constant 0 : index
    %c2_68 = arith.constant 2 : index
    %158 = vector.load %arg4[%c0_66, %c0_67, %c2_68] : memref<1x4x19xf32, #tpu.memory_space<vmem>>, vector<1x4x16xf32>
    %159 = vector.shape_cast %158 : vector<1x4x16xf32> to vector<4x16xf32>
    %160 = vector.shape_cast %159 : vector<4x16xf32> to vector<1x4x16xf32>
    %161 = vector.broadcast %150 : vector<3x4x1xf32> to vector<3x4x16xf32>
    %162 = vector.broadcast %160 : vector<1x4x16xf32> to vector<3x4x16xf32>
    %163 = arith.mulf %161, %162 : vector<3x4x16xf32>
    %164 = arith.addf %135, %163 : vector<3x4x16xf32>
    %c0_69 = arith.constant 0 : index
    %c0_70 = arith.constant 0 : index
    %c3 = arith.constant 3 : index
    %165 = vector.load %arg1[%c0_69, %c0_70, %c3] : memref<1x4x19xf32, #tpu.memory_space<vmem>>, vector<1x4x16xf32>
    %166 = vector.shape_cast %165 : vector<1x4x16xf32> to vector<4x16xf32>
    %167 = vector.shape_cast %166 : vector<4x16xf32> to vector<1x4x16xf32>
    %168 = vector.broadcast %150 : vector<3x4x1xf32> to vector<3x4x16xf32>
    %169 = vector.broadcast %167 : vector<1x4x16xf32> to vector<3x4x16xf32>
    %170 = arith.mulf %168, %169 : vector<3x4x16xf32>
    %171 = arith.addf %142, %170 : vector<3x4x16xf32>
    %c0_71 = arith.constant 0 : index
    %c0_72 = arith.constant 0 : index
    %c3_73 = arith.constant 3 : index
    %172 = vector.load %arg3[%c0_71, %c0_72, %c3_73] : memref<1x4x19xf32, #tpu.memory_space<vmem>>, vector<1x4x16xf32>
    %173 = vector.shape_cast %172 : vector<1x4x16xf32> to vector<4x16xf32>
    %174 = vector.shape_cast %173 : vector<4x16xf32> to vector<1x4x16xf32>
    %175 = vector.broadcast %150 : vector<3x4x1xf32> to vector<3x4x16xf32>
    %176 = vector.broadcast %174 : vector<1x4x16xf32> to vector<3x4x16xf32>
    %177 = arith.mulf %175, %176 : vector<3x4x16xf32>
    %178 = arith.addf %149, %177 : vector<3x4x16xf32>
    %179 = vector.extract_strided_slice %0 {offsets = [0, 0, 6], sizes = [3, 4, 1], strides = [1, 1, 1]} : vector<3x4x7xf32> to vector<3x4x1xf32>
    %c0_74 = arith.constant 0 : index
    %c0_75 = arith.constant 0 : index
    %c3_76 = arith.constant 3 : index
    %180 = vector.load %arg1[%c0_74, %c0_75, %c3_76] : memref<1x4x19xf32, #tpu.memory_space<vmem>>, vector<1x4x16xf32>
    %181 = vector.shape_cast %180 : vector<1x4x16xf32> to vector<4x16xf32>
    %182 = vector.shape_cast %181 : vector<4x16xf32> to vector<1x4x16xf32>
    %183 = vector.broadcast %179 : vector<3x4x1xf32> to vector<3x4x16xf32>
    %184 = vector.broadcast %182 : vector<1x4x16xf32> to vector<3x4x16xf32>
    %185 = arith.mulf %183, %184 : vector<3x4x16xf32>
    %186 = arith.addf %157, %185 : vector<3x4x16xf32>
    %c0_77 = arith.constant 0 : index
    %c0_78 = arith.constant 0 : index
    %c3_79 = arith.constant 3 : index
    %187 = vector.load %arg3[%c0_77, %c0_78, %c3_79] : memref<1x4x19xf32, #tpu.memory_space<vmem>>, vector<1x4x16xf32>
    %188 = vector.shape_cast %187 : vector<1x4x16xf32> to vector<4x16xf32>
    %189 = vector.shape_cast %188 : vector<4x16xf32> to vector<1x4x16xf32>
    %190 = vector.broadcast %179 : vector<3x4x1xf32> to vector<3x4x16xf32>
    %191 = vector.broadcast %189 : vector<1x4x16xf32> to vector<3x4x16xf32>
    %192 = arith.mulf %190, %191 : vector<3x4x16xf32>
    %193 = arith.addf %164, %192 : vector<3x4x16xf32>
    %c0_80 = arith.constant 0 : index
    %c0_81 = arith.constant 0 : index
    %c3_82 = arith.constant 3 : index
    %194 = vector.load %arg2[%c0_80, %c0_81, %c3_82] : memref<1x4x19xf32, #tpu.memory_space<vmem>>, vector<1x4x16xf32>
    %195 = vector.shape_cast %194 : vector<1x4x16xf32> to vector<4x16xf32>
    %196 = vector.shape_cast %195 : vector<4x16xf32> to vector<1x4x16xf32>
    %197 = vector.broadcast %179 : vector<3x4x1xf32> to vector<3x4x16xf32>
    %198 = vector.broadcast %196 : vector<1x4x16xf32> to vector<3x4x16xf32>
    %199 = arith.mulf %197, %198 : vector<3x4x16xf32>
    %200 = arith.addf %171, %199 : vector<3x4x16xf32>
    %c0_83 = arith.constant 0 : index
    %c0_84 = arith.constant 0 : index
    %c3_85 = arith.constant 3 : index
    %201 = vector.load %arg4[%c0_83, %c0_84, %c3_85] : memref<1x4x19xf32, #tpu.memory_space<vmem>>, vector<1x4x16xf32>
    %202 = vector.shape_cast %201 : vector<1x4x16xf32> to vector<4x16xf32>
    %203 = vector.shape_cast %202 : vector<4x16xf32> to vector<1x4x16xf32>
    %204 = vector.broadcast %179 : vector<3x4x1xf32> to vector<3x4x16xf32>
    %205 = vector.broadcast %203 : vector<1x4x16xf32> to vector<3x4x16xf32>
    %206 = arith.mulf %204, %205 : vector<3x4x16xf32>
    %207 = arith.addf %178, %206 : vector<3x4x16xf32>
    %208 = arith.mulf %186, %186 : vector<3x4x16xf32>
    %209 = arith.mulf %193, %193 : vector<3x4x16xf32>
    %210 = arith.addf %208, %209 : vector<3x4x16xf32>
    %211 = math.sqrt %210 : vector<3x4x16xf32>
    %212 = arith.mulf %200, %200 : vector<3x4x16xf32>
    %213 = arith.mulf %207, %207 : vector<3x4x16xf32>
    %214 = arith.addf %212, %213 : vector<3x4x16xf32>
    %215 = math.sqrt %214 : vector<3x4x16xf32>
    %c0_86 = arith.constant 0 : index
    %c0_87 = arith.constant 0 : index
    %c1_88 = arith.constant 1 : index
    %216 = vector.load %arg8[%c0_86, %c0_87, %c1_88] : memref<3x4x18xf32, #tpu.memory_space<vmem>>, vector<3x4x16xf32>
    tpu.vector_store %arg8[%c0_86, %c0_87, %c1_88], %211 {strides = array<i32>} : memref<3x4x18xf32, #tpu.memory_space<vmem>>, vector<3x4x16xf32>,
    %c0_89 = arith.constant 0 : index
    %c0_90 = arith.constant 0 : index
    %c1_91 = arith.constant 1 : index
    %217 = vector.load %arg9[%c0_89, %c0_90, %c1_91] : memref<3x4x18xf32, #tpu.memory_space<vmem>>, vector<3x4x16xf32>
    tpu.vector_store %arg9[%c0_89, %c0_90, %c1_91], %215 {strides = array<i32>} : memref<3x4x18xf32, #tpu.memory_space<vmem>>, vector<3x4x16xf32>,
    %218 = vector.extract_strided_slice %215 {offsets = [0, 0, 0], sizes = [3, 4, 1], strides = [1, 1, 1]} : vector<3x4x16xf32> to vector<3x4x1xf32>
    %c0_92 = arith.constant 0 : index
    %c0_93 = arith.constant 0 : index
    %c0_94 = arith.constant 0 : index
    %219 = vector.load %arg8[%c0_92, %c0_93, %c0_94] : memref<3x4x18xf32, #tpu.memory_space<vmem>>, vector<3x4x1xf32>
    tpu.vector_store %arg8[%c0_92, %c0_93, %c0_94], %218 {strides = array<i32>} : memref<3x4x18xf32, #tpu.memory_space<vmem>>, vector<3x4x1xf32>,
    %220 = vector.extract_strided_slice %211 {offsets = [0, 0, 0], sizes = [3, 4, 1], strides = [1, 1, 1]} : vector<3x4x16xf32> to vector<3x4x1xf32>
    %c0_95 = arith.constant 0 : index
    %c0_96 = arith.constant 0 : index
    %c0_97 = arith.constant 0 : index
    %221 = vector.load %arg9[%c0_95, %c0_96, %c0_97] : memref<3x4x18xf32, #tpu.memory_space<vmem>>, vector<3x4x1xf32>
    tpu.vector_store %arg9[%c0_95, %c0_96, %c0_97], %220 {strides = array<i32>} : memref<3x4x18xf32, #tpu.memory_space<vmem>>, vector<3x4x1xf32>,
    %222 = vector.extract_strided_slice %215 {offsets = [0, 0, 15], sizes = [3, 4, 1], strides = [1, 1, 1]} : vector<3x4x16xf32> to vector<3x4x1xf32>
    %c0_98 = arith.constant 0 : index
    %c0_99 = arith.constant 0 : index
    %c17 = arith.constant 17 : index
    %223 = vector.load %arg8[%c0_98, %c0_99, %c17] : memref<3x4x18xf32, #tpu.memory_space<vmem>>, vector<3x4x1xf32>
    tpu.vector_store %arg8[%c0_98, %c0_99, %c17], %222 {strides = array<i32>} : memref<3x4x18xf32, #tpu.memory_space<vmem>>, vector<3x4x1xf32>,
    %224 = vector.extract_strided_slice %211 {offsets = [0, 0, 15], sizes = [3, 4, 1], strides = [1, 1, 1]} : vector<3x4x16xf32> to vector<3x4x1xf32>
    %c0_100 = arith.constant 0 : index
    %c0_101 = arith.constant 0 : index
    %c17_102 = arith.constant 17 : index
    %225 = vector.load %arg9[%c0_100, %c0_101, %c17_102] : memref<3x4x18xf32, #tpu.memory_space<vmem>>, vector<3x4x1xf32>
    tpu.vector_store %arg9[%c0_100, %c0_101, %c17_102], %224 {strides = array<i32>} : memref<3x4x18xf32, #tpu.memory_space<vmem>>, vector<3x4x1xf32>,
    %c0_103 = arith.constant 0 : index
    %c0_104 = arith.constant 0 : index
    %c0_105 = arith.constant 0 : index
    %226 = vector.load %arg8[%c0_103, %c0_104, %c0_105] : memref<3x4x18xf32, #tpu.memory_space<vmem>>, vector<3x4x16xf32>
    %c0_106 = arith.constant 0 : index
    %c0_107 = arith.constant 0 : index
    %c0_108 = arith.constant 0 : index
    %227 = vector.load %arg9[%c0_106, %c0_107, %c0_108] : memref<3x4x18xf32, #tpu.memory_space<vmem>>, vector<3x4x16xf32>
    %c0_109 = arith.constant 0 : index
    %c0_110 = arith.constant 0 : index
    %c2_111 = arith.constant 2 : index
    %228 = vector.load %arg8[%c0_109, %c0_110, %c2_111] : memref<3x4x18xf32, #tpu.memory_space<vmem>>, vector<3x4x16xf32>
    %c0_112 = arith.constant 0 : index
    %c0_113 = arith.constant 0 : index
    %c2_114 = arith.constant 2 : index
    %229 = vector.load %arg9[%c0_112, %c0_113, %c2_114] : memref<3x4x18xf32, #tpu.memory_space<vmem>>, vector<3x4x16xf32>
    %cst_115 = arith.constant -5.000000e-02 : f32
    %230 = vector.broadcast %cst_115 : f32 to vector<3x4x16xf32>
    %231 = arith.mulf %230, %226 : vector<3x4x16xf32>
    %cst_116 = arith.constant 2.500000e-01 : f32
    %232 = vector.broadcast %cst_116 : f32 to vector<3x4x16xf32>
    %233 = arith.mulf %232, %227 : vector<3x4x16xf32>
    %234 = arith.addf %231, %233 : vector<3x4x16xf32>
    %cst_117 = arith.constant 6.000000e-01 : f32
    %235 = vector.broadcast %cst_117 : f32 to vector<3x4x16xf32>
    %236 = arith.mulf %235, %211 : vector<3x4x16xf32>
    %237 = arith.addf %234, %236 : vector<3x4x16xf32>
    %cst_118 = arith.constant 2.500000e-01 : f32
    %238 = vector.broadcast %cst_118 : f32 to vector<3x4x16xf32>
    %239 = arith.mulf %238, %215 : vector<3x4x16xf32>
    %240 = arith.addf %237, %239 : vector<3x4x16xf32>
    %cst_119 = arith.constant -5.000000e-02 : f32
    %241 = vector.broadcast %cst_119 : f32 to vector<3x4x16xf32>
    %242 = arith.mulf %241, %228 : vector<3x4x16xf32>
    %243 = arith.addf %240, %242 : vector<3x4x16xf32>
    %c0_120 = arith.constant 0 : index
    %c0_121 = arith.constant 0 : index
    %c0_122 = arith.constant 0 : index
    %c0_123 = arith.constant 0 : index
    %244 = vector.load %arg6[%c0_120, %c0_121, %c0_122, %c0_123] : memref<1x3x4x16xf32, #tpu.memory_space<vmem>>, vector<1x3x4x16xf32>
    %245 = vector.shape_cast %244 : vector<1x3x4x16xf32> to vector<3x4x16xf32>
    %246 = vector.shape_cast %243 : vector<3x4x16xf32> to vector<1x3x4x16xf32>
    tpu.vector_store %arg6[%c0_120, %c0_121, %c0_122, %c0_123], %246 {strides = array<i32>} : memref<1x3x4x16xf32, #tpu.memory_space<vmem>>, vector<1x3x4x16xf32>,
    %cst_124 = arith.constant -5.000000e-02 : f32
    %247 = vector.broadcast %cst_124 : f32 to vector<3x4x16xf32>
    %248 = arith.mulf %247, %227 : vector<3x4x16xf32>
    %cst_125 = arith.constant 2.500000e-01 : f32
    %249 = vector.broadcast %cst_125 : f32 to vector<3x4x16xf32>
    %250 = arith.mulf %249, %211 : vector<3x4x16xf32>
    %251 = arith.addf %248, %250 : vector<3x4x16xf32>
    %cst_126 = arith.constant 6.000000e-01 : f32
    %252 = vector.broadcast %cst_126 : f32 to vector<3x4x16xf32>
    %253 = arith.mulf %252, %215 : vector<3x4x16xf32>
    %254 = arith.addf %251, %253 : vector<3x4x16xf32>
    %cst_127 = arith.constant 2.500000e-01 : f32
    %255 = vector.broadcast %cst_127 : f32 to vector<3x4x16xf32>
    %256 = arith.mulf %255, %228 : vector<3x4x16xf32>
    %257 = arith.addf %254, %256 : vector<3x4x16xf32>
    %cst_128 = arith.constant -5.000000e-02 : f32
    %258 = vector.broadcast %cst_128 : f32 to vector<3x4x16xf32>
    %259 = arith.mulf %258, %229 : vector<3x4x16xf32>
    %260 = arith.addf %257, %259 : vector<3x4x16xf32>
    %c0_129 = arith.constant 0 : index
    %c0_130 = arith.constant 0 : index
    %c0_131 = arith.constant 0 : index
    %c0_132 = arith.constant 0 : index
    %261 = vector.load %arg7[%c0_129, %c0_130, %c0_131, %c0_132] : memref<1x3x4x16xf32, #tpu.memory_space<vmem>>, vector<1x3x4x16xf32>
    %262 = vector.shape_cast %261 : vector<1x3x4x16xf32> to vector<3x4x16xf32>
    %263 = vector.shape_cast %260 : vector<3x4x16xf32> to vector<1x3x4x16xf32>
    tpu.vector_store %arg7[%c0_129, %c0_130, %c0_131, %c0_132], %263 {strides = array<i32>} : memref<1x3x4x16xf32, #tpu.memory_space<vmem>>, vector<1x3x4x16xf32>,
    return
  }
  func.func @transform_0(%arg0: i32) -> (i32, i32, i32) {
    %c0_i32 = arith.constant 0 : i32
    %c0_i32_0 = arith.constant 0 : i32
    %c0_i32_1 = arith.constant 0 : i32
    return %arg0, %c0_i32, %c0_i32_0 : i32, i32, i32
  }
  func.func @transform_1(%arg0: i32) -> (i32, i32, i32) {
    %c0_i32 = arith.constant 0 : i32
    %c0_i32_0 = arith.constant 0 : i32
    %c0_i32_1 = arith.constant 0 : i32
    return %arg0, %c0_i32, %c0_i32_0 : i32, i32, i32
  }
  func.func @transform_2(%arg0: i32) -> (i32, i32, i32) {
    %c0_i32 = arith.constant 0 : i32
    %c0_i32_0 = arith.constant 0 : i32
    %c0_i32_1 = arith.constant 0 : i32
    return %arg0, %c0_i32, %c0_i32_0 : i32, i32, i32
  }
  func.func @transform_3(%arg0: i32) -> (i32, i32, i32) {
    %c0_i32 = arith.constant 0 : i32
    %c0_i32_0 = arith.constant 0 : i32
    %c0_i32_1 = arith.constant 0 : i32
    return %arg0, %c0_i32, %c0_i32_0 : i32, i32, i32
  }
  func.func @transform_4(%arg0: i32) -> (i32, i32, i32) {
    %c0_i32 = arith.constant 0 : i32
    %c0_i32_0 = arith.constant 0 : i32
    %c0_i32_1 = arith.constant 0 : i32
    %c0_i32_2 = arith.constant 0 : i32
    return %c0_i32, %c0_i32_0, %c0_i32_1 : i32, i32, i32
  }
  func.func @transform_5(%arg0: i32) -> (i32, i32, i32, i32) {
    %c0_i32 = arith.constant 0 : i32
    %c0_i32_0 = arith.constant 0 : i32
    %c0_i32_1 = arith.constant 0 : i32
    %c0_i32_2 = arith.constant 0 : i32
    return %arg0, %c0_i32, %c0_i32_0, %c0_i32_1 : i32, i32, i32, i32
  }
  func.func @transform_6(%arg0: i32) -> (i32, i32, i32, i32) {
    %c0_i32 = arith.constant 0 : i32
    %c0_i32_0 = arith.constant 0 : i32
    %c0_i32_1 = arith.constant 0 : i32
    %c0_i32_2 = arith.constant 0 : i32
    return %arg0, %c0_i32, %c0_i32_0, %c0_i32_1 : i32, i32, i32, i32
  }
}

module attributes {stable_mosaic.version = 11 : i64} {
  func.func @kernel(%arg0: i32, %arg1: memref<24x10xf32, #tpu.memory_space<vmem>>, %arg2: memref<24x10xf32, #tpu.memory_space<vmem>>, %arg3: memref<24x10xf32, #tpu.memory_space<vmem>>, %arg4: memref<24x10xf32, #tpu.memory_space<vmem>>, %arg5: memref<24x8xf32, #tpu.memory_space<vmem>>, %arg6: memref<24x8xf32, #tpu.memory_space<vmem>>) attributes {dimension_semantics = [#tpu.dimension_semantics<parallel>], iteration_bounds = array<i64: 1>, scalar_prefetch = 0 : i64, scratch_operands = 0 : i64, tpu.core_type = #tpu.core_type<tc>, window_params = [{transform_indices = @transform_0, window_bounds = array<i64: 24, 10>}, {transform_indices = @transform_1, window_bounds = array<i64: 24, 10>}, {transform_indices = @transform_2, window_bounds = array<i64: 24, 10>}, {transform_indices = @transform_3, window_bounds = array<i64: 24, 10>}, {transform_indices = @transform_4, window_bounds = array<i64: 24, 8>}, {transform_indices = @transform_5, window_bounds = array<i64: 24, 8>}]} {
    %cst = arith.constant 0.000000e+00 : f32
    %0 = vector.broadcast %cst : f32 to vector<24x8xf32>
    %c0 = arith.constant 0 : index
    %c0_0 = arith.constant 0 : index
    %1 = vector.load %arg1[%c0, %c0_0] : memref<24x10xf32, #tpu.memory_space<vmem>>, vector<24x8xf32>
    %cst_1 = arith.constant 0.341506362 : f32
    %2 = vector.broadcast %cst_1 : f32 to vector<24x8xf32>
    %3 = arith.mulf %2, %1 : vector<24x8xf32>
    %4 = arith.addf %0, %3 : vector<24x8xf32>
    %c0_2 = arith.constant 0 : index
    %c0_3 = arith.constant 0 : index
    %5 = vector.load %arg2[%c0_2, %c0_3] : memref<24x10xf32, #tpu.memory_space<vmem>>, vector<24x8xf32>
    %cst_4 = arith.constant 0.591506362 : f32
    %6 = vector.broadcast %cst_4 : f32 to vector<24x8xf32>
    %7 = arith.mulf %6, %5 : vector<24x8xf32>
    %8 = arith.addf %4, %7 : vector<24x8xf32>
    %c0_5 = arith.constant 0 : index
    %c1 = arith.constant 1 : index
    %9 = vector.load %arg1[%c0_5, %c1] : memref<24x10xf32, #tpu.memory_space<vmem>>, vector<24x8xf32>
    %cst_6 = arith.constant 0.158493653 : f32
    %10 = vector.broadcast %cst_6 : f32 to vector<24x8xf32>
    %11 = arith.mulf %10, %9 : vector<24x8xf32>
    %12 = arith.addf %8, %11 : vector<24x8xf32>
    %c0_7 = arith.constant 0 : index
    %c1_8 = arith.constant 1 : index
    %13 = vector.load %arg2[%c0_7, %c1_8] : memref<24x10xf32, #tpu.memory_space<vmem>>, vector<24x8xf32>
    %cst_9 = arith.constant -0.0915063545 : f32
    %14 = vector.broadcast %cst_9 : f32 to vector<24x8xf32>
    %15 = arith.mulf %14, %13 : vector<24x8xf32>
    %16 = arith.addf %12, %15 : vector<24x8xf32>
    %c0_10 = arith.constant 0 : index
    %c0_11 = arith.constant 0 : index
    %17 = vector.load %arg5[%c0_10, %c0_11] : memref<24x8xf32, #tpu.memory_space<vmem>>, vector<24x8xf32>
    tpu.vector_store %arg5[%c0_10, %c0_11], %16 {strides = array<i32>} : memref<24x8xf32, #tpu.memory_space<vmem>>, vector<24x8xf32>,
    %cst_12 = arith.constant 0.000000e+00 : f32
    %18 = vector.broadcast %cst_12 : f32 to vector<24x8xf32>
    %c0_13 = arith.constant 0 : index
    %c0_14 = arith.constant 0 : index
    %19 = vector.load %arg3[%c0_13, %c0_14] : memref<24x10xf32, #tpu.memory_space<vmem>>, vector<24x8xf32>
    %cst_15 = arith.constant -0.0915063545 : f32
    %20 = vector.broadcast %cst_15 : f32 to vector<24x8xf32>
    %21 = arith.mulf %20, %19 : vector<24x8xf32>
    %22 = arith.addf %18, %21 : vector<24x8xf32>
    %c0_16 = arith.constant 0 : index
    %c0_17 = arith.constant 0 : index
    %23 = vector.load %arg4[%c0_16, %c0_17] : memref<24x10xf32, #tpu.memory_space<vmem>>, vector<24x8xf32>
    %cst_18 = arith.constant 0.158493653 : f32
    %24 = vector.broadcast %cst_18 : f32 to vector<24x8xf32>
    %25 = arith.mulf %24, %23 : vector<24x8xf32>
    %26 = arith.addf %22, %25 : vector<24x8xf32>
    %c0_19 = arith.constant 0 : index
    %c1_20 = arith.constant 1 : index
    %27 = vector.load %arg3[%c0_19, %c1_20] : memref<24x10xf32, #tpu.memory_space<vmem>>, vector<24x8xf32>
    %cst_21 = arith.constant 0.591506362 : f32
    %28 = vector.broadcast %cst_21 : f32 to vector<24x8xf32>
    %29 = arith.mulf %28, %27 : vector<24x8xf32>
    %30 = arith.addf %26, %29 : vector<24x8xf32>
    %c0_22 = arith.constant 0 : index
    %c1_23 = arith.constant 1 : index
    %31 = vector.load %arg4[%c0_22, %c1_23] : memref<24x10xf32, #tpu.memory_space<vmem>>, vector<24x8xf32>
    %cst_24 = arith.constant 0.341506362 : f32
    %32 = vector.broadcast %cst_24 : f32 to vector<24x8xf32>
    %33 = arith.mulf %32, %31 : vector<24x8xf32>
    %34 = arith.addf %30, %33 : vector<24x8xf32>
    %c0_25 = arith.constant 0 : index
    %c0_26 = arith.constant 0 : index
    %35 = vector.load %arg6[%c0_25, %c0_26] : memref<24x8xf32, #tpu.memory_space<vmem>>, vector<24x8xf32>
    tpu.vector_store %arg6[%c0_25, %c0_26], %34 {strides = array<i32>} : memref<24x8xf32, #tpu.memory_space<vmem>>, vector<24x8xf32>,
    return
  }
  func.func @transform_0(%arg0: i32) -> (i32, i32) {
    %c0_i32 = arith.constant 0 : i32
    %c0_i32_0 = arith.constant 0 : i32
    return %arg0, %c0_i32 : i32, i32
  }
  func.func @transform_1(%arg0: i32) -> (i32, i32) {
    %c0_i32 = arith.constant 0 : i32
    %c0_i32_0 = arith.constant 0 : i32
    return %arg0, %c0_i32 : i32, i32
  }
  func.func @transform_2(%arg0: i32) -> (i32, i32) {
    %c0_i32 = arith.constant 0 : i32
    %c0_i32_0 = arith.constant 0 : i32
    return %arg0, %c0_i32 : i32, i32
  }
  func.func @transform_3(%arg0: i32) -> (i32, i32) {
    %c0_i32 = arith.constant 0 : i32
    %c0_i32_0 = arith.constant 0 : i32
    return %arg0, %c0_i32 : i32, i32
  }
  func.func @transform_4(%arg0: i32) -> (i32, i32) {
    %c0_i32 = arith.constant 0 : i32
    %c0_i32_0 = arith.constant 0 : i32
    return %arg0, %c0_i32 : i32, i32
  }
  func.func @transform_5(%arg0: i32) -> (i32, i32) {
    %c0_i32 = arith.constant 0 : i32
    %c0_i32_0 = arith.constant 0 : i32
    return %arg0, %c0_i32 : i32, i32
  }
}

module attributes {stable_mosaic.version = 11 : i64} {
  func.func @kernel(%arg0: i32, %arg1: memref<24x6xf32, #tpu.memory_space<vmem>>, %arg2: memref<24x6xf32, #tpu.memory_space<vmem>>, %arg3: memref<24x6xf32, #tpu.memory_space<vmem>>, %arg4: memref<24x6xf32, #tpu.memory_space<vmem>>, %arg5: memref<24x4xf32, #tpu.memory_space<vmem>>, %arg6: memref<24x4xf32, #tpu.memory_space<vmem>>) attributes {dimension_semantics = [#tpu.dimension_semantics<parallel>], iteration_bounds = array<i64: 1>, scalar_prefetch = 0 : i64, scratch_operands = 0 : i64, tpu.core_type = #tpu.core_type<tc>, window_params = [{transform_indices = @transform_0, window_bounds = array<i64: 24, 6>}, {transform_indices = @transform_1, window_bounds = array<i64: 24, 6>}, {transform_indices = @transform_2, window_bounds = array<i64: 24, 6>}, {transform_indices = @transform_3, window_bounds = array<i64: 24, 6>}, {transform_indices = @transform_4, window_bounds = array<i64: 24, 4>}, {transform_indices = @transform_5, window_bounds = array<i64: 24, 4>}]} {
    %cst = arith.constant 0.000000e+00 : f32
    %0 = vector.broadcast %cst : f32 to vector<24x4xf32>
    %c0 = arith.constant 0 : index
    %c0_0 = arith.constant 0 : index
    %1 = vector.load %arg1[%c0, %c0_0] : memref<24x6xf32, #tpu.memory_space<vmem>>, vector<24x4xf32>
    %cst_1 = arith.constant 0.341506362 : f32
    %2 = vector.broadcast %cst_1 : f32 to vector<24x4xf32>
    %3 = arith.mulf %2, %1 : vector<24x4xf32>
    %4 = arith.addf %0, %3 : vector<24x4xf32>
    %c0_2 = arith.constant 0 : index
    %c0_3 = arith.constant 0 : index
    %5 = vector.load %arg2[%c0_2, %c0_3] : memref<24x6xf32, #tpu.memory_space<vmem>>, vector<24x4xf32>
    %cst_4 = arith.constant 0.591506362 : f32
    %6 = vector.broadcast %cst_4 : f32 to vector<24x4xf32>
    %7 = arith.mulf %6, %5 : vector<24x4xf32>
    %8 = arith.addf %4, %7 : vector<24x4xf32>
    %c0_5 = arith.constant 0 : index
    %c1 = arith.constant 1 : index
    %9 = vector.load %arg1[%c0_5, %c1] : memref<24x6xf32, #tpu.memory_space<vmem>>, vector<24x4xf32>
    %cst_6 = arith.constant 0.158493653 : f32
    %10 = vector.broadcast %cst_6 : f32 to vector<24x4xf32>
    %11 = arith.mulf %10, %9 : vector<24x4xf32>
    %12 = arith.addf %8, %11 : vector<24x4xf32>
    %c0_7 = arith.constant 0 : index
    %c1_8 = arith.constant 1 : index
    %13 = vector.load %arg2[%c0_7, %c1_8] : memref<24x6xf32, #tpu.memory_space<vmem>>, vector<24x4xf32>
    %cst_9 = arith.constant -0.0915063545 : f32
    %14 = vector.broadcast %cst_9 : f32 to vector<24x4xf32>
    %15 = arith.mulf %14, %13 : vector<24x4xf32>
    %16 = arith.addf %12, %15 : vector<24x4xf32>
    %c0_10 = arith.constant 0 : index
    %c0_11 = arith.constant 0 : index
    %17 = vector.load %arg5[%c0_10, %c0_11] : memref<24x4xf32, #tpu.memory_space<vmem>>, vector<24x4xf32>
    tpu.vector_store %arg5[%c0_10, %c0_11], %16 {strides = array<i32>} : memref<24x4xf32, #tpu.memory_space<vmem>>, vector<24x4xf32>,
    %cst_12 = arith.constant 0.000000e+00 : f32
    %18 = vector.broadcast %cst_12 : f32 to vector<24x4xf32>
    %c0_13 = arith.constant 0 : index
    %c0_14 = arith.constant 0 : index
    %19 = vector.load %arg3[%c0_13, %c0_14] : memref<24x6xf32, #tpu.memory_space<vmem>>, vector<24x4xf32>
    %cst_15 = arith.constant -0.0915063545 : f32
    %20 = vector.broadcast %cst_15 : f32 to vector<24x4xf32>
    %21 = arith.mulf %20, %19 : vector<24x4xf32>
    %22 = arith.addf %18, %21 : vector<24x4xf32>
    %c0_16 = arith.constant 0 : index
    %c0_17 = arith.constant 0 : index
    %23 = vector.load %arg4[%c0_16, %c0_17] : memref<24x6xf32, #tpu.memory_space<vmem>>, vector<24x4xf32>
    %cst_18 = arith.constant 0.158493653 : f32
    %24 = vector.broadcast %cst_18 : f32 to vector<24x4xf32>
    %25 = arith.mulf %24, %23 : vector<24x4xf32>
    %26 = arith.addf %22, %25 : vector<24x4xf32>
    %c0_19 = arith.constant 0 : index
    %c1_20 = arith.constant 1 : index
    %27 = vector.load %arg3[%c0_19, %c1_20] : memref<24x6xf32, #tpu.memory_space<vmem>>, vector<24x4xf32>
    %cst_21 = arith.constant 0.591506362 : f32
    %28 = vector.broadcast %cst_21 : f32 to vector<24x4xf32>
    %29 = arith.mulf %28, %27 : vector<24x4xf32>
    %30 = arith.addf %26, %29 : vector<24x4xf32>
    %c0_22 = arith.constant 0 : index
    %c1_23 = arith.constant 1 : index
    %31 = vector.load %arg4[%c0_22, %c1_23] : memref<24x6xf32, #tpu.memory_space<vmem>>, vector<24x4xf32>
    %cst_24 = arith.constant 0.341506362 : f32
    %32 = vector.broadcast %cst_24 : f32 to vector<24x4xf32>
    %33 = arith.mulf %32, %31 : vector<24x4xf32>
    %34 = arith.addf %30, %33 : vector<24x4xf32>
    %c0_25 = arith.constant 0 : index
    %c0_26 = arith.constant 0 : index
    %35 = vector.load %arg6[%c0_25, %c0_26] : memref<24x4xf32, #tpu.memory_space<vmem>>, vector<24x4xf32>
    tpu.vector_store %arg6[%c0_25, %c0_26], %34 {strides = array<i32>} : memref<24x4xf32, #tpu.memory_space<vmem>>, vector<24x4xf32>,
    return
  }
  func.func @transform_0(%arg0: i32) -> (i32, i32) {
    %c0_i32 = arith.constant 0 : i32
    %c0_i32_0 = arith.constant 0 : i32
    return %arg0, %c0_i32 : i32, i32
  }
  func.func @transform_1(%arg0: i32) -> (i32, i32) {
    %c0_i32 = arith.constant 0 : i32
    %c0_i32_0 = arith.constant 0 : i32
    return %arg0, %c0_i32 : i32, i32
  }
  func.func @transform_2(%arg0: i32) -> (i32, i32) {
    %c0_i32 = arith.constant 0 : i32
    %c0_i32_0 = arith.constant 0 : i32
    return %arg0, %c0_i32 : i32, i32
  }
  func.func @transform_3(%arg0: i32) -> (i32, i32) {
    %c0_i32 = arith.constant 0 : i32
    %c0_i32_0 = arith.constant 0 : i32
    return %arg0, %c0_i32 : i32, i32
  }
  func.func @transform_4(%arg0: i32) -> (i32, i32) {
    %c0_i32 = arith.constant 0 : i32
    %c0_i32_0 = arith.constant 0 : i32
    return %arg0, %c0_i32 : i32, i32
  }
  func.func @transform_5(%arg0: i32) -> (i32, i32) {
    %c0_i32 = arith.constant 0 : i32
    %c0_i32_0 = arith.constant 0 : i32
    return %arg0, %c0_i32 : i32, i32
  }
}

module attributes {stable_mosaic.version = 11 : i64} {
  func.func @kernel(%arg0: i32, %arg1: memref<8x18xf32, #tpu.memory_space<vmem>>, %arg2: memref<8x18xf32, #tpu.memory_space<vmem>>, %arg3: memref<8x18xf32, #tpu.memory_space<vmem>>, %arg4: memref<8x18xf32, #tpu.memory_space<vmem>>, %arg5: memref<8x16xf32, #tpu.memory_space<vmem>>, %arg6: memref<8x16xf32, #tpu.memory_space<vmem>>, %arg7: memref<8x16xf32, #tpu.memory_space<vmem>>, %arg8: memref<8x16xf32, #tpu.memory_space<vmem>>) attributes {dimension_semantics = [#tpu.dimension_semantics<parallel>], iteration_bounds = array<i64: 1>, scalar_prefetch = 0 : i64, scratch_operands = 0 : i64, tpu.core_type = #tpu.core_type<tc>, window_params = [{transform_indices = @transform_0, window_bounds = array<i64: 8, 18>}, {transform_indices = @transform_1, window_bounds = array<i64: 8, 18>}, {transform_indices = @transform_2, window_bounds = array<i64: 8, 18>}, {transform_indices = @transform_3, window_bounds = array<i64: 8, 18>}, {transform_indices = @transform_4, window_bounds = array<i64: 8, 16>}, {transform_indices = @transform_5, window_bounds = array<i64: 8, 16>}, {transform_indices = @transform_6, window_bounds = array<i64: 8, 16>}, {transform_indices = @transform_7, window_bounds = array<i64: 8, 16>}]} {
    %cst = arith.constant 0.000000e+00 : f32
    %0 = vector.broadcast %cst : f32 to vector<8x16xf32>
    %c0 = arith.constant 0 : index
    %c0_0 = arith.constant 0 : index
    %1 = vector.load %arg1[%c0, %c0_0] : memref<8x18xf32, #tpu.memory_space<vmem>>, vector<8x16xf32>
    %cst_1 = arith.constant -0.0915063545 : f32
    %2 = vector.broadcast %cst_1 : f32 to vector<8x16xf32>
    %3 = arith.mulf %2, %1 : vector<8x16xf32>
    %4 = arith.addf %0, %3 : vector<8x16xf32>
    %c0_2 = arith.constant 0 : index
    %c0_3 = arith.constant 0 : index
    %5 = vector.load %arg2[%c0_2, %c0_3] : memref<8x18xf32, #tpu.memory_space<vmem>>, vector<8x16xf32>
    %cst_4 = arith.constant -0.158493653 : f32
    %6 = vector.broadcast %cst_4 : f32 to vector<8x16xf32>
    %7 = arith.mulf %6, %5 : vector<8x16xf32>
    %8 = arith.addf %4, %7 : vector<8x16xf32>
    %c0_5 = arith.constant 0 : index
    %c1 = arith.constant 1 : index
    %9 = vector.load %arg1[%c0_5, %c1] : memref<8x18xf32, #tpu.memory_space<vmem>>, vector<8x16xf32>
    %cst_6 = arith.constant 0.591506362 : f32
    %10 = vector.broadcast %cst_6 : f32 to vector<8x16xf32>
    %11 = arith.mulf %10, %9 : vector<8x16xf32>
    %12 = arith.addf %8, %11 : vector<8x16xf32>
    %c0_7 = arith.constant 0 : index
    %c1_8 = arith.constant 1 : index
    %13 = vector.load %arg2[%c0_7, %c1_8] : memref<8x18xf32, #tpu.memory_space<vmem>>, vector<8x16xf32>
    %cst_9 = arith.constant -0.341506362 : f32
    %14 = vector.broadcast %cst_9 : f32 to vector<8x16xf32>
    %15 = arith.mulf %14, %13 : vector<8x16xf32>
    %16 = arith.addf %12, %15 : vector<8x16xf32>
    %c0_10 = arith.constant 0 : index
    %c0_11 = arith.constant 0 : index
    %17 = vector.load %arg5[%c0_10, %c0_11] : memref<8x16xf32, #tpu.memory_space<vmem>>, vector<8x16xf32>
    tpu.vector_store %arg5[%c0_10, %c0_11], %16 {strides = array<i32>} : memref<8x16xf32, #tpu.memory_space<vmem>>, vector<8x16xf32>,
    %cst_12 = arith.constant 0.000000e+00 : f32
    %18 = vector.broadcast %cst_12 : f32 to vector<8x16xf32>
    %c0_13 = arith.constant 0 : index
    %c0_14 = arith.constant 0 : index
    %19 = vector.load %arg3[%c0_13, %c0_14] : memref<8x18xf32, #tpu.memory_space<vmem>>, vector<8x16xf32>
    %cst_15 = arith.constant -0.341506362 : f32
    %20 = vector.broadcast %cst_15 : f32 to vector<8x16xf32>
    %21 = arith.mulf %20, %19 : vector<8x16xf32>
    %22 = arith.addf %18, %21 : vector<8x16xf32>
    %c0_16 = arith.constant 0 : index
    %c0_17 = arith.constant 0 : index
    %23 = vector.load %arg4[%c0_16, %c0_17] : memref<8x18xf32, #tpu.memory_space<vmem>>, vector<8x16xf32>
    %cst_18 = arith.constant 0.591506362 : f32
    %24 = vector.broadcast %cst_18 : f32 to vector<8x16xf32>
    %25 = arith.mulf %24, %23 : vector<8x16xf32>
    %26 = arith.addf %22, %25 : vector<8x16xf32>
    %c0_19 = arith.constant 0 : index
    %c1_20 = arith.constant 1 : index
    %27 = vector.load %arg3[%c0_19, %c1_20] : memref<8x18xf32, #tpu.memory_space<vmem>>, vector<8x16xf32>
    %cst_21 = arith.constant -0.158493653 : f32
    %28 = vector.broadcast %cst_21 : f32 to vector<8x16xf32>
    %29 = arith.mulf %28, %27 : vector<8x16xf32>
    %30 = arith.addf %26, %29 : vector<8x16xf32>
    %c0_22 = arith.constant 0 : index
    %c1_23 = arith.constant 1 : index
    %31 = vector.load %arg4[%c0_22, %c1_23] : memref<8x18xf32, #tpu.memory_space<vmem>>, vector<8x16xf32>
    %cst_24 = arith.constant -0.0915063545 : f32
    %32 = vector.broadcast %cst_24 : f32 to vector<8x16xf32>
    %33 = arith.mulf %32, %31 : vector<8x16xf32>
    %34 = arith.addf %30, %33 : vector<8x16xf32>
    %c0_25 = arith.constant 0 : index
    %c0_26 = arith.constant 0 : index
    %35 = vector.load %arg6[%c0_25, %c0_26] : memref<8x16xf32, #tpu.memory_space<vmem>>, vector<8x16xf32>
    tpu.vector_store %arg6[%c0_25, %c0_26], %34 {strides = array<i32>} : memref<8x16xf32, #tpu.memory_space<vmem>>, vector<8x16xf32>,
    %cst_27 = arith.constant 0.000000e+00 : f32
    %36 = vector.broadcast %cst_27 : f32 to vector<8x16xf32>
    %c0_28 = arith.constant 0 : index
    %c0_29 = arith.constant 0 : index
    %37 = vector.load %arg1[%c0_28, %c0_29] : memref<8x18xf32, #tpu.memory_space<vmem>>, vector<8x16xf32>
    %cst_30 = arith.constant 0.341506362 : f32
    %38 = vector.broadcast %cst_30 : f32 to vector<8x16xf32>
    %39 = arith.mulf %38, %37 : vector<8x16xf32>
    %40 = arith.addf %36, %39 : vector<8x16xf32>
    %c0_31 = arith.constant 0 : index
    %c0_32 = arith.constant 0 : index
    %41 = vector.load %arg2[%c0_31, %c0_32] : memref<8x18xf32, #tpu.memory_space<vmem>>, vector<8x16xf32>
    %cst_33 = arith.constant 0.591506362 : f32
    %42 = vector.broadcast %cst_33 : f32 to vector<8x16xf32>
    %43 = arith.mulf %42, %41 : vector<8x16xf32>
    %44 = arith.addf %40, %43 : vector<8x16xf32>
    %c0_34 = arith.constant 0 : index
    %c1_35 = arith.constant 1 : index
    %45 = vector.load %arg1[%c0_34, %c1_35] : memref<8x18xf32, #tpu.memory_space<vmem>>, vector<8x16xf32>
    %cst_36 = arith.constant 0.158493653 : f32
    %46 = vector.broadcast %cst_36 : f32 to vector<8x16xf32>
    %47 = arith.mulf %46, %45 : vector<8x16xf32>
    %48 = arith.addf %44, %47 : vector<8x16xf32>
    %c0_37 = arith.constant 0 : index
    %c1_38 = arith.constant 1 : index
    %49 = vector.load %arg2[%c0_37, %c1_38] : memref<8x18xf32, #tpu.memory_space<vmem>>, vector<8x16xf32>
    %cst_39 = arith.constant -0.0915063545 : f32
    %50 = vector.broadcast %cst_39 : f32 to vector<8x16xf32>
    %51 = arith.mulf %50, %49 : vector<8x16xf32>
    %52 = arith.addf %48, %51 : vector<8x16xf32>
    %c0_40 = arith.constant 0 : index
    %c0_41 = arith.constant 0 : index
    %53 = vector.load %arg7[%c0_40, %c0_41] : memref<8x16xf32, #tpu.memory_space<vmem>>, vector<8x16xf32>
    tpu.vector_store %arg7[%c0_40, %c0_41], %52 {strides = array<i32>} : memref<8x16xf32, #tpu.memory_space<vmem>>, vector<8x16xf32>,
    %cst_42 = arith.constant 0.000000e+00 : f32
    %54 = vector.broadcast %cst_42 : f32 to vector<8x16xf32>
    %c0_43 = arith.constant 0 : index
    %c0_44 = arith.constant 0 : index
    %55 = vector.load %arg3[%c0_43, %c0_44] : memref<8x18xf32, #tpu.memory_space<vmem>>, vector<8x16xf32>
    %cst_45 = arith.constant -0.0915063545 : f32
    %56 = vector.broadcast %cst_45 : f32 to vector<8x16xf32>
    %57 = arith.mulf %56, %55 : vector<8x16xf32>
    %58 = arith.addf %54, %57 : vector<8x16xf32>
    %c0_46 = arith.constant 0 : index
    %c0_47 = arith.constant 0 : index
    %59 = vector.load %arg4[%c0_46, %c0_47] : memref<8x18xf32, #tpu.memory_space<vmem>>, vector<8x16xf32>
    %cst_48 = arith.constant 0.158493653 : f32
    %60 = vector.broadcast %cst_48 : f32 to vector<8x16xf32>
    %61 = arith.mulf %60, %59 : vector<8x16xf32>
    %62 = arith.addf %58, %61 : vector<8x16xf32>
    %c0_49 = arith.constant 0 : index
    %c1_50 = arith.constant 1 : index
    %63 = vector.load %arg3[%c0_49, %c1_50] : memref<8x18xf32, #tpu.memory_space<vmem>>, vector<8x16xf32>
    %cst_51 = arith.constant 0.591506362 : f32
    %64 = vector.broadcast %cst_51 : f32 to vector<8x16xf32>
    %65 = arith.mulf %64, %63 : vector<8x16xf32>
    %66 = arith.addf %62, %65 : vector<8x16xf32>
    %c0_52 = arith.constant 0 : index
    %c1_53 = arith.constant 1 : index
    %67 = vector.load %arg4[%c0_52, %c1_53] : memref<8x18xf32, #tpu.memory_space<vmem>>, vector<8x16xf32>
    %cst_54 = arith.constant 0.341506362 : f32
    %68 = vector.broadcast %cst_54 : f32 to vector<8x16xf32>
    %69 = arith.mulf %68, %67 : vector<8x16xf32>
    %70 = arith.addf %66, %69 : vector<8x16xf32>
    %c0_55 = arith.constant 0 : index
    %c0_56 = arith.constant 0 : index
    %71 = vector.load %arg8[%c0_55, %c0_56] : memref<8x16xf32, #tpu.memory_space<vmem>>, vector<8x16xf32>
    tpu.vector_store %arg8[%c0_55, %c0_56], %70 {strides = array<i32>} : memref<8x16xf32, #tpu.memory_space<vmem>>, vector<8x16xf32>,
    return
  }
  func.func @transform_0(%arg0: i32) -> (i32, i32) {
    %c0_i32 = arith.constant 0 : i32
    %c0_i32_0 = arith.constant 0 : i32
    return %arg0, %c0_i32 : i32, i32
  }
  func.func @transform_1(%arg0: i32) -> (i32, i32) {
    %c0_i32 = arith.constant 0 : i32
    %c0_i32_0 = arith.constant 0 : i32
    return %arg0, %c0_i32 : i32, i32
  }
  func.func @transform_2(%arg0: i32) -> (i32, i32) {
    %c0_i32 = arith.constant 0 : i32
    %c0_i32_0 = arith.constant 0 : i32
    return %arg0, %c0_i32 : i32, i32
  }
  func.func @transform_3(%arg0: i32) -> (i32, i32) {
    %c0_i32 = arith.constant 0 : i32
    %c0_i32_0 = arith.constant 0 : i32
    return %arg0, %c0_i32 : i32, i32
  }
  func.func @transform_4(%arg0: i32) -> (i32, i32) {
    %c0_i32 = arith.constant 0 : i32
    %c0_i32_0 = arith.constant 0 : i32
    return %arg0, %c0_i32 : i32, i32
  }
  func.func @transform_5(%arg0: i32) -> (i32, i32) {
    %c0_i32 = arith.constant 0 : i32
    %c0_i32_0 = arith.constant 0 : i32
    return %arg0, %c0_i32 : i32, i32
  }
  func.func @transform_6(%arg0: i32) -> (i32, i32) {
    %c0_i32 = arith.constant 0 : i32
    %c0_i32_0 = arith.constant 0 : i32
    return %arg0, %c0_i32 : i32, i32
  }
  func.func @transform_7(%arg0: i32) -> (i32, i32) {
    %c0_i32 = arith.constant 0 : i32
    %c0_i32_0 = arith.constant 0 : i32
    return %arg0, %c0_i32 : i32, i32
  }
}

module attributes {stable_mosaic.version = 11 : i64} {
  func.func @kernel(%arg0: i32, %arg1: memref<8x10xf32, #tpu.memory_space<vmem>>, %arg2: memref<8x10xf32, #tpu.memory_space<vmem>>, %arg3: memref<8x10xf32, #tpu.memory_space<vmem>>, %arg4: memref<8x10xf32, #tpu.memory_space<vmem>>, %arg5: memref<8x8xf32, #tpu.memory_space<vmem>>, %arg6: memref<8x8xf32, #tpu.memory_space<vmem>>) attributes {dimension_semantics = [#tpu.dimension_semantics<parallel>], iteration_bounds = array<i64: 1>, scalar_prefetch = 0 : i64, scratch_operands = 0 : i64, tpu.core_type = #tpu.core_type<tc>, window_params = [{transform_indices = @transform_0, window_bounds = array<i64: 8, 10>}, {transform_indices = @transform_1, window_bounds = array<i64: 8, 10>}, {transform_indices = @transform_2, window_bounds = array<i64: 8, 10>}, {transform_indices = @transform_3, window_bounds = array<i64: 8, 10>}, {transform_indices = @transform_4, window_bounds = array<i64: 8, 8>}, {transform_indices = @transform_5, window_bounds = array<i64: 8, 8>}]} {
    %cst = arith.constant 0.000000e+00 : f32
    %0 = vector.broadcast %cst : f32 to vector<8x8xf32>
    %c0 = arith.constant 0 : index
    %c0_0 = arith.constant 0 : index
    %1 = vector.load %arg1[%c0, %c0_0] : memref<8x10xf32, #tpu.memory_space<vmem>>, vector<8x8xf32>
    %cst_1 = arith.constant -0.0915063545 : f32
    %2 = vector.broadcast %cst_1 : f32 to vector<8x8xf32>
    %3 = arith.mulf %2, %1 : vector<8x8xf32>
    %4 = arith.addf %0, %3 : vector<8x8xf32>
    %c0_2 = arith.constant 0 : index
    %c0_3 = arith.constant 0 : index
    %5 = vector.load %arg2[%c0_2, %c0_3] : memref<8x10xf32, #tpu.memory_space<vmem>>, vector<8x8xf32>
    %cst_4 = arith.constant -0.158493653 : f32
    %6 = vector.broadcast %cst_4 : f32 to vector<8x8xf32>
    %7 = arith.mulf %6, %5 : vector<8x8xf32>
    %8 = arith.addf %4, %7 : vector<8x8xf32>
    %c0_5 = arith.constant 0 : index
    %c1 = arith.constant 1 : index
    %9 = vector.load %arg1[%c0_5, %c1] : memref<8x10xf32, #tpu.memory_space<vmem>>, vector<8x8xf32>
    %cst_6 = arith.constant 0.591506362 : f32
    %10 = vector.broadcast %cst_6 : f32 to vector<8x8xf32>
    %11 = arith.mulf %10, %9 : vector<8x8xf32>
    %12 = arith.addf %8, %11 : vector<8x8xf32>
    %c0_7 = arith.constant 0 : index
    %c1_8 = arith.constant 1 : index
    %13 = vector.load %arg2[%c0_7, %c1_8] : memref<8x10xf32, #tpu.memory_space<vmem>>, vector<8x8xf32>
    %cst_9 = arith.constant -0.341506362 : f32
    %14 = vector.broadcast %cst_9 : f32 to vector<8x8xf32>
    %15 = arith.mulf %14, %13 : vector<8x8xf32>
    %16 = arith.addf %12, %15 : vector<8x8xf32>
    %c0_10 = arith.constant 0 : index
    %c0_11 = arith.constant 0 : index
    %17 = vector.load %arg5[%c0_10, %c0_11] : memref<8x8xf32, #tpu.memory_space<vmem>>, vector<8x8xf32>
    tpu.vector_store %arg5[%c0_10, %c0_11], %16 {strides = array<i32>} : memref<8x8xf32, #tpu.memory_space<vmem>>, vector<8x8xf32>,
    %cst_12 = arith.constant 0.000000e+00 : f32
    %18 = vector.broadcast %cst_12 : f32 to vector<8x8xf32>
    %c0_13 = arith.constant 0 : index
    %c0_14 = arith.constant 0 : index
    %19 = vector.load %arg3[%c0_13, %c0_14] : memref<8x10xf32, #tpu.memory_space<vmem>>, vector<8x8xf32>
    %cst_15 = arith.constant -0.341506362 : f32
    %20 = vector.broadcast %cst_15 : f32 to vector<8x8xf32>
    %21 = arith.mulf %20, %19 : vector<8x8xf32>
    %22 = arith.addf %18, %21 : vector<8x8xf32>
    %c0_16 = arith.constant 0 : index
    %c0_17 = arith.constant 0 : index
    %23 = vector.load %arg4[%c0_16, %c0_17] : memref<8x10xf32, #tpu.memory_space<vmem>>, vector<8x8xf32>
    %cst_18 = arith.constant 0.591506362 : f32
    %24 = vector.broadcast %cst_18 : f32 to vector<8x8xf32>
    %25 = arith.mulf %24, %23 : vector<8x8xf32>
    %26 = arith.addf %22, %25 : vector<8x8xf32>
    %c0_19 = arith.constant 0 : index
    %c1_20 = arith.constant 1 : index
    %27 = vector.load %arg3[%c0_19, %c1_20] : memref<8x10xf32, #tpu.memory_space<vmem>>, vector<8x8xf32>
    %cst_21 = arith.constant -0.158493653 : f32
    %28 = vector.broadcast %cst_21 : f32 to vector<8x8xf32>
    %29 = arith.mulf %28, %27 : vector<8x8xf32>
    %30 = arith.addf %26, %29 : vector<8x8xf32>
    %c0_22 = arith.constant 0 : index
    %c1_23 = arith.constant 1 : index
    %31 = vector.load %arg4[%c0_22, %c1_23] : memref<8x10xf32, #tpu.memory_space<vmem>>, vector<8x8xf32>
    %cst_24 = arith.constant -0.0915063545 : f32
    %32 = vector.broadcast %cst_24 : f32 to vector<8x8xf32>
    %33 = arith.mulf %32, %31 : vector<8x8xf32>
    %34 = arith.addf %30, %33 : vector<8x8xf32>
    %c0_25 = arith.constant 0 : index
    %c0_26 = arith.constant 0 : index
    %35 = vector.load %arg6[%c0_25, %c0_26] : memref<8x8xf32, #tpu.memory_space<vmem>>, vector<8x8xf32>
    tpu.vector_store %arg6[%c0_25, %c0_26], %34 {strides = array<i32>} : memref<8x8xf32, #tpu.memory_space<vmem>>, vector<8x8xf32>,
    return
  }
  func.func @transform_0(%arg0: i32) -> (i32, i32) {
    %c0_i32 = arith.constant 0 : i32
    %c0_i32_0 = arith.constant 0 : i32
    return %arg0, %c0_i32 : i32, i32
  }
  func.func @transform_1(%arg0: i32) -> (i32, i32) {
    %c0_i32 = arith.constant 0 : i32
    %c0_i32_0 = arith.constant 0 : i32
    return %arg0, %c0_i32 : i32, i32
  }
  func.func @transform_2(%arg0: i32) -> (i32, i32) {
    %c0_i32 = arith.constant 0 : i32
    %c0_i32_0 = arith.constant 0 : i32
    return %arg0, %c0_i32 : i32, i32
  }
  func.func @transform_3(%arg0: i32) -> (i32, i32) {
    %c0_i32 = arith.constant 0 : i32
    %c0_i32_0 = arith.constant 0 : i32
    return %arg0, %c0_i32 : i32, i32
  }
  func.func @transform_4(%arg0: i32) -> (i32, i32) {
    %c0_i32 = arith.constant 0 : i32
    %c0_i32_0 = arith.constant 0 : i32
    return %arg0, %c0_i32 : i32, i32
  }
  func.func @transform_5(%arg0: i32) -> (i32, i32) {
    %c0_i32 = arith.constant 0 : i32
    %c0_i32_0 = arith.constant 0 : i32
    return %arg0, %c0_i32 : i32, i32
  }
}

module attributes {stable_mosaic.version = 11 : i64} {
  func.func @_conv_mod_down_kernel(%arg0: i32, %arg1: memref<1x4x11xf32, #tpu.memory_space<vmem>>, %arg2: memref<1x4x11xf32, #tpu.memory_space<vmem>>, %arg3: memref<1x4x11xf32, #tpu.memory_space<vmem>>, %arg4: memref<1x4x11xf32, #tpu.memory_space<vmem>>, %arg5: memref<3x4x7xf32, #tpu.memory_space<vmem>>, %arg6: memref<1x3x4x8xf32, #tpu.memory_space<vmem>>, %arg7: memref<1x3x4x8xf32, #tpu.memory_space<vmem>>, %arg8: memref<3x4x10xf32, #tpu.memory_space<vmem>>, %arg9: memref<3x4x10xf32, #tpu.memory_space<vmem>>) attributes {dimension_semantics = [#tpu.dimension_semantics<parallel>], iteration_bounds = array<i64: 2>, scalar_prefetch = 0 : i64, scratch_operands = 2 : i64, tpu.core_type = #tpu.core_type<tc>, window_params = [{transform_indices = @transform_0, window_bounds = array<i64: 1, 4, 11>}, {transform_indices = @transform_1, window_bounds = array<i64: 1, 4, 11>}, {transform_indices = @transform_2, window_bounds = array<i64: 1, 4, 11>}, {transform_indices = @transform_3, window_bounds = array<i64: 1, 4, 11>}, {pipeline_mode = #tpu.pipeline_mode<synchronous>, transform_indices = @transform_4, window_bounds = array<i64: 3, 4, 7>}, {transform_indices = @transform_5, window_bounds = array<i64: 1, 3, 4, 8>}, {transform_indices = @transform_6, window_bounds = array<i64: 1, 3, 4, 8>}]} {
    %c0 = arith.constant 0 : index
    %c0_0 = arith.constant 0 : index
    %c0_1 = arith.constant 0 : index
    %0 = vector.load %arg5[%c0, %c0_0, %c0_1] : memref<3x4x7xf32, #tpu.memory_space<vmem>>, vector<3x4x7xf32>
    %cst = arith.constant 0.000000e+00 : f32
    %1 = vector.broadcast %cst : f32 to vector<3x4x8xf32>
    %cst_2 = arith.constant 0.000000e+00 : f32
    %2 = vector.broadcast %cst_2 : f32 to vector<3x4x8xf32>
    %cst_3 = arith.constant 0.000000e+00 : f32
    %3 = vector.broadcast %cst_3 : f32 to vector<3x4x8xf32>
    %cst_4 = arith.constant 0.000000e+00 : f32
    %4 = vector.broadcast %cst_4 : f32 to vector<3x4x8xf32>
    %5 = vector.extract_strided_slice %0 {offsets = [0, 0, 0], sizes = [3, 4, 1], strides = [1, 1, 1]} : vector<3x4x7xf32> to vector<3x4x1xf32>
    %c0_5 = arith.constant 0 : index
    %c0_6 = arith.constant 0 : index
    %c0_7 = arith.constant 0 : index
    %6 = vector.load %arg1[%c0_5, %c0_6, %c0_7] : memref<1x4x11xf32, #tpu.memory_space<vmem>>, vector<1x4x8xf32>
    %7 = vector.shape_cast %6 : vector<1x4x8xf32> to vector<4x8xf32>
    %8 = vector.shape_cast %7 : vector<4x8xf32> to vector<1x4x8xf32>
    %9 = vector.broadcast %5 : vector<3x4x1xf32> to vector<3x4x8xf32>
    %10 = vector.broadcast %8 : vector<1x4x8xf32> to vector<3x4x8xf32>
    %11 = arith.mulf %9, %10 : vector<3x4x8xf32>
    %12 = arith.addf %1, %11 : vector<3x4x8xf32>
    %c0_8 = arith.constant 0 : index
    %c0_9 = arith.constant 0 : index
    %c0_10 = arith.constant 0 : index
    %13 = vector.load %arg3[%c0_8, %c0_9, %c0_10] : memref<1x4x11xf32, #tpu.memory_space<vmem>>, vector<1x4x8xf32>
    %14 = vector.shape_cast %13 : vector<1x4x8xf32> to vector<4x8xf32>
    %15 = vector.shape_cast %14 : vector<4x8xf32> to vector<1x4x8xf32>
    %16 = vector.broadcast %5 : vector<3x4x1xf32> to vector<3x4x8xf32>
    %17 = vector.broadcast %15 : vector<1x4x8xf32> to vector<3x4x8xf32>
    %18 = arith.mulf %16, %17 : vector<3x4x8xf32>
    %19 = arith.addf %2, %18 : vector<3x4x8xf32>
    %c0_11 = arith.constant 0 : index
    %c0_12 = arith.constant 0 : index
    %c0_13 = arith.constant 0 : index
    %20 = vector.load %arg2[%c0_11, %c0_12, %c0_13] : memref<1x4x11xf32, #tpu.memory_space<vmem>>, vector<1x4x8xf32>
    %21 = vector.shape_cast %20 : vector<1x4x8xf32> to vector<4x8xf32>
    %22 = vector.shape_cast %21 : vector<4x8xf32> to vector<1x4x8xf32>
    %23 = vector.broadcast %5 : vector<3x4x1xf32> to vector<3x4x8xf32>
    %24 = vector.broadcast %22 : vector<1x4x8xf32> to vector<3x4x8xf32>
    %25 = arith.mulf %23, %24 : vector<3x4x8xf32>
    %26 = arith.addf %3, %25 : vector<3x4x8xf32>
    %c0_14 = arith.constant 0 : index
    %c0_15 = arith.constant 0 : index
    %c0_16 = arith.constant 0 : index
    %27 = vector.load %arg4[%c0_14, %c0_15, %c0_16] : memref<1x4x11xf32, #tpu.memory_space<vmem>>, vector<1x4x8xf32>
    %28 = vector.shape_cast %27 : vector<1x4x8xf32> to vector<4x8xf32>
    %29 = vector.shape_cast %28 : vector<4x8xf32> to vector<1x4x8xf32>
    %30 = vector.broadcast %5 : vector<3x4x1xf32> to vector<3x4x8xf32>
    %31 = vector.broadcast %29 : vector<1x4x8xf32> to vector<3x4x8xf32>
    %32 = arith.mulf %30, %31 : vector<3x4x8xf32>
    %33 = arith.addf %4, %32 : vector<3x4x8xf32>
    %34 = vector.extract_strided_slice %0 {offsets = [0, 0, 1], sizes = [3, 4, 1], strides = [1, 1, 1]} : vector<3x4x7xf32> to vector<3x4x1xf32>
    %c0_17 = arith.constant 0 : index
    %c0_18 = arith.constant 0 : index
    %c0_19 = arith.constant 0 : index
    %35 = vector.load %arg2[%c0_17, %c0_18, %c0_19] : memref<1x4x11xf32, #tpu.memory_space<vmem>>, vector<1x4x8xf32>
    %36 = vector.shape_cast %35 : vector<1x4x8xf32> to vector<4x8xf32>
    %37 = vector.shape_cast %36 : vector<4x8xf32> to vector<1x4x8xf32>
    %38 = vector.broadcast %34 : vector<3x4x1xf32> to vector<3x4x8xf32>
    %39 = vector.broadcast %37 : vector<1x4x8xf32> to vector<3x4x8xf32>
    %40 = arith.mulf %38, %39 : vector<3x4x8xf32>
    %41 = arith.addf %12, %40 : vector<3x4x8xf32>
    %c0_20 = arith.constant 0 : index
    %c0_21 = arith.constant 0 : index
    %c0_22 = arith.constant 0 : index
    %42 = vector.load %arg4[%c0_20, %c0_21, %c0_22] : memref<1x4x11xf32, #tpu.memory_space<vmem>>, vector<1x4x8xf32>
    %43 = vector.shape_cast %42 : vector<1x4x8xf32> to vector<4x8xf32>
    %44 = vector.shape_cast %43 : vector<4x8xf32> to vector<1x4x8xf32>
    %45 = vector.broadcast %34 : vector<3x4x1xf32> to vector<3x4x8xf32>
    %46 = vector.broadcast %44 : vector<1x4x8xf32> to vector<3x4x8xf32>
    %47 = arith.mulf %45, %46 : vector<3x4x8xf32>
    %48 = arith.addf %19, %47 : vector<3x4x8xf32>
    %c0_23 = arith.constant 0 : index
    %c0_24 = arith.constant 0 : index
    %c1 = arith.constant 1 : index
    %49 = vector.load %arg1[%c0_23, %c0_24, %c1] : memref<1x4x11xf32, #tpu.memory_space<vmem>>, vector<1x4x8xf32>
    %50 = vector.shape_cast %49 : vector<1x4x8xf32> to vector<4x8xf32>
    %51 = vector.shape_cast %50 : vector<4x8xf32> to vector<1x4x8xf32>
    %52 = vector.broadcast %34 : vector<3x4x1xf32> to vector<3x4x8xf32>
    %53 = vector.broadcast %51 : vector<1x4x8xf32> to vector<3x4x8xf32>
    %54 = arith.mulf %52, %53 : vector<3x4x8xf32>
    %55 = arith.addf %26, %54 : vector<3x4x8xf32>
    %c0_25 = arith.constant 0 : index
    %c0_26 = arith.constant 0 : index
    %c1_27 = arith.constant 1 : index
    %56 = vector.load %arg3[%c0_25, %c0_26, %c1_27] : memref<1x4x11xf32, #tpu.memory_space<vmem>>, vector<1x4x8xf32>
    %57 = vector.shape_cast %56 : vector<1x4x8xf32> to vector<4x8xf32>
    %58 = vector.shape_cast %57 : vector<4x8xf32> to vector<1x4x8xf32>
    %59 = vector.broadcast %34 : vector<3x4x1xf32> to vector<3x4x8xf32>
    %60 = vector.broadcast %58 : vector<1x4x8xf32> to vector<3x4x8xf32>
    %61 = arith.mulf %59, %60 : vector<3x4x8xf32>
    %62 = arith.addf %33, %61 : vector<3x4x8xf32>
    %63 = vector.extract_strided_slice %0 {offsets = [0, 0, 2], sizes = [3, 4, 1], strides = [1, 1, 1]} : vector<3x4x7xf32> to vector<3x4x1xf32>
    %c0_28 = arith.constant 0 : index
    %c0_29 = arith.constant 0 : index
    %c1_30 = arith.constant 1 : index
    %64 = vector.load %arg1[%c0_28, %c0_29, %c1_30] : memref<1x4x11xf32, #tpu.memory_space<vmem>>, vector<1x4x8xf32>
    %65 = vector.shape_cast %64 : vector<1x4x8xf32> to vector<4x8xf32>
    %66 = vector.shape_cast %65 : vector<4x8xf32> to vector<1x4x8xf32>
    %67 = vector.broadcast %63 : vector<3x4x1xf32> to vector<3x4x8xf32>
    %68 = vector.broadcast %66 : vector<1x4x8xf32> to vector<3x4x8xf32>
    %69 = arith.mulf %67, %68 : vector<3x4x8xf32>
    %70 = arith.addf %41, %69 : vector<3x4x8xf32>
    %c0_31 = arith.constant 0 : index
    %c0_32 = arith.constant 0 : index
    %c1_33 = arith.constant 1 : index
    %71 = vector.load %arg3[%c0_31, %c0_32, %c1_33] : memref<1x4x11xf32, #tpu.memory_space<vmem>>, vector<1x4x8xf32>
    %72 = vector.shape_cast %71 : vector<1x4x8xf32> to vector<4x8xf32>
    %73 = vector.shape_cast %72 : vector<4x8xf32> to vector<1x4x8xf32>
    %74 = vector.broadcast %63 : vector<3x4x1xf32> to vector<3x4x8xf32>
    %75 = vector.broadcast %73 : vector<1x4x8xf32> to vector<3x4x8xf32>
    %76 = arith.mulf %74, %75 : vector<3x4x8xf32>
    %77 = arith.addf %48, %76 : vector<3x4x8xf32>
    %c0_34 = arith.constant 0 : index
    %c0_35 = arith.constant 0 : index
    %c1_36 = arith.constant 1 : index
    %78 = vector.load %arg2[%c0_34, %c0_35, %c1_36] : memref<1x4x11xf32, #tpu.memory_space<vmem>>, vector<1x4x8xf32>
    %79 = vector.shape_cast %78 : vector<1x4x8xf32> to vector<4x8xf32>
    %80 = vector.shape_cast %79 : vector<4x8xf32> to vector<1x4x8xf32>
    %81 = vector.broadcast %63 : vector<3x4x1xf32> to vector<3x4x8xf32>
    %82 = vector.broadcast %80 : vector<1x4x8xf32> to vector<3x4x8xf32>
    %83 = arith.mulf %81, %82 : vector<3x4x8xf32>
    %84 = arith.addf %55, %83 : vector<3x4x8xf32>
    %c0_37 = arith.constant 0 : index
    %c0_38 = arith.constant 0 : index
    %c1_39 = arith.constant 1 : index
    %85 = vector.load %arg4[%c0_37, %c0_38, %c1_39] : memref<1x4x11xf32, #tpu.memory_space<vmem>>, vector<1x4x8xf32>
    %86 = vector.shape_cast %85 : vector<1x4x8xf32> to vector<4x8xf32>
    %87 = vector.shape_cast %86 : vector<4x8xf32> to vector<1x4x8xf32>
    %88 = vector.broadcast %63 : vector<3x4x1xf32> to vector<3x4x8xf32>
    %89 = vector.broadcast %87 : vector<1x4x8xf32> to vector<3x4x8xf32>
    %90 = arith.mulf %88, %89 : vector<3x4x8xf32>
    %91 = arith.addf %62, %90 : vector<3x4x8xf32>
    %92 = vector.extract_strided_slice %0 {offsets = [0, 0, 3], sizes = [3, 4, 1], strides = [1, 1, 1]} : vector<3x4x7xf32> to vector<3x4x1xf32>
    %c0_40 = arith.constant 0 : index
    %c0_41 = arith.constant 0 : index
    %c1_42 = arith.constant 1 : index
    %93 = vector.load %arg2[%c0_40, %c0_41, %c1_42] : memref<1x4x11xf32, #tpu.memory_space<vmem>>, vector<1x4x8xf32>
    %94 = vector.shape_cast %93 : vector<1x4x8xf32> to vector<4x8xf32>
    %95 = vector.shape_cast %94 : vector<4x8xf32> to vector<1x4x8xf32>
    %96 = vector.broadcast %92 : vector<3x4x1xf32> to vector<3x4x8xf32>
    %97 = vector.broadcast %95 : vector<1x4x8xf32> to vector<3x4x8xf32>
    %98 = arith.mulf %96, %97 : vector<3x4x8xf32>
    %99 = arith.addf %70, %98 : vector<3x4x8xf32>
    %c0_43 = arith.constant 0 : index
    %c0_44 = arith.constant 0 : index
    %c1_45 = arith.constant 1 : index
    %100 = vector.load %arg4[%c0_43, %c0_44, %c1_45] : memref<1x4x11xf32, #tpu.memory_space<vmem>>, vector<1x4x8xf32>
    %101 = vector.shape_cast %100 : vector<1x4x8xf32> to vector<4x8xf32>
    %102 = vector.shape_cast %101 : vector<4x8xf32> to vector<1x4x8xf32>
    %103 = vector.broadcast %92 : vector<3x4x1xf32> to vector<3x4x8xf32>
    %104 = vector.broadcast %102 : vector<1x4x8xf32> to vector<3x4x8xf32>
    %105 = arith.mulf %103, %104 : vector<3x4x8xf32>
    %106 = arith.addf %77, %105 : vector<3x4x8xf32>
    %c0_46 = arith.constant 0 : index
    %c0_47 = arith.constant 0 : index
    %c2 = arith.constant 2 : index
    %107 = vector.load %arg1[%c0_46, %c0_47, %c2] : memref<1x4x11xf32, #tpu.memory_space<vmem>>, vector<1x4x8xf32>
    %108 = vector.shape_cast %107 : vector<1x4x8xf32> to vector<4x8xf32>
    %109 = vector.shape_cast %108 : vector<4x8xf32> to vector<1x4x8xf32>
    %110 = vector.broadcast %92 : vector<3x4x1xf32> to vector<3x4x8xf32>
    %111 = vector.broadcast %109 : vector<1x4x8xf32> to vector<3x4x8xf32>
    %112 = arith.mulf %110, %111 : vector<3x4x8xf32>
    %113 = arith.addf %84, %112 : vector<3x4x8xf32>
    %c0_48 = arith.constant 0 : index
    %c0_49 = arith.constant 0 : index
    %c2_50 = arith.constant 2 : index
    %114 = vector.load %arg3[%c0_48, %c0_49, %c2_50] : memref<1x4x11xf32, #tpu.memory_space<vmem>>, vector<1x4x8xf32>
    %115 = vector.shape_cast %114 : vector<1x4x8xf32> to vector<4x8xf32>
    %116 = vector.shape_cast %115 : vector<4x8xf32> to vector<1x4x8xf32>
    %117 = vector.broadcast %92 : vector<3x4x1xf32> to vector<3x4x8xf32>
    %118 = vector.broadcast %116 : vector<1x4x8xf32> to vector<3x4x8xf32>
    %119 = arith.mulf %117, %118 : vector<3x4x8xf32>
    %120 = arith.addf %91, %119 : vector<3x4x8xf32>
    %121 = vector.extract_strided_slice %0 {offsets = [0, 0, 4], sizes = [3, 4, 1], strides = [1, 1, 1]} : vector<3x4x7xf32> to vector<3x4x1xf32>
    %c0_51 = arith.constant 0 : index
    %c0_52 = arith.constant 0 : index
    %c2_53 = arith.constant 2 : index
    %122 = vector.load %arg1[%c0_51, %c0_52, %c2_53] : memref<1x4x11xf32, #tpu.memory_space<vmem>>, vector<1x4x8xf32>
    %123 = vector.shape_cast %122 : vector<1x4x8xf32> to vector<4x8xf32>
    %124 = vector.shape_cast %123 : vector<4x8xf32> to vector<1x4x8xf32>
    %125 = vector.broadcast %121 : vector<3x4x1xf32> to vector<3x4x8xf32>
    %126 = vector.broadcast %124 : vector<1x4x8xf32> to vector<3x4x8xf32>
    %127 = arith.mulf %125, %126 : vector<3x4x8xf32>
    %128 = arith.addf %99, %127 : vector<3x4x8xf32>
    %c0_54 = arith.constant 0 : index
    %c0_55 = arith.constant 0 : index
    %c2_56 = arith.constant 2 : index
    %129 = vector.load %arg3[%c0_54, %c0_55, %c2_56] : memref<1x4x11xf32, #tpu.memory_space<vmem>>, vector<1x4x8xf32>
    %130 = vector.shape_cast %129 : vector<1x4x8xf32> to vector<4x8xf32>
    %131 = vector.shape_cast %130 : vector<4x8xf32> to vector<1x4x8xf32>
    %132 = vector.broadcast %121 : vector<3x4x1xf32> to vector<3x4x8xf32>
    %133 = vector.broadcast %131 : vector<1x4x8xf32> to vector<3x4x8xf32>
    %134 = arith.mulf %132, %133 : vector<3x4x8xf32>
    %135 = arith.addf %106, %134 : vector<3x4x8xf32>
    %c0_57 = arith.constant 0 : index
    %c0_58 = arith.constant 0 : index
    %c2_59 = arith.constant 2 : index
    %136 = vector.load %arg2[%c0_57, %c0_58, %c2_59] : memref<1x4x11xf32, #tpu.memory_space<vmem>>, vector<1x4x8xf32>
    %137 = vector.shape_cast %136 : vector<1x4x8xf32> to vector<4x8xf32>
    %138 = vector.shape_cast %137 : vector<4x8xf32> to vector<1x4x8xf32>
    %139 = vector.broadcast %121 : vector<3x4x1xf32> to vector<3x4x8xf32>
    %140 = vector.broadcast %138 : vector<1x4x8xf32> to vector<3x4x8xf32>
    %141 = arith.mulf %139, %140 : vector<3x4x8xf32>
    %142 = arith.addf %113, %141 : vector<3x4x8xf32>
    %c0_60 = arith.constant 0 : index
    %c0_61 = arith.constant 0 : index
    %c2_62 = arith.constant 2 : index
    %143 = vector.load %arg4[%c0_60, %c0_61, %c2_62] : memref<1x4x11xf32, #tpu.memory_space<vmem>>, vector<1x4x8xf32>
    %144 = vector.shape_cast %143 : vector<1x4x8xf32> to vector<4x8xf32>
    %145 = vector.shape_cast %144 : vector<4x8xf32> to vector<1x4x8xf32>
    %146 = vector.broadcast %121 : vector<3x4x1xf32> to vector<3x4x8xf32>
    %147 = vector.broadcast %145 : vector<1x4x8xf32> to vector<3x4x8xf32>
    %148 = arith.mulf %146, %147 : vector<3x4x8xf32>
    %149 = arith.addf %120, %148 : vector<3x4x8xf32>
    %150 = vector.extract_strided_slice %0 {offsets = [0, 0, 5], sizes = [3, 4, 1], strides = [1, 1, 1]} : vector<3x4x7xf32> to vector<3x4x1xf32>
    %c0_63 = arith.constant 0 : index
    %c0_64 = arith.constant 0 : index
    %c2_65 = arith.constant 2 : index
    %151 = vector.load %arg2[%c0_63, %c0_64, %c2_65] : memref<1x4x11xf32, #tpu.memory_space<vmem>>, vector<1x4x8xf32>
    %152 = vector.shape_cast %151 : vector<1x4x8xf32> to vector<4x8xf32>
    %153 = vector.shape_cast %152 : vector<4x8xf32> to vector<1x4x8xf32>
    %154 = vector.broadcast %150 : vector<3x4x1xf32> to vector<3x4x8xf32>
    %155 = vector.broadcast %153 : vector<1x4x8xf32> to vector<3x4x8xf32>
    %156 = arith.mulf %154, %155 : vector<3x4x8xf32>
    %157 = arith.addf %128, %156 : vector<3x4x8xf32>
    %c0_66 = arith.constant 0 : index
    %c0_67 = arith.constant 0 : index
    %c2_68 = arith.constant 2 : index
    %158 = vector.load %arg4[%c0_66, %c0_67, %c2_68] : memref<1x4x11xf32, #tpu.memory_space<vmem>>, vector<1x4x8xf32>
    %159 = vector.shape_cast %158 : vector<1x4x8xf32> to vector<4x8xf32>
    %160 = vector.shape_cast %159 : vector<4x8xf32> to vector<1x4x8xf32>
    %161 = vector.broadcast %150 : vector<3x4x1xf32> to vector<3x4x8xf32>
    %162 = vector.broadcast %160 : vector<1x4x8xf32> to vector<3x4x8xf32>
    %163 = arith.mulf %161, %162 : vector<3x4x8xf32>
    %164 = arith.addf %135, %163 : vector<3x4x8xf32>
    %c0_69 = arith.constant 0 : index
    %c0_70 = arith.constant 0 : index
    %c3 = arith.constant 3 : index
    %165 = vector.load %arg1[%c0_69, %c0_70, %c3] : memref<1x4x11xf32, #tpu.memory_space<vmem>>, vector<1x4x8xf32>
    %166 = vector.shape_cast %165 : vector<1x4x8xf32> to vector<4x8xf32>
    %167 = vector.shape_cast %166 : vector<4x8xf32> to vector<1x4x8xf32>
    %168 = vector.broadcast %150 : vector<3x4x1xf32> to vector<3x4x8xf32>
    %169 = vector.broadcast %167 : vector<1x4x8xf32> to vector<3x4x8xf32>
    %170 = arith.mulf %168, %169 : vector<3x4x8xf32>
    %171 = arith.addf %142, %170 : vector<3x4x8xf32>
    %c0_71 = arith.constant 0 : index
    %c0_72 = arith.constant 0 : index
    %c3_73 = arith.constant 3 : index
    %172 = vector.load %arg3[%c0_71, %c0_72, %c3_73] : memref<1x4x11xf32, #tpu.memory_space<vmem>>, vector<1x4x8xf32>
    %173 = vector.shape_cast %172 : vector<1x4x8xf32> to vector<4x8xf32>
    %174 = vector.shape_cast %173 : vector<4x8xf32> to vector<1x4x8xf32>
    %175 = vector.broadcast %150 : vector<3x4x1xf32> to vector<3x4x8xf32>
    %176 = vector.broadcast %174 : vector<1x4x8xf32> to vector<3x4x8xf32>
    %177 = arith.mulf %175, %176 : vector<3x4x8xf32>
    %178 = arith.addf %149, %177 : vector<3x4x8xf32>
    %179 = vector.extract_strided_slice %0 {offsets = [0, 0, 6], sizes = [3, 4, 1], strides = [1, 1, 1]} : vector<3x4x7xf32> to vector<3x4x1xf32>
    %c0_74 = arith.constant 0 : index
    %c0_75 = arith.constant 0 : index
    %c3_76 = arith.constant 3 : index
    %180 = vector.load %arg1[%c0_74, %c0_75, %c3_76] : memref<1x4x11xf32, #tpu.memory_space<vmem>>, vector<1x4x8xf32>
    %181 = vector.shape_cast %180 : vector<1x4x8xf32> to vector<4x8xf32>
    %182 = vector.shape_cast %181 : vector<4x8xf32> to vector<1x4x8xf32>
    %183 = vector.broadcast %179 : vector<3x4x1xf32> to vector<3x4x8xf32>
    %184 = vector.broadcast %182 : vector<1x4x8xf32> to vector<3x4x8xf32>
    %185 = arith.mulf %183, %184 : vector<3x4x8xf32>
    %186 = arith.addf %157, %185 : vector<3x4x8xf32>
    %c0_77 = arith.constant 0 : index
    %c0_78 = arith.constant 0 : index
    %c3_79 = arith.constant 3 : index
    %187 = vector.load %arg3[%c0_77, %c0_78, %c3_79] : memref<1x4x11xf32, #tpu.memory_space<vmem>>, vector<1x4x8xf32>
    %188 = vector.shape_cast %187 : vector<1x4x8xf32> to vector<4x8xf32>
    %189 = vector.shape_cast %188 : vector<4x8xf32> to vector<1x4x8xf32>
    %190 = vector.broadcast %179 : vector<3x4x1xf32> to vector<3x4x8xf32>
    %191 = vector.broadcast %189 : vector<1x4x8xf32> to vector<3x4x8xf32>
    %192 = arith.mulf %190, %191 : vector<3x4x8xf32>
    %193 = arith.addf %164, %192 : vector<3x4x8xf32>
    %c0_80 = arith.constant 0 : index
    %c0_81 = arith.constant 0 : index
    %c3_82 = arith.constant 3 : index
    %194 = vector.load %arg2[%c0_80, %c0_81, %c3_82] : memref<1x4x11xf32, #tpu.memory_space<vmem>>, vector<1x4x8xf32>
    %195 = vector.shape_cast %194 : vector<1x4x8xf32> to vector<4x8xf32>
    %196 = vector.shape_cast %195 : vector<4x8xf32> to vector<1x4x8xf32>
    %197 = vector.broadcast %179 : vector<3x4x1xf32> to vector<3x4x8xf32>
    %198 = vector.broadcast %196 : vector<1x4x8xf32> to vector<3x4x8xf32>
    %199 = arith.mulf %197, %198 : vector<3x4x8xf32>
    %200 = arith.addf %171, %199 : vector<3x4x8xf32>
    %c0_83 = arith.constant 0 : index
    %c0_84 = arith.constant 0 : index
    %c3_85 = arith.constant 3 : index
    %201 = vector.load %arg4[%c0_83, %c0_84, %c3_85] : memref<1x4x11xf32, #tpu.memory_space<vmem>>, vector<1x4x8xf32>
    %202 = vector.shape_cast %201 : vector<1x4x8xf32> to vector<4x8xf32>
    %203 = vector.shape_cast %202 : vector<4x8xf32> to vector<1x4x8xf32>
    %204 = vector.broadcast %179 : vector<3x4x1xf32> to vector<3x4x8xf32>
    %205 = vector.broadcast %203 : vector<1x4x8xf32> to vector<3x4x8xf32>
    %206 = arith.mulf %204, %205 : vector<3x4x8xf32>
    %207 = arith.addf %178, %206 : vector<3x4x8xf32>
    %208 = arith.mulf %186, %186 : vector<3x4x8xf32>
    %209 = arith.mulf %193, %193 : vector<3x4x8xf32>
    %210 = arith.addf %208, %209 : vector<3x4x8xf32>
    %211 = math.sqrt %210 : vector<3x4x8xf32>
    %212 = arith.mulf %200, %200 : vector<3x4x8xf32>
    %213 = arith.mulf %207, %207 : vector<3x4x8xf32>
    %214 = arith.addf %212, %213 : vector<3x4x8xf32>
    %215 = math.sqrt %214 : vector<3x4x8xf32>
    %c0_86 = arith.constant 0 : index
    %c0_87 = arith.constant 0 : index
    %c1_88 = arith.constant 1 : index
    %216 = vector.load %arg8[%c0_86, %c0_87, %c1_88] : memref<3x4x10xf32, #tpu.memory_space<vmem>>, vector<3x4x8xf32>
    tpu.vector_store %arg8[%c0_86, %c0_87, %c1_88], %211 {strides = array<i32>} : memref<3x4x10xf32, #tpu.memory_space<vmem>>, vector<3x4x8xf32>,
    %c0_89 = arith.constant 0 : index
    %c0_90 = arith.constant 0 : index
    %c1_91 = arith.constant 1 : index
    %217 = vector.load %arg9[%c0_89, %c0_90, %c1_91] : memref<3x4x10xf32, #tpu.memory_space<vmem>>, vector<3x4x8xf32>
    tpu.vector_store %arg9[%c0_89, %c0_90, %c1_91], %215 {strides = array<i32>} : memref<3x4x10xf32, #tpu.memory_space<vmem>>, vector<3x4x8xf32>,
    %218 = vector.extract_strided_slice %215 {offsets = [0, 0, 0], sizes = [3, 4, 1], strides = [1, 1, 1]} : vector<3x4x8xf32> to vector<3x4x1xf32>
    %c0_92 = arith.constant 0 : index
    %c0_93 = arith.constant 0 : index
    %c0_94 = arith.constant 0 : index
    %219 = vector.load %arg8[%c0_92, %c0_93, %c0_94] : memref<3x4x10xf32, #tpu.memory_space<vmem>>, vector<3x4x1xf32>
    tpu.vector_store %arg8[%c0_92, %c0_93, %c0_94], %218 {strides = array<i32>} : memref<3x4x10xf32, #tpu.memory_space<vmem>>, vector<3x4x1xf32>,
    %220 = vector.extract_strided_slice %211 {offsets = [0, 0, 0], sizes = [3, 4, 1], strides = [1, 1, 1]} : vector<3x4x8xf32> to vector<3x4x1xf32>
    %c0_95 = arith.constant 0 : index
    %c0_96 = arith.constant 0 : index
    %c0_97 = arith.constant 0 : index
    %221 = vector.load %arg9[%c0_95, %c0_96, %c0_97] : memref<3x4x10xf32, #tpu.memory_space<vmem>>, vector<3x4x1xf32>
    tpu.vector_store %arg9[%c0_95, %c0_96, %c0_97], %220 {strides = array<i32>} : memref<3x4x10xf32, #tpu.memory_space<vmem>>, vector<3x4x1xf32>,
    %222 = vector.extract_strided_slice %215 {offsets = [0, 0, 7], sizes = [3, 4, 1], strides = [1, 1, 1]} : vector<3x4x8xf32> to vector<3x4x1xf32>
    %c0_98 = arith.constant 0 : index
    %c0_99 = arith.constant 0 : index
    %c9 = arith.constant 9 : index
    %223 = vector.load %arg8[%c0_98, %c0_99, %c9] : memref<3x4x10xf32, #tpu.memory_space<vmem>>, vector<3x4x1xf32>
    tpu.vector_store %arg8[%c0_98, %c0_99, %c9], %222 {strides = array<i32>} : memref<3x4x10xf32, #tpu.memory_space<vmem>>, vector<3x4x1xf32>,
    %224 = vector.extract_strided_slice %211 {offsets = [0, 0, 7], sizes = [3, 4, 1], strides = [1, 1, 1]} : vector<3x4x8xf32> to vector<3x4x1xf32>
    %c0_100 = arith.constant 0 : index
    %c0_101 = arith.constant 0 : index
    %c9_102 = arith.constant 9 : index
    %225 = vector.load %arg9[%c0_100, %c0_101, %c9_102] : memref<3x4x10xf32, #tpu.memory_space<vmem>>, vector<3x4x1xf32>
    tpu.vector_store %arg9[%c0_100, %c0_101, %c9_102], %224 {strides = array<i32>} : memref<3x4x10xf32, #tpu.memory_space<vmem>>, vector<3x4x1xf32>,
    %c0_103 = arith.constant 0 : index
    %c0_104 = arith.constant 0 : index
    %c0_105 = arith.constant 0 : index
    %226 = vector.load %arg8[%c0_103, %c0_104, %c0_105] : memref<3x4x10xf32, #tpu.memory_space<vmem>>, vector<3x4x8xf32>
    %c0_106 = arith.constant 0 : index
    %c0_107 = arith.constant 0 : index
    %c0_108 = arith.constant 0 : index
    %227 = vector.load %arg9[%c0_106, %c0_107, %c0_108] : memref<3x4x10xf32, #tpu.memory_space<vmem>>, vector<3x4x8xf32>
    %c0_109 = arith.constant 0 : index
    %c0_110 = arith.constant 0 : index
    %c2_111 = arith.constant 2 : index
    %228 = vector.load %arg8[%c0_109, %c0_110, %c2_111] : memref<3x4x10xf32, #tpu.memory_space<vmem>>, vector<3x4x8xf32>
    %c0_112 = arith.constant 0 : index
    %c0_113 = arith.constant 0 : index
    %c2_114 = arith.constant 2 : index
    %229 = vector.load %arg9[%c0_112, %c0_113, %c2_114] : memref<3x4x10xf32, #tpu.memory_space<vmem>>, vector<3x4x8xf32>
    %cst_115 = arith.constant -5.000000e-02 : f32
    %230 = vector.broadcast %cst_115 : f32 to vector<3x4x8xf32>
    %231 = arith.mulf %230, %226 : vector<3x4x8xf32>
    %cst_116 = arith.constant 2.500000e-01 : f32
    %232 = vector.broadcast %cst_116 : f32 to vector<3x4x8xf32>
    %233 = arith.mulf %232, %227 : vector<3x4x8xf32>
    %234 = arith.addf %231, %233 : vector<3x4x8xf32>
    %cst_117 = arith.constant 6.000000e-01 : f32
    %235 = vector.broadcast %cst_117 : f32 to vector<3x4x8xf32>
    %236 = arith.mulf %235, %211 : vector<3x4x8xf32>
    %237 = arith.addf %234, %236 : vector<3x4x8xf32>
    %cst_118 = arith.constant 2.500000e-01 : f32
    %238 = vector.broadcast %cst_118 : f32 to vector<3x4x8xf32>
    %239 = arith.mulf %238, %215 : vector<3x4x8xf32>
    %240 = arith.addf %237, %239 : vector<3x4x8xf32>
    %cst_119 = arith.constant -5.000000e-02 : f32
    %241 = vector.broadcast %cst_119 : f32 to vector<3x4x8xf32>
    %242 = arith.mulf %241, %228 : vector<3x4x8xf32>
    %243 = arith.addf %240, %242 : vector<3x4x8xf32>
    %c0_120 = arith.constant 0 : index
    %c0_121 = arith.constant 0 : index
    %c0_122 = arith.constant 0 : index
    %c0_123 = arith.constant 0 : index
    %244 = vector.load %arg6[%c0_120, %c0_121, %c0_122, %c0_123] : memref<1x3x4x8xf32, #tpu.memory_space<vmem>>, vector<1x3x4x8xf32>
    %245 = vector.shape_cast %244 : vector<1x3x4x8xf32> to vector<3x4x8xf32>
    %246 = vector.shape_cast %243 : vector<3x4x8xf32> to vector<1x3x4x8xf32>
    tpu.vector_store %arg6[%c0_120, %c0_121, %c0_122, %c0_123], %246 {strides = array<i32>} : memref<1x3x4x8xf32, #tpu.memory_space<vmem>>, vector<1x3x4x8xf32>,
    %cst_124 = arith.constant -5.000000e-02 : f32
    %247 = vector.broadcast %cst_124 : f32 to vector<3x4x8xf32>
    %248 = arith.mulf %247, %227 : vector<3x4x8xf32>
    %cst_125 = arith.constant 2.500000e-01 : f32
    %249 = vector.broadcast %cst_125 : f32 to vector<3x4x8xf32>
    %250 = arith.mulf %249, %211 : vector<3x4x8xf32>
    %251 = arith.addf %248, %250 : vector<3x4x8xf32>
    %cst_126 = arith.constant 6.000000e-01 : f32
    %252 = vector.broadcast %cst_126 : f32 to vector<3x4x8xf32>
    %253 = arith.mulf %252, %215 : vector<3x4x8xf32>
    %254 = arith.addf %251, %253 : vector<3x4x8xf32>
    %cst_127 = arith.constant 2.500000e-01 : f32
    %255 = vector.broadcast %cst_127 : f32 to vector<3x4x8xf32>
    %256 = arith.mulf %255, %228 : vector<3x4x8xf32>
    %257 = arith.addf %254, %256 : vector<3x4x8xf32>
    %cst_128 = arith.constant -5.000000e-02 : f32
    %258 = vector.broadcast %cst_128 : f32 to vector<3x4x8xf32>
    %259 = arith.mulf %258, %229 : vector<3x4x8xf32>
    %260 = arith.addf %257, %259 : vector<3x4x8xf32>
    %c0_129 = arith.constant 0 : index
    %c0_130 = arith.constant 0 : index
    %c0_131 = arith.constant 0 : index
    %c0_132 = arith.constant 0 : index
    %261 = vector.load %arg7[%c0_129, %c0_130, %c0_131, %c0_132] : memref<1x3x4x8xf32, #tpu.memory_space<vmem>>, vector<1x3x4x8xf32>
    %262 = vector.shape_cast %261 : vector<1x3x4x8xf32> to vector<3x4x8xf32>
    %263 = vector.shape_cast %260 : vector<3x4x8xf32> to vector<1x3x4x8xf32>
    tpu.vector_store %arg7[%c0_129, %c0_130, %c0_131, %c0_132], %263 {strides = array<i32>} : memref<1x3x4x8xf32, #tpu.memory_space<vmem>>, vector<1x3x4x8xf32>,
    return
  }
  func.func @transform_0(%arg0: i32) -> (i32, i32, i32) {
    %c0_i32 = arith.constant 0 : i32
    %c0_i32_0 = arith.constant 0 : i32
    %c0_i32_1 = arith.constant 0 : i32
    return %arg0, %c0_i32, %c0_i32_0 : i32, i32, i32
  }
  func.func @transform_1(%arg0: i32) -> (i32, i32, i32) {
    %c0_i32 = arith.constant 0 : i32
    %c0_i32_0 = arith.constant 0 : i32
    %c0_i32_1 = arith.constant 0 : i32
    return %arg0, %c0_i32, %c0_i32_0 : i32, i32, i32
  }
  func.func @transform_2(%arg0: i32) -> (i32, i32, i32) {
    %c0_i32 = arith.constant 0 : i32
    %c0_i32_0 = arith.constant 0 : i32
    %c0_i32_1 = arith.constant 0 : i32
    return %arg0, %c0_i32, %c0_i32_0 : i32, i32, i32
  }
  func.func @transform_3(%arg0: i32) -> (i32, i32, i32) {
    %c0_i32 = arith.constant 0 : i32
    %c0_i32_0 = arith.constant 0 : i32
    %c0_i32_1 = arith.constant 0 : i32
    return %arg0, %c0_i32, %c0_i32_0 : i32, i32, i32
  }
  func.func @transform_4(%arg0: i32) -> (i32, i32, i32) {
    %c0_i32 = arith.constant 0 : i32
    %c0_i32_0 = arith.constant 0 : i32
    %c0_i32_1 = arith.constant 0 : i32
    %c0_i32_2 = arith.constant 0 : i32
    return %c0_i32, %c0_i32_0, %c0_i32_1 : i32, i32, i32
  }
  func.func @transform_5(%arg0: i32) -> (i32, i32, i32, i32) {
    %c0_i32 = arith.constant 0 : i32
    %c0_i32_0 = arith.constant 0 : i32
    %c0_i32_1 = arith.constant 0 : i32
    %c0_i32_2 = arith.constant 0 : i32
    return %arg0, %c0_i32, %c0_i32_0, %c0_i32_1 : i32, i32, i32, i32
  }
  func.func @transform_6(%arg0: i32) -> (i32, i32, i32, i32) {
    %c0_i32 = arith.constant 0 : i32
    %c0_i32_0 = arith.constant 0 : i32
    %c0_i32_1 = arith.constant 0 : i32
    %c0_i32_2 = arith.constant 0 : i32
    return %arg0, %c0_i32, %c0_i32_0, %c0_i32_1 : i32, i32, i32, i32
  }
}

module attributes {stable_mosaic.version = 11 : i64} {
  func.func @_conv_mod_down_kernel(%arg0: i32, %arg1: memref<1x4x7xf32, #tpu.memory_space<vmem>>, %arg2: memref<1x4x7xf32, #tpu.memory_space<vmem>>, %arg3: memref<1x4x7xf32, #tpu.memory_space<vmem>>, %arg4: memref<1x4x7xf32, #tpu.memory_space<vmem>>, %arg5: memref<3x4x7xf32, #tpu.memory_space<vmem>>, %arg6: memref<1x3x4x4xf32, #tpu.memory_space<vmem>>, %arg7: memref<1x3x4x4xf32, #tpu.memory_space<vmem>>, %arg8: memref<3x4x6xf32, #tpu.memory_space<vmem>>, %arg9: memref<3x4x6xf32, #tpu.memory_space<vmem>>) attributes {dimension_semantics = [#tpu.dimension_semantics<parallel>], iteration_bounds = array<i64: 2>, scalar_prefetch = 0 : i64, scratch_operands = 2 : i64, tpu.core_type = #tpu.core_type<tc>, window_params = [{transform_indices = @transform_0, window_bounds = array<i64: 1, 4, 7>}, {transform_indices = @transform_1, window_bounds = array<i64: 1, 4, 7>}, {transform_indices = @transform_2, window_bounds = array<i64: 1, 4, 7>}, {transform_indices = @transform_3, window_bounds = array<i64: 1, 4, 7>}, {pipeline_mode = #tpu.pipeline_mode<synchronous>, transform_indices = @transform_4, window_bounds = array<i64: 3, 4, 7>}, {transform_indices = @transform_5, window_bounds = array<i64: 1, 3, 4, 4>}, {transform_indices = @transform_6, window_bounds = array<i64: 1, 3, 4, 4>}]} {
    %c0 = arith.constant 0 : index
    %c0_0 = arith.constant 0 : index
    %c0_1 = arith.constant 0 : index
    %0 = vector.load %arg5[%c0, %c0_0, %c0_1] : memref<3x4x7xf32, #tpu.memory_space<vmem>>, vector<3x4x7xf32>
    %cst = arith.constant 0.000000e+00 : f32
    %1 = vector.broadcast %cst : f32 to vector<3x4x4xf32>
    %cst_2 = arith.constant 0.000000e+00 : f32
    %2 = vector.broadcast %cst_2 : f32 to vector<3x4x4xf32>
    %cst_3 = arith.constant 0.000000e+00 : f32
    %3 = vector.broadcast %cst_3 : f32 to vector<3x4x4xf32>
    %cst_4 = arith.constant 0.000000e+00 : f32
    %4 = vector.broadcast %cst_4 : f32 to vector<3x4x4xf32>
    %5 = vector.extract_strided_slice %0 {offsets = [0, 0, 0], sizes = [3, 4, 1], strides = [1, 1, 1]} : vector<3x4x7xf32> to vector<3x4x1xf32>
    %c0_5 = arith.constant 0 : index
    %c0_6 = arith.constant 0 : index
    %c0_7 = arith.constant 0 : index
    %6 = vector.load %arg1[%c0_5, %c0_6, %c0_7] : memref<1x4x7xf32, #tpu.memory_space<vmem>>, vector<1x4x4xf32>
    %7 = vector.shape_cast %6 : vector<1x4x4xf32> to vector<4x4xf32>
    %8 = vector.shape_cast %7 : vector<4x4xf32> to vector<1x4x4xf32>
    %9 = vector.broadcast %5 : vector<3x4x1xf32> to vector<3x4x4xf32>
    %10 = vector.broadcast %8 : vector<1x4x4xf32> to vector<3x4x4xf32>
    %11 = arith.mulf %9, %10 : vector<3x4x4xf32>
    %12 = arith.addf %1, %11 : vector<3x4x4xf32>
    %c0_8 = arith.constant 0 : index
    %c0_9 = arith.constant 0 : index
    %c0_10 = arith.constant 0 : index
    %13 = vector.load %arg3[%c0_8, %c0_9, %c0_10] : memref<1x4x7xf32, #tpu.memory_space<vmem>>, vector<1x4x4xf32>
    %14 = vector.shape_cast %13 : vector<1x4x4xf32> to vector<4x4xf32>
    %15 = vector.shape_cast %14 : vector<4x4xf32> to vector<1x4x4xf32>
    %16 = vector.broadcast %5 : vector<3x4x1xf32> to vector<3x4x4xf32>
    %17 = vector.broadcast %15 : vector<1x4x4xf32> to vector<3x4x4xf32>
    %18 = arith.mulf %16, %17 : vector<3x4x4xf32>
    %19 = arith.addf %2, %18 : vector<3x4x4xf32>
    %c0_11 = arith.constant 0 : index
    %c0_12 = arith.constant 0 : index
    %c0_13 = arith.constant 0 : index
    %20 = vector.load %arg2[%c0_11, %c0_12, %c0_13] : memref<1x4x7xf32, #tpu.memory_space<vmem>>, vector<1x4x4xf32>
    %21 = vector.shape_cast %20 : vector<1x4x4xf32> to vector<4x4xf32>
    %22 = vector.shape_cast %21 : vector<4x4xf32> to vector<1x4x4xf32>
    %23 = vector.broadcast %5 : vector<3x4x1xf32> to vector<3x4x4xf32>
    %24 = vector.broadcast %22 : vector<1x4x4xf32> to vector<3x4x4xf32>
    %25 = arith.mulf %23, %24 : vector<3x4x4xf32>
    %26 = arith.addf %3, %25 : vector<3x4x4xf32>
    %c0_14 = arith.constant 0 : index
    %c0_15 = arith.constant 0 : index
    %c0_16 = arith.constant 0 : index
    %27 = vector.load %arg4[%c0_14, %c0_15, %c0_16] : memref<1x4x7xf32, #tpu.memory_space<vmem>>, vector<1x4x4xf32>
    %28 = vector.shape_cast %27 : vector<1x4x4xf32> to vector<4x4xf32>
    %29 = vector.shape_cast %28 : vector<4x4xf32> to vector<1x4x4xf32>
    %30 = vector.broadcast %5 : vector<3x4x1xf32> to vector<3x4x4xf32>
    %31 = vector.broadcast %29 : vector<1x4x4xf32> to vector<3x4x4xf32>
    %32 = arith.mulf %30, %31 : vector<3x4x4xf32>
    %33 = arith.addf %4, %32 : vector<3x4x4xf32>
    %34 = vector.extract_strided_slice %0 {offsets = [0, 0, 1], sizes = [3, 4, 1], strides = [1, 1, 1]} : vector<3x4x7xf32> to vector<3x4x1xf32>
    %c0_17 = arith.constant 0 : index
    %c0_18 = arith.constant 0 : index
    %c0_19 = arith.constant 0 : index
    %35 = vector.load %arg2[%c0_17, %c0_18, %c0_19] : memref<1x4x7xf32, #tpu.memory_space<vmem>>, vector<1x4x4xf32>
    %36 = vector.shape_cast %35 : vector<1x4x4xf32> to vector<4x4xf32>
    %37 = vector.shape_cast %36 : vector<4x4xf32> to vector<1x4x4xf32>
    %38 = vector.broadcast %34 : vector<3x4x1xf32> to vector<3x4x4xf32>
    %39 = vector.broadcast %37 : vector<1x4x4xf32> to vector<3x4x4xf32>
    %40 = arith.mulf %38, %39 : vector<3x4x4xf32>
    %41 = arith.addf %12, %40 : vector<3x4x4xf32>
    %c0_20 = arith.constant 0 : index
    %c0_21 = arith.constant 0 : index
    %c0_22 = arith.constant 0 : index
    %42 = vector.load %arg4[%c0_20, %c0_21, %c0_22] : memref<1x4x7xf32, #tpu.memory_space<vmem>>, vector<1x4x4xf32>
    %43 = vector.shape_cast %42 : vector<1x4x4xf32> to vector<4x4xf32>
    %44 = vector.shape_cast %43 : vector<4x4xf32> to vector<1x4x4xf32>
    %45 = vector.broadcast %34 : vector<3x4x1xf32> to vector<3x4x4xf32>
    %46 = vector.broadcast %44 : vector<1x4x4xf32> to vector<3x4x4xf32>
    %47 = arith.mulf %45, %46 : vector<3x4x4xf32>
    %48 = arith.addf %19, %47 : vector<3x4x4xf32>
    %c0_23 = arith.constant 0 : index
    %c0_24 = arith.constant 0 : index
    %c1 = arith.constant 1 : index
    %49 = vector.load %arg1[%c0_23, %c0_24, %c1] : memref<1x4x7xf32, #tpu.memory_space<vmem>>, vector<1x4x4xf32>
    %50 = vector.shape_cast %49 : vector<1x4x4xf32> to vector<4x4xf32>
    %51 = vector.shape_cast %50 : vector<4x4xf32> to vector<1x4x4xf32>
    %52 = vector.broadcast %34 : vector<3x4x1xf32> to vector<3x4x4xf32>
    %53 = vector.broadcast %51 : vector<1x4x4xf32> to vector<3x4x4xf32>
    %54 = arith.mulf %52, %53 : vector<3x4x4xf32>
    %55 = arith.addf %26, %54 : vector<3x4x4xf32>
    %c0_25 = arith.constant 0 : index
    %c0_26 = arith.constant 0 : index
    %c1_27 = arith.constant 1 : index
    %56 = vector.load %arg3[%c0_25, %c0_26, %c1_27] : memref<1x4x7xf32, #tpu.memory_space<vmem>>, vector<1x4x4xf32>
    %57 = vector.shape_cast %56 : vector<1x4x4xf32> to vector<4x4xf32>
    %58 = vector.shape_cast %57 : vector<4x4xf32> to vector<1x4x4xf32>
    %59 = vector.broadcast %34 : vector<3x4x1xf32> to vector<3x4x4xf32>
    %60 = vector.broadcast %58 : vector<1x4x4xf32> to vector<3x4x4xf32>
    %61 = arith.mulf %59, %60 : vector<3x4x4xf32>
    %62 = arith.addf %33, %61 : vector<3x4x4xf32>
    %63 = vector.extract_strided_slice %0 {offsets = [0, 0, 2], sizes = [3, 4, 1], strides = [1, 1, 1]} : vector<3x4x7xf32> to vector<3x4x1xf32>
    %c0_28 = arith.constant 0 : index
    %c0_29 = arith.constant 0 : index
    %c1_30 = arith.constant 1 : index
    %64 = vector.load %arg1[%c0_28, %c0_29, %c1_30] : memref<1x4x7xf32, #tpu.memory_space<vmem>>, vector<1x4x4xf32>
    %65 = vector.shape_cast %64 : vector<1x4x4xf32> to vector<4x4xf32>
    %66 = vector.shape_cast %65 : vector<4x4xf32> to vector<1x4x4xf32>
    %67 = vector.broadcast %63 : vector<3x4x1xf32> to vector<3x4x4xf32>
    %68 = vector.broadcast %66 : vector<1x4x4xf32> to vector<3x4x4xf32>
    %69 = arith.mulf %67, %68 : vector<3x4x4xf32>
    %70 = arith.addf %41, %69 : vector<3x4x4xf32>
    %c0_31 = arith.constant 0 : index
    %c0_32 = arith.constant 0 : index
    %c1_33 = arith.constant 1 : index
    %71 = vector.load %arg3[%c0_31, %c0_32, %c1_33] : memref<1x4x7xf32, #tpu.memory_space<vmem>>, vector<1x4x4xf32>
    %72 = vector.shape_cast %71 : vector<1x4x4xf32> to vector<4x4xf32>
    %73 = vector.shape_cast %72 : vector<4x4xf32> to vector<1x4x4xf32>
    %74 = vector.broadcast %63 : vector<3x4x1xf32> to vector<3x4x4xf32>
    %75 = vector.broadcast %73 : vector<1x4x4xf32> to vector<3x4x4xf32>
    %76 = arith.mulf %74, %75 : vector<3x4x4xf32>
    %77 = arith.addf %48, %76 : vector<3x4x4xf32>
    %c0_34 = arith.constant 0 : index
    %c0_35 = arith.constant 0 : index
    %c1_36 = arith.constant 1 : index
    %78 = vector.load %arg2[%c0_34, %c0_35, %c1_36] : memref<1x4x7xf32, #tpu.memory_space<vmem>>, vector<1x4x4xf32>
    %79 = vector.shape_cast %78 : vector<1x4x4xf32> to vector<4x4xf32>
    %80 = vector.shape_cast %79 : vector<4x4xf32> to vector<1x4x4xf32>
    %81 = vector.broadcast %63 : vector<3x4x1xf32> to vector<3x4x4xf32>
    %82 = vector.broadcast %80 : vector<1x4x4xf32> to vector<3x4x4xf32>
    %83 = arith.mulf %81, %82 : vector<3x4x4xf32>
    %84 = arith.addf %55, %83 : vector<3x4x4xf32>
    %c0_37 = arith.constant 0 : index
    %c0_38 = arith.constant 0 : index
    %c1_39 = arith.constant 1 : index
    %85 = vector.load %arg4[%c0_37, %c0_38, %c1_39] : memref<1x4x7xf32, #tpu.memory_space<vmem>>, vector<1x4x4xf32>
    %86 = vector.shape_cast %85 : vector<1x4x4xf32> to vector<4x4xf32>
    %87 = vector.shape_cast %86 : vector<4x4xf32> to vector<1x4x4xf32>
    %88 = vector.broadcast %63 : vector<3x4x1xf32> to vector<3x4x4xf32>
    %89 = vector.broadcast %87 : vector<1x4x4xf32> to vector<3x4x4xf32>
    %90 = arith.mulf %88, %89 : vector<3x4x4xf32>
    %91 = arith.addf %62, %90 : vector<3x4x4xf32>
    %92 = vector.extract_strided_slice %0 {offsets = [0, 0, 3], sizes = [3, 4, 1], strides = [1, 1, 1]} : vector<3x4x7xf32> to vector<3x4x1xf32>
    %c0_40 = arith.constant 0 : index
    %c0_41 = arith.constant 0 : index
    %c1_42 = arith.constant 1 : index
    %93 = vector.load %arg2[%c0_40, %c0_41, %c1_42] : memref<1x4x7xf32, #tpu.memory_space<vmem>>, vector<1x4x4xf32>
    %94 = vector.shape_cast %93 : vector<1x4x4xf32> to vector<4x4xf32>
    %95 = vector.shape_cast %94 : vector<4x4xf32> to vector<1x4x4xf32>
    %96 = vector.broadcast %92 : vector<3x4x1xf32> to vector<3x4x4xf32>
    %97 = vector.broadcast %95 : vector<1x4x4xf32> to vector<3x4x4xf32>
    %98 = arith.mulf %96, %97 : vector<3x4x4xf32>
    %99 = arith.addf %70, %98 : vector<3x4x4xf32>
    %c0_43 = arith.constant 0 : index
    %c0_44 = arith.constant 0 : index
    %c1_45 = arith.constant 1 : index
    %100 = vector.load %arg4[%c0_43, %c0_44, %c1_45] : memref<1x4x7xf32, #tpu.memory_space<vmem>>, vector<1x4x4xf32>
    %101 = vector.shape_cast %100 : vector<1x4x4xf32> to vector<4x4xf32>
    %102 = vector.shape_cast %101 : vector<4x4xf32> to vector<1x4x4xf32>
    %103 = vector.broadcast %92 : vector<3x4x1xf32> to vector<3x4x4xf32>
    %104 = vector.broadcast %102 : vector<1x4x4xf32> to vector<3x4x4xf32>
    %105 = arith.mulf %103, %104 : vector<3x4x4xf32>
    %106 = arith.addf %77, %105 : vector<3x4x4xf32>
    %c0_46 = arith.constant 0 : index
    %c0_47 = arith.constant 0 : index
    %c2 = arith.constant 2 : index
    %107 = vector.load %arg1[%c0_46, %c0_47, %c2] : memref<1x4x7xf32, #tpu.memory_space<vmem>>, vector<1x4x4xf32>
    %108 = vector.shape_cast %107 : vector<1x4x4xf32> to vector<4x4xf32>
    %109 = vector.shape_cast %108 : vector<4x4xf32> to vector<1x4x4xf32>
    %110 = vector.broadcast %92 : vector<3x4x1xf32> to vector<3x4x4xf32>
    %111 = vector.broadcast %109 : vector<1x4x4xf32> to vector<3x4x4xf32>
    %112 = arith.mulf %110, %111 : vector<3x4x4xf32>
    %113 = arith.addf %84, %112 : vector<3x4x4xf32>
    %c0_48 = arith.constant 0 : index
    %c0_49 = arith.constant 0 : index
    %c2_50 = arith.constant 2 : index
    %114 = vector.load %arg3[%c0_48, %c0_49, %c2_50] : memref<1x4x7xf32, #tpu.memory_space<vmem>>, vector<1x4x4xf32>
    %115 = vector.shape_cast %114 : vector<1x4x4xf32> to vector<4x4xf32>
    %116 = vector.shape_cast %115 : vector<4x4xf32> to vector<1x4x4xf32>
    %117 = vector.broadcast %92 : vector<3x4x1xf32> to vector<3x4x4xf32>
    %118 = vector.broadcast %116 : vector<1x4x4xf32> to vector<3x4x4xf32>
    %119 = arith.mulf %117, %118 : vector<3x4x4xf32>
    %120 = arith.addf %91, %119 : vector<3x4x4xf32>
    %121 = vector.extract_strided_slice %0 {offsets = [0, 0, 4], sizes = [3, 4, 1], strides = [1, 1, 1]} : vector<3x4x7xf32> to vector<3x4x1xf32>
    %c0_51 = arith.constant 0 : index
    %c0_52 = arith.constant 0 : index
    %c2_53 = arith.constant 2 : index
    %122 = vector.load %arg1[%c0_51, %c0_52, %c2_53] : memref<1x4x7xf32, #tpu.memory_space<vmem>>, vector<1x4x4xf32>
    %123 = vector.shape_cast %122 : vector<1x4x4xf32> to vector<4x4xf32>
    %124 = vector.shape_cast %123 : vector<4x4xf32> to vector<1x4x4xf32>
    %125 = vector.broadcast %121 : vector<3x4x1xf32> to vector<3x4x4xf32>
    %126 = vector.broadcast %124 : vector<1x4x4xf32> to vector<3x4x4xf32>
    %127 = arith.mulf %125, %126 : vector<3x4x4xf32>
    %128 = arith.addf %99, %127 : vector<3x4x4xf32>
    %c0_54 = arith.constant 0 : index
    %c0_55 = arith.constant 0 : index
    %c2_56 = arith.constant 2 : index
    %129 = vector.load %arg3[%c0_54, %c0_55, %c2_56] : memref<1x4x7xf32, #tpu.memory_space<vmem>>, vector<1x4x4xf32>
    %130 = vector.shape_cast %129 : vector<1x4x4xf32> to vector<4x4xf32>
    %131 = vector.shape_cast %130 : vector<4x4xf32> to vector<1x4x4xf32>
    %132 = vector.broadcast %121 : vector<3x4x1xf32> to vector<3x4x4xf32>
    %133 = vector.broadcast %131 : vector<1x4x4xf32> to vector<3x4x4xf32>
    %134 = arith.mulf %132, %133 : vector<3x4x4xf32>
    %135 = arith.addf %106, %134 : vector<3x4x4xf32>
    %c0_57 = arith.constant 0 : index
    %c0_58 = arith.constant 0 : index
    %c2_59 = arith.constant 2 : index
    %136 = vector.load %arg2[%c0_57, %c0_58, %c2_59] : memref<1x4x7xf32, #tpu.memory_space<vmem>>, vector<1x4x4xf32>
    %137 = vector.shape_cast %136 : vector<1x4x4xf32> to vector<4x4xf32>
    %138 = vector.shape_cast %137 : vector<4x4xf32> to vector<1x4x4xf32>
    %139 = vector.broadcast %121 : vector<3x4x1xf32> to vector<3x4x4xf32>
    %140 = vector.broadcast %138 : vector<1x4x4xf32> to vector<3x4x4xf32>
    %141 = arith.mulf %139, %140 : vector<3x4x4xf32>
    %142 = arith.addf %113, %141 : vector<3x4x4xf32>
    %c0_60 = arith.constant 0 : index
    %c0_61 = arith.constant 0 : index
    %c2_62 = arith.constant 2 : index
    %143 = vector.load %arg4[%c0_60, %c0_61, %c2_62] : memref<1x4x7xf32, #tpu.memory_space<vmem>>, vector<1x4x4xf32>
    %144 = vector.shape_cast %143 : vector<1x4x4xf32> to vector<4x4xf32>
    %145 = vector.shape_cast %144 : vector<4x4xf32> to vector<1x4x4xf32>
    %146 = vector.broadcast %121 : vector<3x4x1xf32> to vector<3x4x4xf32>
    %147 = vector.broadcast %145 : vector<1x4x4xf32> to vector<3x4x4xf32>
    %148 = arith.mulf %146, %147 : vector<3x4x4xf32>
    %149 = arith.addf %120, %148 : vector<3x4x4xf32>
    %150 = vector.extract_strided_slice %0 {offsets = [0, 0, 5], sizes = [3, 4, 1], strides = [1, 1, 1]} : vector<3x4x7xf32> to vector<3x4x1xf32>
    %c0_63 = arith.constant 0 : index
    %c0_64 = arith.constant 0 : index
    %c2_65 = arith.constant 2 : index
    %151 = vector.load %arg2[%c0_63, %c0_64, %c2_65] : memref<1x4x7xf32, #tpu.memory_space<vmem>>, vector<1x4x4xf32>
    %152 = vector.shape_cast %151 : vector<1x4x4xf32> to vector<4x4xf32>
    %153 = vector.shape_cast %152 : vector<4x4xf32> to vector<1x4x4xf32>
    %154 = vector.broadcast %150 : vector<3x4x1xf32> to vector<3x4x4xf32>
    %155 = vector.broadcast %153 : vector<1x4x4xf32> to vector<3x4x4xf32>
    %156 = arith.mulf %154, %155 : vector<3x4x4xf32>
    %157 = arith.addf %128, %156 : vector<3x4x4xf32>
    %c0_66 = arith.constant 0 : index
    %c0_67 = arith.constant 0 : index
    %c2_68 = arith.constant 2 : index
    %158 = vector.load %arg4[%c0_66, %c0_67, %c2_68] : memref<1x4x7xf32, #tpu.memory_space<vmem>>, vector<1x4x4xf32>
    %159 = vector.shape_cast %158 : vector<1x4x4xf32> to vector<4x4xf32>
    %160 = vector.shape_cast %159 : vector<4x4xf32> to vector<1x4x4xf32>
    %161 = vector.broadcast %150 : vector<3x4x1xf32> to vector<3x4x4xf32>
    %162 = vector.broadcast %160 : vector<1x4x4xf32> to vector<3x4x4xf32>
    %163 = arith.mulf %161, %162 : vector<3x4x4xf32>
    %164 = arith.addf %135, %163 : vector<3x4x4xf32>
    %c0_69 = arith.constant 0 : index
    %c0_70 = arith.constant 0 : index
    %c3 = arith.constant 3 : index
    %165 = vector.load %arg1[%c0_69, %c0_70, %c3] : memref<1x4x7xf32, #tpu.memory_space<vmem>>, vector<1x4x4xf32>
    %166 = vector.shape_cast %165 : vector<1x4x4xf32> to vector<4x4xf32>
    %167 = vector.shape_cast %166 : vector<4x4xf32> to vector<1x4x4xf32>
    %168 = vector.broadcast %150 : vector<3x4x1xf32> to vector<3x4x4xf32>
    %169 = vector.broadcast %167 : vector<1x4x4xf32> to vector<3x4x4xf32>
    %170 = arith.mulf %168, %169 : vector<3x4x4xf32>
    %171 = arith.addf %142, %170 : vector<3x4x4xf32>
    %c0_71 = arith.constant 0 : index
    %c0_72 = arith.constant 0 : index
    %c3_73 = arith.constant 3 : index
    %172 = vector.load %arg3[%c0_71, %c0_72, %c3_73] : memref<1x4x7xf32, #tpu.memory_space<vmem>>, vector<1x4x4xf32>
    %173 = vector.shape_cast %172 : vector<1x4x4xf32> to vector<4x4xf32>
    %174 = vector.shape_cast %173 : vector<4x4xf32> to vector<1x4x4xf32>
    %175 = vector.broadcast %150 : vector<3x4x1xf32> to vector<3x4x4xf32>
    %176 = vector.broadcast %174 : vector<1x4x4xf32> to vector<3x4x4xf32>
    %177 = arith.mulf %175, %176 : vector<3x4x4xf32>
    %178 = arith.addf %149, %177 : vector<3x4x4xf32>
    %179 = vector.extract_strided_slice %0 {offsets = [0, 0, 6], sizes = [3, 4, 1], strides = [1, 1, 1]} : vector<3x4x7xf32> to vector<3x4x1xf32>
    %c0_74 = arith.constant 0 : index
    %c0_75 = arith.constant 0 : index
    %c3_76 = arith.constant 3 : index
    %180 = vector.load %arg1[%c0_74, %c0_75, %c3_76] : memref<1x4x7xf32, #tpu.memory_space<vmem>>, vector<1x4x4xf32>
    %181 = vector.shape_cast %180 : vector<1x4x4xf32> to vector<4x4xf32>
    %182 = vector.shape_cast %181 : vector<4x4xf32> to vector<1x4x4xf32>
    %183 = vector.broadcast %179 : vector<3x4x1xf32> to vector<3x4x4xf32>
    %184 = vector.broadcast %182 : vector<1x4x4xf32> to vector<3x4x4xf32>
    %185 = arith.mulf %183, %184 : vector<3x4x4xf32>
    %186 = arith.addf %157, %185 : vector<3x4x4xf32>
    %c0_77 = arith.constant 0 : index
    %c0_78 = arith.constant 0 : index
    %c3_79 = arith.constant 3 : index
    %187 = vector.load %arg3[%c0_77, %c0_78, %c3_79] : memref<1x4x7xf32, #tpu.memory_space<vmem>>, vector<1x4x4xf32>
    %188 = vector.shape_cast %187 : vector<1x4x4xf32> to vector<4x4xf32>
    %189 = vector.shape_cast %188 : vector<4x4xf32> to vector<1x4x4xf32>
    %190 = vector.broadcast %179 : vector<3x4x1xf32> to vector<3x4x4xf32>
    %191 = vector.broadcast %189 : vector<1x4x4xf32> to vector<3x4x4xf32>
    %192 = arith.mulf %190, %191 : vector<3x4x4xf32>
    %193 = arith.addf %164, %192 : vector<3x4x4xf32>
    %c0_80 = arith.constant 0 : index
    %c0_81 = arith.constant 0 : index
    %c3_82 = arith.constant 3 : index
    %194 = vector.load %arg2[%c0_80, %c0_81, %c3_82] : memref<1x4x7xf32, #tpu.memory_space<vmem>>, vector<1x4x4xf32>
    %195 = vector.shape_cast %194 : vector<1x4x4xf32> to vector<4x4xf32>
    %196 = vector.shape_cast %195 : vector<4x4xf32> to vector<1x4x4xf32>
    %197 = vector.broadcast %179 : vector<3x4x1xf32> to vector<3x4x4xf32>
    %198 = vector.broadcast %196 : vector<1x4x4xf32> to vector<3x4x4xf32>
    %199 = arith.mulf %197, %198 : vector<3x4x4xf32>
    %200 = arith.addf %171, %199 : vector<3x4x4xf32>
    %c0_83 = arith.constant 0 : index
    %c0_84 = arith.constant 0 : index
    %c3_85 = arith.constant 3 : index
    %201 = vector.load %arg4[%c0_83, %c0_84, %c3_85] : memref<1x4x7xf32, #tpu.memory_space<vmem>>, vector<1x4x4xf32>
    %202 = vector.shape_cast %201 : vector<1x4x4xf32> to vector<4x4xf32>
    %203 = vector.shape_cast %202 : vector<4x4xf32> to vector<1x4x4xf32>
    %204 = vector.broadcast %179 : vector<3x4x1xf32> to vector<3x4x4xf32>
    %205 = vector.broadcast %203 : vector<1x4x4xf32> to vector<3x4x4xf32>
    %206 = arith.mulf %204, %205 : vector<3x4x4xf32>
    %207 = arith.addf %178, %206 : vector<3x4x4xf32>
    %208 = arith.mulf %186, %186 : vector<3x4x4xf32>
    %209 = arith.mulf %193, %193 : vector<3x4x4xf32>
    %210 = arith.addf %208, %209 : vector<3x4x4xf32>
    %211 = math.sqrt %210 : vector<3x4x4xf32>
    %212 = arith.mulf %200, %200 : vector<3x4x4xf32>
    %213 = arith.mulf %207, %207 : vector<3x4x4xf32>
    %214 = arith.addf %212, %213 : vector<3x4x4xf32>
    %215 = math.sqrt %214 : vector<3x4x4xf32>
    %c0_86 = arith.constant 0 : index
    %c0_87 = arith.constant 0 : index
    %c1_88 = arith.constant 1 : index
    %216 = vector.load %arg8[%c0_86, %c0_87, %c1_88] : memref<3x4x6xf32, #tpu.memory_space<vmem>>, vector<3x4x4xf32>
    tpu.vector_store %arg8[%c0_86, %c0_87, %c1_88], %211 {strides = array<i32>} : memref<3x4x6xf32, #tpu.memory_space<vmem>>, vector<3x4x4xf32>,
    %c0_89 = arith.constant 0 : index
    %c0_90 = arith.constant 0 : index
    %c1_91 = arith.constant 1 : index
    %217 = vector.load %arg9[%c0_89, %c0_90, %c1_91] : memref<3x4x6xf32, #tpu.memory_space<vmem>>, vector<3x4x4xf32>
    tpu.vector_store %arg9[%c0_89, %c0_90, %c1_91], %215 {strides = array<i32>} : memref<3x4x6xf32, #tpu.memory_space<vmem>>, vector<3x4x4xf32>,
    %218 = vector.extract_strided_slice %215 {offsets = [0, 0, 0], sizes = [3, 4, 1], strides = [1, 1, 1]} : vector<3x4x4xf32> to vector<3x4x1xf32>
    %c0_92 = arith.constant 0 : index
    %c0_93 = arith.constant 0 : index
    %c0_94 = arith.constant 0 : index
    %219 = vector.load %arg8[%c0_92, %c0_93, %c0_94] : memref<3x4x6xf32, #tpu.memory_space<vmem>>, vector<3x4x1xf32>
    tpu.vector_store %arg8[%c0_92, %c0_93, %c0_94], %218 {strides = array<i32>} : memref<3x4x6xf32, #tpu.memory_space<vmem>>, vector<3x4x1xf32>,
    %220 = vector.extract_strided_slice %211 {offsets = [0, 0, 0], sizes = [3, 4, 1], strides = [1, 1, 1]} : vector<3x4x4xf32> to vector<3x4x1xf32>
    %c0_95 = arith.constant 0 : index
    %c0_96 = arith.constant 0 : index
    %c0_97 = arith.constant 0 : index
    %221 = vector.load %arg9[%c0_95, %c0_96, %c0_97] : memref<3x4x6xf32, #tpu.memory_space<vmem>>, vector<3x4x1xf32>
    tpu.vector_store %arg9[%c0_95, %c0_96, %c0_97], %220 {strides = array<i32>} : memref<3x4x6xf32, #tpu.memory_space<vmem>>, vector<3x4x1xf32>,
    %222 = vector.extract_strided_slice %215 {offsets = [0, 0, 3], sizes = [3, 4, 1], strides = [1, 1, 1]} : vector<3x4x4xf32> to vector<3x4x1xf32>
    %c0_98 = arith.constant 0 : index
    %c0_99 = arith.constant 0 : index
    %c5 = arith.constant 5 : index
    %223 = vector.load %arg8[%c0_98, %c0_99, %c5] : memref<3x4x6xf32, #tpu.memory_space<vmem>>, vector<3x4x1xf32>
    tpu.vector_store %arg8[%c0_98, %c0_99, %c5], %222 {strides = array<i32>} : memref<3x4x6xf32, #tpu.memory_space<vmem>>, vector<3x4x1xf32>,
    %224 = vector.extract_strided_slice %211 {offsets = [0, 0, 3], sizes = [3, 4, 1], strides = [1, 1, 1]} : vector<3x4x4xf32> to vector<3x4x1xf32>
    %c0_100 = arith.constant 0 : index
    %c0_101 = arith.constant 0 : index
    %c5_102 = arith.constant 5 : index
    %225 = vector.load %arg9[%c0_100, %c0_101, %c5_102] : memref<3x4x6xf32, #tpu.memory_space<vmem>>, vector<3x4x1xf32>
    tpu.vector_store %arg9[%c0_100, %c0_101, %c5_102], %224 {strides = array<i32>} : memref<3x4x6xf32, #tpu.memory_space<vmem>>, vector<3x4x1xf32>,
    %c0_103 = arith.constant 0 : index
    %c0_104 = arith.constant 0 : index
    %c0_105 = arith.constant 0 : index
    %226 = vector.load %arg8[%c0_103, %c0_104, %c0_105] : memref<3x4x6xf32, #tpu.memory_space<vmem>>, vector<3x4x4xf32>
    %c0_106 = arith.constant 0 : index
    %c0_107 = arith.constant 0 : index
    %c0_108 = arith.constant 0 : index
    %227 = vector.load %arg9[%c0_106, %c0_107, %c0_108] : memref<3x4x6xf32, #tpu.memory_space<vmem>>, vector<3x4x4xf32>
    %c0_109 = arith.constant 0 : index
    %c0_110 = arith.constant 0 : index
    %c2_111 = arith.constant 2 : index
    %228 = vector.load %arg8[%c0_109, %c0_110, %c2_111] : memref<3x4x6xf32, #tpu.memory_space<vmem>>, vector<3x4x4xf32>
    %c0_112 = arith.constant 0 : index
    %c0_113 = arith.constant 0 : index
    %c2_114 = arith.constant 2 : index
    %229 = vector.load %arg9[%c0_112, %c0_113, %c2_114] : memref<3x4x6xf32, #tpu.memory_space<vmem>>, vector<3x4x4xf32>
    %cst_115 = arith.constant -5.000000e-02 : f32
    %230 = vector.broadcast %cst_115 : f32 to vector<3x4x4xf32>
    %231 = arith.mulf %230, %226 : vector<3x4x4xf32>
    %cst_116 = arith.constant 2.500000e-01 : f32
    %232 = vector.broadcast %cst_116 : f32 to vector<3x4x4xf32>
    %233 = arith.mulf %232, %227 : vector<3x4x4xf32>
    %234 = arith.addf %231, %233 : vector<3x4x4xf32>
    %cst_117 = arith.constant 6.000000e-01 : f32
    %235 = vector.broadcast %cst_117 : f32 to vector<3x4x4xf32>
    %236 = arith.mulf %235, %211 : vector<3x4x4xf32>
    %237 = arith.addf %234, %236 : vector<3x4x4xf32>
    %cst_118 = arith.constant 2.500000e-01 : f32
    %238 = vector.broadcast %cst_118 : f32 to vector<3x4x4xf32>
    %239 = arith.mulf %238, %215 : vector<3x4x4xf32>
    %240 = arith.addf %237, %239 : vector<3x4x4xf32>
    %cst_119 = arith.constant -5.000000e-02 : f32
    %241 = vector.broadcast %cst_119 : f32 to vector<3x4x4xf32>
    %242 = arith.mulf %241, %228 : vector<3x4x4xf32>
    %243 = arith.addf %240, %242 : vector<3x4x4xf32>
    %c0_120 = arith.constant 0 : index
    %c0_121 = arith.constant 0 : index
    %c0_122 = arith.constant 0 : index
    %c0_123 = arith.constant 0 : index
    %244 = vector.load %arg6[%c0_120, %c0_121, %c0_122, %c0_123] : memref<1x3x4x4xf32, #tpu.memory_space<vmem>>, vector<1x3x4x4xf32>
    %245 = vector.shape_cast %244 : vector<1x3x4x4xf32> to vector<3x4x4xf32>
    %246 = vector.shape_cast %243 : vector<3x4x4xf32> to vector<1x3x4x4xf32>
    tpu.vector_store %arg6[%c0_120, %c0_121, %c0_122, %c0_123], %246 {strides = array<i32>} : memref<1x3x4x4xf32, #tpu.memory_space<vmem>>, vector<1x3x4x4xf32>,
    %cst_124 = arith.constant -5.000000e-02 : f32
    %247 = vector.broadcast %cst_124 : f32 to vector<3x4x4xf32>
    %248 = arith.mulf %247, %227 : vector<3x4x4xf32>
    %cst_125 = arith.constant 2.500000e-01 : f32
    %249 = vector.broadcast %cst_125 : f32 to vector<3x4x4xf32>
    %250 = arith.mulf %249, %211 : vector<3x4x4xf32>
    %251 = arith.addf %248, %250 : vector<3x4x4xf32>
    %cst_126 = arith.constant 6.000000e-01 : f32
    %252 = vector.broadcast %cst_126 : f32 to vector<3x4x4xf32>
    %253 = arith.mulf %252, %215 : vector<3x4x4xf32>
    %254 = arith.addf %251, %253 : vector<3x4x4xf32>
    %cst_127 = arith.constant 2.500000e-01 : f32
    %255 = vector.broadcast %cst_127 : f32 to vector<3x4x4xf32>
    %256 = arith.mulf %255, %228 : vector<3x4x4xf32>
    %257 = arith.addf %254, %256 : vector<3x4x4xf32>
    %cst_128 = arith.constant -5.000000e-02 : f32
    %258 = vector.broadcast %cst_128 : f32 to vector<3x4x4xf32>
    %259 = arith.mulf %258, %229 : vector<3x4x4xf32>
    %260 = arith.addf %257, %259 : vector<3x4x4xf32>
    %c0_129 = arith.constant 0 : index
    %c0_130 = arith.constant 0 : index
    %c0_131 = arith.constant 0 : index
    %c0_132 = arith.constant 0 : index
    %261 = vector.load %arg7[%c0_129, %c0_130, %c0_131, %c0_132] : memref<1x3x4x4xf32, #tpu.memory_space<vmem>>, vector<1x3x4x4xf32>
    %262 = vector.shape_cast %261 : vector<1x3x4x4xf32> to vector<3x4x4xf32>
    %263 = vector.shape_cast %260 : vector<3x4x4xf32> to vector<1x3x4x4xf32>
    tpu.vector_store %arg7[%c0_129, %c0_130, %c0_131, %c0_132], %263 {strides = array<i32>} : memref<1x3x4x4xf32, #tpu.memory_space<vmem>>, vector<1x3x4x4xf32>,
    return
  }
  func.func @transform_0(%arg0: i32) -> (i32, i32, i32) {
    %c0_i32 = arith.constant 0 : i32
    %c0_i32_0 = arith.constant 0 : i32
    %c0_i32_1 = arith.constant 0 : i32
    return %arg0, %c0_i32, %c0_i32_0 : i32, i32, i32
  }
  func.func @transform_1(%arg0: i32) -> (i32, i32, i32) {
    %c0_i32 = arith.constant 0 : i32
    %c0_i32_0 = arith.constant 0 : i32
    %c0_i32_1 = arith.constant 0 : i32
    return %arg0, %c0_i32, %c0_i32_0 : i32, i32, i32
  }
  func.func @transform_2(%arg0: i32) -> (i32, i32, i32) {
    %c0_i32 = arith.constant 0 : i32
    %c0_i32_0 = arith.constant 0 : i32
    %c0_i32_1 = arith.constant 0 : i32
    return %arg0, %c0_i32, %c0_i32_0 : i32, i32, i32
  }
  func.func @transform_3(%arg0: i32) -> (i32, i32, i32) {
    %c0_i32 = arith.constant 0 : i32
    %c0_i32_0 = arith.constant 0 : i32
    %c0_i32_1 = arith.constant 0 : i32
    return %arg0, %c0_i32, %c0_i32_0 : i32, i32, i32
  }
  func.func @transform_4(%arg0: i32) -> (i32, i32, i32) {
    %c0_i32 = arith.constant 0 : i32
    %c0_i32_0 = arith.constant 0 : i32
    %c0_i32_1 = arith.constant 0 : i32
    %c0_i32_2 = arith.constant 0 : i32
    return %c0_i32, %c0_i32_0, %c0_i32_1 : i32, i32, i32
  }
  func.func @transform_5(%arg0: i32) -> (i32, i32, i32, i32) {
    %c0_i32 = arith.constant 0 : i32
    %c0_i32_0 = arith.constant 0 : i32
    %c0_i32_1 = arith.constant 0 : i32
    %c0_i32_2 = arith.constant 0 : i32
    return %arg0, %c0_i32, %c0_i32_0, %c0_i32_1 : i32, i32, i32, i32
  }
  func.func @transform_6(%arg0: i32) -> (i32, i32, i32, i32) {
    %c0_i32 = arith.constant 0 : i32
    %c0_i32_0 = arith.constant 0 : i32
    %c0_i32_1 = arith.constant 0 : i32
    %c0_i32_2 = arith.constant 0 : i32
    return %arg0, %c0_i32, %c0_i32_0, %c0_i32_1 : i32, i32, i32, i32
  }
}

</mosaic_0001>

<llo_original>
// kernel: murenn_direct_forward.9
$region0: #{murenn_direct_forward.9}
  #allocation0 [shape = 'u32[]', space=smem, size = 0x4, offset = 0x4, fixed_abs, tag = 'smem constant byte address 0x4 - core index']
  #allocation1 [shape = 'u32[144,128]{1,0:T(1,128)}', space=vmem, size = 0x12000, scoped, tag = 'internal scratch']
  %s0 = inlined_call_operand.vmem [shape: f32[8,35], index: 0, kind: input, shape index: {}]
  %s1 = inlined_call_operand.vmem [shape: f32[8,35], index: 1, kind: input, shape index: {}]
  %s2 = inlined_call_operand.vmem [shape: f32[8,32], index: 2, kind: output, shape index: {0}]
  %s3 = inlined_call_operand.vmem [shape: f32[8,32], index: 3, kind: output, shape index: {1}]
  %s4 = inlined_call_operand.vmem [shape: f32[8,32], index: 4, kind: output, shape index: {2}]
  %s5 = inlined_call_operand.vmem [shape: f32[8,32], index: 5, kind: output, shape index: {3}]
  %6 = xla_tuple %s2, %s3, %s4, %s5
  %s7 = sld [smem:[#allocation0]]
  $region42: #{murenn_direct_forward.9} parent=0
    _
  %s9 = ssub.s32 1, %s7
  %s10 = scalar_select 0, %s9, %s7
  // Predicated region
  $region2: #{murenn_direct_forward.9} parent=0 // pred_check
    _
  $region3: #{murenn_direct_forward.9} parent=0 // pred_check_branch
    %12 = sbr.rel (0) target = $region5
  $region4: #{murenn_direct_forward.9} parent=0 // pred_region
    _
  $region5: #{murenn_direct_forward.9} parent=0 // pred_fallthru
    _
  // Predicated region
  $region6: #{murenn_direct_forward.9} parent=0 // pred_check
    _
  $region7: #{murenn_direct_forward.9} parent=0 // pred_check_branch
    %14 = sbr.rel (0) target = $region9
  $region8: #{murenn_direct_forward.9} parent=0 // pred_region
    _
  $region9: #{murenn_direct_forward.9} parent=0 // pred_fallthru
    _
  %v15 = vld [vmem:[%s0] sm:$0xff]
  %v16 = vmul.f32 %v15, -0.010714286
  %v17 = vadd.f32 %v16, 0.0
  %v18 = vld [vmem:[%s1] sm:$0xff]
  %v19 = vmul.f32 %v18, 0.05357143
  %v20 = vadd.f32 %v17, %v19
  %v21 = vmul.f32 %v15, 0.2607143
  %23 = vrot.lane.b32.xlu0 %v21, 127
  %v24 = vpop.permute.xlu0 %23
  %v26 = vadd.f32 %v20, %v24
  %v27 = vmul.f32 %v18, -0.60714287
  %29 = vrot.lane.b32.xlu0 %v27, 127
  %v30 = vpop.permute.xlu0 %29
  %v32 = vadd.f32 %v26, %v30
  %33 = vrot.lane.b32.xlu0 %v21, 126
  %v34 = vpop.permute.xlu0 %33
  %v36 = vadd.f32 %v32, %v34
  %38 = vrot.lane.b32.xlu0 %v19, 126
  %v39 = vpop.permute.xlu0 %38
  %v41 = vadd.f32 %v36, %v39
  %43 = vrot.lane.b32.xlu0 %v16, 125
  %v44 = vpop.permute.xlu0 %43
  %v46 = vadd.f32 %v41, %v44
  %vm47 = vcmask 261120
  %48 = vst.msk [vmem:[%s2] sm:$0xff] %vm47, %v46
  %v49 = vld [vmem:[%s1] sm:$0xff]
  %v50 = vmul.f32 %v49, -0.010714286
  %v51 = vadd.f32 %v50, 0.0
  %v52 = vld [vmem:[%s0] sm:$0xff]
  %v53 = vmul.f32 %v52, 0.05357143
  %55 = vrot.lane.b32.xlu0 %v53, 127
  %v56 = vpop.permute.xlu0 %55
  %v58 = vadd.f32 %v51, %v56
  %v59 = vmul.f32 %v49, 0.2607143
  %61 = vrot.lane.b32.xlu0 %v59, 127
  %v62 = vpop.permute.xlu0 %61
  %v64 = vadd.f32 %v58, %v62
  %v65 = vmul.f32 %v52, -0.60714287
  %67 = vrot.lane.b32.xlu0 %v65, 126
  %v68 = vpop.permute.xlu0 %67
  %v70 = vadd.f32 %v64, %v68
  %71 = vrot.lane.b32.xlu0 %v59, 126
  %v72 = vpop.permute.xlu0 %71
  %v74 = vadd.f32 %v70, %v72
  %75 = vrot.lane.b32.xlu0 %v53, 125
  %v76 = vpop.permute.xlu0 %75
  %v78 = vadd.f32 %v74, %v76
  %80 = vrot.lane.b32.xlu0 %v50, 125
  %v81 = vpop.permute.xlu0 %80
  %v83 = vadd.f32 %v78, %v81
  %84 = vst.msk [vmem:[%s3] sm:$0xff] %vm47, %v83
  %v85 = vld [vmem:[%s1] sm:$0xff]
  %v86 = vmul.f32 %v85, -0.05
  %v87 = vadd.f32 %v86, 0.0
  %v88 = vld [vmem:[%s0] sm:$0xff]
  %v89 = vmul.f32 %v88, 0.25
  %91 = vrot.lane.b32.xlu0 %v89, 127
  %v92 = vpop.permute.xlu0 %91
  %v94 = vadd.f32 %v87, %v92
  %v95 = vmul.f32 %v85, 0.6
  %97 = vrot.lane.b32.xlu0 %v95, 127
  %v98 = vpop.permute.xlu0 %97
  %v100 = vadd.f32 %v94, %v98
  %101 = vrot.lane.b32.xlu0 %v89, 126
  %v102 = vpop.permute.xlu0 %101
  %v104 = vadd.f32 %v100, %v102
  %106 = vrot.lane.b32.xlu0 %v86, 126
  %v107 = vpop.permute.xlu0 %106
  %v109 = vadd.f32 %v104, %v107
  %110 = vst.msk [vmem:[%s4] sm:$0xff] %vm47, %v109
  %v111 = vld [vmem:[%s0] sm:$0xff]
  %v112 = vmul.f32 %v111, -0.05
  %v113 = vadd.f32 %v112, 0.0
  %v114 = vld [vmem:[%s1] sm:$0xff]
  %v115 = vmul.f32 %v114, 0.25
  %v116 = vadd.f32 %v113, %v115
  %v117 = vmul.f32 %v111, 0.6
  %119 = vrot.lane.b32.xlu0 %v117, 127
  %v120 = vpop.permute.xlu0 %119
  %v122 = vadd.f32 %v116, %v120
  %124 = vrot.lane.b32.xlu0 %v115, 127
  %v125 = vpop.permute.xlu0 %124
  %v127 = vadd.f32 %v122, %v125
  %129 = vrot.lane.b32.xlu0 %v112, 126
  %v130 = vpop.permute.xlu0 %129
  %v132 = vadd.f32 %v127, %v130
  %134 = vrot.lane.b32.xlu0 %v132, 127
  %v135 = vpop.permute.xlu0 %134
  %137 = vst.msk [vmem:[%s5] sm:$0xff] %vm47, %v135
  // Predicated region
  $region10: #{murenn_direct_forward.9} parent=0 // pred_check
    _
  $region11: #{murenn_direct_forward.9} parent=0 // pred_check_branch
    %139 = sbr.rel (0) target = $region13
  $region12: #{murenn_direct_forward.9} parent=0 // pred_region
    _
  $region13: #{murenn_direct_forward.9} parent=0 // pred_fallthru
    _
  // Predicated region
  $region14: #{murenn_direct_forward.9} parent=0 // pred_check
    _
  $region15: #{murenn_direct_forward.9} parent=0 // pred_check_branch
    %141 = sbr.rel (0) target = $region17
  $region16: #{murenn_direct_forward.9} parent=0 // pred_region
    _
  $region17: #{murenn_direct_forward.9} parent=0 // pred_fallthru
    _
  // Predicated region
  $region18: #{murenn_direct_forward.9} parent=0 // pred_check
    _
  $region19: #{murenn_direct_forward.9} parent=0 // pred_check_branch
    %143 = sbr.rel (0) target = $region21
  $region20: #{murenn_direct_forward.9} parent=0 // pred_region
    _
  $region21: #{murenn_direct_forward.9} parent=0 // pred_fallthru
    _
  // Predicated region
  $region22: #{murenn_direct_forward.9} parent=0 // pred_check
    _
  $region23: #{murenn_direct_forward.9} parent=0 // pred_check_branch
    %145 = sbr.rel (0) target = $region25
  $region24: #{murenn_direct_forward.9} parent=0 // pred_region
    _
  $region25: #{murenn_direct_forward.9} parent=0 // pred_fallthru
    _
  // Predicated region
  $region26: #{murenn_direct_forward.9} parent=0 // pred_check
    _
  $region27: #{murenn_direct_forward.9} parent=0 // pred_check_branch
    %147 = sbr.rel (0) target = $region29
  $region28: #{murenn_direct_forward.9} parent=0 // pred_region
    _
  $region29: #{murenn_direct_forward.9} parent=0 // pred_fallthru
    _
  // Predicated region
  $region30: #{murenn_direct_forward.9} parent=0 // pred_check
    _
  $region31: #{murenn_direct_forward.9} parent=0 // pred_check_branch
    %149 = sbr.rel (0) target = $region33
  $region32: #{murenn_direct_forward.9} parent=0 // pred_region
    _
  $region33: #{murenn_direct_forward.9} parent=0 // pred_fallthru
    _
  // Predicated region
  $region34: #{murenn_direct_forward.9} parent=0 // pred_check
    _
  $region35: #{murenn_direct_forward.9} parent=0 // pred_check_branch
    %151 = sbr.rel (0) target = $region37
  $region36: #{murenn_direct_forward.9} parent=0 // pred_region
    _
  $region37: #{murenn_direct_forward.9} parent=0 // pred_fallthru
    _
  // Predicated region
  $region38: #{murenn_direct_forward.9} parent=0 // pred_check
    _
  $region39: #{murenn_direct_forward.9} parent=0 // pred_check_branch
    %153 = sbr.rel (0) target = $region41
  $region40: #{murenn_direct_forward.9} parent=0 // pred_region
    _
  $region41: #{murenn_direct_forward.9} parent=0 // pred_fallthru
    _

// kernel: murenn_direct_forward.13
$region0: #{murenn_direct_forward.13}
  #allocation0 [shape = 'u32[]', space=smem, size = 0x4, offset = 0x4, fixed_abs, tag = 'smem constant byte address 0x4 - core index']
  #allocation1 [shape = 'u32[144,128]{1,0:T(1,128)}', space=vmem, size = 0x12000, scoped, tag = 'internal scratch']
  %s0 = inlined_call_operand.vmem [shape: f32[24,10], index: 0, kind: input, shape index: {}]
  %s1 = inlined_call_operand.vmem [shape: f32[24,10], index: 1, kind: input, shape index: {}]
  %s2 = inlined_call_operand.vmem [shape: f32[24,10], index: 2, kind: input, shape index: {}]
  %s3 = inlined_call_operand.vmem [shape: f32[24,10], index: 3, kind: input, shape index: {}]
  %s4 = inlined_call_operand.vmem [shape: f32[24,8], index: 4, kind: output, shape index: {0}]
  %s5 = inlined_call_operand.vmem [shape: f32[24,8], index: 5, kind: output, shape index: {1}]
  %6 = xla_tuple %s4, %s5
  %s7 = sld [smem:[#allocation0]]
  $region34: #{murenn_direct_forward.13} parent=0
    _
  %s9 = ssub.s32 1, %s7
  %s10 = scalar_select 0, %s9, %s7
  // Predicated region
  $region2: #{murenn_direct_forward.13} parent=0 // pred_check
    _
  $region3: #{murenn_direct_forward.13} parent=0 // pred_check_branch
    %12 = sbr.rel (0) target = $region5
  $region4: #{murenn_direct_forward.13} parent=0 // pred_region
    _
  $region5: #{murenn_direct_forward.13} parent=0 // pred_fallthru
    _
  // Predicated region
  $region6: #{murenn_direct_forward.13} parent=0 // pred_check
    _
  $region7: #{murenn_direct_forward.13} parent=0 // pred_check_branch
    %14 = sbr.rel (0) target = $region9
  $region8: #{murenn_direct_forward.13} parent=0 // pred_region
    _
  $region9: #{murenn_direct_forward.13} parent=0 // pred_fallthru
    _
  // Predicated region
  $region10: #{murenn_direct_forward.13} parent=0 // pred_check
    _
  $region11: #{murenn_direct_forward.13} parent=0 // pred_check_branch
    %16 = sbr.rel (0) target = $region13
  $region12: #{murenn_direct_forward.13} parent=0 // pred_region
    _
  $region13: #{murenn_direct_forward.13} parent=0 // pred_fallthru
    _
  // Predicated region
  $region14: #{murenn_direct_forward.13} parent=0 // pred_check
    _
  $region15: #{murenn_direct_forward.13} parent=0 // pred_check_branch
    %18 = sbr.rel (0) target = $region17
  $region16: #{murenn_direct_forward.13} parent=0 // pred_region
    _
  $region17: #{murenn_direct_forward.13} parent=0 // pred_fallthru
    _
  %v19 = vld [vmem:[%s0] sm:$0xff]
  %v20 = vld [vmem:[%s0 + $0x8] sm:$0xff]
  %v21 = vld [vmem:[%s0 + $0x10] sm:$0xff]
  %v22 = vmul.f32 %v19, 0.34150636
  %v23 = vmul.f32 %v20, 0.34150636
  %v24 = vmul.f32 %v21, 0.34150636
  %v25 = vadd.f32 %v22, 0.0
  %v26 = vadd.f32 %v23, 0.0
  %v27 = vadd.f32 %v24, 0.0
  %v28 = vld [vmem:[%s1] sm:$0xff]
  %v29 = vld [vmem:[%s1 + $0x8] sm:$0xff]
  %v30 = vld [vmem:[%s1 + $0x10] sm:$0xff]
  %v31 = vmul.f32 %v28, 0.59150636
  %v32 = vmul.f32 %v29, 0.59150636
  %v33 = vmul.f32 %v30, 0.59150636
  %v34 = vadd.f32 %v25, %v31
  %v35 = vadd.f32 %v26, %v32
  %v36 = vadd.f32 %v27, %v33
  %v37 = vmul.f32 %v19, 0.15849365
  %v38 = vmul.f32 %v20, 0.15849365
  %v39 = vmul.f32 %v21, 0.15849365
  %43 = vrot.lane.b32.xlu0 %v37, 127
  %v44 = vpop.permute.xlu0 %43
  %45 = vrot.lane.b32.xlu0 %v38, 127
  %v46 = vpop.permute.xlu0 %45
  %47 = vrot.lane.b32.xlu0 %v39, 127
  %v48 = vpop.permute.xlu0 %47
  %v52 = vadd.f32 %v34, %v44
  %v53 = vadd.f32 %v35, %v46
  %v54 = vadd.f32 %v36, %v48
  %v55 = vmul.f32 %v28, -0.091506355
  %v56 = vmul.f32 %v29, -0.091506355
  %v57 = vmul.f32 %v30, -0.091506355
  %61 = vrot.lane.b32.xlu0 %v55, 127
  %v62 = vpop.permute.xlu0 %61
  %63 = vrot.lane.b32.xlu0 %v56, 127
  %v64 = vpop.permute.xlu0 %63
  %65 = vrot.lane.b32.xlu0 %v57, 127
  %v66 = vpop.permute.xlu0 %65
  %v70 = vadd.f32 %v52, %v62
  %v71 = vadd.f32 %v53, %v64
  %v72 = vadd.f32 %v54, %v66
  %vm73 = vcmask 64512
  %74 = vst.msk [vmem:[%s4] sm:$0xff] %vm73, %v70
  %75 = vst.msk [vmem:[%s4 + $0x8] sm:$0xff] %vm73, %v71
  %76 = vst.msk [vmem:[%s4 + $0x10] sm:$0xff] %vm73, %v72
  %v77 = vld [vmem:[%s2] sm:$0xff]
  %v78 = vld [vmem:[%s2 + $0x8] sm:$0xff]
  %v79 = vld [vmem:[%s2 + $0x10] sm:$0xff]
  %v80 = vmul.f32 %v77, -0.091506355
  %v81 = vmul.f32 %v78, -0.091506355
  %v82 = vmul.f32 %v79, -0.091506355
  %v83 = vadd.f32 %v80, 0.0
  %v84 = vadd.f32 %v81, 0.0
  %v85 = vadd.f32 %v82, 0.0
  %v86 = vld [vmem:[%s3] sm:$0xff]
  %v87 = vld [vmem:[%s3 + $0x8] sm:$0xff]
  %v88 = vld [vmem:[%s3 + $0x10] sm:$0xff]
  %v89 = vmul.f32 %v86, 0.15849365
  %v90 = vmul.f32 %v87, 0.15849365
  %v91 = vmul.f32 %v88, 0.15849365
  %v92 = vadd.f32 %v83, %v89
  %v93 = vadd.f32 %v84, %v90
  %v94 = vadd.f32 %v85, %v91
  %v95 = vmul.f32 %v77, 0.59150636
  %v96 = vmul.f32 %v78, 0.59150636
  %v97 = vmul.f32 %v79, 0.59150636
  %101 = vrot.lane.b32.xlu0 %v95, 127
  %v102 = vpop.permute.xlu0 %101
  %103 = vrot.lane.b32.xlu0 %v96, 127
  %v104 = vpop.permute.xlu0 %103
  %105 = vrot.lane.b32.xlu0 %v97, 127
  %v106 = vpop.permute.xlu0 %105
  %v110 = vadd.f32 %v92, %v102
  %v111 = vadd.f32 %v93, %v104
  %v112 = vadd.f32 %v94, %v106
  %v113 = vmul.f32 %v86, 0.34150636
  %v114 = vmul.f32 %v87, 0.34150636
  %v115 = vmul.f32 %v88, 0.34150636
  %119 = vrot.lane.b32.xlu0 %v113, 127
  %v120 = vpop.permute.xlu0 %119
  %121 = vrot.lane.b32.xlu0 %v114, 127
  %v122 = vpop.permute.xlu0 %121
  %123 = vrot.lane.b32.xlu0 %v115, 127
  %v124 = vpop.permute.xlu0 %123
  %v128 = vadd.f32 %v110, %v120
  %v129 = vadd.f32 %v111, %v122
  %v130 = vadd.f32 %v112, %v124
  %131 = vst.msk [vmem:[%s5] sm:$0xff] %vm73, %v128
  %132 = vst.msk [vmem:[%s5 + $0x8] sm:$0xff] %vm73, %v129
  %133 = vst.msk [vmem:[%s5 + $0x10] sm:$0xff] %vm73, %v130
  // Predicated region
  $region18: #{murenn_direct_forward.13} parent=0 // pred_check
    _
  $region19: #{murenn_direct_forward.13} parent=0 // pred_check_branch
    %135 = sbr.rel (0) target = $region21
  $region20: #{murenn_direct_forward.13} parent=0 // pred_region
    _
  $region21: #{murenn_direct_forward.13} parent=0 // pred_fallthru
    _
  // Predicated region
  $region22: #{murenn_direct_forward.13} parent=0 // pred_check
    _
  $region23: #{murenn_direct_forward.13} parent=0 // pred_check_branch
    %137 = sbr.rel (0) target = $region25
  $region24: #{murenn_direct_forward.13} parent=0 // pred_region
    _
  $region25: #{murenn_direct_forward.13} parent=0 // pred_fallthru
    _
  // Predicated region
  $region26: #{murenn_direct_forward.13} parent=0 // pred_check
    _
  $region27: #{murenn_direct_forward.13} parent=0 // pred_check_branch
    %139 = sbr.rel (0) target = $region29
  $region28: #{murenn_direct_forward.13} parent=0 // pred_region
    _
  $region29: #{murenn_direct_forward.13} parent=0 // pred_fallthru
    _
  // Predicated region
  $region30: #{murenn_direct_forward.13} parent=0 // pred_check
    _
  $region31: #{murenn_direct_forward.13} parent=0 // pred_check_branch
    %141 = sbr.rel (0) target = $region33
  $region32: #{murenn_direct_forward.13} parent=0 // pred_region
    _
  $region33: #{murenn_direct_forward.13} parent=0 // pred_fallthru
    _

// kernel: murenn_direct_forward.12
$region0: #{murenn_direct_forward.12}
  #allocation0 [shape = 'u32[]', space=smem, size = 0x4, offset = 0x4, fixed_abs, tag = 'smem constant byte address 0x4 - core index']
  #allocation1 [shape = 'u32[144,128]{1,0:T(1,128)}', space=vmem, size = 0x12000, scoped, tag = 'internal scratch']
  #allocation2 [shape = 'f32[3,4,18]{2,1,0:T(4,128)}', space=vmem, size = 0x1800, scoped, tag = 'scratch operand']
  #allocation3 [shape = 'f32[3,4,18]{2,1,0:T(4,128)}', space=vmem, size = 0x1800, scoped, tag = 'scratch operand']
  %s0 = inlined_call_operand.vmem [shape: f32[2,4,19], index: 0, kind: input, shape index: {}]
  %s1 = inlined_call_operand.vmem [shape: f32[2,4,19], index: 1, kind: input, shape index: {}]
  %s2 = inlined_call_operand.vmem [shape: f32[2,4,19], index: 2, kind: input, shape index: {}]
  %s3 = inlined_call_operand.vmem [shape: f32[2,4,19], index: 3, kind: input, shape index: {}]
  %s4 = inlined_call_operand.vmem [shape: f32[3,4,7], index: 4, kind: input, shape index: {}]
  %s5 = inlined_call_operand.vmem [shape: f32[2,3,4,16], index: 5, kind: output, shape index: {0}]
  %s6 = inlined_call_operand.vmem [shape: f32[2,3,4,16], index: 6, kind: output, shape index: {1}]
  %7 = xla_tuple %s5, %s6
  %s8 = sld [smem:[#allocation0]]
  $region61: #{murenn_direct_forward.12} parent=0
    _
  %s10 = ssub.s32 1, %s8
  %s11 = scalar_select 0, %s10, %s8
  loop: start=0, step=1, limit=4
  $region2: #{murenn_direct_forward.12} parent=0 // loop_pre_header
    _
  $region3: #{murenn_direct_forward.12} parent=0 // loop_header
    %s13 = sphi 0, %s17
    %p14 = scmp.ge.s32.totalorder %s13, 4
    %s23 = sphi 0, %s25
    %s26 = sphi 0, %s23
    %s27 = sphi 0, %s26
    %s43 = sphi 0, %s27
    %s49 = sphi 0, %s51
    %s52 = sphi 0, %s49
    %s53 = sphi 0, %s52
    %s69 = sphi 0, %s53
    %s75 = sphi 0, %s77
    %s78 = sphi 0, %s75
    %s79 = sphi 0, %s78
    %s95 = sphi 0, %s79
    %s101 = sphi 0, %s103
    %s104 = sphi 0, %s101
    %s105 = sphi 0, %s104
    %s121 = sphi 0, %s105
    %s125 = sphi 0, %s125
    %s127 = sphi 0, %s125
    %s128 = sphi 0, %s127
    %s142 = sphi 0, %s128
    %s148 = sphi 0, %s150
    %s151 = sphi 0, %s148
    %s152 = sphi 0, %s151
    %s168 = sphi 0, %s152
    %s174 = sphi 0, %s176
    %s177 = sphi 0, %s174
    %s178 = sphi 0, %s177
    %s194 = sphi 0, %s178
  $region4: #{murenn_direct_forward.12} parent=0 // loop_header_branch
    %16 = sbr.rel (%p14) target = $region8
  $region5: #{murenn_direct_forward.12} parent=0 // loop_body
    %s18 = ssub.s32 %s13, 1
    %s19 = ssub.s32 %s13, 2
    %s20 = sadd.s32 %s13, 1
    %s21 = ssub.s32 %s13, %s20
    %p22 = scmp.eq.s32.totalorder %s21, 0
    %s24 = sadd.s32 %s23, 1
    %s25 = scalar_select %p22, %s23, %s24
    %p28 = pneg %p22
    %p29 = scmp.eq.s32.totalorder %s13, 1
    %p30 = por %p28, %p29
    %p31 = scmp.ne.s32.totalorder %s23, %s26
    %p32 = scmp.eq.s32.totalorder %s13, 0
    %p33 = por %p31, %p32
    %p34 = scmp.ne.s32.totalorder %s23, %s26
    %p35 = scmp.eq.s32.totalorder %s18, 1
    %p36 = por %p34, %p35
    %p37 = scmp.ne.s32.totalorder %s26, %s27
    %p38 = scmp.eq.s32.totalorder %s18, 0
    %p39 = por %p37, %p38
    %p40 = scmp.ne.s32.totalorder %s26, %s27
    %p41 = scmp.eq.s32.totalorder %s19, 1
    %p42 = por %p40, %p41
    %p44 = scmp.ne.s32.totalorder %s27, %s43
    %p45 = scmp.eq.s32.totalorder %s19, 0
    %p46 = por %p44, %p45
    %s47 = ssub.s32 %s13, %s20
    %p48 = scmp.eq.s32.totalorder %s47, 0
    %s50 = sadd.s32 %s49, 1
    %s51 = scalar_select %p48, %s49, %s50
    %p54 = pneg %p48
    %p55 = scmp.eq.s32.totalorder %s13, 1
    %p56 = por %p54, %p55
    %p57 = scmp.ne.s32.totalorder %s49, %s52
    %p58 = scmp.eq.s32.totalorder %s13, 0
    %p59 = por %p57, %p58
    %p60 = scmp.ne.s32.totalorder %s49, %s52
    %p61 = scmp.eq.s32.totalorder %s18, 1
    %p62 = por %p60, %p61
    %p63 = scmp.ne.s32.totalorder %s52, %s53
    %p64 = scmp.eq.s32.totalorder %s18, 0
    %p65 = por %p63, %p64
    %p66 = scmp.ne.s32.totalorder %s52, %s53
    %p67 = scmp.eq.s32.totalorder %s19, 1
    %p68 = por %p66, %p67
    %p70 = scmp.ne.s32.totalorder %s53, %s69
    %p71 = scmp.eq.s32.totalorder %s19, 0
    %p72 = por %p70, %p71
    %s73 = ssub.s32 %s13, %s20
    %p74 = scmp.eq.s32.totalorder %s73, 0
    %s76 = sadd.s32 %s75, 1
    %s77 = scalar_select %p74, %s75, %s76
    %p80 = pneg %p74
    %p81 = scmp.eq.s32.totalorder %s13, 1
    %p82 = por %p80, %p81
    %p83 = scmp.ne.s32.totalorder %s75, %s78
    %p84 = scmp.eq.s32.totalorder %s13, 0
    %p85 = por %p83, %p84
    %p86 = scmp.ne.s32.totalorder %s75, %s78
    %p87 = scmp.eq.s32.totalorder %s18, 1
    %p88 = por %p86, %p87
    %p89 = scmp.ne.s32.totalorder %s78, %s79
    %p90 = scmp.eq.s32.totalorder %s18, 0
    %p91 = por %p89, %p90
    %p92 = scmp.ne.s32.totalorder %s78, %s79
    %p93 = scmp.eq.s32.totalorder %s19, 1
    %p94 = por %p92, %p93
    %p96 = scmp.ne.s32.totalorder %s79, %s95
    %p97 = scmp.eq.s32.totalorder %s19, 0
    %p98 = por %p96, %p97
    %s99 = ssub.s32 %s13, %s20
    %p100 = scmp.eq.s32.totalorder %s99, 0
    %s102 = sadd.s32 %s101, 1
    %s103 = scalar_select %p100, %s101, %s102
    %p106 = pneg %p100
    %p107 = scmp.eq.s32.totalorder %s13, 1
    %p108 = por %p106, %p107
    %p109 = scmp.ne.s32.totalorder %s101, %s104
    %p110 = scmp.eq.s32.totalorder %s13, 0
    %p111 = por %p109, %p110
    %p112 = scmp.ne.s32.totalorder %s101, %s104
    %p113 = scmp.eq.s32.totalorder %s18, 1
    %p114 = por %p112, %p113
    %p115 = scmp.ne.s32.totalorder %s104, %s105
    %p116 = scmp.eq.s32.totalorder %s18, 0
    %p117 = por %p115, %p116
    %p118 = scmp.ne.s32.totalorder %s104, %s105
    %p119 = scmp.eq.s32.totalorder %s19, 1
    %p120 = por %p118, %p119
    %p122 = scmp.ne.s32.totalorder %s105, %s121
    %p123 = scmp.eq.s32.totalorder %s19, 0
    %p124 = por %p122, %p123
    %s126 = sadd.s32 %s125, 1
    %p129 = scmp.eq.s32.totalorder %s13, 1
    %p130 = scmp.ne.s32.totalorder %s125, %s127
    %p131 = scmp.eq.s32.totalorder %s13, 0
    %p132 = por %p130, %p131
    %p133 = scmp.ne.s32.totalorder %s125, %s127
    %p134 = scmp.eq.s32.totalorder %s18, 1
    %p135 = por %p133, %p134
    %p136 = scmp.ne.s32.totalorder %s127, %s128
    %p137 = scmp.eq.s32.totalorder %s18, 0
    %p138 = por %p136, %p137
    %p139 = scmp.ne.s32.totalorder %s127, %s128
    %p140 = scmp.eq.s32.totalorder %s19, 1
    %p141 = por %p139, %p140
    %p143 = scmp.ne.s32.totalorder %s128, %s142
    %p144 = scmp.eq.s32.totalorder %s19, 0
    %p145 = por %p143, %p144
    %s146 = ssub.s32 %s13, %s20
    %p147 = scmp.eq.s32.totalorder %s146, 0
    %s149 = sadd.s32 %s148, 1
    %s150 = scalar_select %p147, %s148, %s149
    %p153 = pneg %p147
    %p154 = scmp.eq.s32.totalorder %s13, 1
    %p155 = por %p153, %p154
    %p156 = scmp.ne.s32.totalorder %s148, %s151
    %p157 = scmp.eq.s32.totalorder %s13, 0
    %p158 = por %p156, %p157
    %p159 = scmp.ne.s32.totalorder %s148, %s151
    %p160 = scmp.eq.s32.totalorder %s18, 1
    %p161 = por %p159, %p160
    %p162 = scmp.ne.s32.totalorder %s151, %s152
    %p163 = scmp.eq.s32.totalorder %s18, 0
    %p164 = por %p162, %p163
    %p165 = scmp.ne.s32.totalorder %s151, %s152
    %p166 = scmp.eq.s32.totalorder %s19, 1
    %p167 = por %p165, %p166
    %p169 = scmp.ne.s32.totalorder %s152, %s168
    %p170 = scmp.eq.s32.totalorder %s19, 0
    %p171 = por %p169, %p170
    %s172 = ssub.s32 %s13, %s20
    %p173 = scmp.eq.s32.totalorder %s172, 0
    %s175 = sadd.s32 %s174, 1
    %s176 = scalar_select %p173, %s174, %s175
    %p179 = pneg %p173
    %p180 = scmp.eq.s32.totalorder %s13, 1
    %p181 = por %p179, %p180
    %p182 = scmp.ne.s32.totalorder %s174, %s177
    %p183 = scmp.eq.s32.totalorder %s13, 0
    %p184 = por %p182, %p183
    %p185 = scmp.ne.s32.totalorder %s174, %s177
    %p186 = scmp.eq.s32.totalorder %s18, 1
    %p187 = por %p185, %p186
    %p188 = scmp.ne.s32.totalorder %s177, %s178
    %p189 = scmp.eq.s32.totalorder %s18, 0
    %p190 = por %p188, %p189
    %p191 = scmp.ne.s32.totalorder %s177, %s178
    %p192 = scmp.eq.s32.totalorder %s19, 1
    %p193 = por %p191, %p192
    %p195 = scmp.ne.s32.totalorder %s178, %s194
    %p196 = scmp.eq.s32.totalorder %s19, 0
    %p197 = por %p195, %p196
    %p198 = scmp.le.s32.totalorder 1, %s13
    %p199 = scmp.lt.s32.totalorder %s13, 3
    %p200 = pnand %p198, %p199
    %p201 = pneg %p200
    // Predicated region
    $region9: #{murenn_direct_forward.12} parent=5 // pred_check
      _
    $region10: #{murenn_direct_forward.12} parent=5 // pred_check_branch
      %203 = sbr.rel (%p200) target = $region12
    $region11: #{murenn_direct_forward.12} parent=5 // pred_region
      %s204 = ssub.s32 %s13, 1
      // Predicated region
      $region13: #{murenn_direct_forward.12} parent=11 // pred_check
        %p205 = pneg %p138
      $region14: #{murenn_direct_forward.12} parent=11 // pred_check_branch
        %207 = sbr.rel (%p205) target = $region16
      $region15: #{murenn_direct_forward.12} parent=11 // pred_region
        _
      $region16: #{murenn_direct_forward.12} parent=11 // pred_fallthru
        _
    $region12: #{murenn_direct_forward.12} parent=5 // pred_fallthru
      _
    %p208 = scmp.lt.s32.totalorder %s13, 2
    // Predicated region
    $region17: #{murenn_direct_forward.12} parent=5 // pred_check
      %p209 = pneg %p208
    $region18: #{murenn_direct_forward.12} parent=5 // pred_check_branch
      %211 = sbr.rel (%p209) target = $region20
    $region19: #{murenn_direct_forward.12} parent=5 // pred_region
      // Predicated region
      $region21: #{murenn_direct_forward.12} parent=19 // pred_check
        %p212 = pneg %p33
      $region22: #{murenn_direct_forward.12} parent=19 // pred_check_branch
        %214 = sbr.rel (%p212) target = $region24
      $region23: #{murenn_direct_forward.12} parent=19 // pred_region
        %p215 = scmp.lt.s32.totalorder %s13, 1
        %s216 = scalar_select %p215, %s13, 1
        %s217 = smul.addr %s216, 4
        %s218 = scalar_lea.vmem %s0, %s217
      $region24: #{murenn_direct_forward.12} parent=19 // pred_fallthru
        _
      // Predicated region
      $region25: #{murenn_direct_forward.12} parent=19 // pred_check
        %p219 = pneg %p59
      $region26: #{murenn_direct_forward.12} parent=19 // pred_check_branch
        %221 = sbr.rel (%p219) target = $region28
      $region27: #{murenn_direct_forward.12} parent=19 // pred_region
        %p222 = scmp.lt.s32.totalorder %s13, 1
        %s223 = scalar_select %p222, %s13, 1
        %s224 = smul.addr %s223, 4
        %s225 = scalar_lea.vmem %s1, %s224
      $region28: #{murenn_direct_forward.12} parent=19 // pred_fallthru
        _
      // Predicated region
      $region29: #{murenn_direct_forward.12} parent=19 // pred_check
        %p226 = pneg %p85
      $region30: #{murenn_direct_forward.12} parent=19 // pred_check_branch
        %228 = sbr.rel (%p226) target = $region32
      $region31: #{murenn_direct_forward.12} parent=19 // pred_region
        %p229 = scmp.lt.s32.totalorder %s13, 1
        %s230 = scalar_select %p229, %s13, 1
        %s231 = smul.addr %s230, 4
        %s232 = scalar_lea.vmem %s2, %s231
      $region32: #{murenn_direct_forward.12} parent=19 // pred_fallthru
        _
      // Predicated region
      $region33: #{murenn_direct_forward.12} parent=19 // pred_check
        %p233 = pneg %p111
      $region34: #{murenn_direct_forward.12} parent=19 // pred_check_branch
        %235 = sbr.rel (%p233) target = $region36
      $region35: #{murenn_direct_forward.12} parent=19 // pred_region
        %p236 = scmp.lt.s32.totalorder %s13, 1
        %s237 = scalar_select %p236, %s13, 1
        %s238 = smul.addr %s237, 4
        %s239 = scalar_lea.vmem %s3, %s238
      $region36: #{murenn_direct_forward.12} parent=19 // pred_fallthru
        _
    $region20: #{murenn_direct_forward.12} parent=5 // pred_fallthru
      _
    %p240 = scmp.le.s32.totalorder 1, %s13
    %p241 = scmp.lt.s32.totalorder %s13, 3
    %p242 = pnand %p240, %p241
    %p243 = pneg %p242
    // Predicated region
    $region37: #{murenn_direct_forward.12} parent=5 // pred_check
      _
    $region38: #{murenn_direct_forward.12} parent=5 // pred_check_branch
      %245 = sbr.rel (%p242) target = $region40
    $region39: #{murenn_direct_forward.12} parent=5 // pred_region
      %s246 = ssub.s32 %s13, 1
      %p247 = scmp.lt.s32.totalorder %s18, 1
      %s248 = scalar_select %p247, %s18, 1
      %s249 = smul.addr %s248, 4
      %s250 = scalar_lea.vmem %s0, %s249
      %p251 = pneg %p39
      %p252 = pneg %p36
      %p253 = scmp.lt.s32.totalorder %s18, 1
      %s254 = scalar_select %p253, %s18, 1
      %s255 = smul.addr %s254, 4
      %s256 = scalar_lea.vmem %s1, %s255
      %p257 = pneg %p65
      %p258 = pneg %p62
      %p259 = scmp.lt.s32.totalorder %s18, 1
      %s260 = scalar_select %p259, %s18, 1
      %s261 = smul.addr %s260, 4
      %s262 = scalar_lea.vmem %s2, %s261
      %p263 = pneg %p91
      %p264 = pneg %p88
      %p265 = scmp.lt.s32.totalorder %s18, 1
      %s266 = scalar_select %p265, %s18, 1
      %s267 = smul.addr %s266, 4
      %s268 = scalar_lea.vmem %s3, %s267
      %p269 = pneg %p117
      %p270 = pneg %p114
      %p271 = pneg %p138
      %p272 = pneg %p135
      %p273 = pneg %p164
      %p274 = pneg %p161
      %p275 = scmp.lt.s32.totalorder %s18, 1
      %s276 = scalar_select %p275, %s18, 1
      %s277 = smul.addr %s276, 3
      %s278 = smul.addr %s277, 4
      %s279 = scalar_lea.vmem %s5, %s278
      %p280 = pneg %p190
      %p281 = pneg %p187
      %p282 = scmp.lt.s32.totalorder %s18, 1
      %s283 = scalar_select %p282, %s18, 1
      %s284 = smul.addr %s283, 3
      %s285 = smul.addr %s284, 4
      %s286 = scalar_lea.vmem %s6, %s285
      %p287 = scmp.lt.s32.totalorder %s18, 1
      %s288 = scalar_select %p287, %s18, 1
      %s289 = smul.addr %s288, 4
      %s290 = scalar_lea.vmem %s0, %s289
      %p291 = scmp.lt.s32.totalorder %s18, 1
      %s292 = scalar_select %p291, %s18, 1
      %s293 = smul.addr %s292, 4
      %s294 = scalar_lea.vmem %s1, %s293
      %p295 = scmp.lt.s32.totalorder %s18, 1
      %s296 = scalar_select %p295, %s18, 1
      %s297 = smul.addr %s296, 4
      %s298 = scalar_lea.vmem %s2, %s297
      %p299 = scmp.lt.s32.totalorder %s18, 1
      %s300 = scalar_select %p299, %s18, 1
      %s301 = smul.addr %s300, 4
      %s302 = scalar_lea.vmem %s3, %s301
      %p303 = scmp.lt.s32.totalorder %s18, 1
      %s304 = scalar_select %p303, %s18, 1
      %s305 = smul.addr %s304, 3
      %s306 = smul.addr %s305, 4
      %s307 = scalar_lea.vmem %s5, %s306
      %p308 = scmp.lt.s32.totalorder %s18, 1
      %s309 = scalar_select %p308, %s18, 1
      %s310 = smul.addr %s309, 3
      %s311 = smul.addr %s310, 4
      %s312 = scalar_lea.vmem %s6, %s311
      %v313 = vld [vmem:[%s4] sm:$0xf]
      %v314 = vld [vmem:[%s4 + $0x4] sm:$0xf]
      %v315 = vld [vmem:[%s4 + $0x8] sm:$0xf]
      %v316 = vld [vmem:[%s290] sm:$0xf]
      %318 = vset.pattern.permute.xlu0 0
      %319 = vperm.xlu0 %318, %v313
      %v320 = vpop.permute.xlu0 %319
      %323 = vset.pattern.permute.xlu0 0
      %324 = vperm.xlu0 %323, %v314
      %v325 = vpop.permute.xlu0 %324
      %328 = vset.pattern.permute.xlu0 0
      %329 = vperm.xlu0 %328, %v315
      %v330 = vpop.permute.xlu0 %329
      %v332 = vmul.f32 %v320, %v316
      %v333 = vmul.f32 %v325, %v316
      %v334 = vmul.f32 %v330, %v316
      %v335 = vadd.f32 %v332, 0.0
      %v336 = vadd.f32 %v333, 0.0
      %v337 = vadd.f32 %v334, 0.0
      %v338 = vld [vmem:[%s298] sm:$0xf]
      %v339 = vmul.f32 %v320, %v338
      %v340 = vmul.f32 %v325, %v338
      %v341 = vmul.f32 %v330, %v338
      %v342 = vadd.f32 %v339, 0.0
      %v343 = vadd.f32 %v340, 0.0
      %v344 = vadd.f32 %v341, 0.0
      %v345 = vld [vmem:[%s294] sm:$0xf]
      %v346 = vmul.f32 %v320, %v345
      %v347 = vmul.f32 %v325, %v345
      %v348 = vmul.f32 %v330, %v345
      %v349 = vadd.f32 %v346, 0.0
      %v350 = vadd.f32 %v347, 0.0
      %v351 = vadd.f32 %v348, 0.0
      %v352 = vld [vmem:[%s302] sm:$0xf]
      %v353 = vmul.f32 %v320, %v352
      %v354 = vmul.f32 %v325, %v352
      %v355 = vmul.f32 %v330, %v352
      %v356 = vadd.f32 %v353, 0.0
      %v357 = vadd.f32 %v354, 0.0
      %v358 = vadd.f32 %v355, 0.0
      %359 = vset.pattern.permute.xlu0 1
      %360 = vperm.xlu0 %359, %v313
      %v361 = vpop.permute.xlu0 %360
      %363 = vset.pattern.permute.xlu0 1
      %364 = vperm.xlu0 %363, %v314
      %v365 = vpop.permute.xlu0 %364
      %367 = vset.pattern.permute.xlu0 1
      %368 = vperm.xlu0 %367, %v315
      %v369 = vpop.permute.xlu0 %368
      %v371 = vmul.f32 %v361, %v345
      %v372 = vmul.f32 %v365, %v345
      %v373 = vmul.f32 %v369, %v345
      %v374 = vadd.f32 %v335, %v371
      %v375 = vadd.f32 %v336, %v372
      %v376 = vadd.f32 %v337, %v373
      %v377 = vmul.f32 %v361, %v352
      %v378 = vmul.f32 %v365, %v352
      %v379 = vmul.f32 %v369, %v352
      %v380 = vadd.f32 %v342, %v377
      %v381 = vadd.f32 %v343, %v378
      %v382 = vadd.f32 %v344, %v379
      %v383 = vmul.f32 %v361, %v316
      %v384 = vmul.f32 %v365, %v316
      %v385 = vmul.f32 %v369, %v316
      %389 = vrot.lane.b32.xlu0 %v383, 127
      %v390 = vpop.permute.xlu0 %389
      %391 = vrot.lane.b32.xlu0 %v384, 127
      %v392 = vpop.permute.xlu0 %391
      %393 = vrot.lane.b32.xlu0 %v385, 127
      %v394 = vpop.permute.xlu0 %393
      %v398 = vadd.f32 %v349, %v390
      %v399 = vadd.f32 %v350, %v392
      %v400 = vadd.f32 %v351, %v394
      %v401 = vmul.f32 %v361, %v338
      %v402 = vmul.f32 %v365, %v338
      %v403 = vmul.f32 %v369, %v338
      %407 = vrot.lane.b32.xlu0 %v401, 127
      %v408 = vpop.permute.xlu0 %407
      %409 = vrot.lane.b32.xlu0 %v402, 127
      %v410 = vpop.permute.xlu0 %409
      %411 = vrot.lane.b32.xlu0 %v403, 127
      %v412 = vpop.permute.xlu0 %411
      %v416 = vadd.f32 %v356, %v408
      %v417 = vadd.f32 %v357, %v410
      %v418 = vadd.f32 %v358, %v412
      %419 = vset.pattern.permute.xlu0 2
      %420 = vperm.xlu0 %419, %v313
      %v421 = vpop.permute.xlu0 %420
      %423 = vset.pattern.permute.xlu0 2
      %424 = vperm.xlu0 %423, %v314
      %v425 = vpop.permute.xlu0 %424
      %427 = vset.pattern.permute.xlu0 2
      %428 = vperm.xlu0 %427, %v315
      %v429 = vpop.permute.xlu0 %428
      %v431 = vmul.f32 %v421, %v316
      %v432 = vmul.f32 %v425, %v316
      %v433 = vmul.f32 %v429, %v316
      %437 = vrot.lane.b32.xlu0 %v431, 127
      %v438 = vpop.permute.xlu0 %437
      %439 = vrot.lane.b32.xlu0 %v432, 127
      %v440 = vpop.permute.xlu0 %439
      %441 = vrot.lane.b32.xlu0 %v433, 127
      %v442 = vpop.permute.xlu0 %441
      %v446 = vadd.f32 %v374, %v438
      %v447 = vadd.f32 %v375, %v440
      %v448 = vadd.f32 %v376, %v442
      %v449 = vmul.f32 %v421, %v338
      %v450 = vmul.f32 %v425, %v338
      %v451 = vmul.f32 %v429, %v338
      %455 = vrot.lane.b32.xlu0 %v449, 127
      %v456 = vpop.permute.xlu0 %455
      %457 = vrot.lane.b32.xlu0 %v450, 127
      %v458 = vpop.permute.xlu0 %457
      %459 = vrot.lane.b32.xlu0 %v451, 127
      %v460 = vpop.permute.xlu0 %459
      %v464 = vadd.f32 %v380, %v456
      %v465 = vadd.f32 %v381, %v458
      %v466 = vadd.f32 %v382, %v460
      %v467 = vmul.f32 %v421, %v345
      %v468 = vmul.f32 %v425, %v345
      %v469 = vmul.f32 %v429, %v345
      %473 = vrot.lane.b32.xlu0 %v467, 127
      %v474 = vpop.permute.xlu0 %473
      %475 = vrot.lane.b32.xlu0 %v468, 127
      %v476 = vpop.permute.xlu0 %475
      %477 = vrot.lane.b32.xlu0 %v469, 127
      %v478 = vpop.permute.xlu0 %477
      %v482 = vadd.f32 %v398, %v474
      %v483 = vadd.f32 %v399, %v476
      %v484 = vadd.f32 %v400, %v478
      %v485 = vmul.f32 %v421, %v352
      %v486 = vmul.f32 %v425, %v352
      %v487 = vmul.f32 %v429, %v352
      %491 = vrot.lane.b32.xlu0 %v485, 127
      %v492 = vpop.permute.xlu0 %491
      %493 = vrot.lane.b32.xlu0 %v486, 127
      %v494 = vpop.permute.xlu0 %493
      %495 = vrot.lane.b32.xlu0 %v487, 127
      %v496 = vpop.permute.xlu0 %495
      %v500 = vadd.f32 %v416, %v492
      %v501 = vadd.f32 %v417, %v494
      %v502 = vadd.f32 %v418, %v496
      %503 = vset.pattern.permute.xlu0 3
      %504 = vperm.xlu0 %503, %v313
      %v505 = vpop.permute.xlu0 %504
      %507 = vset.pattern.permute.xlu0 3
      %508 = vperm.xlu0 %507, %v314
      %v509 = vpop.permute.xlu0 %508
      %511 = vset.pattern.permute.xlu0 3
      %512 = vperm.xlu0 %511, %v315
      %v513 = vpop.permute.xlu0 %512
      %v515 = vmul.f32 %v505, %v345
      %v516 = vmul.f32 %v509, %v345
      %v517 = vmul.f32 %v513, %v345
      %521 = vrot.lane.b32.xlu0 %v515, 127
      %v522 = vpop.permute.xlu0 %521
      %523 = vrot.lane.b32.xlu0 %v516, 127
      %v524 = vpop.permute.xlu0 %523
      %525 = vrot.lane.b32.xlu0 %v517, 127
      %v526 = vpop.permute.xlu0 %525
      %v530 = vadd.f32 %v446, %v522
      %v531 = vadd.f32 %v447, %v524
      %v532 = vadd.f32 %v448, %v526
      %v533 = vmul.f32 %v505, %v352
      %v534 = vmul.f32 %v509, %v352
      %v535 = vmul.f32 %v513, %v352
      %539 = vrot.lane.b32.xlu0 %v533, 127
      %v540 = vpop.permute.xlu0 %539
      %541 = vrot.lane.b32.xlu0 %v534, 127
      %v542 = vpop.permute.xlu0 %541
      %543 = vrot.lane.b32.xlu0 %v535, 127
      %v544 = vpop.permute.xlu0 %543
      %v548 = vadd.f32 %v464, %v540
      %v549 = vadd.f32 %v465, %v542
      %v550 = vadd.f32 %v466, %v544
      %v551 = vmul.f32 %v505, %v316
      %v552 = vmul.f32 %v509, %v316
      %v553 = vmul.f32 %v513, %v316
      %557 = vrot.lane.b32.xlu0 %v551, 126
      %v558 = vpop.permute.xlu0 %557
      %559 = vrot.lane.b32.xlu0 %v552, 126
      %v560 = vpop.permute.xlu0 %559
      %561 = vrot.lane.b32.xlu0 %v553, 126
      %v562 = vpop.permute.xlu0 %561
      %v566 = vadd.f32 %v482, %v558
      %v567 = vadd.f32 %v483, %v560
      %v568 = vadd.f32 %v484, %v562
      %v569 = vmul.f32 %v505, %v338
      %v570 = vmul.f32 %v509, %v338
      %v571 = vmul.f32 %v513, %v338
      %575 = vrot.lane.b32.xlu0 %v569, 126
      %v576 = vpop.permute.xlu0 %575
      %577 = vrot.lane.b32.xlu0 %v570, 126
      %v578 = vpop.permute.xlu0 %577
      %579 = vrot.lane.b32.xlu0 %v571, 126
      %v580 = vpop.permute.xlu0 %579
      %v584 = vadd.f32 %v500, %v576
      %v585 = vadd.f32 %v501, %v578
      %v586 = vadd.f32 %v502, %v580
      %587 = vset.pattern.permute.xlu0 4
      %588 = vperm.xlu0 %587, %v313
      %v589 = vpop.permute.xlu0 %588
      %591 = vset.pattern.permute.xlu0 4
      %592 = vperm.xlu0 %591, %v314
      %v593 = vpop.permute.xlu0 %592
      %595 = vset.pattern.permute.xlu0 4
      %596 = vperm.xlu0 %595, %v315
      %v597 = vpop.permute.xlu0 %596
      %v599 = vmul.f32 %v589, %v316
      %v600 = vmul.f32 %v593, %v316
      %v601 = vmul.f32 %v597, %v316
      %605 = vrot.lane.b32.xlu0 %v599, 126
      %v606 = vpop.permute.xlu0 %605
      %607 = vrot.lane.b32.xlu0 %v600, 126
      %v608 = vpop.permute.xlu0 %607
      %609 = vrot.lane.b32.xlu0 %v601, 126
      %v610 = vpop.permute.xlu0 %609
      %v614 = vadd.f32 %v530, %v606
      %v615 = vadd.f32 %v531, %v608
      %v616 = vadd.f32 %v532, %v610
      %v617 = vmul.f32 %v589, %v338
      %v618 = vmul.f32 %v593, %v338
      %v619 = vmul.f32 %v597, %v338
      %623 = vrot.lane.b32.xlu0 %v617, 126
      %v624 = vpop.permute.xlu0 %623
      %625 = vrot.lane.b32.xlu0 %v618, 126
      %v626 = vpop.permute.xlu0 %625
      %627 = vrot.lane.b32.xlu0 %v619, 126
      %v628 = vpop.permute.xlu0 %627
      %v632 = vadd.f32 %v548, %v624
      %v633 = vadd.f32 %v549, %v626
      %v634 = vadd.f32 %v550, %v628
      %v635 = vmul.f32 %v589, %v345
      %v636 = vmul.f32 %v593, %v345
      %v637 = vmul.f32 %v597, %v345
      %641 = vrot.lane.b32.xlu0 %v635, 126
      %v642 = vpop.permute.xlu0 %641
      %643 = vrot.lane.b32.xlu0 %v636, 126
      %v644 = vpop.permute.xlu0 %643
      %645 = vrot.lane.b32.xlu0 %v637, 126
      %v646 = vpop.permute.xlu0 %645
      %v650 = vadd.f32 %v566, %v642
      %v651 = vadd.f32 %v567, %v644
      %v652 = vadd.f32 %v568, %v646
      %v653 = vmul.f32 %v589, %v352
      %v654 = vmul.f32 %v593, %v352
      %v655 = vmul.f32 %v597, %v352
      %659 = vrot.lane.b32.xlu0 %v653, 126
      %v660 = vpop.permute.xlu0 %659
      %661 = vrot.lane.b32.xlu0 %v654, 126
      %v662 = vpop.permute.xlu0 %661
      %663 = vrot.lane.b32.xlu0 %v655, 126
      %v664 = vpop.permute.xlu0 %663
      %v668 = vadd.f32 %v584, %v660
      %v669 = vadd.f32 %v585, %v662
      %v670 = vadd.f32 %v586, %v664
      %671 = vset.pattern.permute.xlu0 5
      %672 = vperm.xlu0 %671, %v313
      %v673 = vpop.permute.xlu0 %672
      %675 = vset.pattern.permute.xlu0 5
      %676 = vperm.xlu0 %675, %v314
      %v677 = vpop.permute.xlu0 %676
      %679 = vset.pattern.permute.xlu0 5
      %680 = vperm.xlu0 %679, %v315
      %v681 = vpop.permute.xlu0 %680
      %v683 = vmul.f32 %v673, %v345
      %v684 = vmul.f32 %v677, %v345
      %v685 = vmul.f32 %v681, %v345
      %689 = vrot.lane.b32.xlu0 %v683, 126
      %v690 = vpop.permute.xlu0 %689
      %691 = vrot.lane.b32.xlu0 %v684, 126
      %v692 = vpop.permute.xlu0 %691
      %693 = vrot.lane.b32.xlu0 %v685, 126
      %v694 = vpop.permute.xlu0 %693
      %v698 = vadd.f32 %v614, %v690
      %v699 = vadd.f32 %v615, %v692
      %v700 = vadd.f32 %v616, %v694
      %v701 = vmul.f32 %v673, %v352
      %v702 = vmul.f32 %v677, %v352
      %v703 = vmul.f32 %v681, %v352
      %707 = vrot.lane.b32.xlu0 %v701, 126
      %v708 = vpop.permute.xlu0 %707
      %709 = vrot.lane.b32.xlu0 %v702, 126
      %v710 = vpop.permute.xlu0 %709
      %711 = vrot.lane.b32.xlu0 %v703, 126
      %v712 = vpop.permute.xlu0 %711
      %v716 = vadd.f32 %v632, %v708
      %v717 = vadd.f32 %v633, %v710
      %v718 = vadd.f32 %v634, %v712
      %v719 = vmul.f32 %v673, %v316
      %v720 = vmul.f32 %v677, %v316
      %v721 = vmul.f32 %v681, %v316
      %725 = vrot.lane.b32.xlu0 %v719, 125
      %v726 = vpop.permute.xlu0 %725
      %727 = vrot.lane.b32.xlu0 %v720, 125
      %v728 = vpop.permute.xlu0 %727
      %729 = vrot.lane.b32.xlu0 %v721, 125
      %v730 = vpop.permute.xlu0 %729
      %v734 = vadd.f32 %v650, %v726
      %v735 = vadd.f32 %v651, %v728
      %v736 = vadd.f32 %v652, %v730
      %v737 = vmul.f32 %v673, %v338
      %v738 = vmul.f32 %v677, %v338
      %v739 = vmul.f32 %v681, %v338
      %743 = vrot.lane.b32.xlu0 %v737, 125
      %v744 = vpop.permute.xlu0 %743
      %745 = vrot.lane.b32.xlu0 %v738, 125
      %v746 = vpop.permute.xlu0 %745
      %747 = vrot.lane.b32.xlu0 %v739, 125
      %v748 = vpop.permute.xlu0 %747
      %v752 = vadd.f32 %v668, %v744
      %v753 = vadd.f32 %v669, %v746
      %v754 = vadd.f32 %v670, %v748
      %755 = vset.pattern.permute.xlu0 6
      %756 = vperm.xlu0 %755, %v313
      %v757 = vpop.permute.xlu0 %756
      %759 = vset.pattern.permute.xlu0 6
      %760 = vperm.xlu0 %759, %v314
      %v761 = vpop.permute.xlu0 %760
      %763 = vset.pattern.permute.xlu0 6
      %764 = vperm.xlu0 %763, %v315
      %v765 = vpop.permute.xlu0 %764
      %v767 = vmul.f32 %v757, %v316
      %v768 = vmul.f32 %v761, %v316
      %v769 = vmul.f32 %v765, %v316
      %773 = vrot.lane.b32.xlu0 %v767, 125
      %v774 = vpop.permute.xlu0 %773
      %775 = vrot.lane.b32.xlu0 %v768, 125
      %v776 = vpop.permute.xlu0 %775
      %777 = vrot.lane.b32.xlu0 %v769, 125
      %v778 = vpop.permute.xlu0 %777
      %v782 = vadd.f32 %v698, %v774
      %v783 = vadd.f32 %v699, %v776
      %v784 = vadd.f32 %v700, %v778
      %v785 = vmul.f32 %v757, %v338
      %v786 = vmul.f32 %v761, %v338
      %v787 = vmul.f32 %v765, %v338
      %791 = vrot.lane.b32.xlu0 %v785, 125
      %v792 = vpop.permute.xlu0 %791
      %793 = vrot.lane.b32.xlu0 %v786, 125
      %v794 = vpop.permute.xlu0 %793
      %795 = vrot.lane.b32.xlu0 %v787, 125
      %v796 = vpop.permute.xlu0 %795
      %v800 = vadd.f32 %v716, %v792
      %v801 = vadd.f32 %v717, %v794
      %v802 = vadd.f32 %v718, %v796
      %v803 = vmul.f32 %v757, %v345
      %v804 = vmul.f32 %v761, %v345
      %v805 = vmul.f32 %v765, %v345
      %809 = vrot.lane.b32.xlu0 %v803, 125
      %v810 = vpop.permute.xlu0 %809
      %811 = vrot.lane.b32.xlu0 %v804, 125
      %v812 = vpop.permute.xlu0 %811
      %813 = vrot.lane.b32.xlu0 %v805, 125
      %v814 = vpop.permute.xlu0 %813
      %v818 = vadd.f32 %v734, %v810
      %v819 = vadd.f32 %v735, %v812
      %v820 = vadd.f32 %v736, %v814
      %v821 = vmul.f32 %v757, %v352
      %v822 = vmul.f32 %v761, %v352
      %v823 = vmul.f32 %v765, %v352
      %827 = vrot.lane.b32.xlu0 %v821, 125
      %v828 = vpop.permute.xlu0 %827
      %829 = vrot.lane.b32.xlu0 %v822, 125
      %v830 = vpop.permute.xlu0 %829
      %831 = vrot.lane.b32.xlu0 %v823, 125
      %v832 = vpop.permute.xlu0 %831
      %v836 = vadd.f32 %v752, %v828
      %v837 = vadd.f32 %v753, %v830
      %v838 = vadd.f32 %v754, %v832
      %v839 = vmul.f32 %v782, %v782
      %v840 = vmul.f32 %v783, %v783
      %v841 = vmul.f32 %v784, %v784
      %v842 = vmul.f32 %v800, %v800
      %v843 = vmul.f32 %v801, %v801
      %v844 = vmul.f32 %v802, %v802
      %v845 = vadd.f32 %v839, %v842
      %v846 = vadd.f32 %v840, %v843
      %v847 = vadd.f32 %v841, %v844
      %v848 = vrsqrt.pop %v845
      %v849 = vmul.f32 %v845, %v848
      %vm850 = vcmp.eq.f32.partialorder %v845, inf
      %v851 = vsel %vm850, %v845, %v849
      %vm852 = vcmp.eq.f32.partialorder %v845, 0.0
      %v853 = vand.u32 %v845, 2147483648
      %v854 = vsel %vm852, %v853, %v851
      %v855 = vrsqrt.pop %v846
      %v856 = vmul.f32 %v846, %v855
      %vm857 = vcmp.eq.f32.partialorder %v846, inf
      %v858 = vsel %vm857, %v846, %v856
      %vm859 = vcmp.eq.f32.partialorder %v846, 0.0
      %v860 = vand.u32 %v846, 2147483648
      %v861 = vsel %vm859, %v860, %v858
      %v862 = vrsqrt.pop %v847
      %v863 = vmul.f32 %v847, %v862
      %vm864 = vcmp.eq.f32.partialorder %v847, inf
      %v865 = vsel %vm864, %v847, %v863
      %vm866 = vcmp.eq.f32.partialorder %v847, 0.0
      %v867 = vand.u32 %v847, 2147483648
      %v868 = vsel %vm866, %v867, %v865
      %v869 = vmul.f32 %v818, %v818
      %v870 = vmul.f32 %v819, %v819
      %v871 = vmul.f32 %v820, %v820
      %v872 = vmul.f32 %v836, %v836
      %v873 = vmul.f32 %v837, %v837
      %v874 = vmul.f32 %v838, %v838
      %v875 = vadd.f32 %v869, %v872
      %v876 = vadd.f32 %v870, %v873
      %v877 = vadd.f32 %v871, %v874
      %v878 = vrsqrt.pop %v875
      %v879 = vmul.f32 %v875, %v878
      %vm880 = vcmp.eq.f32.partialorder %v875, inf
      %v881 = vsel %vm880, %v875, %v879
      %vm882 = vcmp.eq.f32.partialorder %v875, 0.0
      %v883 = vand.u32 %v875, 2147483648
      %v884 = vsel %vm882, %v883, %v881
      %v885 = vrsqrt.pop %v876
      %v886 = vmul.f32 %v876, %v885
      %vm887 = vcmp.eq.f32.partialorder %v876, inf
      %v888 = vsel %vm887, %v876, %v886
      %vm889 = vcmp.eq.f32.partialorder %v876, 0.0
      %v890 = vand.u32 %v876, 2147483648
      %v891 = vsel %vm889, %v890, %v888
      %v892 = vrsqrt.pop %v877
      %v893 = vmul.f32 %v877, %v892
      %vm894 = vcmp.eq.f32.partialorder %v877, inf
      %v895 = vsel %vm894, %v877, %v893
      %vm896 = vcmp.eq.f32.partialorder %v877, 0.0
      %v897 = vand.u32 %v877, 2147483648
      %v898 = vsel %vm896, %v897, %v895
      %902 = vrot.lane.b32.xlu0 %v854, 1
      %v903 = vpop.permute.xlu0 %902
      %904 = vrot.lane.b32.xlu0 %v861, 1
      %v905 = vpop.permute.xlu0 %904
      %906 = vrot.lane.b32.xlu0 %v868, 1
      %v907 = vpop.permute.xlu0 %906
      %vm911 = vcmask 134152
      %912 = vst.msk [vmem:[#allocation2] sm:$0xf] %vm911, %v903
      %913 = vst.msk [vmem:[#allocation2 + $0x4] sm:$0xf] %vm911, %v905
      %914 = vst.msk [vmem:[#allocation2 + $0x8] sm:$0xf] %vm911, %v907
      %918 = vrot.lane.b32.xlu0 %v884, 1
      %v919 = vpop.permute.xlu0 %918
      %920 = vrot.lane.b32.xlu0 %v891, 1
      %v921 = vpop.permute.xlu0 %920
      %922 = vrot.lane.b32.xlu0 %v898, 1
      %v923 = vpop.permute.xlu0 %922
      %927 = vst.msk [vmem:[#allocation3] sm:$0xf] %vm911, %v919
      %928 = vst.msk [vmem:[#allocation3 + $0x4] sm:$0xf] %vm911, %v921
      %929 = vst.msk [vmem:[#allocation3 + $0x8] sm:$0xf] %vm911, %v923
      %vm930 = vcmask 3072
      %931 = vst.msk [vmem:[#allocation2] sm:$0xf] %vm930, %v884
      %932 = vst.msk [vmem:[#allocation2 + $0x4] sm:$0xf] %vm930, %v891
      %933 = vst.msk [vmem:[#allocation2 + $0x8] sm:$0xf] %vm930, %v898
      %934 = vst.msk [vmem:[#allocation3] sm:$0xf] %vm930, %v854
      %935 = vst.msk [vmem:[#allocation3 + $0x4] sm:$0xf] %vm930, %v861
      %936 = vst.msk [vmem:[#allocation3 + $0x8] sm:$0xf] %vm930, %v868
      %937 = vrot.lane.b32.xlu0 %v884, 2
      %v938 = vpop.permute.xlu0 %937
      %939 = vrot.lane.b32.xlu0 %v891, 2
      %v940 = vpop.permute.xlu0 %939
      %941 = vrot.lane.b32.xlu0 %v898, 2
      %v942 = vpop.permute.xlu0 %941
      %vm946 = vcmask 142472
      %947 = vst.msk [vmem:[#allocation2] sm:$0xf] %vm946, %v938
      %948 = vst.msk [vmem:[#allocation2 + $0x4] sm:$0xf] %vm946, %v940
      %949 = vst.msk [vmem:[#allocation2 + $0x8] sm:$0xf] %vm946, %v942
      %950 = vrot.lane.b32.xlu0 %v854, 2
      %v951 = vpop.permute.xlu0 %950
      %952 = vrot.lane.b32.xlu0 %v861, 2
      %v953 = vpop.permute.xlu0 %952
      %954 = vrot.lane.b32.xlu0 %v868, 2
      %v955 = vpop.permute.xlu0 %954
      %959 = vst.msk [vmem:[#allocation3] sm:$0xf] %vm946, %v951
      %960 = vst.msk [vmem:[#allocation3 + $0x4] sm:$0xf] %vm946, %v953
      %961 = vst.msk [vmem:[#allocation3 + $0x8] sm:$0xf] %vm946, %v955
      %v962 = vld [vmem:[#allocation2] sm:$0xf]
      %v963 = vld [vmem:[#allocation2 + $0x4] sm:$0xf]
      %v964 = vld [vmem:[#allocation2 + $0x8] sm:$0xf]
      %v965 = vld [vmem:[#allocation3] sm:$0xf]
      %v966 = vld [vmem:[#allocation3 + $0x4] sm:$0xf]
      %v967 = vld [vmem:[#allocation3 + $0x8] sm:$0xf]
      %v968 = vmul.f32 %v962, -0.05
      %v969 = vmul.f32 %v963, -0.05
      %v970 = vmul.f32 %v964, -0.05
      %v971 = vmul.f32 %v965, 0.25
      %v972 = vmul.f32 %v966, 0.25
      %v973 = vmul.f32 %v967, 0.25
      %v974 = vadd.f32 %v968, %v971
      %v975 = vadd.f32 %v969, %v972
      %v976 = vadd.f32 %v970, %v973
      %v977 = vmul.f32 %v854, 0.6
      %v978 = vmul.f32 %v861, 0.6
      %v979 = vmul.f32 %v868, 0.6
      %v980 = vadd.f32 %v974, %v977
      %v981 = vadd.f32 %v975, %v978
      %v982 = vadd.f32 %v976, %v979
      %v983 = vmul.f32 %v884, 0.25
      %v984 = vmul.f32 %v891, 0.25
      %v985 = vmul.f32 %v898, 0.25
      %v986 = vadd.f32 %v980, %v983
      %v987 = vadd.f32 %v981, %v984
      %v988 = vadd.f32 %v982, %v985
      %992 = vrot.lane.b32.xlu0 %v968, 126
      %v993 = vpop.permute.xlu0 %992
      %994 = vrot.lane.b32.xlu0 %v969, 126
      %v995 = vpop.permute.xlu0 %994
      %996 = vrot.lane.b32.xlu0 %v970, 126
      %v997 = vpop.permute.xlu0 %996
      %v1001 = vadd.f32 %v986, %v993
      %v1002 = vadd.f32 %v987, %v995
      %v1003 = vadd.f32 %v988, %v997
      %vm1004 = vcmask 125952
      %1005 = vst.msk [vmem:[%s307] sm:$0xf] %vm1004, %v1001
      %1006 = vst.msk [vmem:[%s307 + $0x4] sm:$0xf] %vm1004, %v1002
      %1007 = vst.msk [vmem:[%s307 + $0x8] sm:$0xf] %vm1004, %v1003
      %v1008 = vmul.f32 %v965, -0.05
      %v1009 = vmul.f32 %v966, -0.05
      %v1010 = vmul.f32 %v967, -0.05
      %v1011 = vmul.f32 %v854, 0.25
      %v1012 = vmul.f32 %v861, 0.25
      %v1013 = vmul.f32 %v868, 0.25
      %v1014 = vadd.f32 %v1008, %v1011
      %v1015 = vadd.f32 %v1009, %v1012
      %v1016 = vadd.f32 %v1010, %v1013
      %v1017 = vmul.f32 %v884, 0.6
      %v1018 = vmul.f32 %v891, 0.6
      %v1019 = vmul.f32 %v898, 0.6
      %v1020 = vadd.f32 %v1014, %v1017
      %v1021 = vadd.f32 %v1015, %v1018
      %v1022 = vadd.f32 %v1016, %v1019
      %v1023 = vmul.f32 %v962, 0.25
      %v1024 = vmul.f32 %v963, 0.25
      %v1025 = vmul.f32 %v964, 0.25
      %1029 = vrot.lane.b32.xlu0 %v1023, 126
      %v1030 = vpop.permute.xlu0 %1029
      %1031 = vrot.lane.b32.xlu0 %v1024, 126
      %v1032 = vpop.permute.xlu0 %1031
      %1033 = vrot.lane.b32.xlu0 %v1025, 126
      %v1034 = vpop.permute.xlu0 %1033
      %v1038 = vadd.f32 %v1020, %v1030
      %v1039 = vadd.f32 %v1021, %v1032
      %v1040 = vadd.f32 %v1022, %v1034
      %1044 = vrot.lane.b32.xlu0 %v1008, 126
      %v1045 = vpop.permute.xlu0 %1044
      %1046 = vrot.lane.b32.xlu0 %v1009, 126
      %v1047 = vpop.permute.xlu0 %1046
      %1048 = vrot.lane.b32.xlu0 %v1010, 126
      %v1049 = vpop.permute.xlu0 %1048
      %v1053 = vadd.f32 %v1038, %v1045
      %v1054 = vadd.f32 %v1039, %v1047
      %v1055 = vadd.f32 %v1040, %v1049
      %1056 = vst.msk [vmem:[%s312] sm:$0xf] %vm1004, %v1053
      %1057 = vst.msk [vmem:[%s312 + $0x4] sm:$0xf] %vm1004, %v1054
      %1058 = vst.msk [vmem:[%s312 + $0x8] sm:$0xf] %vm1004, %v1055
      %p1059 = scmp.lt.s32.totalorder %s18, 1
      %s1060 = scalar_select %p1059, %s18, 1
      %s1061 = smul.addr %s1060, 3
      %s1062 = smul.addr %s1061, 4
      %s1063 = scalar_lea.vmem %s5, %s1062
      %p1064 = scmp.lt.s32.totalorder %s18, 1
      %s1065 = scalar_select %p1064, %s18, 1
      %s1066 = smul.addr %s1065, 3
      %s1067 = smul.addr %s1066, 4
      %s1068 = scalar_lea.vmem %s6, %s1067
      // Predicated region
      $region41: #{murenn_direct_forward.12} parent=39 // pred_check
        %p1069 = pneg %p161
      $region42: #{murenn_direct_forward.12} parent=39 // pred_check_branch
        %1071 = sbr.rel (%p1069) target = $region44
      $region43: #{murenn_direct_forward.12} parent=39 // pred_region
        _
      $region44: #{murenn_direct_forward.12} parent=39 // pred_fallthru
        _
      // Predicated region
      $region45: #{murenn_direct_forward.12} parent=39 // pred_check
        %p1072 = pneg %p187
      $region46: #{murenn_direct_forward.12} parent=39 // pred_check_branch
        %1074 = sbr.rel (%p1072) target = $region48
      $region47: #{murenn_direct_forward.12} parent=39 // pred_region
        _
      $region48: #{murenn_direct_forward.12} parent=39 // pred_fallthru
        _
    $region40: #{murenn_direct_forward.12} parent=5 // pred_fallthru
      _
    %p1075 = scmp.le.s32.totalorder 2, %s13
    // Predicated region
    $region49: #{murenn_direct_forward.12} parent=5 // pred_check
      %p1076 = pneg %p1075
    $region50: #{murenn_direct_forward.12} parent=5 // pred_check_branch
      %1078 = sbr.rel (%p1076) target = $region52
    $region51: #{murenn_direct_forward.12} parent=5 // pred_region
      %s1079 = ssub.s32 %s13, 2
      // Predicated region
      $region53: #{murenn_direct_forward.12} parent=51 // pred_check
        %p1080 = pneg %p167
      $region54: #{murenn_direct_forward.12} parent=51 // pred_check_branch
        %1082 = sbr.rel (%p1080) target = $region56
      $region55: #{murenn_direct_forward.12} parent=51 // pred_region
        %p1083 = scmp.lt.s32.totalorder %s19, 1
        %s1084 = scalar_select %p1083, %s19, 1
        %s1085 = smul.addr %s1084, 3
        %s1086 = smul.addr %s1085, 4
        %s1087 = scalar_lea.vmem %s5, %s1086
      $region56: #{murenn_direct_forward.12} parent=51 // pred_fallthru
        _
      // Predicated region
      $region57: #{murenn_direct_forward.12} parent=51 // pred_check
        %p1088 = pneg %p193
      $region58: #{murenn_direct_forward.12} parent=51 // pred_check_branch
        %1090 = sbr.rel (%p1088) target = $region60
      $region59: #{murenn_direct_forward.12} parent=51 // pred_region
        %p1091 = scmp.lt.s32.totalorder %s19, 1
        %s1092 = scalar_select %p1091, %s19, 1
        %s1093 = smul.addr %s1092, 3
        %s1094 = smul.addr %s1093, 4
        %s1095 = scalar_lea.vmem %s6, %s1094
      $region60: #{murenn_direct_forward.12} parent=51 // pred_fallthru
        _
    $region52: #{murenn_direct_forward.12} parent=5 // pred_fallthru
      _
  $region6: #{murenn_direct_forward.12} parent=0 // loop_footer
    %s17 = sadd.s32 1, %s13
  $region7: #{murenn_direct_forward.12} parent=0 // loop_footer_branch
    %12 = sbr.rel target = $region3
  $region8: #{murenn_direct_forward.12} parent=0 // loop_exit
    _

// kernel: murenn_direct_forward.14
$region0: #{murenn_direct_forward.14}
  #allocation0 [shape = 'u32[]', space=smem, size = 0x4, offset = 0x4, fixed_abs, tag = 'smem constant byte address 0x4 - core index']
  #allocation1 [shape = 'u32[144,128]{1,0:T(1,128)}', space=vmem, size = 0x12000, scoped, tag = 'internal scratch']
  %s0 = inlined_call_operand.vmem [shape: f32[24,6], index: 0, kind: input, shape index: {}]
  %s1 = inlined_call_operand.vmem [shape: f32[24,6], index: 1, kind: input, shape index: {}]
  %s2 = inlined_call_operand.vmem [shape: f32[24,6], index: 2, kind: input, shape index: {}]
  %s3 = inlined_call_operand.vmem [shape: f32[24,6], index: 3, kind: input, shape index: {}]
  %s4 = inlined_call_operand.vmem [shape: f32[24,4], index: 4, kind: output, shape index: {0}]
  %s5 = inlined_call_operand.vmem [shape: f32[24,4], index: 5, kind: output, shape index: {1}]
  %6 = xla_tuple %s4, %s5
  %s7 = sld [smem:[#allocation0]]
  $region34: #{murenn_direct_forward.14} parent=0
    _
  %s9 = ssub.s32 1, %s7
  %s10 = scalar_select 0, %s9, %s7
  // Predicated region
  $region2: #{murenn_direct_forward.14} parent=0 // pred_check
    _
  $region3: #{murenn_direct_forward.14} parent=0 // pred_check_branch
    %12 = sbr.rel (0) target = $region5
  $region4: #{murenn_direct_forward.14} parent=0 // pred_region
    _
  $region5: #{murenn_direct_forward.14} parent=0 // pred_fallthru
    _
  // Predicated region
  $region6: #{murenn_direct_forward.14} parent=0 // pred_check
    _
  $region7: #{murenn_direct_forward.14} parent=0 // pred_check_branch
    %14 = sbr.rel (0) target = $region9
  $region8: #{murenn_direct_forward.14} parent=0 // pred_region
    _
  $region9: #{murenn_direct_forward.14} parent=0 // pred_fallthru
    _
  // Predicated region
  $region10: #{murenn_direct_forward.14} parent=0 // pred_check
    _
  $region11: #{murenn_direct_forward.14} parent=0 // pred_check_branch
    %16 = sbr.rel (0) target = $region13
  $region12: #{murenn_direct_forward.14} parent=0 // pred_region
    _
  $region13: #{murenn_direct_forward.14} parent=0 // pred_fallthru
    _
  // Predicated region
  $region14: #{murenn_direct_forward.14} parent=0 // pred_check
    _
  $region15: #{murenn_direct_forward.14} parent=0 // pred_check_branch
    %18 = sbr.rel (0) target = $region17
  $region16: #{murenn_direct_forward.14} parent=0 // pred_region
    _
  $region17: #{murenn_direct_forward.14} parent=0 // pred_fallthru
    _
  %v19 = vld [vmem:[%s0] sm:$0xff]
  %v20 = vld [vmem:[%s0 + $0x8] sm:$0xff]
  %v21 = vld [vmem:[%s0 + $0x10] sm:$0xff]
  %v22 = vmul.f32 %v19, 0.34150636
  %v23 = vmul.f32 %v20, 0.34150636
  %v24 = vmul.f32 %v21, 0.34150636
  %v25 = vadd.f32 %v22, 0.0
  %v26 = vadd.f32 %v23, 0.0
  %v27 = vadd.f32 %v24, 0.0
  %v28 = vld [vmem:[%s1] sm:$0xff]
  %v29 = vld [vmem:[%s1 + $0x8] sm:$0xff]
  %v30 = vld [vmem:[%s1 + $0x10] sm:$0xff]
  %v31 = vmul.f32 %v28, 0.59150636
  %v32 = vmul.f32 %v29, 0.59150636
  %v33 = vmul.f32 %v30, 0.59150636
  %v34 = vadd.f32 %v25, %v31
  %v35 = vadd.f32 %v26, %v32
  %v36 = vadd.f32 %v27, %v33
  %v37 = vmul.f32 %v19, 0.15849365
  %v38 = vmul.f32 %v20, 0.15849365
  %v39 = vmul.f32 %v21, 0.15849365
  %43 = vrot.lane.b32.xlu0 %v37, 127
  %v44 = vpop.permute.xlu0 %43
  %45 = vrot.lane.b32.xlu0 %v38, 127
  %v46 = vpop.permute.xlu0 %45
  %47 = vrot.lane.b32.xlu0 %v39, 127
  %v48 = vpop.permute.xlu0 %47
  %v52 = vadd.f32 %v34, %v44
  %v53 = vadd.f32 %v35, %v46
  %v54 = vadd.f32 %v36, %v48
  %v55 = vmul.f32 %v28, -0.091506355
  %v56 = vmul.f32 %v29, -0.091506355
  %v57 = vmul.f32 %v30, -0.091506355
  %61 = vrot.lane.b32.xlu0 %v55, 127
  %v62 = vpop.permute.xlu0 %61
  %63 = vrot.lane.b32.xlu0 %v56, 127
  %v64 = vpop.permute.xlu0 %63
  %65 = vrot.lane.b32.xlu0 %v57, 127
  %v66 = vpop.permute.xlu0 %65
  %v70 = vadd.f32 %v52, %v62
  %v71 = vadd.f32 %v53, %v64
  %v72 = vadd.f32 %v54, %v66
  %vm73 = vcmask 31744
  %74 = vst.msk [vmem:[%s4] sm:$0xff] %vm73, %v70
  %75 = vst.msk [vmem:[%s4 + $0x8] sm:$0xff] %vm73, %v71
  %76 = vst.msk [vmem:[%s4 + $0x10] sm:$0xff] %vm73, %v72
  %v77 = vld [vmem:[%s2] sm:$0xff]
  %v78 = vld [vmem:[%s2 + $0x8] sm:$0xff]
  %v79 = vld [vmem:[%s2 + $0x10] sm:$0xff]
  %v80 = vmul.f32 %v77, -0.091506355
  %v81 = vmul.f32 %v78, -0.091506355
  %v82 = vmul.f32 %v79, -0.091506355
  %v83 = vadd.f32 %v80, 0.0
  %v84 = vadd.f32 %v81, 0.0
  %v85 = vadd.f32 %v82, 0.0
  %v86 = vld [vmem:[%s3] sm:$0xff]
  %v87 = vld [vmem:[%s3 + $0x8] sm:$0xff]
  %v88 = vld [vmem:[%s3 + $0x10] sm:$0xff]
  %v89 = vmul.f32 %v86, 0.15849365
  %v90 = vmul.f32 %v87, 0.15849365
  %v91 = vmul.f32 %v88, 0.15849365
  %v92 = vadd.f32 %v83, %v89
  %v93 = vadd.f32 %v84, %v90
  %v94 = vadd.f32 %v85, %v91
  %v95 = vmul.f32 %v77, 0.59150636
  %v96 = vmul.f32 %v78, 0.59150636
  %v97 = vmul.f32 %v79, 0.59150636
  %101 = vrot.lane.b32.xlu0 %v95, 127
  %v102 = vpop.permute.xlu0 %101
  %103 = vrot.lane.b32.xlu0 %v96, 127
  %v104 = vpop.permute.xlu0 %103
  %105 = vrot.lane.b32.xlu0 %v97, 127
  %v106 = vpop.permute.xlu0 %105
  %v110 = vadd.f32 %v92, %v102
  %v111 = vadd.f32 %v93, %v104
  %v112 = vadd.f32 %v94, %v106
  %v113 = vmul.f32 %v86, 0.34150636
  %v114 = vmul.f32 %v87, 0.34150636
  %v115 = vmul.f32 %v88, 0.34150636
  %119 = vrot.lane.b32.xlu0 %v113, 127
  %v120 = vpop.permute.xlu0 %119
  %121 = vrot.lane.b32.xlu0 %v114, 127
  %v122 = vpop.permute.xlu0 %121
  %123 = vrot.lane.b32.xlu0 %v115, 127
  %v124 = vpop.permute.xlu0 %123
  %v128 = vadd.f32 %v110, %v120
  %v129 = vadd.f32 %v111, %v122
  %v130 = vadd.f32 %v112, %v124
  %131 = vst.msk [vmem:[%s5] sm:$0xff] %vm73, %v128
  %132 = vst.msk [vmem:[%s5 + $0x8] sm:$0xff] %vm73, %v129
  %133 = vst.msk [vmem:[%s5 + $0x10] sm:$0xff] %vm73, %v130
  // Predicated region
  $region18: #{murenn_direct_forward.14} parent=0 // pred_check
    _
  $region19: #{murenn_direct_forward.14} parent=0 // pred_check_branch
    %135 = sbr.rel (0) target = $region21
  $region20: #{murenn_direct_forward.14} parent=0 // pred_region
    _
  $region21: #{murenn_direct_forward.14} parent=0 // pred_fallthru
    _
  // Predicated region
  $region22: #{murenn_direct_forward.14} parent=0 // pred_check
    _
  $region23: #{murenn_direct_forward.14} parent=0 // pred_check_branch
    %137 = sbr.rel (0) target = $region25
  $region24: #{murenn_direct_forward.14} parent=0 // pred_region
    _
  $region25: #{murenn_direct_forward.14} parent=0 // pred_fallthru
    _
  // Predicated region
  $region26: #{murenn_direct_forward.14} parent=0 // pred_check
    _
  $region27: #{murenn_direct_forward.14} parent=0 // pred_check_branch
    %139 = sbr.rel (0) target = $region29
  $region28: #{murenn_direct_forward.14} parent=0 // pred_region
    _
  $region29: #{murenn_direct_forward.14} parent=0 // pred_fallthru
    _
  // Predicated region
  $region30: #{murenn_direct_forward.14} parent=0 // pred_check
    _
  $region31: #{murenn_direct_forward.14} parent=0 // pred_check_branch
    %141 = sbr.rel (0) target = $region33
  $region32: #{murenn_direct_forward.14} parent=0 // pred_region
    _
  $region33: #{murenn_direct_forward.14} parent=0 // pred_fallthru
    _

// kernel: murenn_direct_forward.10
$region0: #{murenn_direct_forward.10}
  #allocation0 [shape = 'u32[]', space=smem, size = 0x4, offset = 0x4, fixed_abs, tag = 'smem constant byte address 0x4 - core index']
  #allocation1 [shape = 'u32[144,128]{1,0:T(1,128)}', space=vmem, size = 0x12000, scoped, tag = 'internal scratch']
  %s0 = inlined_call_operand.vmem [shape: f32[8,18], index: 0, kind: input, shape index: {}]
  %s1 = inlined_call_operand.vmem [shape: f32[8,18], index: 1, kind: input, shape index: {}]
  %s2 = inlined_call_operand.vmem [shape: f32[8,18], index: 2, kind: input, shape index: {}]
  %s3 = inlined_call_operand.vmem [shape: f32[8,18], index: 3, kind: input, shape index: {}]
  %s4 = inlined_call_operand.vmem [shape: f32[8,16], index: 4, kind: output, shape index: {0}]
  %s5 = inlined_call_operand.vmem [shape: f32[8,16], index: 5, kind: output, shape index: {1}]
  %s6 = inlined_call_operand.vmem [shape: f32[8,16], index: 6, kind: output, shape index: {2}]
  %s7 = inlined_call_operand.vmem [shape: f32[8,16], index: 7, kind: output, shape index: {3}]
  %8 = xla_tuple %s4, %s5, %s6, %s7
  %s9 = sld [smem:[#allocation0]]
  $region50: #{murenn_direct_forward.10} parent=0
    _
  %s11 = ssub.s32 1, %s9
  %s12 = scalar_select 0, %s11, %s9
  // Predicated region
  $region2: #{murenn_direct_forward.10} parent=0 // pred_check
    _
  $region3: #{murenn_direct_forward.10} parent=0 // pred_check_branch
    %14 = sbr.rel (0) target = $region5
  $region4: #{murenn_direct_forward.10} parent=0 // pred_region
    _
  $region5: #{murenn_direct_forward.10} parent=0 // pred_fallthru
    _
  // Predicated region
  $region6: #{murenn_direct_forward.10} parent=0 // pred_check
    _
  $region7: #{murenn_direct_forward.10} parent=0 // pred_check_branch
    %16 = sbr.rel (0) target = $region9
  $region8: #{murenn_direct_forward.10} parent=0 // pred_region
    _
  $region9: #{murenn_direct_forward.10} parent=0 // pred_fallthru
    _
  // Predicated region
  $region10: #{murenn_direct_forward.10} parent=0 // pred_check
    _
  $region11: #{murenn_direct_forward.10} parent=0 // pred_check_branch
    %18 = sbr.rel (0) target = $region13
  $region12: #{murenn_direct_forward.10} parent=0 // pred_region
    _
  $region13: #{murenn_direct_forward.10} parent=0 // pred_fallthru
    _
  // Predicated region
  $region14: #{murenn_direct_forward.10} parent=0 // pred_check
    _
  $region15: #{murenn_direct_forward.10} parent=0 // pred_check_branch
    %20 = sbr.rel (0) target = $region17
  $region16: #{murenn_direct_forward.10} parent=0 // pred_region
    _
  $region17: #{murenn_direct_forward.10} parent=0 // pred_fallthru
    _
  %v21 = vld [vmem:[%s0] sm:$0xff]
  %v22 = vmul.f32 %v21, -0.091506355
  %v23 = vadd.f32 %v22, 0.0
  %v24 = vld [vmem:[%s1] sm:$0xff]
  %v25 = vmul.f32 %v24, -0.15849365
  %v26 = vadd.f32 %v23, %v25
  %v27 = vmul.f32 %v21, 0.59150636
  %29 = vrot.lane.b32.xlu0 %v27, 127
  %v30 = vpop.permute.xlu0 %29
  %v32 = vadd.f32 %v26, %v30
  %v33 = vmul.f32 %v24, -0.34150636
  %35 = vrot.lane.b32.xlu0 %v33, 127
  %v36 = vpop.permute.xlu0 %35
  %v38 = vadd.f32 %v32, %v36
  %vm39 = vcmask 130048
  %40 = vst.msk [vmem:[%s4] sm:$0xff] %vm39, %v38
  %v41 = vld [vmem:[%s2] sm:$0xff]
  %v42 = vmul.f32 %v41, -0.34150636
  %v43 = vadd.f32 %v42, 0.0
  %v44 = vld [vmem:[%s3] sm:$0xff]
  %v45 = vmul.f32 %v44, 0.59150636
  %v46 = vadd.f32 %v43, %v45
  %v47 = vmul.f32 %v41, -0.15849365
  %49 = vrot.lane.b32.xlu0 %v47, 127
  %v50 = vpop.permute.xlu0 %49
  %v52 = vadd.f32 %v46, %v50
  %v53 = vmul.f32 %v44, -0.091506355
  %55 = vrot.lane.b32.xlu0 %v53, 127
  %v56 = vpop.permute.xlu0 %55
  %v58 = vadd.f32 %v52, %v56
  %59 = vst.msk [vmem:[%s5] sm:$0xff] %vm39, %v58
  %v60 = vld [vmem:[%s0] sm:$0xff]
  %v61 = vmul.f32 %v60, 0.34150636
  %v62 = vadd.f32 %v61, 0.0
  %v63 = vld [vmem:[%s1] sm:$0xff]
  %v64 = vmul.f32 %v63, 0.59150636
  %v65 = vadd.f32 %v62, %v64
  %v66 = vmul.f32 %v60, 0.15849365
  %68 = vrot.lane.b32.xlu0 %v66, 127
  %v69 = vpop.permute.xlu0 %68
  %v71 = vadd.f32 %v65, %v69
  %v72 = vmul.f32 %v63, -0.091506355
  %74 = vrot.lane.b32.xlu0 %v72, 127
  %v75 = vpop.permute.xlu0 %74
  %v77 = vadd.f32 %v71, %v75
  %78 = vst.msk [vmem:[%s6] sm:$0xff] %vm39, %v77
  %v79 = vld [vmem:[%s2] sm:$0xff]
  %v80 = vmul.f32 %v79, -0.091506355
  %v81 = vadd.f32 %v80, 0.0
  %v82 = vld [vmem:[%s3] sm:$0xff]
  %v83 = vmul.f32 %v82, 0.15849365
  %v84 = vadd.f32 %v81, %v83
  %v85 = vmul.f32 %v79, 0.59150636
  %87 = vrot.lane.b32.xlu0 %v85, 127
  %v88 = vpop.permute.xlu0 %87
  %v90 = vadd.f32 %v84, %v88
  %v91 = vmul.f32 %v82, 0.34150636
  %93 = vrot.lane.b32.xlu0 %v91, 127
  %v94 = vpop.permute.xlu0 %93
  %v96 = vadd.f32 %v90, %v94
  %97 = vst.msk [vmem:[%s7] sm:$0xff] %vm39, %v96
  // Predicated region
  $region18: #{murenn_direct_forward.10} parent=0 // pred_check
    _
  $region19: #{murenn_direct_forward.10} parent=0 // pred_check_branch
    %99 = sbr.rel (0) target = $region21
  $region20: #{murenn_direct_forward.10} parent=0 // pred_region
    _
  $region21: #{murenn_direct_forward.10} parent=0 // pred_fallthru
    _
  // Predicated region
  $region22: #{murenn_direct_forward.10} parent=0 // pred_check
    _
  $region23: #{murenn_direct_forward.10} parent=0 // pred_check_branch
    %101 = sbr.rel (0) target = $region25
  $region24: #{murenn_direct_forward.10} parent=0 // pred_region
    _
  $region25: #{murenn_direct_forward.10} parent=0 // pred_fallthru
    _
  // Predicated region
  $region26: #{murenn_direct_forward.10} parent=0 // pred_check
    _
  $region27: #{murenn_direct_forward.10} parent=0 // pred_check_branch
    %103 = sbr.rel (0) target = $region29
  $region28: #{murenn_direct_forward.10} parent=0 // pred_region
    _
  $region29: #{murenn_direct_forward.10} parent=0 // pred_fallthru
    _
  // Predicated region
  $region30: #{murenn_direct_forward.10} parent=0 // pred_check
    _
  $region31: #{murenn_direct_forward.10} parent=0 // pred_check_branch
    %105 = sbr.rel (0) target = $region33
  $region32: #{murenn_direct_forward.10} parent=0 // pred_region
    _
  $region33: #{murenn_direct_forward.10} parent=0 // pred_fallthru
    _
  // Predicated region
  $region34: #{murenn_direct_forward.10} parent=0 // pred_check
    _
  $region35: #{murenn_direct_forward.10} parent=0 // pred_check_branch
    %107 = sbr.rel (0) target = $region37
  $region36: #{murenn_direct_forward.10} parent=0 // pred_region
    _
  $region37: #{murenn_direct_forward.10} parent=0 // pred_fallthru
    _
  // Predicated region
  $region38: #{murenn_direct_forward.10} parent=0 // pred_check
    _
  $region39: #{murenn_direct_forward.10} parent=0 // pred_check_branch
    %109 = sbr.rel (0) target = $region41
  $region40: #{murenn_direct_forward.10} parent=0 // pred_region
    _
  $region41: #{murenn_direct_forward.10} parent=0 // pred_fallthru
    _
  // Predicated region
  $region42: #{murenn_direct_forward.10} parent=0 // pred_check
    _
  $region43: #{murenn_direct_forward.10} parent=0 // pred_check_branch
    %111 = sbr.rel (0) target = $region45
  $region44: #{murenn_direct_forward.10} parent=0 // pred_region
    _
  $region45: #{murenn_direct_forward.10} parent=0 // pred_fallthru
    _
  // Predicated region
  $region46: #{murenn_direct_forward.10} parent=0 // pred_check
    _
  $region47: #{murenn_direct_forward.10} parent=0 // pred_check_branch
    %113 = sbr.rel (0) target = $region49
  $region48: #{murenn_direct_forward.10} parent=0 // pred_region
    _
  $region49: #{murenn_direct_forward.10} parent=0 // pred_fallthru
    _

// kernel: murenn_direct_forward.11
$region0: #{murenn_direct_forward.11}
  #allocation0 [shape = 'u32[]', space=smem, size = 0x4, offset = 0x4, fixed_abs, tag = 'smem constant byte address 0x4 - core index']
  #allocation1 [shape = 'u32[144,128]{1,0:T(1,128)}', space=vmem, size = 0x12000, scoped, tag = 'internal scratch']
  %s0 = inlined_call_operand.vmem [shape: f32[8,10], index: 0, kind: input, shape index: {}]
  %s1 = inlined_call_operand.vmem [shape: f32[8,10], index: 1, kind: input, shape index: {}]
  %s2 = inlined_call_operand.vmem [shape: f32[8,10], index: 2, kind: input, shape index: {}]
  %s3 = inlined_call_operand.vmem [shape: f32[8,10], index: 3, kind: input, shape index: {}]
  %s4 = inlined_call_operand.vmem [shape: f32[8,8], index: 4, kind: output, shape index: {0}]
  %s5 = inlined_call_operand.vmem [shape: f32[8,8], index: 5, kind: output, shape index: {1}]
  %6 = xla_tuple %s4, %s5
  %s7 = sld [smem:[#allocation0]]
  $region34: #{murenn_direct_forward.11} parent=0
    _
  %s9 = ssub.s32 1, %s7
  %s10 = scalar_select 0, %s9, %s7
  // Predicated region
  $region2: #{murenn_direct_forward.11} parent=0 // pred_check
    _
  $region3: #{murenn_direct_forward.11} parent=0 // pred_check_branch
    %12 = sbr.rel (0) target = $region5
  $region4: #{murenn_direct_forward.11} parent=0 // pred_region
    _
  $region5: #{murenn_direct_forward.11} parent=0 // pred_fallthru
    _
  // Predicated region
  $region6: #{murenn_direct_forward.11} parent=0 // pred_check
    _
  $region7: #{murenn_direct_forward.11} parent=0 // pred_check_branch
    %14 = sbr.rel (0) target = $region9
  $region8: #{murenn_direct_forward.11} parent=0 // pred_region
    _
  $region9: #{murenn_direct_forward.11} parent=0 // pred_fallthru
    _
  // Predicated region
  $region10: #{murenn_direct_forward.11} parent=0 // pred_check
    _
  $region11: #{murenn_direct_forward.11} parent=0 // pred_check_branch
    %16 = sbr.rel (0) target = $region13
  $region12: #{murenn_direct_forward.11} parent=0 // pred_region
    _
  $region13: #{murenn_direct_forward.11} parent=0 // pred_fallthru
    _
  // Predicated region
  $region14: #{murenn_direct_forward.11} parent=0 // pred_check
    _
  $region15: #{murenn_direct_forward.11} parent=0 // pred_check_branch
    %18 = sbr.rel (0) target = $region17
  $region16: #{murenn_direct_forward.11} parent=0 // pred_region
    _
  $region17: #{murenn_direct_forward.11} parent=0 // pred_fallthru
    _
  %v19 = vld [vmem:[%s0] sm:$0xff]
  %v20 = vmul.f32 %v19, -0.091506355
  %v21 = vadd.f32 %v20, 0.0
  %v22 = vld [vmem:[%s1] sm:$0xff]
  %v23 = vmul.f32 %v22, -0.15849365
  %v24 = vadd.f32 %v21, %v23
  %v25 = vmul.f32 %v19, 0.59150636
  %27 = vrot.lane.b32.xlu0 %v25, 127
  %v28 = vpop.permute.xlu0 %27
  %v30 = vadd.f32 %v24, %v28
  %v31 = vmul.f32 %v22, -0.34150636
  %33 = vrot.lane.b32.xlu0 %v31, 127
  %v34 = vpop.permute.xlu0 %33
  %v36 = vadd.f32 %v30, %v34
  %vm37 = vcmask 64512
  %38 = vst.msk [vmem:[%s4] sm:$0xff] %vm37, %v36
  %v39 = vld [vmem:[%s2] sm:$0xff]
  %v40 = vmul.f32 %v39, -0.34150636
  %v41 = vadd.f32 %v40, 0.0
  %v42 = vld [vmem:[%s3] sm:$0xff]
  %v43 = vmul.f32 %v42, 0.59150636
  %v44 = vadd.f32 %v41, %v43
  %v45 = vmul.f32 %v39, -0.15849365
  %47 = vrot.lane.b32.xlu0 %v45, 127
  %v48 = vpop.permute.xlu0 %47
  %v50 = vadd.f32 %v44, %v48
  %v51 = vmul.f32 %v42, -0.091506355
  %53 = vrot.lane.b32.xlu0 %v51, 127
  %v54 = vpop.permute.xlu0 %53
  %v56 = vadd.f32 %v50, %v54
  %57 = vst.msk [vmem:[%s5] sm:$0xff] %vm37, %v56
  // Predicated region
  $region18: #{murenn_direct_forward.11} parent=0 // pred_check
    _
  $region19: #{murenn_direct_forward.11} parent=0 // pred_check_branch
    %59 = sbr.rel (0) target = $region21
  $region20: #{murenn_direct_forward.11} parent=0 // pred_region
    _
  $region21: #{murenn_direct_forward.11} parent=0 // pred_fallthru
    _
  // Predicated region
  $region22: #{murenn_direct_forward.11} parent=0 // pred_check
    _
  $region23: #{murenn_direct_forward.11} parent=0 // pred_check_branch
    %61 = sbr.rel (0) target = $region25
  $region24: #{murenn_direct_forward.11} parent=0 // pred_region
    _
  $region25: #{murenn_direct_forward.11} parent=0 // pred_fallthru
    _
  // Predicated region
  $region26: #{murenn_direct_forward.11} parent=0 // pred_check
    _
  $region27: #{murenn_direct_forward.11} parent=0 // pred_check_branch
    %63 = sbr.rel (0) target = $region29
  $region28: #{murenn_direct_forward.11} parent=0 // pred_region
    _
  $region29: #{murenn_direct_forward.11} parent=0 // pred_fallthru
    _
  // Predicated region
  $region30: #{murenn_direct_forward.11} parent=0 // pred_check
    _
  $region31: #{murenn_direct_forward.11} parent=0 // pred_check_branch
    %65 = sbr.rel (0) target = $region33
  $region32: #{murenn_direct_forward.11} parent=0 // pred_region
    _
  $region33: #{murenn_direct_forward.11} parent=0 // pred_fallthru
    _

// kernel: murenn_direct_forward.15
$region0: #{murenn_direct_forward.15}
  #allocation0 [shape = 'u32[]', space=smem, size = 0x4, offset = 0x4, fixed_abs, tag = 'smem constant byte address 0x4 - core index']
  #allocation1 [shape = 'u32[144,128]{1,0:T(1,128)}', space=vmem, size = 0x12000, scoped, tag = 'internal scratch']
  #allocation2 [shape = 'f32[3,4,10]{2,1,0:T(4,128)}', space=vmem, size = 0x1800, scoped, tag = 'scratch operand']
  #allocation3 [shape = 'f32[3,4,10]{2,1,0:T(4,128)}', space=vmem, size = 0x1800, scoped, tag = 'scratch operand']
  %s0 = inlined_call_operand.vmem [shape: f32[2,4,11], index: 0, kind: input, shape index: {}]
  %s1 = inlined_call_operand.vmem [shape: f32[2,4,11], index: 1, kind: input, shape index: {}]
  %s2 = inlined_call_operand.vmem [shape: f32[2,4,11], index: 2, kind: input, shape index: {}]
  %s3 = inlined_call_operand.vmem [shape: f32[2,4,11], index: 3, kind: input, shape index: {}]
  %s4 = inlined_call_operand.vmem [shape: f32[3,4,7], index: 4, kind: input, shape index: {}]
  %s5 = inlined_call_operand.vmem [shape: f32[2,3,4,8], index: 5, kind: output, shape index: {0}]
  %s6 = inlined_call_operand.vmem [shape: f32[2,3,4,8], index: 6, kind: output, shape index: {1}]
  %7 = xla_tuple %s5, %s6
  %s8 = sld [smem:[#allocation0]]
  $region61: #{murenn_direct_forward.15} parent=0
    _
  %s10 = ssub.s32 1, %s8
  %s11 = scalar_select 0, %s10, %s8
  loop: start=0, step=1, limit=4
  $region2: #{murenn_direct_forward.15} parent=0 // loop_pre_header
    _
  $region3: #{murenn_direct_forward.15} parent=0 // loop_header
    %s13 = sphi 0, %s17
    %p14 = scmp.ge.s32.totalorder %s13, 4
    %s23 = sphi 0, %s25
    %s26 = sphi 0, %s23
    %s27 = sphi 0, %s26
    %s43 = sphi 0, %s27
    %s49 = sphi 0, %s51
    %s52 = sphi 0, %s49
    %s53 = sphi 0, %s52
    %s69 = sphi 0, %s53
    %s75 = sphi 0, %s77
    %s78 = sphi 0, %s75
    %s79 = sphi 0, %s78
    %s95 = sphi 0, %s79
    %s101 = sphi 0, %s103
    %s104 = sphi 0, %s101
    %s105 = sphi 0, %s104
    %s121 = sphi 0, %s105
    %s125 = sphi 0, %s125
    %s127 = sphi 0, %s125
    %s128 = sphi 0, %s127
    %s142 = sphi 0, %s128
    %s148 = sphi 0, %s150
    %s151 = sphi 0, %s148
    %s152 = sphi 0, %s151
    %s168 = sphi 0, %s152
    %s174 = sphi 0, %s176
    %s177 = sphi 0, %s174
    %s178 = sphi 0, %s177
    %s194 = sphi 0, %s178
  $region4: #{murenn_direct_forward.15} parent=0 // loop_header_branch
    %16 = sbr.rel (%p14) target = $region8
  $region5: #{murenn_direct_forward.15} parent=0 // loop_body
    %s18 = ssub.s32 %s13, 1
    %s19 = ssub.s32 %s13, 2
    %s20 = sadd.s32 %s13, 1
    %s21 = ssub.s32 %s13, %s20
    %p22 = scmp.eq.s32.totalorder %s21, 0
    %s24 = sadd.s32 %s23, 1
    %s25 = scalar_select %p22, %s23, %s24
    %p28 = pneg %p22
    %p29 = scmp.eq.s32.totalorder %s13, 1
    %p30 = por %p28, %p29
    %p31 = scmp.ne.s32.totalorder %s23, %s26
    %p32 = scmp.eq.s32.totalorder %s13, 0
    %p33 = por %p31, %p32
    %p34 = scmp.ne.s32.totalorder %s23, %s26
    %p35 = scmp.eq.s32.totalorder %s18, 1
    %p36 = por %p34, %p35
    %p37 = scmp.ne.s32.totalorder %s26, %s27
    %p38 = scmp.eq.s32.totalorder %s18, 0
    %p39 = por %p37, %p38
    %p40 = scmp.ne.s32.totalorder %s26, %s27
    %p41 = scmp.eq.s32.totalorder %s19, 1
    %p42 = por %p40, %p41
    %p44 = scmp.ne.s32.totalorder %s27, %s43
    %p45 = scmp.eq.s32.totalorder %s19, 0
    %p46 = por %p44, %p45
    %s47 = ssub.s32 %s13, %s20
    %p48 = scmp.eq.s32.totalorder %s47, 0
    %s50 = sadd.s32 %s49, 1
    %s51 = scalar_select %p48, %s49, %s50
    %p54 = pneg %p48
    %p55 = scmp.eq.s32.totalorder %s13, 1
    %p56 = por %p54, %p55
    %p57 = scmp.ne.s32.totalorder %s49, %s52
    %p58 = scmp.eq.s32.totalorder %s13, 0
    %p59 = por %p57, %p58
    %p60 = scmp.ne.s32.totalorder %s49, %s52
    %p61 = scmp.eq.s32.totalorder %s18, 1
    %p62 = por %p60, %p61
    %p63 = scmp.ne.s32.totalorder %s52, %s53
    %p64 = scmp.eq.s32.totalorder %s18, 0
    %p65 = por %p63, %p64
    %p66 = scmp.ne.s32.totalorder %s52, %s53
    %p67 = scmp.eq.s32.totalorder %s19, 1
    %p68 = por %p66, %p67
    %p70 = scmp.ne.s32.totalorder %s53, %s69
    %p71 = scmp.eq.s32.totalorder %s19, 0
    %p72 = por %p70, %p71
    %s73 = ssub.s32 %s13, %s20
    %p74 = scmp.eq.s32.totalorder %s73, 0
    %s76 = sadd.s32 %s75, 1
    %s77 = scalar_select %p74, %s75, %s76
    %p80 = pneg %p74
    %p81 = scmp.eq.s32.totalorder %s13, 1
    %p82 = por %p80, %p81
    %p83 = scmp.ne.s32.totalorder %s75, %s78
    %p84 = scmp.eq.s32.totalorder %s13, 0
    %p85 = por %p83, %p84
    %p86 = scmp.ne.s32.totalorder %s75, %s78
    %p87 = scmp.eq.s32.totalorder %s18, 1
    %p88 = por %p86, %p87
    %p89 = scmp.ne.s32.totalorder %s78, %s79
    %p90 = scmp.eq.s32.totalorder %s18, 0
    %p91 = por %p89, %p90
    %p92 = scmp.ne.s32.totalorder %s78, %s79
    %p93 = scmp.eq.s32.totalorder %s19, 1
    %p94 = por %p92, %p93
    %p96 = scmp.ne.s32.totalorder %s79, %s95
    %p97 = scmp.eq.s32.totalorder %s19, 0
    %p98 = por %p96, %p97
    %s99 = ssub.s32 %s13, %s20
    %p100 = scmp.eq.s32.totalorder %s99, 0
    %s102 = sadd.s32 %s101, 1
    %s103 = scalar_select %p100, %s101, %s102
    %p106 = pneg %p100
    %p107 = scmp.eq.s32.totalorder %s13, 1
    %p108 = por %p106, %p107
    %p109 = scmp.ne.s32.totalorder %s101, %s104
    %p110 = scmp.eq.s32.totalorder %s13, 0
    %p111 = por %p109, %p110
    %p112 = scmp.ne.s32.totalorder %s101, %s104
    %p113 = scmp.eq.s32.totalorder %s18, 1
    %p114 = por %p112, %p113
    %p115 = scmp.ne.s32.totalorder %s104, %s105
    %p116 = scmp.eq.s32.totalorder %s18, 0
    %p117 = por %p115, %p116
    %p118 = scmp.ne.s32.totalorder %s104, %s105
    %p119 = scmp.eq.s32.totalorder %s19, 1
    %p120 = por %p118, %p119
    %p122 = scmp.ne.s32.totalorder %s105, %s121
    %p123 = scmp.eq.s32.totalorder %s19, 0
    %p124 = por %p122, %p123
    %s126 = sadd.s32 %s125, 1
    %p129 = scmp.eq.s32.totalorder %s13, 1
    %p130 = scmp.ne.s32.totalorder %s125, %s127
    %p131 = scmp.eq.s32.totalorder %s13, 0
    %p132 = por %p130, %p131
    %p133 = scmp.ne.s32.totalorder %s125, %s127
    %p134 = scmp.eq.s32.totalorder %s18, 1
    %p135 = por %p133, %p134
    %p136 = scmp.ne.s32.totalorder %s127, %s128
    %p137 = scmp.eq.s32.totalorder %s18, 0
    %p138 = por %p136, %p137
    %p139 = scmp.ne.s32.totalorder %s127, %s128
    %p140 = scmp.eq.s32.totalorder %s19, 1
    %p141 = por %p139, %p140
    %p143 = scmp.ne.s32.totalorder %s128, %s142
    %p144 = scmp.eq.s32.totalorder %s19, 0
    %p145 = por %p143, %p144
    %s146 = ssub.s32 %s13, %s20
    %p147 = scmp.eq.s32.totalorder %s146, 0
    %s149 = sadd.s32 %s148, 1
    %s150 = scalar_select %p147, %s148, %s149
    %p153 = pneg %p147
    %p154 = scmp.eq.s32.totalorder %s13, 1
    %p155 = por %p153, %p154
    %p156 = scmp.ne.s32.totalorder %s148, %s151
    %p157 = scmp.eq.s32.totalorder %s13, 0
    %p158 = por %p156, %p157
    %p159 = scmp.ne.s32.totalorder %s148, %s151
    %p160 = scmp.eq.s32.totalorder %s18, 1
    %p161 = por %p159, %p160
    %p162 = scmp.ne.s32.totalorder %s151, %s152
    %p163 = scmp.eq.s32.totalorder %s18, 0
    %p164 = por %p162, %p163
    %p165 = scmp.ne.s32.totalorder %s151, %s152
    %p166 = scmp.eq.s32.totalorder %s19, 1
    %p167 = por %p165, %p166
    %p169 = scmp.ne.s32.totalorder %s152, %s168
    %p170 = scmp.eq.s32.totalorder %s19, 0
    %p171 = por %p169, %p170
    %s172 = ssub.s32 %s13, %s20
    %p173 = scmp.eq.s32.totalorder %s172, 0
    %s175 = sadd.s32 %s174, 1
    %s176 = scalar_select %p173, %s174, %s175
    %p179 = pneg %p173
    %p180 = scmp.eq.s32.totalorder %s13, 1
    %p181 = por %p179, %p180
    %p182 = scmp.ne.s32.totalorder %s174, %s177
    %p183 = scmp.eq.s32.totalorder %s13, 0
    %p184 = por %p182, %p183
    %p185 = scmp.ne.s32.totalorder %s174, %s177
    %p186 = scmp.eq.s32.totalorder %s18, 1
    %p187 = por %p185, %p186
    %p188 = scmp.ne.s32.totalorder %s177, %s178
    %p189 = scmp.eq.s32.totalorder %s18, 0
    %p190 = por %p188, %p189
    %p191 = scmp.ne.s32.totalorder %s177, %s178
    %p192 = scmp.eq.s32.totalorder %s19, 1
    %p193 = por %p191, %p192
    %p195 = scmp.ne.s32.totalorder %s178, %s194
    %p196 = scmp.eq.s32.totalorder %s19, 0
    %p197 = por %p195, %p196
    %p198 = scmp.le.s32.totalorder 1, %s13
    %p199 = scmp.lt.s32.totalorder %s13, 3
    %p200 = pnand %p198, %p199
    %p201 = pneg %p200
    // Predicated region
    $region9: #{murenn_direct_forward.15} parent=5 // pred_check
      _
    $region10: #{murenn_direct_forward.15} parent=5 // pred_check_branch
      %203 = sbr.rel (%p200) target = $region12
    $region11: #{murenn_direct_forward.15} parent=5 // pred_region
      %s204 = ssub.s32 %s13, 1
      // Predicated region
      $region13: #{murenn_direct_forward.15} parent=11 // pred_check
        %p205 = pneg %p138
      $region14: #{murenn_direct_forward.15} parent=11 // pred_check_branch
        %207 = sbr.rel (%p205) target = $region16
      $region15: #{murenn_direct_forward.15} parent=11 // pred_region
        _
      $region16: #{murenn_direct_forward.15} parent=11 // pred_fallthru
        _
    $region12: #{murenn_direct_forward.15} parent=5 // pred_fallthru
      _
    %p208 = scmp.lt.s32.totalorder %s13, 2
    // Predicated region
    $region17: #{murenn_direct_forward.15} parent=5 // pred_check
      %p209 = pneg %p208
    $region18: #{murenn_direct_forward.15} parent=5 // pred_check_branch
      %211 = sbr.rel (%p209) target = $region20
    $region19: #{murenn_direct_forward.15} parent=5 // pred_region
      // Predicated region
      $region21: #{murenn_direct_forward.15} parent=19 // pred_check
        %p212 = pneg %p33
      $region22: #{murenn_direct_forward.15} parent=19 // pred_check_branch
        %214 = sbr.rel (%p212) target = $region24
      $region23: #{murenn_direct_forward.15} parent=19 // pred_region
        %p215 = scmp.lt.s32.totalorder %s13, 1
        %s216 = scalar_select %p215, %s13, 1
        %s217 = smul.addr %s216, 4
        %s218 = scalar_lea.vmem %s0, %s217
      $region24: #{murenn_direct_forward.15} parent=19 // pred_fallthru
        _
      // Predicated region
      $region25: #{murenn_direct_forward.15} parent=19 // pred_check
        %p219 = pneg %p59
      $region26: #{murenn_direct_forward.15} parent=19 // pred_check_branch
        %221 = sbr.rel (%p219) target = $region28
      $region27: #{murenn_direct_forward.15} parent=19 // pred_region
        %p222 = scmp.lt.s32.totalorder %s13, 1
        %s223 = scalar_select %p222, %s13, 1
        %s224 = smul.addr %s223, 4
        %s225 = scalar_lea.vmem %s1, %s224
      $region28: #{murenn_direct_forward.15} parent=19 // pred_fallthru
        _
      // Predicated region
      $region29: #{murenn_direct_forward.15} parent=19 // pred_check
        %p226 = pneg %p85
      $region30: #{murenn_direct_forward.15} parent=19 // pred_check_branch
        %228 = sbr.rel (%p226) target = $region32
      $region31: #{murenn_direct_forward.15} parent=19 // pred_region
        %p229 = scmp.lt.s32.totalorder %s13, 1
        %s230 = scalar_select %p229, %s13, 1
        %s231 = smul.addr %s230, 4
        %s232 = scalar_lea.vmem %s2, %s231
      $region32: #{murenn_direct_forward.15} parent=19 // pred_fallthru
        _
      // Predicated region
      $region33: #{murenn_direct_forward.15} parent=19 // pred_check
        %p233 = pneg %p111
      $region34: #{murenn_direct_forward.15} parent=19 // pred_check_branch
        %235 = sbr.rel (%p233) target = $region36
      $region35: #{murenn_direct_forward.15} parent=19 // pred_region
        %p236 = scmp.lt.s32.totalorder %s13, 1
        %s237 = scalar_select %p236, %s13, 1
        %s238 = smul.addr %s237, 4
        %s239 = scalar_lea.vmem %s3, %s238
      $region36: #{murenn_direct_forward.15} parent=19 // pred_fallthru
        _
    $region20: #{murenn_direct_forward.15} parent=5 // pred_fallthru
      _
    %p240 = scmp.le.s32.totalorder 1, %s13
    %p241 = scmp.lt.s32.totalorder %s13, 3
    %p242 = pnand %p240, %p241
    %p243 = pneg %p242
    // Predicated region
    $region37: #{murenn_direct_forward.15} parent=5 // pred_check
      _
    $region38: #{murenn_direct_forward.15} parent=5 // pred_check_branch
      %245 = sbr.rel (%p242) target = $region40
    $region39: #{murenn_direct_forward.15} parent=5 // pred_region
      %s246 = ssub.s32 %s13, 1
      %p247 = scmp.lt.s32.totalorder %s18, 1
      %s248 = scalar_select %p247, %s18, 1
      %s249 = smul.addr %s248, 4
      %s250 = scalar_lea.vmem %s0, %s249
      %p251 = pneg %p39
      %p252 = pneg %p36
      %p253 = scmp.lt.s32.totalorder %s18, 1
      %s254 = scalar_select %p253, %s18, 1
      %s255 = smul.addr %s254, 4
      %s256 = scalar_lea.vmem %s1, %s255
      %p257 = pneg %p65
      %p258 = pneg %p62
      %p259 = scmp.lt.s32.totalorder %s18, 1
      %s260 = scalar_select %p259, %s18, 1
      %s261 = smul.addr %s260, 4
      %s262 = scalar_lea.vmem %s2, %s261
      %p263 = pneg %p91
      %p264 = pneg %p88
      %p265 = scmp.lt.s32.totalorder %s18, 1
      %s266 = scalar_select %p265, %s18, 1
      %s267 = smul.addr %s266, 4
      %s268 = scalar_lea.vmem %s3, %s267
      %p269 = pneg %p117
      %p270 = pneg %p114
      %p271 = pneg %p138
      %p272 = pneg %p135
      %p273 = pneg %p164
      %p274 = pneg %p161
      %p275 = scmp.lt.s32.totalorder %s18, 1
      %s276 = scalar_select %p275, %s18, 1
      %s277 = smul.addr %s276, 3
      %s278 = smul.addr %s277, 4
      %s279 = scalar_lea.vmem %s5, %s278
      %p280 = pneg %p190
      %p281 = pneg %p187
      %p282 = scmp.lt.s32.totalorder %s18, 1
      %s283 = scalar_select %p282, %s18, 1
      %s284 = smul.addr %s283, 3
      %s285 = smul.addr %s284, 4
      %s286 = scalar_lea.vmem %s6, %s285
      %p287 = scmp.lt.s32.totalorder %s18, 1
      %s288 = scalar_select %p287, %s18, 1
      %s289 = smul.addr %s288, 4
      %s290 = scalar_lea.vmem %s0, %s289
      %p291 = scmp.lt.s32.totalorder %s18, 1
      %s292 = scalar_select %p291, %s18, 1
      %s293 = smul.addr %s292, 4
      %s294 = scalar_lea.vmem %s1, %s293
      %p295 = scmp.lt.s32.totalorder %s18, 1
      %s296 = scalar_select %p295, %s18, 1
      %s297 = smul.addr %s296, 4
      %s298 = scalar_lea.vmem %s2, %s297
      %p299 = scmp.lt.s32.totalorder %s18, 1
      %s300 = scalar_select %p299, %s18, 1
      %s301 = smul.addr %s300, 4
      %s302 = scalar_lea.vmem %s3, %s301
      %p303 = scmp.lt.s32.totalorder %s18, 1
      %s304 = scalar_select %p303, %s18, 1
      %s305 = smul.addr %s304, 3
      %s306 = smul.addr %s305, 4
      %s307 = scalar_lea.vmem %s5, %s306
      %p308 = scmp.lt.s32.totalorder %s18, 1
      %s309 = scalar_select %p308, %s18, 1
      %s310 = smul.addr %s309, 3
      %s311 = smul.addr %s310, 4
      %s312 = scalar_lea.vmem %s6, %s311
      %v313 = vld [vmem:[%s4] sm:$0xf]
      %v314 = vld [vmem:[%s4 + $0x4] sm:$0xf]
      %v315 = vld [vmem:[%s4 + $0x8] sm:$0xf]
      %v316 = vld [vmem:[%s290] sm:$0xf]
      %318 = vset.pattern.permute.xlu0 0
      %319 = vperm.xlu0 %318, %v313
      %v320 = vpop.permute.xlu0 %319
      %323 = vset.pattern.permute.xlu0 0
      %324 = vperm.xlu0 %323, %v314
      %v325 = vpop.permute.xlu0 %324
      %328 = vset.pattern.permute.xlu0 0
      %329 = vperm.xlu0 %328, %v315
      %v330 = vpop.permute.xlu0 %329
      %v332 = vmul.f32 %v320, %v316
      %v333 = vmul.f32 %v325, %v316
      %v334 = vmul.f32 %v330, %v316
      %v335 = vadd.f32 %v332, 0.0
      %v336 = vadd.f32 %v333, 0.0
      %v337 = vadd.f32 %v334, 0.0
      %v338 = vld [vmem:[%s298] sm:$0xf]
      %v339 = vmul.f32 %v320, %v338
      %v340 = vmul.f32 %v325, %v338
      %v341 = vmul.f32 %v330, %v338
      %v342 = vadd.f32 %v339, 0.0
      %v343 = vadd.f32 %v340, 0.0
      %v344 = vadd.f32 %v341, 0.0
      %v345 = vld [vmem:[%s294] sm:$0xf]
      %v346 = vmul.f32 %v320, %v345
      %v347 = vmul.f32 %v325, %v345
      %v348 = vmul.f32 %v330, %v345
      %v349 = vadd.f32 %v346, 0.0
      %v350 = vadd.f32 %v347, 0.0
      %v351 = vadd.f32 %v348, 0.0
      %v352 = vld [vmem:[%s302] sm:$0xf]
      %v353 = vmul.f32 %v320, %v352
      %v354 = vmul.f32 %v325, %v352
      %v355 = vmul.f32 %v330, %v352
      %v356 = vadd.f32 %v353, 0.0
      %v357 = vadd.f32 %v354, 0.0
      %v358 = vadd.f32 %v355, 0.0
      %359 = vset.pattern.permute.xlu0 1
      %360 = vperm.xlu0 %359, %v313
      %v361 = vpop.permute.xlu0 %360
      %363 = vset.pattern.permute.xlu0 1
      %364 = vperm.xlu0 %363, %v314
      %v365 = vpop.permute.xlu0 %364
      %367 = vset.pattern.permute.xlu0 1
      %368 = vperm.xlu0 %367, %v315
      %v369 = vpop.permute.xlu0 %368
      %v371 = vmul.f32 %v361, %v345
      %v372 = vmul.f32 %v365, %v345
      %v373 = vmul.f32 %v369, %v345
      %v374 = vadd.f32 %v335, %v371
      %v375 = vadd.f32 %v336, %v372
      %v376 = vadd.f32 %v337, %v373
      %v377 = vmul.f32 %v361, %v352
      %v378 = vmul.f32 %v365, %v352
      %v379 = vmul.f32 %v369, %v352
      %v380 = vadd.f32 %v342, %v377
      %v381 = vadd.f32 %v343, %v378
      %v382 = vadd.f32 %v344, %v379
      %v383 = vmul.f32 %v361, %v316
      %v384 = vmul.f32 %v365, %v316
      %v385 = vmul.f32 %v369, %v316
      %389 = vrot.lane.b32.xlu0 %v383, 127
      %v390 = vpop.permute.xlu0 %389
      %391 = vrot.lane.b32.xlu0 %v384, 127
      %v392 = vpop.permute.xlu0 %391
      %393 = vrot.lane.b32.xlu0 %v385, 127
      %v394 = vpop.permute.xlu0 %393
      %v398 = vadd.f32 %v349, %v390
      %v399 = vadd.f32 %v350, %v392
      %v400 = vadd.f32 %v351, %v394
      %v401 = vmul.f32 %v361, %v338
      %v402 = vmul.f32 %v365, %v338
      %v403 = vmul.f32 %v369, %v338
      %407 = vrot.lane.b32.xlu0 %v401, 127
      %v408 = vpop.permute.xlu0 %407
      %409 = vrot.lane.b32.xlu0 %v402, 127
      %v410 = vpop.permute.xlu0 %409
      %411 = vrot.lane.b32.xlu0 %v403, 127
      %v412 = vpop.permute.xlu0 %411
      %v416 = vadd.f32 %v356, %v408
      %v417 = vadd.f32 %v357, %v410
      %v418 = vadd.f32 %v358, %v412
      %419 = vset.pattern.permute.xlu0 2
      %420 = vperm.xlu0 %419, %v313
      %v421 = vpop.permute.xlu0 %420
      %423 = vset.pattern.permute.xlu0 2
      %424 = vperm.xlu0 %423, %v314
      %v425 = vpop.permute.xlu0 %424
      %427 = vset.pattern.permute.xlu0 2
      %428 = vperm.xlu0 %427, %v315
      %v429 = vpop.permute.xlu0 %428
      %v431 = vmul.f32 %v421, %v316
      %v432 = vmul.f32 %v425, %v316
      %v433 = vmul.f32 %v429, %v316
      %437 = vrot.lane.b32.xlu0 %v431, 127
      %v438 = vpop.permute.xlu0 %437
      %439 = vrot.lane.b32.xlu0 %v432, 127
      %v440 = vpop.permute.xlu0 %439
      %441 = vrot.lane.b32.xlu0 %v433, 127
      %v442 = vpop.permute.xlu0 %441
      %v446 = vadd.f32 %v374, %v438
      %v447 = vadd.f32 %v375, %v440
      %v448 = vadd.f32 %v376, %v442
      %v449 = vmul.f32 %v421, %v338
      %v450 = vmul.f32 %v425, %v338
      %v451 = vmul.f32 %v429, %v338
      %455 = vrot.lane.b32.xlu0 %v449, 127
      %v456 = vpop.permute.xlu0 %455
      %457 = vrot.lane.b32.xlu0 %v450, 127
      %v458 = vpop.permute.xlu0 %457
      %459 = vrot.lane.b32.xlu0 %v451, 127
      %v460 = vpop.permute.xlu0 %459
      %v464 = vadd.f32 %v380, %v456
      %v465 = vadd.f32 %v381, %v458
      %v466 = vadd.f32 %v382, %v460
      %v467 = vmul.f32 %v421, %v345
      %v468 = vmul.f32 %v425, %v345
      %v469 = vmul.f32 %v429, %v345
      %473 = vrot.lane.b32.xlu0 %v467, 127
      %v474 = vpop.permute.xlu0 %473
      %475 = vrot.lane.b32.xlu0 %v468, 127
      %v476 = vpop.permute.xlu0 %475
      %477 = vrot.lane.b32.xlu0 %v469, 127
      %v478 = vpop.permute.xlu0 %477
      %v482 = vadd.f32 %v398, %v474
      %v483 = vadd.f32 %v399, %v476
      %v484 = vadd.f32 %v400, %v478
      %v485 = vmul.f32 %v421, %v352
      %v486 = vmul.f32 %v425, %v352
      %v487 = vmul.f32 %v429, %v352
      %491 = vrot.lane.b32.xlu0 %v485, 127
      %v492 = vpop.permute.xlu0 %491
      %493 = vrot.lane.b32.xlu0 %v486, 127
      %v494 = vpop.permute.xlu0 %493
      %495 = vrot.lane.b32.xlu0 %v487, 127
      %v496 = vpop.permute.xlu0 %495
      %v500 = vadd.f32 %v416, %v492
      %v501 = vadd.f32 %v417, %v494
      %v502 = vadd.f32 %v418, %v496
      %503 = vset.pattern.permute.xlu0 3
      %504 = vperm.xlu0 %503, %v313
      %v505 = vpop.permute.xlu0 %504
      %507 = vset.pattern.permute.xlu0 3
      %508 = vperm.xlu0 %507, %v314
      %v509 = vpop.permute.xlu0 %508
      %511 = vset.pattern.permute.xlu0 3
      %512 = vperm.xlu0 %511, %v315
      %v513 = vpop.permute.xlu0 %512
      %v515 = vmul.f32 %v505, %v345
      %v516 = vmul.f32 %v509, %v345
      %v517 = vmul.f32 %v513, %v345
      %521 = vrot.lane.b32.xlu0 %v515, 127
      %v522 = vpop.permute.xlu0 %521
      %523 = vrot.lane.b32.xlu0 %v516, 127
      %v524 = vpop.permute.xlu0 %523
      %525 = vrot.lane.b32.xlu0 %v517, 127
      %v526 = vpop.permute.xlu0 %525
      %v530 = vadd.f32 %v446, %v522
      %v531 = vadd.f32 %v447, %v524
      %v532 = vadd.f32 %v448, %v526
      %v533 = vmul.f32 %v505, %v352
      %v534 = vmul.f32 %v509, %v352
      %v535 = vmul.f32 %v513, %v352
      %539 = vrot.lane.b32.xlu0 %v533, 127
      %v540 = vpop.permute.xlu0 %539
      %541 = vrot.lane.b32.xlu0 %v534, 127
      %v542 = vpop.permute.xlu0 %541
      %543 = vrot.lane.b32.xlu0 %v535, 127
      %v544 = vpop.permute.xlu0 %543
      %v548 = vadd.f32 %v464, %v540
      %v549 = vadd.f32 %v465, %v542
      %v550 = vadd.f32 %v466, %v544
      %v551 = vmul.f32 %v505, %v316
      %v552 = vmul.f32 %v509, %v316
      %v553 = vmul.f32 %v513, %v316
      %557 = vrot.lane.b32.xlu0 %v551, 126
      %v558 = vpop.permute.xlu0 %557
      %559 = vrot.lane.b32.xlu0 %v552, 126
      %v560 = vpop.permute.xlu0 %559
      %561 = vrot.lane.b32.xlu0 %v553, 126
      %v562 = vpop.permute.xlu0 %561
      %v566 = vadd.f32 %v482, %v558
      %v567 = vadd.f32 %v483, %v560
      %v568 = vadd.f32 %v484, %v562
      %v569 = vmul.f32 %v505, %v338
      %v570 = vmul.f32 %v509, %v338
      %v571 = vmul.f32 %v513, %v338
      %575 = vrot.lane.b32.xlu0 %v569, 126
      %v576 = vpop.permute.xlu0 %575
      %577 = vrot.lane.b32.xlu0 %v570, 126
      %v578 = vpop.permute.xlu0 %577
      %579 = vrot.lane.b32.xlu0 %v571, 126
      %v580 = vpop.permute.xlu0 %579
      %v584 = vadd.f32 %v500, %v576
      %v585 = vadd.f32 %v501, %v578
      %v586 = vadd.f32 %v502, %v580
      %587 = vset.pattern.permute.xlu0 4
      %588 = vperm.xlu0 %587, %v313
      %v589 = vpop.permute.xlu0 %588
      %591 = vset.pattern.permute.xlu0 4
      %592 = vperm.xlu0 %591, %v314
      %v593 = vpop.permute.xlu0 %592
      %595 = vset.pattern.permute.xlu0 4
      %596 = vperm.xlu0 %595, %v315
      %v597 = vpop.permute.xlu0 %596
      %v599 = vmul.f32 %v589, %v316
      %v600 = vmul.f32 %v593, %v316
      %v601 = vmul.f32 %v597, %v316
      %605 = vrot.lane.b32.xlu0 %v599, 126
      %v606 = vpop.permute.xlu0 %605
      %607 = vrot.lane.b32.xlu0 %v600, 126
      %v608 = vpop.permute.xlu0 %607
      %609 = vrot.lane.b32.xlu0 %v601, 126
      %v610 = vpop.permute.xlu0 %609
      %v614 = vadd.f32 %v530, %v606
      %v615 = vadd.f32 %v531, %v608
      %v616 = vadd.f32 %v532, %v610
      %v617 = vmul.f32 %v589, %v338
      %v618 = vmul.f32 %v593, %v338
      %v619 = vmul.f32 %v597, %v338
      %623 = vrot.lane.b32.xlu0 %v617, 126
      %v624 = vpop.permute.xlu0 %623
      %625 = vrot.lane.b32.xlu0 %v618, 126
      %v626 = vpop.permute.xlu0 %625
      %627 = vrot.lane.b32.xlu0 %v619, 126
      %v628 = vpop.permute.xlu0 %627
      %v632 = vadd.f32 %v548, %v624
      %v633 = vadd.f32 %v549, %v626
      %v634 = vadd.f32 %v550, %v628
      %v635 = vmul.f32 %v589, %v345
      %v636 = vmul.f32 %v593, %v345
      %v637 = vmul.f32 %v597, %v345
      %641 = vrot.lane.b32.xlu0 %v635, 126
      %v642 = vpop.permute.xlu0 %641
      %643 = vrot.lane.b32.xlu0 %v636, 126
      %v644 = vpop.permute.xlu0 %643
      %645 = vrot.lane.b32.xlu0 %v637, 126
      %v646 = vpop.permute.xlu0 %645
      %v650 = vadd.f32 %v566, %v642
      %v651 = vadd.f32 %v567, %v644
      %v652 = vadd.f32 %v568, %v646
      %v653 = vmul.f32 %v589, %v352
      %v654 = vmul.f32 %v593, %v352
      %v655 = vmul.f32 %v597, %v352
      %659 = vrot.lane.b32.xlu0 %v653, 126
      %v660 = vpop.permute.xlu0 %659
      %661 = vrot.lane.b32.xlu0 %v654, 126
      %v662 = vpop.permute.xlu0 %661
      %663 = vrot.lane.b32.xlu0 %v655, 126
      %v664 = vpop.permute.xlu0 %663
      %v668 = vadd.f32 %v584, %v660
      %v669 = vadd.f32 %v585, %v662
      %v670 = vadd.f32 %v586, %v664
      %671 = vset.pattern.permute.xlu0 5
      %672 = vperm.xlu0 %671, %v313
      %v673 = vpop.permute.xlu0 %672
      %675 = vset.pattern.permute.xlu0 5
      %676 = vperm.xlu0 %675, %v314
      %v677 = vpop.permute.xlu0 %676
      %679 = vset.pattern.permute.xlu0 5
      %680 = vperm.xlu0 %679, %v315
      %v681 = vpop.permute.xlu0 %680
      %v683 = vmul.f32 %v673, %v345
      %v684 = vmul.f32 %v677, %v345
      %v685 = vmul.f32 %v681, %v345
      %689 = vrot.lane.b32.xlu0 %v683, 126
      %v690 = vpop.permute.xlu0 %689
      %691 = vrot.lane.b32.xlu0 %v684, 126
      %v692 = vpop.permute.xlu0 %691
      %693 = vrot.lane.b32.xlu0 %v685, 126
      %v694 = vpop.permute.xlu0 %693
      %v698 = vadd.f32 %v614, %v690
      %v699 = vadd.f32 %v615, %v692
      %v700 = vadd.f32 %v616, %v694
      %v701 = vmul.f32 %v673, %v352
      %v702 = vmul.f32 %v677, %v352
      %v703 = vmul.f32 %v681, %v352
      %707 = vrot.lane.b32.xlu0 %v701, 126
      %v708 = vpop.permute.xlu0 %707
      %709 = vrot.lane.b32.xlu0 %v702, 126
      %v710 = vpop.permute.xlu0 %709
      %711 = vrot.lane.b32.xlu0 %v703, 126
      %v712 = vpop.permute.xlu0 %711
      %v716 = vadd.f32 %v632, %v708
      %v717 = vadd.f32 %v633, %v710
      %v718 = vadd.f32 %v634, %v712
      %v719 = vmul.f32 %v673, %v316
      %v720 = vmul.f32 %v677, %v316
      %v721 = vmul.f32 %v681, %v316
      %725 = vrot.lane.b32.xlu0 %v719, 125
      %v726 = vpop.permute.xlu0 %725
      %727 = vrot.lane.b32.xlu0 %v720, 125
      %v728 = vpop.permute.xlu0 %727
      %729 = vrot.lane.b32.xlu0 %v721, 125
      %v730 = vpop.permute.xlu0 %729
      %v734 = vadd.f32 %v650, %v726
      %v735 = vadd.f32 %v651, %v728
      %v736 = vadd.f32 %v652, %v730
      %v737 = vmul.f32 %v673, %v338
      %v738 = vmul.f32 %v677, %v338
      %v739 = vmul.f32 %v681, %v338
      %743 = vrot.lane.b32.xlu0 %v737, 125
      %v744 = vpop.permute.xlu0 %743
      %745 = vrot.lane.b32.xlu0 %v738, 125
      %v746 = vpop.permute.xlu0 %745
      %747 = vrot.lane.b32.xlu0 %v739, 125
      %v748 = vpop.permute.xlu0 %747
      %v752 = vadd.f32 %v668, %v744
      %v753 = vadd.f32 %v669, %v746
      %v754 = vadd.f32 %v670, %v748
      %755 = vset.pattern.permute.xlu0 6
      %756 = vperm.xlu0 %755, %v313
      %v757 = vpop.permute.xlu0 %756
      %759 = vset.pattern.permute.xlu0 6
      %760 = vperm.xlu0 %759, %v314
      %v761 = vpop.permute.xlu0 %760
      %763 = vset.pattern.permute.xlu0 6
      %764 = vperm.xlu0 %763, %v315
      %v765 = vpop.permute.xlu0 %764
      %v767 = vmul.f32 %v757, %v316
      %v768 = vmul.f32 %v761, %v316
      %v769 = vmul.f32 %v765, %v316
      %773 = vrot.lane.b32.xlu0 %v767, 125
      %v774 = vpop.permute.xlu0 %773
      %775 = vrot.lane.b32.xlu0 %v768, 125
      %v776 = vpop.permute.xlu0 %775
      %777 = vrot.lane.b32.xlu0 %v769, 125
      %v778 = vpop.permute.xlu0 %777
      %v782 = vadd.f32 %v698, %v774
      %v783 = vadd.f32 %v699, %v776
      %v784 = vadd.f32 %v700, %v778
      %v785 = vmul.f32 %v757, %v338
      %v786 = vmul.f32 %v761, %v338
      %v787 = vmul.f32 %v765, %v338
      %791 = vrot.lane.b32.xlu0 %v785, 125
      %v792 = vpop.permute.xlu0 %791
      %793 = vrot.lane.b32.xlu0 %v786, 125
      %v794 = vpop.permute.xlu0 %793
      %795 = vrot.lane.b32.xlu0 %v787, 125
      %v796 = vpop.permute.xlu0 %795
      %v800 = vadd.f32 %v716, %v792
      %v801 = vadd.f32 %v717, %v794
      %v802 = vadd.f32 %v718, %v796
      %v803 = vmul.f32 %v757, %v345
      %v804 = vmul.f32 %v761, %v345
      %v805 = vmul.f32 %v765, %v345
      %809 = vrot.lane.b32.xlu0 %v803, 125
      %v810 = vpop.permute.xlu0 %809
      %811 = vrot.lane.b32.xlu0 %v804, 125
      %v812 = vpop.permute.xlu0 %811
      %813 = vrot.lane.b32.xlu0 %v805, 125
      %v814 = vpop.permute.xlu0 %813
      %v818 = vadd.f32 %v734, %v810
      %v819 = vadd.f32 %v735, %v812
      %v820 = vadd.f32 %v736, %v814
      %v821 = vmul.f32 %v757, %v352
      %v822 = vmul.f32 %v761, %v352
      %v823 = vmul.f32 %v765, %v352
      %827 = vrot.lane.b32.xlu0 %v821, 125
      %v828 = vpop.permute.xlu0 %827
      %829 = vrot.lane.b32.xlu0 %v822, 125
      %v830 = vpop.permute.xlu0 %829
      %831 = vrot.lane.b32.xlu0 %v823, 125
      %v832 = vpop.permute.xlu0 %831
      %v836 = vadd.f32 %v752, %v828
      %v837 = vadd.f32 %v753, %v830
      %v838 = vadd.f32 %v754, %v832
      %v839 = vmul.f32 %v782, %v782
      %v840 = vmul.f32 %v783, %v783
      %v841 = vmul.f32 %v784, %v784
      %v842 = vmul.f32 %v800, %v800
      %v843 = vmul.f32 %v801, %v801
      %v844 = vmul.f32 %v802, %v802
      %v845 = vadd.f32 %v839, %v842
      %v846 = vadd.f32 %v840, %v843
      %v847 = vadd.f32 %v841, %v844
      %v848 = vrsqrt.pop %v845
      %v849 = vmul.f32 %v845, %v848
      %vm850 = vcmp.eq.f32.partialorder %v845, inf
      %v851 = vsel %vm850, %v845, %v849
      %vm852 = vcmp.eq.f32.partialorder %v845, 0.0
      %v853 = vand.u32 %v845, 2147483648
      %v854 = vsel %vm852, %v853, %v851
      %v855 = vrsqrt.pop %v846
      %v856 = vmul.f32 %v846, %v855
      %vm857 = vcmp.eq.f32.partialorder %v846, inf
      %v858 = vsel %vm857, %v846, %v856
      %vm859 = vcmp.eq.f32.partialorder %v846, 0.0
      %v860 = vand.u32 %v846, 2147483648
      %v861 = vsel %vm859, %v860, %v858
      %v862 = vrsqrt.pop %v847
      %v863 = vmul.f32 %v847, %v862
      %vm864 = vcmp.eq.f32.partialorder %v847, inf
      %v865 = vsel %vm864, %v847, %v863
      %vm866 = vcmp.eq.f32.partialorder %v847, 0.0
      %v867 = vand.u32 %v847, 2147483648
      %v868 = vsel %vm866, %v867, %v865
      %v869 = vmul.f32 %v818, %v818
      %v870 = vmul.f32 %v819, %v819
      %v871 = vmul.f32 %v820, %v820
      %v872 = vmul.f32 %v836, %v836
      %v873 = vmul.f32 %v837, %v837
      %v874 = vmul.f32 %v838, %v838
      %v875 = vadd.f32 %v869, %v872
      %v876 = vadd.f32 %v870, %v873
      %v877 = vadd.f32 %v871, %v874
      %v878 = vrsqrt.pop %v875
      %v879 = vmul.f32 %v875, %v878
      %vm880 = vcmp.eq.f32.partialorder %v875, inf
      %v881 = vsel %vm880, %v875, %v879
      %vm882 = vcmp.eq.f32.partialorder %v875, 0.0
      %v883 = vand.u32 %v875, 2147483648
      %v884 = vsel %vm882, %v883, %v881
      %v885 = vrsqrt.pop %v876
      %v886 = vmul.f32 %v876, %v885
      %vm887 = vcmp.eq.f32.partialorder %v876, inf
      %v888 = vsel %vm887, %v876, %v886
      %vm889 = vcmp.eq.f32.partialorder %v876, 0.0
      %v890 = vand.u32 %v876, 2147483648
      %v891 = vsel %vm889, %v890, %v888
      %v892 = vrsqrt.pop %v877
      %v893 = vmul.f32 %v877, %v892
      %vm894 = vcmp.eq.f32.partialorder %v877, inf
      %v895 = vsel %vm894, %v877, %v893
      %vm896 = vcmp.eq.f32.partialorder %v877, 0.0
      %v897 = vand.u32 %v877, 2147483648
      %v898 = vsel %vm896, %v897, %v895
      %902 = vrot.lane.b32.xlu0 %v854, 1
      %v903 = vpop.permute.xlu0 %902
      %904 = vrot.lane.b32.xlu0 %v861, 1
      %v905 = vpop.permute.xlu0 %904
      %906 = vrot.lane.b32.xlu0 %v868, 1
      %v907 = vpop.permute.xlu0 %906
      %vm911 = vcmask 68616
      %912 = vst.msk [vmem:[#allocation2] sm:$0xf] %vm911, %v903
      %913 = vst.msk [vmem:[#allocation2 + $0x4] sm:$0xf] %vm911, %v905
      %914 = vst.msk [vmem:[#allocation2 + $0x8] sm:$0xf] %vm911, %v907
      %918 = vrot.lane.b32.xlu0 %v884, 1
      %v919 = vpop.permute.xlu0 %918
      %920 = vrot.lane.b32.xlu0 %v891, 1
      %v921 = vpop.permute.xlu0 %920
      %922 = vrot.lane.b32.xlu0 %v898, 1
      %v923 = vpop.permute.xlu0 %922
      %927 = vst.msk [vmem:[#allocation3] sm:$0xf] %vm911, %v919
      %928 = vst.msk [vmem:[#allocation3 + $0x4] sm:$0xf] %vm911, %v921
      %929 = vst.msk [vmem:[#allocation3 + $0x8] sm:$0xf] %vm911, %v923
      %vm930 = vcmask 3072
      %931 = vst.msk [vmem:[#allocation2] sm:$0xf] %vm930, %v884
      %932 = vst.msk [vmem:[#allocation2 + $0x4] sm:$0xf] %vm930, %v891
      %933 = vst.msk [vmem:[#allocation2 + $0x8] sm:$0xf] %vm930, %v898
      %934 = vst.msk [vmem:[#allocation3] sm:$0xf] %vm930, %v854
      %935 = vst.msk [vmem:[#allocation3 + $0x4] sm:$0xf] %vm930, %v861
      %936 = vst.msk [vmem:[#allocation3 + $0x8] sm:$0xf] %vm930, %v868
      %937 = vrot.lane.b32.xlu0 %v884, 2
      %v938 = vpop.permute.xlu0 %937
      %939 = vrot.lane.b32.xlu0 %v891, 2
      %v940 = vpop.permute.xlu0 %939
      %941 = vrot.lane.b32.xlu0 %v898, 2
      %v942 = vpop.permute.xlu0 %941
      %vm946 = vcmask 76872
      %947 = vst.msk [vmem:[#allocation2] sm:$0xf] %vm946, %v938
      %948 = vst.msk [vmem:[#allocation2 + $0x4] sm:$0xf] %vm946, %v940
      %949 = vst.msk [vmem:[#allocation2 + $0x8] sm:$0xf] %vm946, %v942
      %950 = vrot.lane.b32.xlu0 %v854, 2
      %v951 = vpop.permute.xlu0 %950
      %952 = vrot.lane.b32.xlu0 %v861, 2
      %v953 = vpop.permute.xlu0 %952
      %954 = vrot.lane.b32.xlu0 %v868, 2
      %v955 = vpop.permute.xlu0 %954
      %959 = vst.msk [vmem:[#allocation3] sm:$0xf] %vm946, %v951
      %960 = vst.msk [vmem:[#allocation3 + $0x4] sm:$0xf] %vm946, %v953
      %961 = vst.msk [vmem:[#allocation3 + $0x8] sm:$0xf] %vm946, %v955
      %v962 = vld [vmem:[#allocation2] sm:$0xf]
      %v963 = vld [vmem:[#allocation2 + $0x4] sm:$0xf]
      %v964 = vld [vmem:[#allocation2 + $0x8] sm:$0xf]
      %v965 = vld [vmem:[#allocation3] sm:$0xf]
      %v966 = vld [vmem:[#allocation3 + $0x4] sm:$0xf]
      %v967 = vld [vmem:[#allocation3 + $0x8] sm:$0xf]
      %v968 = vmul.f32 %v962, -0.05
      %v969 = vmul.f32 %v963, -0.05
      %v970 = vmul.f32 %v964, -0.05
      %v971 = vmul.f32 %v965, 0.25
      %v972 = vmul.f32 %v966, 0.25
      %v973 = vmul.f32 %v967, 0.25
      %v974 = vadd.f32 %v968, %v971
      %v975 = vadd.f32 %v969, %v972
      %v976 = vadd.f32 %v970, %v973
      %v977 = vmul.f32 %v854, 0.6
      %v978 = vmul.f32 %v861, 0.6
      %v979 = vmul.f32 %v868, 0.6
      %v980 = vadd.f32 %v974, %v977
      %v981 = vadd.f32 %v975, %v978
      %v982 = vadd.f32 %v976, %v979
      %v983 = vmul.f32 %v884, 0.25
      %v984 = vmul.f32 %v891, 0.25
      %v985 = vmul.f32 %v898, 0.25
      %v986 = vadd.f32 %v980, %v983
      %v987 = vadd.f32 %v981, %v984
      %v988 = vadd.f32 %v982, %v985
      %992 = vrot.lane.b32.xlu0 %v968, 126
      %v993 = vpop.permute.xlu0 %992
      %994 = vrot.lane.b32.xlu0 %v969, 126
      %v995 = vpop.permute.xlu0 %994
      %996 = vrot.lane.b32.xlu0 %v970, 126
      %v997 = vpop.permute.xlu0 %996
      %v1001 = vadd.f32 %v986, %v993
      %v1002 = vadd.f32 %v987, %v995
      %v1003 = vadd.f32 %v988, %v997
      %vm1004 = vcmask 60416
      %1005 = vst.msk [vmem:[%s307] sm:$0xf] %vm1004, %v1001
      %1006 = vst.msk [vmem:[%s307 + $0x4] sm:$0xf] %vm1004, %v1002
      %1007 = vst.msk [vmem:[%s307 + $0x8] sm:$0xf] %vm1004, %v1003
      %v1008 = vmul.f32 %v965, -0.05
      %v1009 = vmul.f32 %v966, -0.05
      %v1010 = vmul.f32 %v967, -0.05
      %v1011 = vmul.f32 %v854, 0.25
      %v1012 = vmul.f32 %v861, 0.25
      %v1013 = vmul.f32 %v868, 0.25
      %v1014 = vadd.f32 %v1008, %v1011
      %v1015 = vadd.f32 %v1009, %v1012
      %v1016 = vadd.f32 %v1010, %v1013
      %v1017 = vmul.f32 %v884, 0.6
      %v1018 = vmul.f32 %v891, 0.6
      %v1019 = vmul.f32 %v898, 0.6
      %v1020 = vadd.f32 %v1014, %v1017
      %v1021 = vadd.f32 %v1015, %v1018
      %v1022 = vadd.f32 %v1016, %v1019
      %v1023 = vmul.f32 %v962, 0.25
      %v1024 = vmul.f32 %v963, 0.25
      %v1025 = vmul.f32 %v964, 0.25
      %1029 = vrot.lane.b32.xlu0 %v1023, 126
      %v1030 = vpop.permute.xlu0 %1029
      %1031 = vrot.lane.b32.xlu0 %v1024, 126
      %v1032 = vpop.permute.xlu0 %1031
      %1033 = vrot.lane.b32.xlu0 %v1025, 126
      %v1034 = vpop.permute.xlu0 %1033
      %v1038 = vadd.f32 %v1020, %v1030
      %v1039 = vadd.f32 %v1021, %v1032
      %v1040 = vadd.f32 %v1022, %v1034
      %1044 = vrot.lane.b32.xlu0 %v1008, 126
      %v1045 = vpop.permute.xlu0 %1044
      %1046 = vrot.lane.b32.xlu0 %v1009, 126
      %v1047 = vpop.permute.xlu0 %1046
      %1048 = vrot.lane.b32.xlu0 %v1010, 126
      %v1049 = vpop.permute.xlu0 %1048
      %v1053 = vadd.f32 %v1038, %v1045
      %v1054 = vadd.f32 %v1039, %v1047
      %v1055 = vadd.f32 %v1040, %v1049
      %1056 = vst.msk [vmem:[%s312] sm:$0xf] %vm1004, %v1053
      %1057 = vst.msk [vmem:[%s312 + $0x4] sm:$0xf] %vm1004, %v1054
      %1058 = vst.msk [vmem:[%s312 + $0x8] sm:$0xf] %vm1004, %v1055
      %p1059 = scmp.lt.s32.totalorder %s18, 1
      %s1060 = scalar_select %p1059, %s18, 1
      %s1061 = smul.addr %s1060, 3
      %s1062 = smul.addr %s1061, 4
      %s1063 = scalar_lea.vmem %s5, %s1062
      %p1064 = scmp.lt.s32.totalorder %s18, 1
      %s1065 = scalar_select %p1064, %s18, 1
      %s1066 = smul.addr %s1065, 3
      %s1067 = smul.addr %s1066, 4
      %s1068 = scalar_lea.vmem %s6, %s1067
      // Predicated region
      $region41: #{murenn_direct_forward.15} parent=39 // pred_check
        %p1069 = pneg %p161
      $region42: #{murenn_direct_forward.15} parent=39 // pred_check_branch
        %1071 = sbr.rel (%p1069) target = $region44
      $region43: #{murenn_direct_forward.15} parent=39 // pred_region
        _
      $region44: #{murenn_direct_forward.15} parent=39 // pred_fallthru
        _
      // Predicated region
      $region45: #{murenn_direct_forward.15} parent=39 // pred_check
        %p1072 = pneg %p187
      $region46: #{murenn_direct_forward.15} parent=39 // pred_check_branch
        %1074 = sbr.rel (%p1072) target = $region48
      $region47: #{murenn_direct_forward.15} parent=39 // pred_region
        _
      $region48: #{murenn_direct_forward.15} parent=39 // pred_fallthru
        _
    $region40: #{murenn_direct_forward.15} parent=5 // pred_fallthru
      _
    %p1075 = scmp.le.s32.totalorder 2, %s13
    // Predicated region
    $region49: #{murenn_direct_forward.15} parent=5 // pred_check
      %p1076 = pneg %p1075
    $region50: #{murenn_direct_forward.15} parent=5 // pred_check_branch
      %1078 = sbr.rel (%p1076) target = $region52
    $region51: #{murenn_direct_forward.15} parent=5 // pred_region
      %s1079 = ssub.s32 %s13, 2
      // Predicated region
      $region53: #{murenn_direct_forward.15} parent=51 // pred_check
        %p1080 = pneg %p167
      $region54: #{murenn_direct_forward.15} parent=51 // pred_check_branch
        %1082 = sbr.rel (%p1080) target = $region56
      $region55: #{murenn_direct_forward.15} parent=51 // pred_region
        %p1083 = scmp.lt.s32.totalorder %s19, 1
        %s1084 = scalar_select %p1083, %s19, 1
        %s1085 = smul.addr %s1084, 3
        %s1086 = smul.addr %s1085, 4
        %s1087 = scalar_lea.vmem %s5, %s1086
      $region56: #{murenn_direct_forward.15} parent=51 // pred_fallthru
        _
      // Predicated region
      $region57: #{murenn_direct_forward.15} parent=51 // pred_check
        %p1088 = pneg %p193
      $region58: #{murenn_direct_forward.15} parent=51 // pred_check_branch
        %1090 = sbr.rel (%p1088) target = $region60
      $region59: #{murenn_direct_forward.15} parent=51 // pred_region
        %p1091 = scmp.lt.s32.totalorder %s19, 1
        %s1092 = scalar_select %p1091, %s19, 1
        %s1093 = smul.addr %s1092, 3
        %s1094 = smul.addr %s1093, 4
        %s1095 = scalar_lea.vmem %s6, %s1094
      $region60: #{murenn_direct_forward.15} parent=51 // pred_fallthru
        _
    $region52: #{murenn_direct_forward.15} parent=5 // pred_fallthru
      _
  $region6: #{murenn_direct_forward.15} parent=0 // loop_footer
    %s17 = sadd.s32 1, %s13
  $region7: #{murenn_direct_forward.15} parent=0 // loop_footer_branch
    %12 = sbr.rel target = $region3
  $region8: #{murenn_direct_forward.15} parent=0 // loop_exit
    _

// kernel: murenn_direct_forward.17
$region0: #{murenn_direct_forward.17}
  #allocation0 [shape = 'u32[]', space=smem, size = 0x4, offset = 0x4, fixed_abs, tag = 'smem constant byte address 0x4 - core index']
  #allocation1 [shape = 'u32[144,128]{1,0:T(1,128)}', space=vmem, size = 0x12000, scoped, tag = 'internal scratch']
  #allocation2 [shape = 'f32[3,4,6]{2,1,0:T(4,128)}', space=vmem, size = 0x1800, scoped, tag = 'scratch operand']
  #allocation3 [shape = 'f32[3,4,6]{2,1,0:T(4,128)}', space=vmem, size = 0x1800, scoped, tag = 'scratch operand']
  %s0 = inlined_call_operand.vmem [shape: f32[2,4,7], index: 0, kind: input, shape index: {}]
  %s1 = inlined_call_operand.vmem [shape: f32[2,4,7], index: 1, kind: input, shape index: {}]
  %s2 = inlined_call_operand.vmem [shape: f32[2,4,7], index: 2, kind: input, shape index: {}]
  %s3 = inlined_call_operand.vmem [shape: f32[2,4,7], index: 3, kind: input, shape index: {}]
  %s4 = inlined_call_operand.vmem [shape: f32[3,4,7], index: 4, kind: input, shape index: {}]
  %s5 = inlined_call_operand.vmem [shape: f32[2,3,4,4], index: 5, kind: output, shape index: {0}]
  %s6 = inlined_call_operand.vmem [shape: f32[2,3,4,4], index: 6, kind: output, shape index: {1}]
  %7 = xla_tuple %s5, %s6
  %s8 = sld [smem:[#allocation0]]
  $region61: #{murenn_direct_forward.17} parent=0
    _
  %s10 = ssub.s32 1, %s8
  %s11 = scalar_select 0, %s10, %s8
  loop: start=0, step=1, limit=4
  $region2: #{murenn_direct_forward.17} parent=0 // loop_pre_header
    _
  $region3: #{murenn_direct_forward.17} parent=0 // loop_header
    %s13 = sphi 0, %s17
    %p14 = scmp.ge.s32.totalorder %s13, 4
    %s23 = sphi 0, %s25
    %s26 = sphi 0, %s23
    %s27 = sphi 0, %s26
    %s43 = sphi 0, %s27
    %s49 = sphi 0, %s51
    %s52 = sphi 0, %s49
    %s53 = sphi 0, %s52
    %s69 = sphi 0, %s53
    %s75 = sphi 0, %s77
    %s78 = sphi 0, %s75
    %s79 = sphi 0, %s78
    %s95 = sphi 0, %s79
    %s101 = sphi 0, %s103
    %s104 = sphi 0, %s101
    %s105 = sphi 0, %s104
    %s121 = sphi 0, %s105
    %s125 = sphi 0, %s125
    %s127 = sphi 0, %s125
    %s128 = sphi 0, %s127
    %s142 = sphi 0, %s128
    %s148 = sphi 0, %s150
    %s151 = sphi 0, %s148
    %s152 = sphi 0, %s151
    %s168 = sphi 0, %s152
    %s174 = sphi 0, %s176
    %s177 = sphi 0, %s174
    %s178 = sphi 0, %s177
    %s194 = sphi 0, %s178
  $region4: #{murenn_direct_forward.17} parent=0 // loop_header_branch
    %16 = sbr.rel (%p14) target = $region8
  $region5: #{murenn_direct_forward.17} parent=0 // loop_body
    %s18 = ssub.s32 %s13, 1
    %s19 = ssub.s32 %s13, 2
    %s20 = sadd.s32 %s13, 1
    %s21 = ssub.s32 %s13, %s20
    %p22 = scmp.eq.s32.totalorder %s21, 0
    %s24 = sadd.s32 %s23, 1
    %s25 = scalar_select %p22, %s23, %s24
    %p28 = pneg %p22
    %p29 = scmp.eq.s32.totalorder %s13, 1
    %p30 = por %p28, %p29
    %p31 = scmp.ne.s32.totalorder %s23, %s26
    %p32 = scmp.eq.s32.totalorder %s13, 0
    %p33 = por %p31, %p32
    %p34 = scmp.ne.s32.totalorder %s23, %s26
    %p35 = scmp.eq.s32.totalorder %s18, 1
    %p36 = por %p34, %p35
    %p37 = scmp.ne.s32.totalorder %s26, %s27
    %p38 = scmp.eq.s32.totalorder %s18, 0
    %p39 = por %p37, %p38
    %p40 = scmp.ne.s32.totalorder %s26, %s27
    %p41 = scmp.eq.s32.totalorder %s19, 1
    %p42 = por %p40, %p41
    %p44 = scmp.ne.s32.totalorder %s27, %s43
    %p45 = scmp.eq.s32.totalorder %s19, 0
    %p46 = por %p44, %p45
    %s47 = ssub.s32 %s13, %s20
    %p48 = scmp.eq.s32.totalorder %s47, 0
    %s50 = sadd.s32 %s49, 1
    %s51 = scalar_select %p48, %s49, %s50
    %p54 = pneg %p48
    %p55 = scmp.eq.s32.totalorder %s13, 1
    %p56 = por %p54, %p55
    %p57 = scmp.ne.s32.totalorder %s49, %s52
    %p58 = scmp.eq.s32.totalorder %s13, 0
    %p59 = por %p57, %p58
    %p60 = scmp.ne.s32.totalorder %s49, %s52
    %p61 = scmp.eq.s32.totalorder %s18, 1
    %p62 = por %p60, %p61
    %p63 = scmp.ne.s32.totalorder %s52, %s53
    %p64 = scmp.eq.s32.totalorder %s18, 0
    %p65 = por %p63, %p64
    %p66 = scmp.ne.s32.totalorder %s52, %s53
    %p67 = scmp.eq.s32.totalorder %s19, 1
    %p68 = por %p66, %p67
    %p70 = scmp.ne.s32.totalorder %s53, %s69
    %p71 = scmp.eq.s32.totalorder %s19, 0
    %p72 = por %p70, %p71
    %s73 = ssub.s32 %s13, %s20
    %p74 = scmp.eq.s32.totalorder %s73, 0
    %s76 = sadd.s32 %s75, 1
    %s77 = scalar_select %p74, %s75, %s76
    %p80 = pneg %p74
    %p81 = scmp.eq.s32.totalorder %s13, 1
    %p82 = por %p80, %p81
    %p83 = scmp.ne.s32.totalorder %s75, %s78
    %p84 = scmp.eq.s32.totalorder %s13, 0
    %p85 = por %p83, %p84
    %p86 = scmp.ne.s32.totalorder %s75, %s78
    %p87 = scmp.eq.s32.totalorder %s18, 1
    %p88 = por %p86, %p87
    %p89 = scmp.ne.s32.totalorder %s78, %s79
    %p90 = scmp.eq.s32.totalorder %s18, 0
    %p91 = por %p89, %p90
    %p92 = scmp.ne.s32.totalorder %s78, %s79
    %p93 = scmp.eq.s32.totalorder %s19, 1
    %p94 = por %p92, %p93
    %p96 = scmp.ne.s32.totalorder %s79, %s95
    %p97 = scmp.eq.s32.totalorder %s19, 0
    %p98 = por %p96, %p97
    %s99 = ssub.s32 %s13, %s20
    %p100 = scmp.eq.s32.totalorder %s99, 0
    %s102 = sadd.s32 %s101, 1
    %s103 = scalar_select %p100, %s101, %s102
    %p106 = pneg %p100
    %p107 = scmp.eq.s32.totalorder %s13, 1
    %p108 = por %p106, %p107
    %p109 = scmp.ne.s32.totalorder %s101, %s104
    %p110 = scmp.eq.s32.totalorder %s13, 0
    %p111 = por %p109, %p110
    %p112 = scmp.ne.s32.totalorder %s101, %s104
    %p113 = scmp.eq.s32.totalorder %s18, 1
    %p114 = por %p112, %p113
    %p115 = scmp.ne.s32.totalorder %s104, %s105
    %p116 = scmp.eq.s32.totalorder %s18, 0
    %p117 = por %p115, %p116
    %p118 = scmp.ne.s32.totalorder %s104, %s105
    %p119 = scmp.eq.s32.totalorder %s19, 1
    %p120 = por %p118, %p119
    %p122 = scmp.ne.s32.totalorder %s105, %s121
    %p123 = scmp.eq.s32.totalorder %s19, 0
    %p124 = por %p122, %p123
    %s126 = sadd.s32 %s125, 1
    %p129 = scmp.eq.s32.totalorder %s13, 1
    %p130 = scmp.ne.s32.totalorder %s125, %s127
    %p131 = scmp.eq.s32.totalorder %s13, 0
    %p132 = por %p130, %p131
    %p133 = scmp.ne.s32.totalorder %s125, %s127
    %p134 = scmp.eq.s32.totalorder %s18, 1
    %p135 = por %p133, %p134
    %p136 = scmp.ne.s32.totalorder %s127, %s128
    %p137 = scmp.eq.s32.totalorder %s18, 0
    %p138 = por %p136, %p137
    %p139 = scmp.ne.s32.totalorder %s127, %s128
    %p140 = scmp.eq.s32.totalorder %s19, 1
    %p141 = por %p139, %p140
    %p143 = scmp.ne.s32.totalorder %s128, %s142
    %p144 = scmp.eq.s32.totalorder %s19, 0
    %p145 = por %p143, %p144
    %s146 = ssub.s32 %s13, %s20
    %p147 = scmp.eq.s32.totalorder %s146, 0
    %s149 = sadd.s32 %s148, 1
    %s150 = scalar_select %p147, %s148, %s149
    %p153 = pneg %p147
    %p154 = scmp.eq.s32.totalorder %s13, 1
    %p155 = por %p153, %p154
    %p156 = scmp.ne.s32.totalorder %s148, %s151
    %p157 = scmp.eq.s32.totalorder %s13, 0
    %p158 = por %p156, %p157
    %p159 = scmp.ne.s32.totalorder %s148, %s151
    %p160 = scmp.eq.s32.totalorder %s18, 1
    %p161 = por %p159, %p160
    %p162 = scmp.ne.s32.totalorder %s151, %s152
    %p163 = scmp.eq.s32.totalorder %s18, 0
    %p164 = por %p162, %p163
    %p165 = scmp.ne.s32.totalorder %s151, %s152
    %p166 = scmp.eq.s32.totalorder %s19, 1
    %p167 = por %p165, %p166
    %p169 = scmp.ne.s32.totalorder %s152, %s168
    %p170 = scmp.eq.s32.totalorder %s19, 0
    %p171 = por %p169, %p170
    %s172 = ssub.s32 %s13, %s20
    %p173 = scmp.eq.s32.totalorder %s172, 0
    %s175 = sadd.s32 %s174, 1
    %s176 = scalar_select %p173, %s174, %s175
    %p179 = pneg %p173
    %p180 = scmp.eq.s32.totalorder %s13, 1
    %p181 = por %p179, %p180
    %p182 = scmp.ne.s32.totalorder %s174, %s177
    %p183 = scmp.eq.s32.totalorder %s13, 0
    %p184 = por %p182, %p183
    %p185 = scmp.ne.s32.totalorder %s174, %s177
    %p186 = scmp.eq.s32.totalorder %s18, 1
    %p187 = por %p185, %p186
    %p188 = scmp.ne.s32.totalorder %s177, %s178
    %p189 = scmp.eq.s32.totalorder %s18, 0
    %p190 = por %p188, %p189
    %p191 = scmp.ne.s32.totalorder %s177, %s178
    %p192 = scmp.eq.s32.totalorder %s19, 1
    %p193 = por %p191, %p192
    %p195 = scmp.ne.s32.totalorder %s178, %s194
    %p196 = scmp.eq.s32.totalorder %s19, 0
    %p197 = por %p195, %p196
    %p198 = scmp.le.s32.totalorder 1, %s13
    %p199 = scmp.lt.s32.totalorder %s13, 3
    %p200 = pnand %p198, %p199
    %p201 = pneg %p200
    // Predicated region
    $region9: #{murenn_direct_forward.17} parent=5 // pred_check
      _
    $region10: #{murenn_direct_forward.17} parent=5 // pred_check_branch
      %203 = sbr.rel (%p200) target = $region12
    $region11: #{murenn_direct_forward.17} parent=5 // pred_region
      %s204 = ssub.s32 %s13, 1
      // Predicated region
      $region13: #{murenn_direct_forward.17} parent=11 // pred_check
        %p205 = pneg %p138
      $region14: #{murenn_direct_forward.17} parent=11 // pred_check_branch
        %207 = sbr.rel (%p205) target = $region16
      $region15: #{murenn_direct_forward.17} parent=11 // pred_region
        _
      $region16: #{murenn_direct_forward.17} parent=11 // pred_fallthru
        _
    $region12: #{murenn_direct_forward.17} parent=5 // pred_fallthru
      _
    %p208 = scmp.lt.s32.totalorder %s13, 2
    // Predicated region
    $region17: #{murenn_direct_forward.17} parent=5 // pred_check
      %p209 = pneg %p208
    $region18: #{murenn_direct_forward.17} parent=5 // pred_check_branch
      %211 = sbr.rel (%p209) target = $region20
    $region19: #{murenn_direct_forward.17} parent=5 // pred_region
      // Predicated region
      $region21: #{murenn_direct_forward.17} parent=19 // pred_check
        %p212 = pneg %p33
      $region22: #{murenn_direct_forward.17} parent=19 // pred_check_branch
        %214 = sbr.rel (%p212) target = $region24
      $region23: #{murenn_direct_forward.17} parent=19 // pred_region
        %p215 = scmp.lt.s32.totalorder %s13, 1
        %s216 = scalar_select %p215, %s13, 1
        %s217 = smul.addr %s216, 4
        %s218 = scalar_lea.vmem %s0, %s217
      $region24: #{murenn_direct_forward.17} parent=19 // pred_fallthru
        _
      // Predicated region
      $region25: #{murenn_direct_forward.17} parent=19 // pred_check
        %p219 = pneg %p59
      $region26: #{murenn_direct_forward.17} parent=19 // pred_check_branch
        %221 = sbr.rel (%p219) target = $region28
      $region27: #{murenn_direct_forward.17} parent=19 // pred_region
        %p222 = scmp.lt.s32.totalorder %s13, 1
        %s223 = scalar_select %p222, %s13, 1
        %s224 = smul.addr %s223, 4
        %s225 = scalar_lea.vmem %s1, %s224
      $region28: #{murenn_direct_forward.17} parent=19 // pred_fallthru
        _
      // Predicated region
      $region29: #{murenn_direct_forward.17} parent=19 // pred_check
        %p226 = pneg %p85
      $region30: #{murenn_direct_forward.17} parent=19 // pred_check_branch
        %228 = sbr.rel (%p226) target = $region32
      $region31: #{murenn_direct_forward.17} parent=19 // pred_region
        %p229 = scmp.lt.s32.totalorder %s13, 1
        %s230 = scalar_select %p229, %s13, 1
        %s231 = smul.addr %s230, 4
        %s232 = scalar_lea.vmem %s2, %s231
      $region32: #{murenn_direct_forward.17} parent=19 // pred_fallthru
        _
      // Predicated region
      $region33: #{murenn_direct_forward.17} parent=19 // pred_check
        %p233 = pneg %p111
      $region34: #{murenn_direct_forward.17} parent=19 // pred_check_branch
        %235 = sbr.rel (%p233) target = $region36
      $region35: #{murenn_direct_forward.17} parent=19 // pred_region
        %p236 = scmp.lt.s32.totalorder %s13, 1
        %s237 = scalar_select %p236, %s13, 1
        %s238 = smul.addr %s237, 4
        %s239 = scalar_lea.vmem %s3, %s238
      $region36: #{murenn_direct_forward.17} parent=19 // pred_fallthru
        _
    $region20: #{murenn_direct_forward.17} parent=5 // pred_fallthru
      _
    %p240 = scmp.le.s32.totalorder 1, %s13
    %p241 = scmp.lt.s32.totalorder %s13, 3
    %p242 = pnand %p240, %p241
    %p243 = pneg %p242
    // Predicated region
    $region37: #{murenn_direct_forward.17} parent=5 // pred_check
      _
    $region38: #{murenn_direct_forward.17} parent=5 // pred_check_branch
      %245 = sbr.rel (%p242) target = $region40
    $region39: #{murenn_direct_forward.17} parent=5 // pred_region
      %s246 = ssub.s32 %s13, 1
      %p247 = scmp.lt.s32.totalorder %s18, 1
      %s248 = scalar_select %p247, %s18, 1
      %s249 = smul.addr %s248, 4
      %s250 = scalar_lea.vmem %s0, %s249
      %p251 = pneg %p39
      %p252 = pneg %p36
      %p253 = scmp.lt.s32.totalorder %s18, 1
      %s254 = scalar_select %p253, %s18, 1
      %s255 = smul.addr %s254, 4
      %s256 = scalar_lea.vmem %s1, %s255
      %p257 = pneg %p65
      %p258 = pneg %p62
      %p259 = scmp.lt.s32.totalorder %s18, 1
      %s260 = scalar_select %p259, %s18, 1
      %s261 = smul.addr %s260, 4
      %s262 = scalar_lea.vmem %s2, %s261
      %p263 = pneg %p91
      %p264 = pneg %p88
      %p265 = scmp.lt.s32.totalorder %s18, 1
      %s266 = scalar_select %p265, %s18, 1
      %s267 = smul.addr %s266, 4
      %s268 = scalar_lea.vmem %s3, %s267
      %p269 = pneg %p117
      %p270 = pneg %p114
      %p271 = pneg %p138
      %p272 = pneg %p135
      %p273 = pneg %p164
      %p274 = pneg %p161
      %p275 = scmp.lt.s32.totalorder %s18, 1
      %s276 = scalar_select %p275, %s18, 1
      %s277 = smul.addr %s276, 3
      %s278 = smul.addr %s277, 4
      %s279 = scalar_lea.vmem %s5, %s278
      %p280 = pneg %p190
      %p281 = pneg %p187
      %p282 = scmp.lt.s32.totalorder %s18, 1
      %s283 = scalar_select %p282, %s18, 1
      %s284 = smul.addr %s283, 3
      %s285 = smul.addr %s284, 4
      %s286 = scalar_lea.vmem %s6, %s285
      %p287 = scmp.lt.s32.totalorder %s18, 1
      %s288 = scalar_select %p287, %s18, 1
      %s289 = smul.addr %s288, 4
      %s290 = scalar_lea.vmem %s0, %s289
      %p291 = scmp.lt.s32.totalorder %s18, 1
      %s292 = scalar_select %p291, %s18, 1
      %s293 = smul.addr %s292, 4
      %s294 = scalar_lea.vmem %s1, %s293
      %p295 = scmp.lt.s32.totalorder %s18, 1
      %s296 = scalar_select %p295, %s18, 1
      %s297 = smul.addr %s296, 4
      %s298 = scalar_lea.vmem %s2, %s297
      %p299 = scmp.lt.s32.totalorder %s18, 1
      %s300 = scalar_select %p299, %s18, 1
      %s301 = smul.addr %s300, 4
      %s302 = scalar_lea.vmem %s3, %s301
      %p303 = scmp.lt.s32.totalorder %s18, 1
      %s304 = scalar_select %p303, %s18, 1
      %s305 = smul.addr %s304, 3
      %s306 = smul.addr %s305, 4
      %s307 = scalar_lea.vmem %s5, %s306
      %p308 = scmp.lt.s32.totalorder %s18, 1
      %s309 = scalar_select %p308, %s18, 1
      %s310 = smul.addr %s309, 3
      %s311 = smul.addr %s310, 4
      %s312 = scalar_lea.vmem %s6, %s311
      %v313 = vld [vmem:[%s4] sm:$0xf]
      %v314 = vld [vmem:[%s4 + $0x4] sm:$0xf]
      %v315 = vld [vmem:[%s4 + $0x8] sm:$0xf]
      %v316 = vld [vmem:[%s290] sm:$0xf]
      %318 = vset.pattern.permute.xlu0 0
      %319 = vperm.xlu0 %318, %v313
      %v320 = vpop.permute.xlu0 %319
      %323 = vset.pattern.permute.xlu0 0
      %324 = vperm.xlu0 %323, %v314
      %v325 = vpop.permute.xlu0 %324
      %328 = vset.pattern.permute.xlu0 0
      %329 = vperm.xlu0 %328, %v315
      %v330 = vpop.permute.xlu0 %329
      %v332 = vmul.f32 %v320, %v316
      %v333 = vmul.f32 %v325, %v316
      %v334 = vmul.f32 %v330, %v316
      %v335 = vadd.f32 %v332, 0.0
      %v336 = vadd.f32 %v333, 0.0
      %v337 = vadd.f32 %v334, 0.0
      %v338 = vld [vmem:[%s298] sm:$0xf]
      %v339 = vmul.f32 %v320, %v338
      %v340 = vmul.f32 %v325, %v338
      %v341 = vmul.f32 %v330, %v338
      %v342 = vadd.f32 %v339, 0.0
      %v343 = vadd.f32 %v340, 0.0
      %v344 = vadd.f32 %v341, 0.0
      %v345 = vld [vmem:[%s294] sm:$0xf]
      %v346 = vmul.f32 %v320, %v345
      %v347 = vmul.f32 %v325, %v345
      %v348 = vmul.f32 %v330, %v345
      %v349 = vadd.f32 %v346, 0.0
      %v350 = vadd.f32 %v347, 0.0
      %v351 = vadd.f32 %v348, 0.0
      %v352 = vld [vmem:[%s302] sm:$0xf]
      %v353 = vmul.f32 %v320, %v352
      %v354 = vmul.f32 %v325, %v352
      %v355 = vmul.f32 %v330, %v352
      %v356 = vadd.f32 %v353, 0.0
      %v357 = vadd.f32 %v354, 0.0
      %v358 = vadd.f32 %v355, 0.0
      %359 = vset.pattern.permute.xlu0 1
      %360 = vperm.xlu0 %359, %v313
      %v361 = vpop.permute.xlu0 %360
      %363 = vset.pattern.permute.xlu0 1
      %364 = vperm.xlu0 %363, %v314
      %v365 = vpop.permute.xlu0 %364
      %367 = vset.pattern.permute.xlu0 1
      %368 = vperm.xlu0 %367, %v315
      %v369 = vpop.permute.xlu0 %368
      %v371 = vmul.f32 %v361, %v345
      %v372 = vmul.f32 %v365, %v345
      %v373 = vmul.f32 %v369, %v345
      %v374 = vadd.f32 %v335, %v371
      %v375 = vadd.f32 %v336, %v372
      %v376 = vadd.f32 %v337, %v373
      %v377 = vmul.f32 %v361, %v352
      %v378 = vmul.f32 %v365, %v352
      %v379 = vmul.f32 %v369, %v352
      %v380 = vadd.f32 %v342, %v377
      %v381 = vadd.f32 %v343, %v378
      %v382 = vadd.f32 %v344, %v379
      %v383 = vmul.f32 %v361, %v316
      %v384 = vmul.f32 %v365, %v316
      %v385 = vmul.f32 %v369, %v316
      %389 = vrot.lane.b32.xlu0 %v383, 127
      %v390 = vpop.permute.xlu0 %389
      %391 = vrot.lane.b32.xlu0 %v384, 127
      %v392 = vpop.permute.xlu0 %391
      %393 = vrot.lane.b32.xlu0 %v385, 127
      %v394 = vpop.permute.xlu0 %393
      %v398 = vadd.f32 %v349, %v390
      %v399 = vadd.f32 %v350, %v392
      %v400 = vadd.f32 %v351, %v394
      %v401 = vmul.f32 %v361, %v338
      %v402 = vmul.f32 %v365, %v338
      %v403 = vmul.f32 %v369, %v338
      %407 = vrot.lane.b32.xlu0 %v401, 127
      %v408 = vpop.permute.xlu0 %407
      %409 = vrot.lane.b32.xlu0 %v402, 127
      %v410 = vpop.permute.xlu0 %409
      %411 = vrot.lane.b32.xlu0 %v403, 127
      %v412 = vpop.permute.xlu0 %411
      %v416 = vadd.f32 %v356, %v408
      %v417 = vadd.f32 %v357, %v410
      %v418 = vadd.f32 %v358, %v412
      %419 = vset.pattern.permute.xlu0 2
      %420 = vperm.xlu0 %419, %v313
      %v421 = vpop.permute.xlu0 %420
      %423 = vset.pattern.permute.xlu0 2
      %424 = vperm.xlu0 %423, %v314
      %v425 = vpop.permute.xlu0 %424
      %427 = vset.pattern.permute.xlu0 2
      %428 = vperm.xlu0 %427, %v315
      %v429 = vpop.permute.xlu0 %428
      %v431 = vmul.f32 %v421, %v316
      %v432 = vmul.f32 %v425, %v316
      %v433 = vmul.f32 %v429, %v316
      %437 = vrot.lane.b32.xlu0 %v431, 127
      %v438 = vpop.permute.xlu0 %437
      %439 = vrot.lane.b32.xlu0 %v432, 127
      %v440 = vpop.permute.xlu0 %439
      %441 = vrot.lane.b32.xlu0 %v433, 127
      %v442 = vpop.permute.xlu0 %441
      %v446 = vadd.f32 %v374, %v438
      %v447 = vadd.f32 %v375, %v440
      %v448 = vadd.f32 %v376, %v442
      %v449 = vmul.f32 %v421, %v338
      %v450 = vmul.f32 %v425, %v338
      %v451 = vmul.f32 %v429, %v338
      %455 = vrot.lane.b32.xlu0 %v449, 127
      %v456 = vpop.permute.xlu0 %455
      %457 = vrot.lane.b32.xlu0 %v450, 127
      %v458 = vpop.permute.xlu0 %457
      %459 = vrot.lane.b32.xlu0 %v451, 127
      %v460 = vpop.permute.xlu0 %459
      %v464 = vadd.f32 %v380, %v456
      %v465 = vadd.f32 %v381, %v458
      %v466 = vadd.f32 %v382, %v460
      %v467 = vmul.f32 %v421, %v345
      %v468 = vmul.f32 %v425, %v345
      %v469 = vmul.f32 %v429, %v345
      %473 = vrot.lane.b32.xlu0 %v467, 127
      %v474 = vpop.permute.xlu0 %473
      %475 = vrot.lane.b32.xlu0 %v468, 127
      %v476 = vpop.permute.xlu0 %475
      %477 = vrot.lane.b32.xlu0 %v469, 127
      %v478 = vpop.permute.xlu0 %477
      %v482 = vadd.f32 %v398, %v474
      %v483 = vadd.f32 %v399, %v476
      %v484 = vadd.f32 %v400, %v478
      %v485 = vmul.f32 %v421, %v352
      %v486 = vmul.f32 %v425, %v352
      %v487 = vmul.f32 %v429, %v352
      %491 = vrot.lane.b32.xlu0 %v485, 127
      %v492 = vpop.permute.xlu0 %491
      %493 = vrot.lane.b32.xlu0 %v486, 127
      %v494 = vpop.permute.xlu0 %493
      %495 = vrot.lane.b32.xlu0 %v487, 127
      %v496 = vpop.permute.xlu0 %495
      %v500 = vadd.f32 %v416, %v492
      %v501 = vadd.f32 %v417, %v494
      %v502 = vadd.f32 %v418, %v496
      %503 = vset.pattern.permute.xlu0 3
      %504 = vperm.xlu0 %503, %v313
      %v505 = vpop.permute.xlu0 %504
      %507 = vset.pattern.permute.xlu0 3
      %508 = vperm.xlu0 %507, %v314
      %v509 = vpop.permute.xlu0 %508
      %511 = vset.pattern.permute.xlu0 3
      %512 = vperm.xlu0 %511, %v315
      %v513 = vpop.permute.xlu0 %512
      %v515 = vmul.f32 %v505, %v345
      %v516 = vmul.f32 %v509, %v345
      %v517 = vmul.f32 %v513, %v345
      %521 = vrot.lane.b32.xlu0 %v515, 127
      %v522 = vpop.permute.xlu0 %521
      %523 = vrot.lane.b32.xlu0 %v516, 127
      %v524 = vpop.permute.xlu0 %523
      %525 = vrot.lane.b32.xlu0 %v517, 127
      %v526 = vpop.permute.xlu0 %525
      %v530 = vadd.f32 %v446, %v522
      %v531 = vadd.f32 %v447, %v524
      %v532 = vadd.f32 %v448, %v526
      %v533 = vmul.f32 %v505, %v352
      %v534 = vmul.f32 %v509, %v352
      %v535 = vmul.f32 %v513, %v352
      %539 = vrot.lane.b32.xlu0 %v533, 127
      %v540 = vpop.permute.xlu0 %539
      %541 = vrot.lane.b32.xlu0 %v534, 127
      %v542 = vpop.permute.xlu0 %541
      %543 = vrot.lane.b32.xlu0 %v535, 127
      %v544 = vpop.permute.xlu0 %543
      %v548 = vadd.f32 %v464, %v540
      %v549 = vadd.f32 %v465, %v542
      %v550 = vadd.f32 %v466, %v544
      %v551 = vmul.f32 %v505, %v316
      %v552 = vmul.f32 %v509, %v316
      %v553 = vmul.f32 %v513, %v316
      %557 = vrot.lane.b32.xlu0 %v551, 126
      %v558 = vpop.permute.xlu0 %557
      %559 = vrot.lane.b32.xlu0 %v552, 126
      %v560 = vpop.permute.xlu0 %559
      %561 = vrot.lane.b32.xlu0 %v553, 126
      %v562 = vpop.permute.xlu0 %561
      %v566 = vadd.f32 %v482, %v558
      %v567 = vadd.f32 %v483, %v560
      %v568 = vadd.f32 %v484, %v562
      %v569 = vmul.f32 %v505, %v338
      %v570 = vmul.f32 %v509, %v338
      %v571 = vmul.f32 %v513, %v338
      %575 = vrot.lane.b32.xlu0 %v569, 126
      %v576 = vpop.permute.xlu0 %575
      %577 = vrot.lane.b32.xlu0 %v570, 126
      %v578 = vpop.permute.xlu0 %577
      %579 = vrot.lane.b32.xlu0 %v571, 126
      %v580 = vpop.permute.xlu0 %579
      %v584 = vadd.f32 %v500, %v576
      %v585 = vadd.f32 %v501, %v578
      %v586 = vadd.f32 %v502, %v580
      %587 = vset.pattern.permute.xlu0 4
      %588 = vperm.xlu0 %587, %v313
      %v589 = vpop.permute.xlu0 %588
      %591 = vset.pattern.permute.xlu0 4
      %592 = vperm.xlu0 %591, %v314
      %v593 = vpop.permute.xlu0 %592
      %595 = vset.pattern.permute.xlu0 4
      %596 = vperm.xlu0 %595, %v315
      %v597 = vpop.permute.xlu0 %596
      %v599 = vmul.f32 %v589, %v316
      %v600 = vmul.f32 %v593, %v316
      %v601 = vmul.f32 %v597, %v316
      %605 = vrot.lane.b32.xlu0 %v599, 126
      %v606 = vpop.permute.xlu0 %605
      %607 = vrot.lane.b32.xlu0 %v600, 126
      %v608 = vpop.permute.xlu0 %607
      %609 = vrot.lane.b32.xlu0 %v601, 126
      %v610 = vpop.permute.xlu0 %609
      %v614 = vadd.f32 %v530, %v606
      %v615 = vadd.f32 %v531, %v608
      %v616 = vadd.f32 %v532, %v610
      %v617 = vmul.f32 %v589, %v338
      %v618 = vmul.f32 %v593, %v338
      %v619 = vmul.f32 %v597, %v338
      %623 = vrot.lane.b32.xlu0 %v617, 126
      %v624 = vpop.permute.xlu0 %623
      %625 = vrot.lane.b32.xlu0 %v618, 126
      %v626 = vpop.permute.xlu0 %625
      %627 = vrot.lane.b32.xlu0 %v619, 126
      %v628 = vpop.permute.xlu0 %627
      %v632 = vadd.f32 %v548, %v624
      %v633 = vadd.f32 %v549, %v626
      %v634 = vadd.f32 %v550, %v628
      %v635 = vmul.f32 %v589, %v345
      %v636 = vmul.f32 %v593, %v345
      %v637 = vmul.f32 %v597, %v345
      %641 = vrot.lane.b32.xlu0 %v635, 126
      %v642 = vpop.permute.xlu0 %641
      %643 = vrot.lane.b32.xlu0 %v636, 126
      %v644 = vpop.permute.xlu0 %643
      %645 = vrot.lane.b32.xlu0 %v637, 126
      %v646 = vpop.permute.xlu0 %645
      %v650 = vadd.f32 %v566, %v642
      %v651 = vadd.f32 %v567, %v644
      %v652 = vadd.f32 %v568, %v646
      %v653 = vmul.f32 %v589, %v352
      %v654 = vmul.f32 %v593, %v352
      %v655 = vmul.f32 %v597, %v352
      %659 = vrot.lane.b32.xlu0 %v653, 126
      %v660 = vpop.permute.xlu0 %659
      %661 = vrot.lane.b32.xlu0 %v654, 126
      %v662 = vpop.permute.xlu0 %661
      %663 = vrot.lane.b32.xlu0 %v655, 126
      %v664 = vpop.permute.xlu0 %663
      %v668 = vadd.f32 %v584, %v660
      %v669 = vadd.f32 %v585, %v662
      %v670 = vadd.f32 %v586, %v664
      %671 = vset.pattern.permute.xlu0 5
      %672 = vperm.xlu0 %671, %v313
      %v673 = vpop.permute.xlu0 %672
      %675 = vset.pattern.permute.xlu0 5
      %676 = vperm.xlu0 %675, %v314
      %v677 = vpop.permute.xlu0 %676
      %679 = vset.pattern.permute.xlu0 5
      %680 = vperm.xlu0 %679, %v315
      %v681 = vpop.permute.xlu0 %680
      %v683 = vmul.f32 %v673, %v345
      %v684 = vmul.f32 %v677, %v345
      %v685 = vmul.f32 %v681, %v345
      %689 = vrot.lane.b32.xlu0 %v683, 126
      %v690 = vpop.permute.xlu0 %689
      %691 = vrot.lane.b32.xlu0 %v684, 126
      %v692 = vpop.permute.xlu0 %691
      %693 = vrot.lane.b32.xlu0 %v685, 126
      %v694 = vpop.permute.xlu0 %693
      %v698 = vadd.f32 %v614, %v690
      %v699 = vadd.f32 %v615, %v692
      %v700 = vadd.f32 %v616, %v694
      %v701 = vmul.f32 %v673, %v352
      %v702 = vmul.f32 %v677, %v352
      %v703 = vmul.f32 %v681, %v352
      %707 = vrot.lane.b32.xlu0 %v701, 126
      %v708 = vpop.permute.xlu0 %707
      %709 = vrot.lane.b32.xlu0 %v702, 126
      %v710 = vpop.permute.xlu0 %709
      %711 = vrot.lane.b32.xlu0 %v703, 126
      %v712 = vpop.permute.xlu0 %711
      %v716 = vadd.f32 %v632, %v708
      %v717 = vadd.f32 %v633, %v710
      %v718 = vadd.f32 %v634, %v712
      %v719 = vmul.f32 %v673, %v316
      %v720 = vmul.f32 %v677, %v316
      %v721 = vmul.f32 %v681, %v316
      %725 = vrot.lane.b32.xlu0 %v719, 125
      %v726 = vpop.permute.xlu0 %725
      %727 = vrot.lane.b32.xlu0 %v720, 125
      %v728 = vpop.permute.xlu0 %727
      %729 = vrot.lane.b32.xlu0 %v721, 125
      %v730 = vpop.permute.xlu0 %729
      %v734 = vadd.f32 %v650, %v726
      %v735 = vadd.f32 %v651, %v728
      %v736 = vadd.f32 %v652, %v730
      %v737 = vmul.f32 %v673, %v338
      %v738 = vmul.f32 %v677, %v338
      %v739 = vmul.f32 %v681, %v338
      %743 = vrot.lane.b32.xlu0 %v737, 125
      %v744 = vpop.permute.xlu0 %743
      %745 = vrot.lane.b32.xlu0 %v738, 125
      %v746 = vpop.permute.xlu0 %745
      %747 = vrot.lane.b32.xlu0 %v739, 125
      %v748 = vpop.permute.xlu0 %747
      %v752 = vadd.f32 %v668, %v744
      %v753 = vadd.f32 %v669, %v746
      %v754 = vadd.f32 %v670, %v748
      %755 = vset.pattern.permute.xlu0 6
      %756 = vperm.xlu0 %755, %v313
      %v757 = vpop.permute.xlu0 %756
      %759 = vset.pattern.permute.xlu0 6
      %760 = vperm.xlu0 %759, %v314
      %v761 = vpop.permute.xlu0 %760
      %763 = vset.pattern.permute.xlu0 6
      %764 = vperm.xlu0 %763, %v315
      %v765 = vpop.permute.xlu0 %764
      %v767 = vmul.f32 %v757, %v316
      %v768 = vmul.f32 %v761, %v316
      %v769 = vmul.f32 %v765, %v316
      %773 = vrot.lane.b32.xlu0 %v767, 125
      %v774 = vpop.permute.xlu0 %773
      %775 = vrot.lane.b32.xlu0 %v768, 125
      %v776 = vpop.permute.xlu0 %775
      %777 = vrot.lane.b32.xlu0 %v769, 125
      %v778 = vpop.permute.xlu0 %777
      %v782 = vadd.f32 %v698, %v774
      %v783 = vadd.f32 %v699, %v776
      %v784 = vadd.f32 %v700, %v778
      %v785 = vmul.f32 %v757, %v338
      %v786 = vmul.f32 %v761, %v338
      %v787 = vmul.f32 %v765, %v338
      %791 = vrot.lane.b32.xlu0 %v785, 125
      %v792 = vpop.permute.xlu0 %791
      %793 = vrot.lane.b32.xlu0 %v786, 125
      %v794 = vpop.permute.xlu0 %793
      %795 = vrot.lane.b32.xlu0 %v787, 125
      %v796 = vpop.permute.xlu0 %795
      %v800 = vadd.f32 %v716, %v792
      %v801 = vadd.f32 %v717, %v794
      %v802 = vadd.f32 %v718, %v796
      %v803 = vmul.f32 %v757, %v345
      %v804 = vmul.f32 %v761, %v345
      %v805 = vmul.f32 %v765, %v345
      %809 = vrot.lane.b32.xlu0 %v803, 125
      %v810 = vpop.permute.xlu0 %809
      %811 = vrot.lane.b32.xlu0 %v804, 125
      %v812 = vpop.permute.xlu0 %811
      %813 = vrot.lane.b32.xlu0 %v805, 125
      %v814 = vpop.permute.xlu0 %813
      %v818 = vadd.f32 %v734, %v810
      %v819 = vadd.f32 %v735, %v812
      %v820 = vadd.f32 %v736, %v814
      %v821 = vmul.f32 %v757, %v352
      %v822 = vmul.f32 %v761, %v352
      %v823 = vmul.f32 %v765, %v352
      %827 = vrot.lane.b32.xlu0 %v821, 125
      %v828 = vpop.permute.xlu0 %827
      %829 = vrot.lane.b32.xlu0 %v822, 125
      %v830 = vpop.permute.xlu0 %829
      %831 = vrot.lane.b32.xlu0 %v823, 125
      %v832 = vpop.permute.xlu0 %831
      %v836 = vadd.f32 %v752, %v828
      %v837 = vadd.f32 %v753, %v830
      %v838 = vadd.f32 %v754, %v832
      %v839 = vmul.f32 %v782, %v782
      %v840 = vmul.f32 %v783, %v783
      %v841 = vmul.f32 %v784, %v784
      %v842 = vmul.f32 %v800, %v800
      %v843 = vmul.f32 %v801, %v801
      %v844 = vmul.f32 %v802, %v802
      %v845 = vadd.f32 %v839, %v842
      %v846 = vadd.f32 %v840, %v843
      %v847 = vadd.f32 %v841, %v844
      %v848 = vrsqrt.pop %v845
      %v849 = vmul.f32 %v845, %v848
      %vm850 = vcmp.eq.f32.partialorder %v845, inf
      %v851 = vsel %vm850, %v845, %v849
      %vm852 = vcmp.eq.f32.partialorder %v845, 0.0
      %v853 = vand.u32 %v845, 2147483648
      %v854 = vsel %vm852, %v853, %v851
      %v855 = vrsqrt.pop %v846
      %v856 = vmul.f32 %v846, %v855
      %vm857 = vcmp.eq.f32.partialorder %v846, inf
      %v858 = vsel %vm857, %v846, %v856
      %vm859 = vcmp.eq.f32.partialorder %v846, 0.0
      %v860 = vand.u32 %v846, 2147483648
      %v861 = vsel %vm859, %v860, %v858
      %v862 = vrsqrt.pop %v847
      %v863 = vmul.f32 %v847, %v862
      %vm864 = vcmp.eq.f32.partialorder %v847, inf
      %v865 = vsel %vm864, %v847, %v863
      %vm866 = vcmp.eq.f32.partialorder %v847, 0.0
      %v867 = vand.u32 %v847, 2147483648
      %v868 = vsel %vm866, %v867, %v865
      %v869 = vmul.f32 %v818, %v818
      %v870 = vmul.f32 %v819, %v819
      %v871 = vmul.f32 %v820, %v820
      %v872 = vmul.f32 %v836, %v836
      %v873 = vmul.f32 %v837, %v837
      %v874 = vmul.f32 %v838, %v838
      %v875 = vadd.f32 %v869, %v872
      %v876 = vadd.f32 %v870, %v873
      %v877 = vadd.f32 %v871, %v874
      %v878 = vrsqrt.pop %v875
      %v879 = vmul.f32 %v875, %v878
      %vm880 = vcmp.eq.f32.partialorder %v875, inf
      %v881 = vsel %vm880, %v875, %v879
      %vm882 = vcmp.eq.f32.partialorder %v875, 0.0
      %v883 = vand.u32 %v875, 2147483648
      %v884 = vsel %vm882, %v883, %v881
      %v885 = vrsqrt.pop %v876
      %v886 = vmul.f32 %v876, %v885
      %vm887 = vcmp.eq.f32.partialorder %v876, inf
      %v888 = vsel %vm887, %v876, %v886
      %vm889 = vcmp.eq.f32.partialorder %v876, 0.0
      %v890 = vand.u32 %v876, 2147483648
      %v891 = vsel %vm889, %v890, %v888
      %v892 = vrsqrt.pop %v877
      %v893 = vmul.f32 %v877, %v892
      %vm894 = vcmp.eq.f32.partialorder %v877, inf
      %v895 = vsel %vm894, %v877, %v893
      %vm896 = vcmp.eq.f32.partialorder %v877, 0.0
      %v897 = vand.u32 %v877, 2147483648
      %v898 = vsel %vm896, %v897, %v895
      %902 = vrot.lane.b32.xlu0 %v854, 1
      %v903 = vpop.permute.xlu0 %902
      %904 = vrot.lane.b32.xlu0 %v861, 1
      %v905 = vpop.permute.xlu0 %904
      %906 = vrot.lane.b32.xlu0 %v868, 1
      %v907 = vpop.permute.xlu0 %906
      %vm911 = vcmask 35848
      %912 = vst.msk [vmem:[#allocation2] sm:$0xf] %vm911, %v903
      %913 = vst.msk [vmem:[#allocation2 + $0x4] sm:$0xf] %vm911, %v905
      %914 = vst.msk [vmem:[#allocation2 + $0x8] sm:$0xf] %vm911, %v907
      %918 = vrot.lane.b32.xlu0 %v884, 1
      %v919 = vpop.permute.xlu0 %918
      %920 = vrot.lane.b32.xlu0 %v891, 1
      %v921 = vpop.permute.xlu0 %920
      %922 = vrot.lane.b32.xlu0 %v898, 1
      %v923 = vpop.permute.xlu0 %922
      %927 = vst.msk [vmem:[#allocation3] sm:$0xf] %vm911, %v919
      %928 = vst.msk [vmem:[#allocation3 + $0x4] sm:$0xf] %vm911, %v921
      %929 = vst.msk [vmem:[#allocation3 + $0x8] sm:$0xf] %vm911, %v923
      %vm930 = vcmask 3072
      %931 = vst.msk [vmem:[#allocation2] sm:$0xf] %vm930, %v884
      %932 = vst.msk [vmem:[#allocation2 + $0x4] sm:$0xf] %vm930, %v891
      %933 = vst.msk [vmem:[#allocation2 + $0x8] sm:$0xf] %vm930, %v898
      %934 = vst.msk [vmem:[#allocation3] sm:$0xf] %vm930, %v854
      %935 = vst.msk [vmem:[#allocation3 + $0x4] sm:$0xf] %vm930, %v861
      %936 = vst.msk [vmem:[#allocation3 + $0x8] sm:$0xf] %vm930, %v868
      %937 = vrot.lane.b32.xlu0 %v884, 2
      %v938 = vpop.permute.xlu0 %937
      %939 = vrot.lane.b32.xlu0 %v891, 2
      %v940 = vpop.permute.xlu0 %939
      %941 = vrot.lane.b32.xlu0 %v898, 2
      %v942 = vpop.permute.xlu0 %941
      %vm946 = vcmask 44072
      %947 = vst.msk [vmem:[#allocation2] sm:$0xf] %vm946, %v938
      %948 = vst.msk [vmem:[#allocation2 + $0x4] sm:$0xf] %vm946, %v940
      %949 = vst.msk [vmem:[#allocation2 + $0x8] sm:$0xf] %vm946, %v942
      %950 = vrot.lane.b32.xlu0 %v854, 2
      %v951 = vpop.permute.xlu0 %950
      %952 = vrot.lane.b32.xlu0 %v861, 2
      %v953 = vpop.permute.xlu0 %952
      %954 = vrot.lane.b32.xlu0 %v868, 2
      %v955 = vpop.permute.xlu0 %954
      %959 = vst.msk [vmem:[#allocation3] sm:$0xf] %vm946, %v951
      %960 = vst.msk [vmem:[#allocation3 + $0x4] sm:$0xf] %vm946, %v953
      %961 = vst.msk [vmem:[#allocation3 + $0x8] sm:$0xf] %vm946, %v955
      %v962 = vld [vmem:[#allocation2] sm:$0xf]
      %v963 = vld [vmem:[#allocation2 + $0x4] sm:$0xf]
      %v964 = vld [vmem:[#allocation2 + $0x8] sm:$0xf]
      %v965 = vld [vmem:[#allocation3] sm:$0xf]
      %v966 = vld [vmem:[#allocation3 + $0x4] sm:$0xf]
      %v967 = vld [vmem:[#allocation3 + $0x8] sm:$0xf]
      %v968 = vmul.f32 %v962, -0.05
      %v969 = vmul.f32 %v963, -0.05
      %v970 = vmul.f32 %v964, -0.05
      %v971 = vmul.f32 %v965, 0.25
      %v972 = vmul.f32 %v966, 0.25
      %v973 = vmul.f32 %v967, 0.25
      %v974 = vadd.f32 %v968, %v971
      %v975 = vadd.f32 %v969, %v972
      %v976 = vadd.f32 %v970, %v973
      %v977 = vmul.f32 %v854, 0.6
      %v978 = vmul.f32 %v861, 0.6
      %v979 = vmul.f32 %v868, 0.6
      %v980 = vadd.f32 %v974, %v977
      %v981 = vadd.f32 %v975, %v978
      %v982 = vadd.f32 %v976, %v979
      %v983 = vmul.f32 %v884, 0.25
      %v984 = vmul.f32 %v891, 0.25
      %v985 = vmul.f32 %v898, 0.25
      %v986 = vadd.f32 %v980, %v983
      %v987 = vadd.f32 %v981, %v984
      %v988 = vadd.f32 %v982, %v985
      %992 = vrot.lane.b32.xlu0 %v968, 126
      %v993 = vpop.permute.xlu0 %992
      %994 = vrot.lane.b32.xlu0 %v969, 126
      %v995 = vpop.permute.xlu0 %994
      %996 = vrot.lane.b32.xlu0 %v970, 126
      %v997 = vpop.permute.xlu0 %996
      %v1001 = vadd.f32 %v986, %v993
      %v1002 = vadd.f32 %v987, %v995
      %v1003 = vadd.f32 %v988, %v997
      %vm1004 = vcmask 27648
      %1005 = vst.msk [vmem:[%s307] sm:$0xf] %vm1004, %v1001
      %1006 = vst.msk [vmem:[%s307 + $0x4] sm:$0xf] %vm1004, %v1002
      %1007 = vst.msk [vmem:[%s307 + $0x8] sm:$0xf] %vm1004, %v1003
      %v1008 = vmul.f32 %v965, -0.05
      %v1009 = vmul.f32 %v966, -0.05
      %v1010 = vmul.f32 %v967, -0.05
      %v1011 = vmul.f32 %v854, 0.25
      %v1012 = vmul.f32 %v861, 0.25
      %v1013 = vmul.f32 %v868, 0.25
      %v1014 = vadd.f32 %v1008, %v1011
      %v1015 = vadd.f32 %v1009, %v1012
      %v1016 = vadd.f32 %v1010, %v1013
      %v1017 = vmul.f32 %v884, 0.6
      %v1018 = vmul.f32 %v891, 0.6
      %v1019 = vmul.f32 %v898, 0.6
      %v1020 = vadd.f32 %v1014, %v1017
      %v1021 = vadd.f32 %v1015, %v1018
      %v1022 = vadd.f32 %v1016, %v1019
      %v1023 = vmul.f32 %v962, 0.25
      %v1024 = vmul.f32 %v963, 0.25
      %v1025 = vmul.f32 %v964, 0.25
      %1029 = vrot.lane.b32.xlu0 %v1023, 126
      %v1030 = vpop.permute.xlu0 %1029
      %1031 = vrot.lane.b32.xlu0 %v1024, 126
      %v1032 = vpop.permute.xlu0 %1031
      %1033 = vrot.lane.b32.xlu0 %v1025, 126
      %v1034 = vpop.permute.xlu0 %1033
      %v1038 = vadd.f32 %v1020, %v1030
      %v1039 = vadd.f32 %v1021, %v1032
      %v1040 = vadd.f32 %v1022, %v1034
      %1044 = vrot.lane.b32.xlu0 %v1008, 126
      %v1045 = vpop.permute.xlu0 %1044
      %1046 = vrot.lane.b32.xlu0 %v1009, 126
      %v1047 = vpop.permute.xlu0 %1046
      %1048 = vrot.lane.b32.xlu0 %v1010, 126
      %v1049 = vpop.permute.xlu0 %1048
      %v1053 = vadd.f32 %v1038, %v1045
      %v1054 = vadd.f32 %v1039, %v1047
      %v1055 = vadd.f32 %v1040, %v1049
      %1056 = vst.msk [vmem:[%s312] sm:$0xf] %vm1004, %v1053
      %1057 = vst.msk [vmem:[%s312 + $0x4] sm:$0xf] %vm1004, %v1054
      %1058 = vst.msk [vmem:[%s312 + $0x8] sm:$0xf] %vm1004, %v1055
      %p1059 = scmp.lt.s32.totalorder %s18, 1
      %s1060 = scalar_select %p1059, %s18, 1
      %s1061 = smul.addr %s1060, 3
      %s1062 = smul.addr %s1061, 4
      %s1063 = scalar_lea.vmem %s5, %s1062
      %p1064 = scmp.lt.s32.totalorder %s18, 1
      %s1065 = scalar_select %p1064, %s18, 1
      %s1066 = smul.addr %s1065, 3
      %s1067 = smul.addr %s1066, 4
      %s1068 = scalar_lea.vmem %s6, %s1067
      // Predicated region
      $region41: #{murenn_direct_forward.17} parent=39 // pred_check
        %p1069 = pneg %p161
      $region42: #{murenn_direct_forward.17} parent=39 // pred_check_branch
        %1071 = sbr.rel (%p1069) target = $region44
      $region43: #{murenn_direct_forward.17} parent=39 // pred_region
        _
      $region44: #{murenn_direct_forward.17} parent=39 // pred_fallthru
        _
      // Predicated region
      $region45: #{murenn_direct_forward.17} parent=39 // pred_check
        %p1072 = pneg %p187
      $region46: #{murenn_direct_forward.17} parent=39 // pred_check_branch
        %1074 = sbr.rel (%p1072) target = $region48
      $region47: #{murenn_direct_forward.17} parent=39 // pred_region
        _
      $region48: #{murenn_direct_forward.17} parent=39 // pred_fallthru
        _
    $region40: #{murenn_direct_forward.17} parent=5 // pred_fallthru
      _
    %p1075 = scmp.le.s32.totalorder 2, %s13
    // Predicated region
    $region49: #{murenn_direct_forward.17} parent=5 // pred_check
      %p1076 = pneg %p1075
    $region50: #{murenn_direct_forward.17} parent=5 // pred_check_branch
      %1078 = sbr.rel (%p1076) target = $region52
    $region51: #{murenn_direct_forward.17} parent=5 // pred_region
      %s1079 = ssub.s32 %s13, 2
      // Predicated region
      $region53: #{murenn_direct_forward.17} parent=51 // pred_check
        %p1080 = pneg %p167
      $region54: #{murenn_direct_forward.17} parent=51 // pred_check_branch
        %1082 = sbr.rel (%p1080) target = $region56
      $region55: #{murenn_direct_forward.17} parent=51 // pred_region
        %p1083 = scmp.lt.s32.totalorder %s19, 1
        %s1084 = scalar_select %p1083, %s19, 1
        %s1085 = smul.addr %s1084, 3
        %s1086 = smul.addr %s1085, 4
        %s1087 = scalar_lea.vmem %s5, %s1086
      $region56: #{murenn_direct_forward.17} parent=51 // pred_fallthru
        _
      // Predicated region
      $region57: #{murenn_direct_forward.17} parent=51 // pred_check
        %p1088 = pneg %p193
      $region58: #{murenn_direct_forward.17} parent=51 // pred_check_branch
        %1090 = sbr.rel (%p1088) target = $region60
      $region59: #{murenn_direct_forward.17} parent=51 // pred_region
        %p1091 = scmp.lt.s32.totalorder %s19, 1
        %s1092 = scalar_select %p1091, %s19, 1
        %s1093 = smul.addr %s1092, 3
        %s1094 = smul.addr %s1093, 4
        %s1095 = scalar_lea.vmem %s6, %s1094
      $region60: #{murenn_direct_forward.17} parent=51 // pred_fallthru
        _
    $region52: #{murenn_direct_forward.17} parent=5 // pred_fallthru
      _
  $region6: #{murenn_direct_forward.17} parent=0 // loop_footer
    %s17 = sadd.s32 1, %s13
  $region7: #{murenn_direct_forward.17} parent=0 // loop_footer_branch
    %12 = sbr.rel target = $region3
  $region8: #{murenn_direct_forward.17} parent=0 // loop_exit
    _

</llo_original>
